<compile_context>
chip_gen: v7x
topology: tpu7x:2x2x1
jax: 0.10.0
libtpu: 0.0.40
codegen_flags: <defaults>
</compile_context>

<pallas_src>
import jax
import jax.numpy as jnp
from jax import lax
from jax.experimental import pallas as pl
from jax.experimental.pallas import tpu as pltpu


def _round_up(x, m):
    return (x + m - 1) // m * m


def _choose_tiling(sp):
    """Pick (sp_pad, tile): tile is a multiple of 128 that divides sp_pad.

    Keeps stores unmasked (lane-dense, 128-aligned) and bounds the per-tile
    accumulator / unroll count.  Small extents become a single fat tile.
    """
    sp_pad = _round_up(sp, 128)
    if sp_pad <= 2048:
        return sp_pad, sp_pad
    for ts in (2048, 1024, 512):
        if sp_pad % ts == 0:
            return sp_pad, ts
    # Awkward extent: pad a little further so tiles stay big and unroll bounded.
    sp_pad = _round_up(sp_pad, 1024)
    return sp_pad, 1024


def _make_kernel(tap_offsets, n_s, ts, cout):
    """Build the conv kernel with static tap offsets / tile layout baked in."""
    kt = len(tap_offsets)

    def kernel(x_ref, w_ref, b_ref, o_ref):
        # x_ref : (Cin, L)        padded, flattened input for one batch element
        # w_ref : (KT, Cout, Cin) pre-masked per-tap filter matrices
        # b_ref : (Cout, 1)       pre-masked bias
        # o_ref : (Cout, Sp_pad)  output on the padded spatial grid
        bias = b_ref[...].astype(jnp.float32)
        for si in range(n_s):                      # static unroll over spatial tiles
            base = si * ts                         # static, 128-aligned
            acc = jnp.zeros((cout, ts), dtype=jnp.float32)
            for t in range(kt):                    # static unroll over filter taps
                off = base + tap_offsets[t]        # static shifted window
                acc = acc + jnp.dot(w_ref[t], x_ref[:, off:off + ts],
                                    preferred_element_type=jnp.float32)
            o_ref[:, base:base + ts] = (acc + bias).astype(o_ref.dtype)

    return kernel


def masked_conv3d(x, w, w_mask, b, b_mask):
    """x: (N, Cin, D, H, W); w, w_mask: (Cout, Cin, KD, KH, KW); b, b_mask: (Cout,)."""
    N, Cin, D, H, W = x.shape
    Cout, _, KD, KH, KW = w.shape

    # PyTorch padding='same' (stride 1): lo = (K-1)//2, hi = (K-1) - lo.
    pads = tuple(((k - 1) // 2, (k - 1) - (k - 1) // 2) for k in (KD, KH, KW))
    Dp, Hp, Wp = D + KD - 1, H + KH - 1, W + KW - 1
    Sp = Dp * Hp * Wp
    KT = KD * KH * KW

    # Max flat-offset of any tap (halo needed past the last output position).
    halo = (KD - 1) * Hp * Wp + (KH - 1) * Wp + (KW - 1)

    sp_pad, TS = _choose_tiling(Sp)
    n_s = sp_pad // TS
    L = _round_up(sp_pad + halo, 128)

    # --- wrapper glue: pad + flatten (layout only, 1x the input bytes) ---------
    x_pad = jnp.pad(x, ((0, 0), (0, 0)) + pads)
    x_flat = x_pad.reshape(N, Cin, Sp)
    x_flat = jnp.pad(x_flat, ((0, 0), (0, 0), (0, L - Sp)))

    # Pre-masked parameters (tiny arrays, reused across all grid steps).
    w_eff = w * w_mask
    w_taps = jnp.transpose(w_eff, (2, 3, 4, 0, 1)).reshape(KT, Cout, Cin)
    b_eff = (b * b_mask).reshape(Cout, 1)

    tap_offsets = tuple(kd * Hp * Wp + kh * Wp + kw
                        for kd in range(KD) for kh in range(KH) for kw in range(KW))

    kernel = _make_kernel(tap_offsets, n_s, TS, Cout)

    itemsize = x.dtype.itemsize
    flops = 2 * N * Cout * Cin * KT * sp_pad
    bytes_accessed = int(itemsize * (N * Cin * L + N * Cout * sp_pad)
                         + w_taps.dtype.itemsize * w_taps.size
                         + b_eff.dtype.itemsize * b_eff.size)

    # VMEM budget: double-buffered x / out blocks + resident (layout-padded) weights.
    x_blk = Cin * L * itemsize
    o_blk = Cout * sp_pad * itemsize
    w_blk = KT * _round_up(Cout, 8) * 128 * w_taps.dtype.itemsize
    need = 2 * (x_blk + o_blk + w_blk) + (1 << 20)
    vmem_limit = None
    if need > 12 * (1 << 20):
        vmem_limit = min(int(need), 60 * (1 << 20))
    # TODO(synk): for very large Cin * spatial volumes the whole-batch (Cin, L)
    # block no longer fits VMEM; that regime needs haloed spatial-tile DMA via
    # memory_space=pl.ANY + pltpu.make_async_copy instead of a resident block.

    out_full = pl.pallas_call(
        kernel,
        out_shape=jax.ShapeDtypeStruct((N, Cout, sp_pad), x.dtype),
        grid_spec=pltpu.PrefetchScalarGridSpec(
            num_scalar_prefetch=0,
            grid=(N,),
            in_specs=[
                pl.BlockSpec((None, Cin, L), lambda n: (n, 0, 0)),
                pl.BlockSpec((KT, Cout, Cin), lambda n: (0, 0, 0)),
                pl.BlockSpec((Cout, 1), lambda n: (0, 0)),
            ],
            out_specs=pl.BlockSpec((None, Cout, sp_pad), lambda n: (n, 0, 0)),
        ),
        compiler_params=pltpu.CompilerParams(
            dimension_semantics=("parallel",),
            vmem_limit_bytes=vmem_limit),
        cost_estimate=pl.CostEstimate(flops=flops, transcendentals=0,
                                      bytes_accessed=bytes_accessed),
    )(x_flat, w_taps, b_eff)

    # Valid outputs sit at the low corner of the padded grid: crop (layout glue).
    out = out_full[:, :, :Sp].reshape(N, Cout, Dp, Hp, Wp)[:, :, :D, :H, :W]
    return out


if __name__ == "__main__":
    # Module config (matches MaskedConv3D(in_channels=4, out_channels=8, kernel_size=3)).
    N, Cin, Cout = 2, 4, 8
    D = H = W = 8
    KD = KH = KW = 3

    key = jax.random.PRNGKey(0)
    kx, kw_key = jax.random.split(key)

    # Deterministic parameter init (kaiming_normal_ with a=sqrt(5), fan_in mode).
    fan_in = Cin * KD * KH * KW
    gain = (2.0 / (1.0 + 5.0)) ** 0.5          # a = sqrt(5)
    std = gain / (fan_in ** 0.5)
    w = std * jax.random.normal(kw_key, (Cout, Cin, KD, KH, KW), dtype=jnp.float32)
    w_mask = jnp.ones_like(w)                  # register_buffer('w_mask', ones)
    b = jnp.zeros((Cout,), dtype=jnp.float32)  # bias initialized to zeros
    b_mask = jnp.ones_like(b)                  # register_buffer('b_mask', ones)

    x = jax.random.normal(kx, (N, Cin, D, H, W), dtype=jnp.float32)

    out = masked_conv3d(x, w, w_mask, b, b_mask)
    out = jax.block_until_ready(out)

    # Sanity check against XLA's conv (explicit PyTorch-'same' padding, stride 1).
    pads = tuple(((k - 1) // 2, (k - 1) - (k - 1) // 2) for k in (KD, KH, KW))
    ref = lax.conv_general_dilated(
        x, w * w_mask, window_strides=(1, 1, 1), padding=pads,
        dimension_numbers=("NCDHW", "OIDHW", "NCDHW"),
    ) + (b * b_mask).reshape(1, Cout, 1, 1, 1)
    assert out.shape == (N, Cout, D, H, W)
    assert jnp.allclose(out, ref, atol=1e-2, rtol=1e-2), "mismatch vs lax conv3d"

    print("KERNEL_OK")
</pallas_src>

<mosaic_0001>
module attributes {stable_mosaic.version = 11 : i64} {
  func.func @kernel(%arg0: i32, %arg1: memref<1x4x1280xf32, #tpu.memory_space<vmem>>, %arg2: memref<27x8x4xf32, #tpu.memory_space<vmem>>, %arg3: memref<8x1xf32, #tpu.memory_space<vmem>>, %arg4: memref<1x8x1024xf32, #tpu.memory_space<vmem>>) attributes {dimension_semantics = [#tpu.dimension_semantics<parallel>], iteration_bounds = array<i64: 2>, scalar_prefetch = 0 : i64, scratch_operands = 0 : i64, tpu.core_type = #tpu.core_type<tc>, window_params = [{transform_indices = @transform_0, window_bounds = array<i64: 1, 4, 1280>}, {pipeline_mode = #tpu.pipeline_mode<synchronous>, transform_indices = @transform_1, window_bounds = array<i64: 27, 8, 4>}, {pipeline_mode = #tpu.pipeline_mode<synchronous>, transform_indices = @transform_2, window_bounds = array<i64: 8, 1>}, {transform_indices = @transform_3, window_bounds = array<i64: 1, 8, 1024>}]} {
    %c0 = arith.constant 0 : index
    %c0_0 = arith.constant 0 : index
    %0 = vector.load %arg3[%c0, %c0_0] : memref<8x1xf32, #tpu.memory_space<vmem>>, vector<8x1xf32>
    %cst = arith.constant 0.000000e+00 : f32
    %1 = vector.broadcast %cst : f32 to vector<8x1024xf32>
    %c0_1 = arith.constant 0 : index
    %c0_2 = arith.constant 0 : index
    %c0_3 = arith.constant 0 : index
    %2 = vector.load %arg2[%c0_1, %c0_2, %c0_3] : memref<27x8x4xf32, #tpu.memory_space<vmem>>, vector<1x8x4xf32>
    %3 = vector.shape_cast %2 : vector<1x8x4xf32> to vector<8x4xf32>
    %c0_4 = arith.constant 0 : index
    %c0_5 = arith.constant 0 : index
    %c0_6 = arith.constant 0 : index
    %4 = vector.load %arg1[%c0_4, %c0_5, %c0_6] : memref<1x4x1280xf32, #tpu.memory_space<vmem>>, vector<1x4x1024xf32>
    %5 = vector.shape_cast %4 : vector<1x4x1024xf32> to vector<4x1024xf32>
    %cst_7 = arith.constant dense<0.000000e+00> : vector<8x1024xf32>
    %6 = tpu.matmul %3, %5, %cst_7 {dimension_numbers = #tpu.dot_dimension_numbers<[1], [0], [0], [1], [0, 0, 1, 1], [], []>} : vector<8x4xf32>, vector<4x1024xf32>, vector<8x1024xf32> -> vector<8x1024xf32>
    %7 = arith.addf %1, %6 : vector<8x1024xf32>
    %c1 = arith.constant 1 : index
    %c0_8 = arith.constant 0 : index
    %c0_9 = arith.constant 0 : index
    %8 = vector.load %arg2[%c1, %c0_8, %c0_9] : memref<27x8x4xf32, #tpu.memory_space<vmem>>, vector<1x8x4xf32>
    %9 = vector.shape_cast %8 : vector<1x8x4xf32> to vector<8x4xf32>
    %c0_10 = arith.constant 0 : index
    %c0_11 = arith.constant 0 : index
    %c1_12 = arith.constant 1 : index
    %10 = vector.load %arg1[%c0_10, %c0_11, %c1_12] : memref<1x4x1280xf32, #tpu.memory_space<vmem>>, vector<1x4x1024xf32>
    %11 = vector.shape_cast %10 : vector<1x4x1024xf32> to vector<4x1024xf32>
    %cst_13 = arith.constant dense<0.000000e+00> : vector<8x1024xf32>
    %12 = tpu.matmul %9, %11, %cst_13 {dimension_numbers = #tpu.dot_dimension_numbers<[1], [0], [0], [1], [0, 0, 1, 1], [], []>} : vector<8x4xf32>, vector<4x1024xf32>, vector<8x1024xf32> -> vector<8x1024xf32>
    %13 = arith.addf %7, %12 : vector<8x1024xf32>
    %c2 = arith.constant 2 : index
    %c0_14 = arith.constant 0 : index
    %c0_15 = arith.constant 0 : index
    %14 = vector.load %arg2[%c2, %c0_14, %c0_15] : memref<27x8x4xf32, #tpu.memory_space<vmem>>, vector<1x8x4xf32>
    %15 = vector.shape_cast %14 : vector<1x8x4xf32> to vector<8x4xf32>
    %c0_16 = arith.constant 0 : index
    %c0_17 = arith.constant 0 : index
    %c2_18 = arith.constant 2 : index
    %16 = vector.load %arg1[%c0_16, %c0_17, %c2_18] : memref<1x4x1280xf32, #tpu.memory_space<vmem>>, vector<1x4x1024xf32>
    %17 = vector.shape_cast %16 : vector<1x4x1024xf32> to vector<4x1024xf32>
    %cst_19 = arith.constant dense<0.000000e+00> : vector<8x1024xf32>
    %18 = tpu.matmul %15, %17, %cst_19 {dimension_numbers = #tpu.dot_dimension_numbers<[1], [0], [0], [1], [0, 0, 1, 1], [], []>} : vector<8x4xf32>, vector<4x1024xf32>, vector<8x1024xf32> -> vector<8x1024xf32>
    %19 = arith.addf %13, %18 : vector<8x1024xf32>
    %c3 = arith.constant 3 : index
    %c0_20 = arith.constant 0 : index
    %c0_21 = arith.constant 0 : index
    %20 = vector.load %arg2[%c3, %c0_20, %c0_21] : memref<27x8x4xf32, #tpu.memory_space<vmem>>, vector<1x8x4xf32>
    %21 = vector.shape_cast %20 : vector<1x8x4xf32> to vector<8x4xf32>
    %c0_22 = arith.constant 0 : index
    %c0_23 = arith.constant 0 : index
    %c10 = arith.constant 10 : index
    %22 = vector.load %arg1[%c0_22, %c0_23, %c10] : memref<1x4x1280xf32, #tpu.memory_space<vmem>>, vector<1x4x1024xf32>
    %23 = vector.shape_cast %22 : vector<1x4x1024xf32> to vector<4x1024xf32>
    %cst_24 = arith.constant dense<0.000000e+00> : vector<8x1024xf32>
    %24 = tpu.matmul %21, %23, %cst_24 {dimension_numbers = #tpu.dot_dimension_numbers<[1], [0], [0], [1], [0, 0, 1, 1], [], []>} : vector<8x4xf32>, vector<4x1024xf32>, vector<8x1024xf32> -> vector<8x1024xf32>
    %25 = arith.addf %19, %24 : vector<8x1024xf32>
    %c4 = arith.constant 4 : index
    %c0_25 = arith.constant 0 : index
    %c0_26 = arith.constant 0 : index
    %26 = vector.load %arg2[%c4, %c0_25, %c0_26] : memref<27x8x4xf32, #tpu.memory_space<vmem>>, vector<1x8x4xf32>
    %27 = vector.shape_cast %26 : vector<1x8x4xf32> to vector<8x4xf32>
    %c0_27 = arith.constant 0 : index
    %c0_28 = arith.constant 0 : index
    %c11 = arith.constant 11 : index
    %28 = vector.load %arg1[%c0_27, %c0_28, %c11] : memref<1x4x1280xf32, #tpu.memory_space<vmem>>, vector<1x4x1024xf32>
    %29 = vector.shape_cast %28 : vector<1x4x1024xf32> to vector<4x1024xf32>
    %cst_29 = arith.constant dense<0.000000e+00> : vector<8x1024xf32>
    %30 = tpu.matmul %27, %29, %cst_29 {dimension_numbers = #tpu.dot_dimension_numbers<[1], [0], [0], [1], [0, 0, 1, 1], [], []>} : vector<8x4xf32>, vector<4x1024xf32>, vector<8x1024xf32> -> vector<8x1024xf32>
    %31 = arith.addf %25, %30 : vector<8x1024xf32>
    %c5 = arith.constant 5 : index
    %c0_30 = arith.constant 0 : index
    %c0_31 = arith.constant 0 : index
    %32 = vector.load %arg2[%c5, %c0_30, %c0_31] : memref<27x8x4xf32, #tpu.memory_space<vmem>>, vector<1x8x4xf32>
    %33 = vector.shape_cast %32 : vector<1x8x4xf32> to vector<8x4xf32>
    %c0_32 = arith.constant 0 : index
    %c0_33 = arith.constant 0 : index
    %c12 = arith.constant 12 : index
    %34 = vector.load %arg1[%c0_32, %c0_33, %c12] : memref<1x4x1280xf32, #tpu.memory_space<vmem>>, vector<1x4x1024xf32>
    %35 = vector.shape_cast %34 : vector<1x4x1024xf32> to vector<4x1024xf32>
    %cst_34 = arith.constant dense<0.000000e+00> : vector<8x1024xf32>
    %36 = tpu.matmul %33, %35, %cst_34 {dimension_numbers = #tpu.dot_dimension_numbers<[1], [0], [0], [1], [0, 0, 1, 1], [], []>} : vector<8x4xf32>, vector<4x1024xf32>, vector<8x1024xf32> -> vector<8x1024xf32>
    %37 = arith.addf %31, %36 : vector<8x1024xf32>
    %c6 = arith.constant 6 : index
    %c0_35 = arith.constant 0 : index
    %c0_36 = arith.constant 0 : index
    %38 = vector.load %arg2[%c6, %c0_35, %c0_36] : memref<27x8x4xf32, #tpu.memory_space<vmem>>, vector<1x8x4xf32>
    %39 = vector.shape_cast %38 : vector<1x8x4xf32> to vector<8x4xf32>
    %c0_37 = arith.constant 0 : index
    %c0_38 = arith.constant 0 : index
    %c20 = arith.constant 20 : index
    %40 = vector.load %arg1[%c0_37, %c0_38, %c20] : memref<1x4x1280xf32, #tpu.memory_space<vmem>>, vector<1x4x1024xf32>
    %41 = vector.shape_cast %40 : vector<1x4x1024xf32> to vector<4x1024xf32>
    %cst_39 = arith.constant dense<0.000000e+00> : vector<8x1024xf32>
    %42 = tpu.matmul %39, %41, %cst_39 {dimension_numbers = #tpu.dot_dimension_numbers<[1], [0], [0], [1], [0, 0, 1, 1], [], []>} : vector<8x4xf32>, vector<4x1024xf32>, vector<8x1024xf32> -> vector<8x1024xf32>
    %43 = arith.addf %37, %42 : vector<8x1024xf32>
    %c7 = arith.constant 7 : index
    %c0_40 = arith.constant 0 : index
    %c0_41 = arith.constant 0 : index
    %44 = vector.load %arg2[%c7, %c0_40, %c0_41] : memref<27x8x4xf32, #tpu.memory_space<vmem>>, vector<1x8x4xf32>
    %45 = vector.shape_cast %44 : vector<1x8x4xf32> to vector<8x4xf32>
    %c0_42 = arith.constant 0 : index
    %c0_43 = arith.constant 0 : index
    %c21 = arith.constant 21 : index
    %46 = vector.load %arg1[%c0_42, %c0_43, %c21] : memref<1x4x1280xf32, #tpu.memory_space<vmem>>, vector<1x4x1024xf32>
    %47 = vector.shape_cast %46 : vector<1x4x1024xf32> to vector<4x1024xf32>
    %cst_44 = arith.constant dense<0.000000e+00> : vector<8x1024xf32>
    %48 = tpu.matmul %45, %47, %cst_44 {dimension_numbers = #tpu.dot_dimension_numbers<[1], [0], [0], [1], [0, 0, 1, 1], [], []>} : vector<8x4xf32>, vector<4x1024xf32>, vector<8x1024xf32> -> vector<8x1024xf32>
    %49 = arith.addf %43, %48 : vector<8x1024xf32>
    %c8 = arith.constant 8 : index
    %c0_45 = arith.constant 0 : index
    %c0_46 = arith.constant 0 : index
    %50 = vector.load %arg2[%c8, %c0_45, %c0_46] : memref<27x8x4xf32, #tpu.memory_space<vmem>>, vector<1x8x4xf32>
    %51 = vector.shape_cast %50 : vector<1x8x4xf32> to vector<8x4xf32>
    %c0_47 = arith.constant 0 : index
    %c0_48 = arith.constant 0 : index
    %c22 = arith.constant 22 : index
    %52 = vector.load %arg1[%c0_47, %c0_48, %c22] : memref<1x4x1280xf32, #tpu.memory_space<vmem>>, vector<1x4x1024xf32>
    %53 = vector.shape_cast %52 : vector<1x4x1024xf32> to vector<4x1024xf32>
    %cst_49 = arith.constant dense<0.000000e+00> : vector<8x1024xf32>
    %54 = tpu.matmul %51, %53, %cst_49 {dimension_numbers = #tpu.dot_dimension_numbers<[1], [0], [0], [1], [0, 0, 1, 1], [], []>} : vector<8x4xf32>, vector<4x1024xf32>, vector<8x1024xf32> -> vector<8x1024xf32>
    %55 = arith.addf %49, %54 : vector<8x1024xf32>
    %c9 = arith.constant 9 : index
    %c0_50 = arith.constant 0 : index
    %c0_51 = arith.constant 0 : index
    %56 = vector.load %arg2[%c9, %c0_50, %c0_51] : memref<27x8x4xf32, #tpu.memory_space<vmem>>, vector<1x8x4xf32>
    %57 = vector.shape_cast %56 : vector<1x8x4xf32> to vector<8x4xf32>
    %c0_52 = arith.constant 0 : index
    %c0_53 = arith.constant 0 : index
    %c100 = arith.constant 100 : index
    %58 = vector.load %arg1[%c0_52, %c0_53, %c100] : memref<1x4x1280xf32, #tpu.memory_space<vmem>>, vector<1x4x1024xf32>
    %59 = vector.shape_cast %58 : vector<1x4x1024xf32> to vector<4x1024xf32>
    %cst_54 = arith.constant dense<0.000000e+00> : vector<8x1024xf32>
    %60 = tpu.matmul %57, %59, %cst_54 {dimension_numbers = #tpu.dot_dimension_numbers<[1], [0], [0], [1], [0, 0, 1, 1], [], []>} : vector<8x4xf32>, vector<4x1024xf32>, vector<8x1024xf32> -> vector<8x1024xf32>
    %61 = arith.addf %55, %60 : vector<8x1024xf32>
    %c10_55 = arith.constant 10 : index
    %c0_56 = arith.constant 0 : index
    %c0_57 = arith.constant 0 : index
    %62 = vector.load %arg2[%c10_55, %c0_56, %c0_57] : memref<27x8x4xf32, #tpu.memory_space<vmem>>, vector<1x8x4xf32>
    %63 = vector.shape_cast %62 : vector<1x8x4xf32> to vector<8x4xf32>
    %c0_58 = arith.constant 0 : index
    %c0_59 = arith.constant 0 : index
    %c101 = arith.constant 101 : index
    %64 = vector.load %arg1[%c0_58, %c0_59, %c101] : memref<1x4x1280xf32, #tpu.memory_space<vmem>>, vector<1x4x1024xf32>
    %65 = vector.shape_cast %64 : vector<1x4x1024xf32> to vector<4x1024xf32>
    %cst_60 = arith.constant dense<0.000000e+00> : vector<8x1024xf32>
    %66 = tpu.matmul %63, %65, %cst_60 {dimension_numbers = #tpu.dot_dimension_numbers<[1], [0], [0], [1], [0, 0, 1, 1], [], []>} : vector<8x4xf32>, vector<4x1024xf32>, vector<8x1024xf32> -> vector<8x1024xf32>
    %67 = arith.addf %61, %66 : vector<8x1024xf32>
    %c11_61 = arith.constant 11 : index
    %c0_62 = arith.constant 0 : index
    %c0_63 = arith.constant 0 : index
    %68 = vector.load %arg2[%c11_61, %c0_62, %c0_63] : memref<27x8x4xf32, #tpu.memory_space<vmem>>, vector<1x8x4xf32>
    %69 = vector.shape_cast %68 : vector<1x8x4xf32> to vector<8x4xf32>
    %c0_64 = arith.constant 0 : index
    %c0_65 = arith.constant 0 : index
    %c102 = arith.constant 102 : index
    %70 = vector.load %arg1[%c0_64, %c0_65, %c102] : memref<1x4x1280xf32, #tpu.memory_space<vmem>>, vector<1x4x1024xf32>
    %71 = vector.shape_cast %70 : vector<1x4x1024xf32> to vector<4x1024xf32>
    %cst_66 = arith.constant dense<0.000000e+00> : vector<8x1024xf32>
    %72 = tpu.matmul %69, %71, %cst_66 {dimension_numbers = #tpu.dot_dimension_numbers<[1], [0], [0], [1], [0, 0, 1, 1], [], []>} : vector<8x4xf32>, vector<4x1024xf32>, vector<8x1024xf32> -> vector<8x1024xf32>
    %73 = arith.addf %67, %72 : vector<8x1024xf32>
    %c12_67 = arith.constant 12 : index
    %c0_68 = arith.constant 0 : index
    %c0_69 = arith.constant 0 : index
    %74 = vector.load %arg2[%c12_67, %c0_68, %c0_69] : memref<27x8x4xf32, #tpu.memory_space<vmem>>, vector<1x8x4xf32>
    %75 = vector.shape_cast %74 : vector<1x8x4xf32> to vector<8x4xf32>
    %c0_70 = arith.constant 0 : index
    %c0_71 = arith.constant 0 : index
    %c110 = arith.constant 110 : index
    %76 = vector.load %arg1[%c0_70, %c0_71, %c110] : memref<1x4x1280xf32, #tpu.memory_space<vmem>>, vector<1x4x1024xf32>
    %77 = vector.shape_cast %76 : vector<1x4x1024xf32> to vector<4x1024xf32>
    %cst_72 = arith.constant dense<0.000000e+00> : vector<8x1024xf32>
    %78 = tpu.matmul %75, %77, %cst_72 {dimension_numbers = #tpu.dot_dimension_numbers<[1], [0], [0], [1], [0, 0, 1, 1], [], []>} : vector<8x4xf32>, vector<4x1024xf32>, vector<8x1024xf32> -> vector<8x1024xf32>
    %79 = arith.addf %73, %78 : vector<8x1024xf32>
    %c13 = arith.constant 13 : index
    %c0_73 = arith.constant 0 : index
    %c0_74 = arith.constant 0 : index
    %80 = vector.load %arg2[%c13, %c0_73, %c0_74] : memref<27x8x4xf32, #tpu.memory_space<vmem>>, vector<1x8x4xf32>
    %81 = vector.shape_cast %80 : vector<1x8x4xf32> to vector<8x4xf32>
    %c0_75 = arith.constant 0 : index
    %c0_76 = arith.constant 0 : index
    %c111 = arith.constant 111 : index
    %82 = vector.load %arg1[%c0_75, %c0_76, %c111] : memref<1x4x1280xf32, #tpu.memory_space<vmem>>, vector<1x4x1024xf32>
    %83 = vector.shape_cast %82 : vector<1x4x1024xf32> to vector<4x1024xf32>
    %cst_77 = arith.constant dense<0.000000e+00> : vector<8x1024xf32>
    %84 = tpu.matmul %81, %83, %cst_77 {dimension_numbers = #tpu.dot_dimension_numbers<[1], [0], [0], [1], [0, 0, 1, 1], [], []>} : vector<8x4xf32>, vector<4x1024xf32>, vector<8x1024xf32> -> vector<8x1024xf32>
    %85 = arith.addf %79, %84 : vector<8x1024xf32>
    %c14 = arith.constant 14 : index
    %c0_78 = arith.constant 0 : index
    %c0_79 = arith.constant 0 : index
    %86 = vector.load %arg2[%c14, %c0_78, %c0_79] : memref<27x8x4xf32, #tpu.memory_space<vmem>>, vector<1x8x4xf32>
    %87 = vector.shape_cast %86 : vector<1x8x4xf32> to vector<8x4xf32>
    %c0_80 = arith.constant 0 : index
    %c0_81 = arith.constant 0 : index
    %c112 = arith.constant 112 : index
    %88 = vector.load %arg1[%c0_80, %c0_81, %c112] : memref<1x4x1280xf32, #tpu.memory_space<vmem>>, vector<1x4x1024xf32>
    %89 = vector.shape_cast %88 : vector<1x4x1024xf32> to vector<4x1024xf32>
    %cst_82 = arith.constant dense<0.000000e+00> : vector<8x1024xf32>
    %90 = tpu.matmul %87, %89, %cst_82 {dimension_numbers = #tpu.dot_dimension_numbers<[1], [0], [0], [1], [0, 0, 1, 1], [], []>} : vector<8x4xf32>, vector<4x1024xf32>, vector<8x1024xf32> -> vector<8x1024xf32>
    %91 = arith.addf %85, %90 : vector<8x1024xf32>
    %c15 = arith.constant 15 : index
    %c0_83 = arith.constant 0 : index
    %c0_84 = arith.constant 0 : index
    %92 = vector.load %arg2[%c15, %c0_83, %c0_84] : memref<27x8x4xf32, #tpu.memory_space<vmem>>, vector<1x8x4xf32>
    %93 = vector.shape_cast %92 : vector<1x8x4xf32> to vector<8x4xf32>
    %c0_85 = arith.constant 0 : index
    %c0_86 = arith.constant 0 : index
    %c120 = arith.constant 120 : index
    %94 = vector.load %arg1[%c0_85, %c0_86, %c120] : memref<1x4x1280xf32, #tpu.memory_space<vmem>>, vector<1x4x1024xf32>
    %95 = vector.shape_cast %94 : vector<1x4x1024xf32> to vector<4x1024xf32>
    %cst_87 = arith.constant dense<0.000000e+00> : vector<8x1024xf32>
    %96 = tpu.matmul %93, %95, %cst_87 {dimension_numbers = #tpu.dot_dimension_numbers<[1], [0], [0], [1], [0, 0, 1, 1], [], []>} : vector<8x4xf32>, vector<4x1024xf32>, vector<8x1024xf32> -> vector<8x1024xf32>
    %97 = arith.addf %91, %96 : vector<8x1024xf32>
    %c16 = arith.constant 16 : index
    %c0_88 = arith.constant 0 : index
    %c0_89 = arith.constant 0 : index
    %98 = vector.load %arg2[%c16, %c0_88, %c0_89] : memref<27x8x4xf32, #tpu.memory_space<vmem>>, vector<1x8x4xf32>
    %99 = vector.shape_cast %98 : vector<1x8x4xf32> to vector<8x4xf32>
    %c0_90 = arith.constant 0 : index
    %c0_91 = arith.constant 0 : index
    %c121 = arith.constant 121 : index
    %100 = vector.load %arg1[%c0_90, %c0_91, %c121] : memref<1x4x1280xf32, #tpu.memory_space<vmem>>, vector<1x4x1024xf32>
    %101 = vector.shape_cast %100 : vector<1x4x1024xf32> to vector<4x1024xf32>
    %cst_92 = arith.constant dense<0.000000e+00> : vector<8x1024xf32>
    %102 = tpu.matmul %99, %101, %cst_92 {dimension_numbers = #tpu.dot_dimension_numbers<[1], [0], [0], [1], [0, 0, 1, 1], [], []>} : vector<8x4xf32>, vector<4x1024xf32>, vector<8x1024xf32> -> vector<8x1024xf32>
    %103 = arith.addf %97, %102 : vector<8x1024xf32>
    %c17 = arith.constant 17 : index
    %c0_93 = arith.constant 0 : index
    %c0_94 = arith.constant 0 : index
    %104 = vector.load %arg2[%c17, %c0_93, %c0_94] : memref<27x8x4xf32, #tpu.memory_space<vmem>>, vector<1x8x4xf32>
    %105 = vector.shape_cast %104 : vector<1x8x4xf32> to vector<8x4xf32>
    %c0_95 = arith.constant 0 : index
    %c0_96 = arith.constant 0 : index
    %c122 = arith.constant 122 : index
    %106 = vector.load %arg1[%c0_95, %c0_96, %c122] : memref<1x4x1280xf32, #tpu.memory_space<vmem>>, vector<1x4x1024xf32>
    %107 = vector.shape_cast %106 : vector<1x4x1024xf32> to vector<4x1024xf32>
    %cst_97 = arith.constant dense<0.000000e+00> : vector<8x1024xf32>
    %108 = tpu.matmul %105, %107, %cst_97 {dimension_numbers = #tpu.dot_dimension_numbers<[1], [0], [0], [1], [0, 0, 1, 1], [], []>} : vector<8x4xf32>, vector<4x1024xf32>, vector<8x1024xf32> -> vector<8x1024xf32>
    %109 = arith.addf %103, %108 : vector<8x1024xf32>
    %c18 = arith.constant 18 : index
    %c0_98 = arith.constant 0 : index
    %c0_99 = arith.constant 0 : index
    %110 = vector.load %arg2[%c18, %c0_98, %c0_99] : memref<27x8x4xf32, #tpu.memory_space<vmem>>, vector<1x8x4xf32>
    %111 = vector.shape_cast %110 : vector<1x8x4xf32> to vector<8x4xf32>
    %c0_100 = arith.constant 0 : index
    %c0_101 = arith.constant 0 : index
    %c200 = arith.constant 200 : index
    %112 = vector.load %arg1[%c0_100, %c0_101, %c200] : memref<1x4x1280xf32, #tpu.memory_space<vmem>>, vector<1x4x1024xf32>
    %113 = vector.shape_cast %112 : vector<1x4x1024xf32> to vector<4x1024xf32>
    %cst_102 = arith.constant dense<0.000000e+00> : vector<8x1024xf32>
    %114 = tpu.matmul %111, %113, %cst_102 {dimension_numbers = #tpu.dot_dimension_numbers<[1], [0], [0], [1], [0, 0, 1, 1], [], []>} : vector<8x4xf32>, vector<4x1024xf32>, vector<8x1024xf32> -> vector<8x1024xf32>
    %115 = arith.addf %109, %114 : vector<8x1024xf32>
    %c19 = arith.constant 19 : index
    %c0_103 = arith.constant 0 : index
    %c0_104 = arith.constant 0 : index
    %116 = vector.load %arg2[%c19, %c0_103, %c0_104] : memref<27x8x4xf32, #tpu.memory_space<vmem>>, vector<1x8x4xf32>
    %117 = vector.shape_cast %116 : vector<1x8x4xf32> to vector<8x4xf32>
    %c0_105 = arith.constant 0 : index
    %c0_106 = arith.constant 0 : index
    %c201 = arith.constant 201 : index
    %118 = vector.load %arg1[%c0_105, %c0_106, %c201] : memref<1x4x1280xf32, #tpu.memory_space<vmem>>, vector<1x4x1024xf32>
    %119 = vector.shape_cast %118 : vector<1x4x1024xf32> to vector<4x1024xf32>
    %cst_107 = arith.constant dense<0.000000e+00> : vector<8x1024xf32>
    %120 = tpu.matmul %117, %119, %cst_107 {dimension_numbers = #tpu.dot_dimension_numbers<[1], [0], [0], [1], [0, 0, 1, 1], [], []>} : vector<8x4xf32>, vector<4x1024xf32>, vector<8x1024xf32> -> vector<8x1024xf32>
    %121 = arith.addf %115, %120 : vector<8x1024xf32>
    %c20_108 = arith.constant 20 : index
    %c0_109 = arith.constant 0 : index
    %c0_110 = arith.constant 0 : index
    %122 = vector.load %arg2[%c20_108, %c0_109, %c0_110] : memref<27x8x4xf32, #tpu.memory_space<vmem>>, vector<1x8x4xf32>
    %123 = vector.shape_cast %122 : vector<1x8x4xf32> to vector<8x4xf32>
    %c0_111 = arith.constant 0 : index
    %c0_112 = arith.constant 0 : index
    %c202 = arith.constant 202 : index
    %124 = vector.load %arg1[%c0_111, %c0_112, %c202] : memref<1x4x1280xf32, #tpu.memory_space<vmem>>, vector<1x4x1024xf32>
    %125 = vector.shape_cast %124 : vector<1x4x1024xf32> to vector<4x1024xf32>
    %cst_113 = arith.constant dense<0.000000e+00> : vector<8x1024xf32>
    %126 = tpu.matmul %123, %125, %cst_113 {dimension_numbers = #tpu.dot_dimension_numbers<[1], [0], [0], [1], [0, 0, 1, 1], [], []>} : vector<8x4xf32>, vector<4x1024xf32>, vector<8x1024xf32> -> vector<8x1024xf32>
    %127 = arith.addf %121, %126 : vector<8x1024xf32>
    %c21_114 = arith.constant 21 : index
    %c0_115 = arith.constant 0 : index
    %c0_116 = arith.constant 0 : index
    %128 = vector.load %arg2[%c21_114, %c0_115, %c0_116] : memref<27x8x4xf32, #tpu.memory_space<vmem>>, vector<1x8x4xf32>
    %129 = vector.shape_cast %128 : vector<1x8x4xf32> to vector<8x4xf32>
    %c0_117 = arith.constant 0 : index
    %c0_118 = arith.constant 0 : index
    %c210 = arith.constant 210 : index
    %130 = vector.load %arg1[%c0_117, %c0_118, %c210] : memref<1x4x1280xf32, #tpu.memory_space<vmem>>, vector<1x4x1024xf32>
    %131 = vector.shape_cast %130 : vector<1x4x1024xf32> to vector<4x1024xf32>
    %cst_119 = arith.constant dense<0.000000e+00> : vector<8x1024xf32>
    %132 = tpu.matmul %129, %131, %cst_119 {dimension_numbers = #tpu.dot_dimension_numbers<[1], [0], [0], [1], [0, 0, 1, 1], [], []>} : vector<8x4xf32>, vector<4x1024xf32>, vector<8x1024xf32> -> vector<8x1024xf32>
    %133 = arith.addf %127, %132 : vector<8x1024xf32>
    %c22_120 = arith.constant 22 : index
    %c0_121 = arith.constant 0 : index
    %c0_122 = arith.constant 0 : index
    %134 = vector.load %arg2[%c22_120, %c0_121, %c0_122] : memref<27x8x4xf32, #tpu.memory_space<vmem>>, vector<1x8x4xf32>
    %135 = vector.shape_cast %134 : vector<1x8x4xf32> to vector<8x4xf32>
    %c0_123 = arith.constant 0 : index
    %c0_124 = arith.constant 0 : index
    %c211 = arith.constant 211 : index
    %136 = vector.load %arg1[%c0_123, %c0_124, %c211] : memref<1x4x1280xf32, #tpu.memory_space<vmem>>, vector<1x4x1024xf32>
    %137 = vector.shape_cast %136 : vector<1x4x1024xf32> to vector<4x1024xf32>
    %cst_125 = arith.constant dense<0.000000e+00> : vector<8x1024xf32>
    %138 = tpu.matmul %135, %137, %cst_125 {dimension_numbers = #tpu.dot_dimension_numbers<[1], [0], [0], [1], [0, 0, 1, 1], [], []>} : vector<8x4xf32>, vector<4x1024xf32>, vector<8x1024xf32> -> vector<8x1024xf32>
    %139 = arith.addf %133, %138 : vector<8x1024xf32>
    %c23 = arith.constant 23 : index
    %c0_126 = arith.constant 0 : index
    %c0_127 = arith.constant 0 : index
    %140 = vector.load %arg2[%c23, %c0_126, %c0_127] : memref<27x8x4xf32, #tpu.memory_space<vmem>>, vector<1x8x4xf32>
    %141 = vector.shape_cast %140 : vector<1x8x4xf32> to vector<8x4xf32>
    %c0_128 = arith.constant 0 : index
    %c0_129 = arith.constant 0 : index
    %c212 = arith.constant 212 : index
    %142 = vector.load %arg1[%c0_128, %c0_129, %c212] : memref<1x4x1280xf32, #tpu.memory_space<vmem>>, vector<1x4x1024xf32>
    %143 = vector.shape_cast %142 : vector<1x4x1024xf32> to vector<4x1024xf32>
    %cst_130 = arith.constant dense<0.000000e+00> : vector<8x1024xf32>
    %144 = tpu.matmul %141, %143, %cst_130 {dimension_numbers = #tpu.dot_dimension_numbers<[1], [0], [0], [1], [0, 0, 1, 1], [], []>} : vector<8x4xf32>, vector<4x1024xf32>, vector<8x1024xf32> -> vector<8x1024xf32>
    %145 = arith.addf %139, %144 : vector<8x1024xf32>
    %c24 = arith.constant 24 : index
    %c0_131 = arith.constant 0 : index
    %c0_132 = arith.constant 0 : index
    %146 = vector.load %arg2[%c24, %c0_131, %c0_132] : memref<27x8x4xf32, #tpu.memory_space<vmem>>, vector<1x8x4xf32>
    %147 = vector.shape_cast %146 : vector<1x8x4xf32> to vector<8x4xf32>
    %c0_133 = arith.constant 0 : index
    %c0_134 = arith.constant 0 : index
    %c220 = arith.constant 220 : index
    %148 = vector.load %arg1[%c0_133, %c0_134, %c220] : memref<1x4x1280xf32, #tpu.memory_space<vmem>>, vector<1x4x1024xf32>
    %149 = vector.shape_cast %148 : vector<1x4x1024xf32> to vector<4x1024xf32>
    %cst_135 = arith.constant dense<0.000000e+00> : vector<8x1024xf32>
    %150 = tpu.matmul %147, %149, %cst_135 {dimension_numbers = #tpu.dot_dimension_numbers<[1], [0], [0], [1], [0, 0, 1, 1], [], []>} : vector<8x4xf32>, vector<4x1024xf32>, vector<8x1024xf32> -> vector<8x1024xf32>
    %151 = arith.addf %145, %150 : vector<8x1024xf32>
    %c25 = arith.constant 25 : index
    %c0_136 = arith.constant 0 : index
    %c0_137 = arith.constant 0 : index
    %152 = vector.load %arg2[%c25, %c0_136, %c0_137] : memref<27x8x4xf32, #tpu.memory_space<vmem>>, vector<1x8x4xf32>
    %153 = vector.shape_cast %152 : vector<1x8x4xf32> to vector<8x4xf32>
    %c0_138 = arith.constant 0 : index
    %c0_139 = arith.constant 0 : index
    %c221 = arith.constant 221 : index
    %154 = vector.load %arg1[%c0_138, %c0_139, %c221] : memref<1x4x1280xf32, #tpu.memory_space<vmem>>, vector<1x4x1024xf32>
    %155 = vector.shape_cast %154 : vector<1x4x1024xf32> to vector<4x1024xf32>
    %cst_140 = arith.constant dense<0.000000e+00> : vector<8x1024xf32>
    %156 = tpu.matmul %153, %155, %cst_140 {dimension_numbers = #tpu.dot_dimension_numbers<[1], [0], [0], [1], [0, 0, 1, 1], [], []>} : vector<8x4xf32>, vector<4x1024xf32>, vector<8x1024xf32> -> vector<8x1024xf32>
    %157 = arith.addf %151, %156 : vector<8x1024xf32>
    %c26 = arith.constant 26 : index
    %c0_141 = arith.constant 0 : index
    %c0_142 = arith.constant 0 : index
    %158 = vector.load %arg2[%c26, %c0_141, %c0_142] : memref<27x8x4xf32, #tpu.memory_space<vmem>>, vector<1x8x4xf32>
    %159 = vector.shape_cast %158 : vector<1x8x4xf32> to vector<8x4xf32>
    %c0_143 = arith.constant 0 : index
    %c0_144 = arith.constant 0 : index
    %c222 = arith.constant 222 : index
    %160 = vector.load %arg1[%c0_143, %c0_144, %c222] : memref<1x4x1280xf32, #tpu.memory_space<vmem>>, vector<1x4x1024xf32>
    %161 = vector.shape_cast %160 : vector<1x4x1024xf32> to vector<4x1024xf32>
    %cst_145 = arith.constant dense<0.000000e+00> : vector<8x1024xf32>
    %162 = tpu.matmul %159, %161, %cst_145 {dimension_numbers = #tpu.dot_dimension_numbers<[1], [0], [0], [1], [0, 0, 1, 1], [], []>} : vector<8x4xf32>, vector<4x1024xf32>, vector<8x1024xf32> -> vector<8x1024xf32>
    %163 = arith.addf %157, %162 : vector<8x1024xf32>
    %164 = vector.broadcast %0 : vector<8x1xf32> to vector<8x1024xf32>
    %165 = arith.addf %163, %164 : vector<8x1024xf32>
    %c0_146 = arith.constant 0 : index
    %c0_147 = arith.constant 0 : index
    %c0_148 = arith.constant 0 : index
    %166 = vector.load %arg4[%c0_146, %c0_147, %c0_148] : memref<1x8x1024xf32, #tpu.memory_space<vmem>>, vector<1x8x1024xf32>
    %167 = vector.shape_cast %166 : vector<1x8x1024xf32> to vector<8x1024xf32>
    %168 = vector.shape_cast %165 : vector<8x1024xf32> to vector<1x8x1024xf32>
    tpu.vector_store %arg4[%c0_146, %c0_147, %c0_148], %168 {strides = array<i32>} : memref<1x8x1024xf32, #tpu.memory_space<vmem>>, vector<1x8x1024xf32>,
    return
  }
  func.func @transform_0(%arg0: i32) -> (i32, i32, i32) {
    %c0_i32 = arith.constant 0 : i32
    %c0_i32_0 = arith.constant 0 : i32
    %c0_i32_1 = arith.constant 0 : i32
    return %arg0, %c0_i32, %c0_i32_0 : i32, i32, i32
  }
  func.func @transform_1(%arg0: i32) -> (i32, i32, i32) {
    %c0_i32 = arith.constant 0 : i32
    %c0_i32_0 = arith.constant 0 : i32
    %c0_i32_1 = arith.constant 0 : i32
    %c0_i32_2 = arith.constant 0 : i32
    return %c0_i32, %c0_i32_0, %c0_i32_1 : i32, i32, i32
  }
  func.func @transform_2(%arg0: i32) -> (i32, i32) {
    %c0_i32 = arith.constant 0 : i32
    %c0_i32_0 = arith.constant 0 : i32
    %c0_i32_1 = arith.constant 0 : i32
    return %c0_i32, %c0_i32_0 : i32, i32
  }
  func.func @transform_3(%arg0: i32) -> (i32, i32, i32) {
    %c0_i32 = arith.constant 0 : i32
    %c0_i32_0 = arith.constant 0 : i32
    %c0_i32_1 = arith.constant 0 : i32
    return %arg0, %c0_i32, %c0_i32_0 : i32, i32, i32
  }
}

</mosaic_0001>

<llo_original>
// kernel: tpu_custom_call.1
$region0: #{tpu_custom_call.1}
  #allocation0 [shape = 'u32[]', space=smem, size = 0x4, offset = 0x4, fixed_abs, tag = 'smem constant byte address 0x4 - core index']
  #allocation1 [shape = 'u32[144,128]{1,0:T(1,128)}', space=vmem, size = 0x12000, scoped, tag = 'internal scratch']
  %s0 = inlined_call_operand.vmem [shape: f32[2,4,1280], index: 0, kind: input, shape index: {}]
  %s1 = inlined_call_operand.vmem [shape: f32[27,8,4], index: 1, kind: input, shape index: {}]
  %s2 = inlined_call_operand.vmem [shape: f32[8,1], index: 2, kind: input, shape index: {}]
  %s3 = inlined_call_operand.hbm [shape: f32[2,8,1024], index: 3, kind: output, shape index: {}]
  %s4 = sld [smem:[#allocation0]]
  $region45: #{tpu_custom_call.1} parent=0
    _
  %s6 = ssub.s32 1, %s4
  %s7 = scalar_select 0, %s6, %s4
  $region1: #{tpu_custom_call.1} parent=0
    #allocation2 [shape = 'u8[65536]{0}', space=vmem, size = 0x10000, scoped, tag = 'output window, operand 0']
    #allocation3 [shape = 's32[2]{0}', space=sflag, size = 0x8, scoped, tag = 'scoped memory for tpu_custom_call.1']
    %8 = vsyncpa [#allocation3], 0
    %s9 = scalar_lea.sflag [#allocation3], 1
    %10 = vsyncpa %s9, 0
    loop: start=0, step=1, limit=4
    $region2: #{tpu_custom_call.1} parent=1 // loop_pre_header
      _
    $region3: #{tpu_custom_call.1} parent=1 // loop_header
      %s12 = sphi 0, %s16
      %p13 = scmp.ge.s32.totalorder %s12, 4
      %s22 = sphi 0, %s24
      %s25 = sphi 0, %s22
      %s26 = sphi 0, %s25
      %s42 = sphi 0, %s26
      %s46 = sphi 0, %s46
      %s48 = sphi 0, %s46
      %s49 = sphi 0, %s48
      %s63 = sphi 0, %s49
      %s67 = sphi 0, %s67
      %s69 = sphi 0, %s67
      %s70 = sphi 0, %s69
      %s84 = sphi 0, %s70
      %s90 = sphi 0, %s92
      %s93 = sphi 0, %s90
      %s94 = sphi 0, %s93
      %s110 = sphi 0, %s94
    $region4: #{tpu_custom_call.1} parent=1 // loop_header_branch
      %15 = sbr.rel (%p13) target = $region8
    $region5: #{tpu_custom_call.1} parent=1 // loop_body
      %s17 = ssub.s32 %s12, 1
      %s18 = ssub.s32 %s12, 2
      %s19 = sadd.s32 %s12, 1
      %s20 = ssub.s32 %s12, %s19
      %p21 = scmp.eq.s32.totalorder %s20, 0
      %s23 = sadd.s32 %s22, 1
      %s24 = scalar_select %p21, %s22, %s23
      %p27 = pneg %p21
      %p28 = scmp.eq.s32.totalorder %s12, 1
      %p29 = por %p27, %p28
      %p30 = scmp.ne.s32.totalorder %s22, %s25
      %p31 = scmp.eq.s32.totalorder %s12, 0
      %p32 = por %p30, %p31
      %p33 = scmp.ne.s32.totalorder %s22, %s25
      %p34 = scmp.eq.s32.totalorder %s17, 1
      %p35 = por %p33, %p34
      %p36 = scmp.ne.s32.totalorder %s25, %s26
      %p37 = scmp.eq.s32.totalorder %s17, 0
      %p38 = por %p36, %p37
      %p39 = scmp.ne.s32.totalorder %s25, %s26
      %p40 = scmp.eq.s32.totalorder %s18, 1
      %p41 = por %p39, %p40
      %p43 = scmp.ne.s32.totalorder %s26, %s42
      %p44 = scmp.eq.s32.totalorder %s18, 0
      %p45 = por %p43, %p44
      %s47 = sadd.s32 %s46, 1
      %p50 = scmp.eq.s32.totalorder %s12, 1
      %p51 = scmp.ne.s32.totalorder %s46, %s48
      %p52 = scmp.eq.s32.totalorder %s12, 0
      %p53 = por %p51, %p52
      %p54 = scmp.ne.s32.totalorder %s46, %s48
      %p55 = scmp.eq.s32.totalorder %s17, 1
      %p56 = por %p54, %p55
      %p57 = scmp.ne.s32.totalorder %s48, %s49
      %p58 = scmp.eq.s32.totalorder %s17, 0
      %p59 = por %p57, %p58
      %p60 = scmp.ne.s32.totalorder %s48, %s49
      %p61 = scmp.eq.s32.totalorder %s18, 1
      %p62 = por %p60, %p61
      %p64 = scmp.ne.s32.totalorder %s49, %s63
      %p65 = scmp.eq.s32.totalorder %s18, 0
      %p66 = por %p64, %p65
      %s68 = sadd.s32 %s67, 1
      %p71 = scmp.eq.s32.totalorder %s12, 1
      %p72 = scmp.ne.s32.totalorder %s67, %s69
      %p73 = scmp.eq.s32.totalorder %s12, 0
      %p74 = por %p72, %p73
      %p75 = scmp.ne.s32.totalorder %s67, %s69
      %p76 = scmp.eq.s32.totalorder %s17, 1
      %p77 = por %p75, %p76
      %p78 = scmp.ne.s32.totalorder %s69, %s70
      %p79 = scmp.eq.s32.totalorder %s17, 0
      %p80 = por %p78, %p79
      %p81 = scmp.ne.s32.totalorder %s69, %s70
      %p82 = scmp.eq.s32.totalorder %s18, 1
      %p83 = por %p81, %p82
      %p85 = scmp.ne.s32.totalorder %s70, %s84
      %p86 = scmp.eq.s32.totalorder %s18, 0
      %p87 = por %p85, %p86
      %s88 = ssub.s32 %s12, %s19
      %p89 = scmp.eq.s32.totalorder %s88, 0
      %s91 = sadd.s32 %s90, 1
      %s92 = scalar_select %p89, %s90, %s91
      %p95 = pneg %p89
      %p96 = scmp.eq.s32.totalorder %s12, 1
      %p97 = por %p95, %p96
      %p98 = scmp.ne.s32.totalorder %s90, %s93
      %p99 = scmp.eq.s32.totalorder %s12, 0
      %p100 = por %p98, %p99
      %p101 = scmp.ne.s32.totalorder %s90, %s93
      %p102 = scmp.eq.s32.totalorder %s17, 1
      %p103 = por %p101, %p102
      %p104 = scmp.ne.s32.totalorder %s93, %s94
      %p105 = scmp.eq.s32.totalorder %s17, 0
      %p106 = por %p104, %p105
      %p107 = scmp.ne.s32.totalorder %s93, %s94
      %p108 = scmp.eq.s32.totalorder %s18, 1
      %p109 = por %p107, %p108
      %p111 = scmp.ne.s32.totalorder %s94, %s110
      %p112 = scmp.eq.s32.totalorder %s18, 0
      %p113 = por %p111, %p112
      %p114 = scmp.le.s32.totalorder 1, %s12
      %p115 = scmp.lt.s32.totalorder %s12, 3
      %p116 = pnand %p114, %p115
      %p117 = pneg %p116
      // Predicated region
      $region9: #{tpu_custom_call.1} parent=5 // pred_check
        _
      $region10: #{tpu_custom_call.1} parent=5 // pred_check_branch
        %119 = sbr.rel (%p116) target = $region12
      $region11: #{tpu_custom_call.1} parent=5 // pred_region
        %s120 = ssub.s32 %s12, 1
        // Predicated region
        $region13: #{tpu_custom_call.1} parent=11 // pred_check
          %p121 = pneg %p59
        $region14: #{tpu_custom_call.1} parent=11 // pred_check_branch
          %123 = sbr.rel (%p121) target = $region16
        $region15: #{tpu_custom_call.1} parent=11 // pred_region
          _
        $region16: #{tpu_custom_call.1} parent=11 // pred_fallthru
          _
        // Predicated region
        $region17: #{tpu_custom_call.1} parent=11 // pred_check
          %p124 = pneg %p80
        $region18: #{tpu_custom_call.1} parent=11 // pred_check_branch
          %126 = sbr.rel (%p124) target = $region20
        $region19: #{tpu_custom_call.1} parent=11 // pred_region
          _
        $region20: #{tpu_custom_call.1} parent=11 // pred_fallthru
          _
      $region12: #{tpu_custom_call.1} parent=5 // pred_fallthru
        _
      %p127 = scmp.lt.s32.totalorder %s12, 2
      // Predicated region
      $region21: #{tpu_custom_call.1} parent=5 // pred_check
        %p128 = pneg %p127
      $region22: #{tpu_custom_call.1} parent=5 // pred_check_branch
        %130 = sbr.rel (%p128) target = $region24
      $region23: #{tpu_custom_call.1} parent=5 // pred_region
        // Predicated region
        $region25: #{tpu_custom_call.1} parent=23 // pred_check
          %p131 = pneg %p32
        $region26: #{tpu_custom_call.1} parent=23 // pred_check_branch
          %133 = sbr.rel (%p131) target = $region28
        $region27: #{tpu_custom_call.1} parent=23 // pred_region
          %p134 = scmp.lt.s32.totalorder %s12, 1
          %s135 = scalar_select %p134, %s12, 1
          %s136 = smul.addr %s135, 10
          %s137 = smul.addr %s136, 4
          %s138 = scalar_lea.vmem %s0, %s137
        $region28: #{tpu_custom_call.1} parent=23 // pred_fallthru
          _
      $region24: #{tpu_custom_call.1} parent=5 // pred_fallthru
        _
      %p139 = scmp.le.s32.totalorder 1, %s12
      %p140 = scmp.lt.s32.totalorder %s12, 3
      %p141 = pnand %p139, %p140
      %p142 = pneg %p141
      // Predicated region
      $region29: #{tpu_custom_call.1} parent=5 // pred_check
        _
      $region30: #{tpu_custom_call.1} parent=5 // pred_check_branch
        %144 = sbr.rel (%p141) target = $region32
      $region31: #{tpu_custom_call.1} parent=5 // pred_region
        %s145 = ssub.s32 %s12, 1
        %p146 = scmp.lt.s32.totalorder %s17, 1
        %s147 = scalar_select %p146, %s17, 1
        %s148 = smul.addr %s147, 10
        %s149 = smul.addr %s148, 4
        %s150 = scalar_lea.vmem %s0, %s149
        %p151 = pneg %p38
        %p152 = pneg %p35
        %p153 = pneg %p59
        %p154 = pneg %p56
        %p155 = pneg %p80
        %p156 = pneg %p77
        %p157 = pneg %p106
        %p158 = pneg %p103
        %s159 = sand.u32 %s93, 1
        %s160 = scalar_lea.sflag [#allocation3], %s159
        %s161 = sand.u32 %s93, 1
        %s162 = smul.addr %s161, 64
        %s163 = scalar_lea.vmem [#allocation2], %s162
        %p164 = scmp.lt.s32.totalorder %s17, 1
        %s165 = scalar_select %p164, %s17, 1
        %s166 = smul.addr %s165, 10
        %s167 = smul.addr %s166, 4
        %s168 = scalar_lea.vmem %s0, %s167
        %v169 = vld [vmem:[%s2] sm:$0xff]
        %v170 = vld [vmem:[%s1] sm:$0xff]
        %v171 = vld [vmem:[%s168] sm:$0xff]
        %v172 = vld [vmem:[%s168 + $0x8] sm:$0xff]
        %v173 = vld [vmem:[%s168 + $0x10] sm:$0xff]
        %v174 = vld [vmem:[%s168 + $0x18] sm:$0xff]
        %s175 = scalar_lea.vmem %s1, 8
        %v176 = vld [vmem:[%s175] sm:$0xff]
        %v177 = vld [vmem:[%s168 + $0x20] sm:$0xf]
        %v183 = vcombine.high %v171, %v171
        %v184 = vcombine.high %v172, %v172
        %v185 = vcombine.high %v173, %v173
        %v186 = vcombine.high %v174, %v174
        %187 = vrot.lane.b32.xlu0 %v171, 127
        %v188 = vpop.permute.xlu0 %187
        %189 = vrot.lane.b32.xlu0 %v183, 127
        %v190 = vpop.permute.xlu0 %189
        %191 = vrot.lane.b32.xlu0 %v172, 127
        %v192 = vpop.permute.xlu0 %191
        %193 = vrot.lane.b32.xlu0 %v184, 127
        %v194 = vpop.permute.xlu0 %193
        %195 = vrot.lane.b32.xlu0 %v173, 127
        %v196 = vpop.permute.xlu0 %195
        %197 = vrot.lane.b32.xlu0 %v185, 127
        %v198 = vpop.permute.xlu0 %197
        %199 = vrot.lane.b32.xlu0 %v174, 127
        %v200 = vpop.permute.xlu0 %199
        %201 = vrot.lane.b32.xlu0 %v186, 127
        %v202 = vpop.permute.xlu0 %201
        %203 = vrot.lane.b32.xlu0 %v177, 127
        %v204 = vpop.permute.xlu0 %203
        %vm205 = vcmask 1039360
        %v206 = vsel %vm205, %v188, %v190
        %v207 = vsel %vm205, %v190, %v192
        %v208 = vsel %vm205, %v192, %v194
        %v209 = vsel %vm205, %v194, %v196
        %v210 = vsel %vm205, %v196, %v198
        %v211 = vsel %vm205, %v198, %v200
        %v212 = vsel %vm205, %v200, %v202
        %v213 = vsel %vm205, %v202, %v204
        %vm214 = vcmask 31744
        %v216 = vsel %vm214, %v176, 0
        %vm218 = vcmask 1043456
        %v219 = vsel %vm218, %v206, 0
        %v221 = vsel %vm218, %v207, 0
        %v223 = vsel %vm218, %v208, 0
        %v225 = vsel %vm218, %v209, 0
        %v227 = vsel %vm218, %v210, 0
        %v229 = vsel %vm218, %v211, 0
        %v231 = vsel %vm218, %v212, 0
        %v233 = vsel %vm218, %v213, 0
        %235 = vmatprep.subr.mxu0 %v221
        %236 = vmatpush1.msra.mxu0 %v219
        %237 = vmatprep.subr.mxu0 0.0
        %238 = vmatpush1.msra.mxu0 0.0
        %239 = vmatprep.subr.mxu0 0.0
        %240 = vmatpush1.msra.mxu0 0.0
        %241 = vmatprep.subr.mxu0 0.0
        %242 = vmatpush1.msra.mxu0 0.0
        %243 = vmatprep.subr.mxu0 0.0
        %244 = vmatpush1.msra.mxu0 0.0
        %245 = vmatprep.subr.mxu0 0.0
        %246 = vmatpush1.msra.mxu0 0.0
        %247 = vmatprep.subr.mxu0 0.0
        %248 = vmatpush1.msra.mxu0 0.0
        %249 = vmatprep.subr.mxu0 0.0
        %250 = vmatpush1.msra.mxu0 0.0
        %251 = vmatprep.subr.mxu0 0.0
        %252 = vmatpush1.msra.mxu0 0.0
        %253 = vmatprep.subr.mxu0 0.0
        %254 = vmatpush1.msra.mxu0 0.0
        %255 = vmatprep.subr.mxu0 0.0
        %256 = vmatpush1.msra.mxu0 0.0
        %257 = vmatprep.subr.mxu0 0.0
        %258 = vmatpush1.msra.mxu0 0.0
        %259 = vmatprep.subr.mxu0 0.0
        %260 = vmatpush1.msra.mxu0 0.0
        %261 = vmatprep.subr.mxu0 0.0
        %262 = vmatpush1.msra.mxu0 0.0
        %263 = vmatprep.subr.mxu0 0.0
        %264 = vmatpush1.msra.mxu0 0.0
        %265 = vmatprep.subr.mxu0 0.0
        %266 = vmatpush1.msra.mxu0 0.0
        %267 = vmatprep.subr.mxu0 0.0
        %268 = vmatpush1.msra.mxu0 0.0
        %269 = vmatprep.subr.mxu0 0.0
        %270 = vmatpush1.msra.mxu0 0.0
        %271 = vmatprep.subr.mxu0 0.0
        %272 = vmatpush1.msra.mxu0 0.0
        %273 = vmatprep.subr.mxu0 0.0
        %274 = vmatpush1.msra.mxu0 0.0
        %275 = vmatprep.subr.mxu0 0.0
        %276 = vmatpush1.msra.mxu0 0.0
        %277 = vmatprep.subr.mxu0 0.0
        %278 = vmatpush1.msra.mxu0 0.0
        %279 = vmatprep.subr.mxu0 0.0
        %280 = vmatpush1.msra.mxu0 0.0
        %281 = vmatprep.subr.mxu0 0.0
        %282 = vmatpush1.msra.mxu0 0.0
        %283 = vmatprep.subr.mxu0 0.0
        %284 = vmatpush1.msra.mxu0 0.0
        %285 = vmatprep.subr.mxu0 0.0
        %286 = vmatpush1.msra.mxu0 0.0
        %287 = vmatprep.subr.mxu0 0.0
        %288 = vmatpush1.msra.mxu0 0.0
        %289 = vmatprep.subr.mxu0 0.0
        %290 = vmatpush1.msra.mxu0 0.0
        %291 = vmatprep.subr.mxu0 0.0
        %292 = vmatpush1.msra.mxu0 0.0
        %293 = vmatprep.subr.mxu0 0.0
        %294 = vmatpush1.msra.mxu0 0.0
        %295 = vmatprep.subr.mxu0 0.0
        %296 = vmatpush1.msra.mxu0 0.0
        %297 = vmatprep.subr.mxu0 0.0
        %298 = vmatpush1.msra.mxu0 0.0
        %299 = vmatprep.mubr.f32.mxu0 0.0
        %300 = vmatmul.mubr.f32.gmra.mrb[0].mxu0 %v216
        %v301 = vpop.f32.mrb[0].mxu0
        %v302 = vadd.f32 0.0, %v301
        %v303 = vpop.f32.mrb[0].mxu0
        %v304 = vadd.f32 0.0, %v303
        %305 = vdwg.mxu0
        %306 = vmatprep.subr.mxu0 %v225
        %307 = vmatpush1.msra.mxu0 %v223
        %308 = vmatprep.subr.mxu0 0.0
        %309 = vmatpush1.msra.mxu0 0.0
        %310 = vmatprep.subr.mxu0 0.0
        %311 = vmatpush1.msra.mxu0 0.0
        %312 = vmatprep.subr.mxu0 0.0
        %313 = vmatpush1.msra.mxu0 0.0
        %314 = vmatprep.subr.mxu0 0.0
        %315 = vmatpush1.msra.mxu0 0.0
        %316 = vmatprep.subr.mxu0 0.0
        %317 = vmatpush1.msra.mxu0 0.0
        %318 = vmatprep.subr.mxu0 0.0
        %319 = vmatpush1.msra.mxu0 0.0
        %320 = vmatprep.subr.mxu0 0.0
        %321 = vmatpush1.msra.mxu0 0.0
        %322 = vmatprep.subr.mxu0 0.0
        %323 = vmatpush1.msra.mxu0 0.0
        %324 = vmatprep.subr.mxu0 0.0
        %325 = vmatpush1.msra.mxu0 0.0
        %326 = vmatprep.subr.mxu0 0.0
        %327 = vmatpush1.msra.mxu0 0.0
        %328 = vmatprep.subr.mxu0 0.0
        %329 = vmatpush1.msra.mxu0 0.0
        %330 = vmatprep.subr.mxu0 0.0
        %331 = vmatpush1.msra.mxu0 0.0
        %332 = vmatprep.subr.mxu0 0.0
        %333 = vmatpush1.msra.mxu0 0.0
        %334 = vmatprep.subr.mxu0 0.0
        %335 = vmatpush1.msra.mxu0 0.0
        %336 = vmatprep.subr.mxu0 0.0
        %337 = vmatpush1.msra.mxu0 0.0
        %338 = vmatprep.subr.mxu0 0.0
        %339 = vmatpush1.msra.mxu0 0.0
        %340 = vmatprep.subr.mxu0 0.0
        %341 = vmatpush1.msra.mxu0 0.0
        %342 = vmatprep.subr.mxu0 0.0
        %343 = vmatpush1.msra.mxu0 0.0
        %344 = vmatprep.subr.mxu0 0.0
        %345 = vmatpush1.msra.mxu0 0.0
        %346 = vmatprep.subr.mxu0 0.0
        %347 = vmatpush1.msra.mxu0 0.0
        %348 = vmatprep.subr.mxu0 0.0
        %349 = vmatpush1.msra.mxu0 0.0
        %350 = vmatprep.subr.mxu0 0.0
        %351 = vmatpush1.msra.mxu0 0.0
        %352 = vmatprep.subr.mxu0 0.0
        %353 = vmatpush1.msra.mxu0 0.0
        %354 = vmatprep.subr.mxu0 0.0
        %355 = vmatpush1.msra.mxu0 0.0
        %356 = vmatprep.subr.mxu0 0.0
        %357 = vmatpush1.msra.mxu0 0.0
        %358 = vmatprep.subr.mxu0 0.0
        %359 = vmatpush1.msra.mxu0 0.0
        %360 = vmatprep.subr.mxu0 0.0
        %361 = vmatpush1.msra.mxu0 0.0
        %362 = vmatprep.subr.mxu0 0.0
        %363 = vmatpush1.msra.mxu0 0.0
        %364 = vmatprep.subr.mxu0 0.0
        %365 = vmatpush1.msra.mxu0 0.0
        %366 = vmatprep.subr.mxu0 0.0
        %367 = vmatpush1.msra.mxu0 0.0
        %368 = vmatprep.subr.mxu0 0.0
        %369 = vmatpush1.msra.mxu0 0.0
        %370 = vmatprep.mubr.f32.mxu0 0.0
        %371 = vmatmul.mubr.f32.gmra.mrb[0].mxu0 %v216
        %v372 = vpop.f32.mrb[0].mxu0
        %v373 = vadd.f32 0.0, %v372
        %v374 = vpop.f32.mrb[0].mxu0
        %v375 = vadd.f32 0.0, %v374
        %376 = vdwg.mxu0
        %377 = vmatprep.subr.mxu0 %v229
        %378 = vmatpush1.msra.mxu0 %v227
        %379 = vmatprep.subr.mxu0 0.0
        %380 = vmatpush1.msra.mxu0 0.0
        %381 = vmatprep.subr.mxu0 0.0
        %382 = vmatpush1.msra.mxu0 0.0
        %383 = vmatprep.subr.mxu0 0.0
        %384 = vmatpush1.msra.mxu0 0.0
        %385 = vmatprep.subr.mxu0 0.0
        %386 = vmatpush1.msra.mxu0 0.0
        %387 = vmatprep.subr.mxu0 0.0
        %388 = vmatpush1.msra.mxu0 0.0
        %389 = vmatprep.subr.mxu0 0.0
        %390 = vmatpush1.msra.mxu0 0.0
        %391 = vmatprep.subr.mxu0 0.0
        %392 = vmatpush1.msra.mxu0 0.0
        %393 = vmatprep.subr.mxu0 0.0
        %394 = vmatpush1.msra.mxu0 0.0
        %395 = vmatprep.subr.mxu0 0.0
        %396 = vmatpush1.msra.mxu0 0.0
        %397 = vmatprep.subr.mxu0 0.0
        %398 = vmatpush1.msra.mxu0 0.0
        %399 = vmatprep.subr.mxu0 0.0
        %400 = vmatpush1.msra.mxu0 0.0
        %401 = vmatprep.subr.mxu0 0.0
        %402 = vmatpush1.msra.mxu0 0.0
        %403 = vmatprep.subr.mxu0 0.0
        %404 = vmatpush1.msra.mxu0 0.0
        %405 = vmatprep.subr.mxu0 0.0
        %406 = vmatpush1.msra.mxu0 0.0
        %407 = vmatprep.subr.mxu0 0.0
        %408 = vmatpush1.msra.mxu0 0.0
        %409 = vmatprep.subr.mxu0 0.0
        %410 = vmatpush1.msra.mxu0 0.0
        %411 = vmatprep.subr.mxu0 0.0
        %412 = vmatpush1.msra.mxu0 0.0
        %413 = vmatprep.subr.mxu0 0.0
        %414 = vmatpush1.msra.mxu0 0.0
        %415 = vmatprep.subr.mxu0 0.0
        %416 = vmatpush1.msra.mxu0 0.0
        %417 = vmatprep.subr.mxu0 0.0
        %418 = vmatpush1.msra.mxu0 0.0
        %419 = vmatprep.subr.mxu0 0.0
        %420 = vmatpush1.msra.mxu0 0.0
        %421 = vmatprep.subr.mxu0 0.0
        %422 = vmatpush1.msra.mxu0 0.0
        %423 = vmatprep.subr.mxu0 0.0
        %424 = vmatpush1.msra.mxu0 0.0
        %425 = vmatprep.subr.mxu0 0.0
        %426 = vmatpush1.msra.mxu0 0.0
        %427 = vmatprep.subr.mxu0 0.0
        %428 = vmatpush1.msra.mxu0 0.0
        %429 = vmatprep.subr.mxu0 0.0
        %430 = vmatpush1.msra.mxu0 0.0
        %431 = vmatprep.subr.mxu0 0.0
        %432 = vmatpush1.msra.mxu0 0.0
        %433 = vmatprep.subr.mxu0 0.0
        %434 = vmatpush1.msra.mxu0 0.0
        %435 = vmatprep.subr.mxu0 0.0
        %436 = vmatpush1.msra.mxu0 0.0
        %437 = vmatprep.subr.mxu0 0.0
        %438 = vmatpush1.msra.mxu0 0.0
        %439 = vmatprep.subr.mxu0 0.0
        %440 = vmatpush1.msra.mxu0 0.0
        %441 = vmatprep.mubr.f32.mxu0 0.0
        %442 = vmatmul.mubr.f32.gmra.mrb[0].mxu0 %v216
        %v443 = vpop.f32.mrb[0].mxu0
        %v444 = vadd.f32 0.0, %v443
        %v445 = vpop.f32.mrb[0].mxu0
        %v446 = vadd.f32 0.0, %v445
        %447 = vdwg.mxu0
        %448 = vmatprep.subr.mxu0 %v233
        %449 = vmatpush1.msra.mxu0 %v231
        %450 = vmatprep.subr.mxu0 0.0
        %451 = vmatpush1.msra.mxu0 0.0
        %452 = vmatprep.subr.mxu0 0.0
        %453 = vmatpush1.msra.mxu0 0.0
        %454 = vmatprep.subr.mxu0 0.0
        %455 = vmatpush1.msra.mxu0 0.0
        %456 = vmatprep.subr.mxu0 0.0
        %457 = vmatpush1.msra.mxu0 0.0
        %458 = vmatprep.subr.mxu0 0.0
        %459 = vmatpush1.msra.mxu0 0.0
        %460 = vmatprep.subr.mxu0 0.0
        %461 = vmatpush1.msra.mxu0 0.0
        %462 = vmatprep.subr.mxu0 0.0
        %463 = vmatpush1.msra.mxu0 0.0
        %464 = vmatprep.subr.mxu0 0.0
        %465 = vmatpush1.msra.mxu0 0.0
        %466 = vmatprep.subr.mxu0 0.0
        %467 = vmatpush1.msra.mxu0 0.0
        %468 = vmatprep.subr.mxu0 0.0
        %469 = vmatpush1.msra.mxu0 0.0
        %470 = vmatprep.subr.mxu0 0.0
        %471 = vmatpush1.msra.mxu0 0.0
        %472 = vmatprep.subr.mxu0 0.0
        %473 = vmatpush1.msra.mxu0 0.0
        %474 = vmatprep.subr.mxu0 0.0
        %475 = vmatpush1.msra.mxu0 0.0
        %476 = vmatprep.subr.mxu0 0.0
        %477 = vmatpush1.msra.mxu0 0.0
        %478 = vmatprep.subr.mxu0 0.0
        %479 = vmatpush1.msra.mxu0 0.0
        %480 = vmatprep.subr.mxu0 0.0
        %481 = vmatpush1.msra.mxu0 0.0
        %482 = vmatprep.subr.mxu0 0.0
        %483 = vmatpush1.msra.mxu0 0.0
        %484 = vmatprep.subr.mxu0 0.0
        %485 = vmatpush1.msra.mxu0 0.0
        %486 = vmatprep.subr.mxu0 0.0
        %487 = vmatpush1.msra.mxu0 0.0
        %488 = vmatprep.subr.mxu0 0.0
        %489 = vmatpush1.msra.mxu0 0.0
        %490 = vmatprep.subr.mxu0 0.0
        %491 = vmatpush1.msra.mxu0 0.0
        %492 = vmatprep.subr.mxu0 0.0
        %493 = vmatpush1.msra.mxu0 0.0
        %494 = vmatprep.subr.mxu0 0.0
        %495 = vmatpush1.msra.mxu0 0.0
        %496 = vmatprep.subr.mxu0 0.0
        %497 = vmatpush1.msra.mxu0 0.0
        %498 = vmatprep.subr.mxu0 0.0
        %499 = vmatpush1.msra.mxu0 0.0
        %500 = vmatprep.subr.mxu0 0.0
        %501 = vmatpush1.msra.mxu0 0.0
        %502 = vmatprep.subr.mxu0 0.0
        %503 = vmatpush1.msra.mxu0 0.0
        %504 = vmatprep.subr.mxu0 0.0
        %505 = vmatpush1.msra.mxu0 0.0
        %506 = vmatprep.subr.mxu0 0.0
        %507 = vmatpush1.msra.mxu0 0.0
        %508 = vmatprep.subr.mxu0 0.0
        %509 = vmatpush1.msra.mxu0 0.0
        %510 = vmatprep.subr.mxu0 0.0
        %511 = vmatpush1.msra.mxu0 0.0
        %512 = vmatprep.mubr.f32.mxu0 0.0
        %513 = vmatmul.mubr.f32.gmra.mrb[0].mxu0 %v216
        %v514 = vpop.f32.mrb[0].mxu0
        %v515 = vadd.f32 0.0, %v514
        %v516 = vpop.f32.mrb[0].mxu0
        %v517 = vadd.f32 0.0, %v516
        %518 = vdwg.mxu0
        %v520 = vsel %vm214, %v170, 0
        %v522 = vsel %vm218, %v171, 0
        %v524 = vsel %vm218, %v183, 0
        %v526 = vsel %vm218, %v172, 0
        %v528 = vsel %vm218, %v184, 0
        %v530 = vsel %vm218, %v173, 0
        %v532 = vsel %vm218, %v185, 0
        %v534 = vsel %vm218, %v174, 0
        %v536 = vsel %vm218, %v186, 0
        %538 = vmatprep.subr.mxu0 %v524
        %539 = vmatpush1.msra.mxu0 %v522
        %540 = vmatprep.subr.mxu0 0.0
        %541 = vmatpush1.msra.mxu0 0.0
        %542 = vmatprep.subr.mxu0 0.0
        %543 = vmatpush1.msra.mxu0 0.0
        %544 = vmatprep.subr.mxu0 0.0
        %545 = vmatpush1.msra.mxu0 0.0
        %546 = vmatprep.subr.mxu0 0.0
        %547 = vmatpush1.msra.mxu0 0.0
        %548 = vmatprep.subr.mxu0 0.0
        %549 = vmatpush1.msra.mxu0 0.0
        %550 = vmatprep.subr.mxu0 0.0
        %551 = vmatpush1.msra.mxu0 0.0
        %552 = vmatprep.subr.mxu0 0.0
        %553 = vmatpush1.msra.mxu0 0.0
        %554 = vmatprep.subr.mxu0 0.0
        %555 = vmatpush1.msra.mxu0 0.0
        %556 = vmatprep.subr.mxu0 0.0
        %557 = vmatpush1.msra.mxu0 0.0
        %558 = vmatprep.subr.mxu0 0.0
        %559 = vmatpush1.msra.mxu0 0.0
        %560 = vmatprep.subr.mxu0 0.0
        %561 = vmatpush1.msra.mxu0 0.0
        %562 = vmatprep.subr.mxu0 0.0
        %563 = vmatpush1.msra.mxu0 0.0
        %564 = vmatprep.subr.mxu0 0.0
        %565 = vmatpush1.msra.mxu0 0.0
        %566 = vmatprep.subr.mxu0 0.0
        %567 = vmatpush1.msra.mxu0 0.0
        %568 = vmatprep.subr.mxu0 0.0
        %569 = vmatpush1.msra.mxu0 0.0
        %570 = vmatprep.subr.mxu0 0.0
        %571 = vmatpush1.msra.mxu0 0.0
        %572 = vmatprep.subr.mxu0 0.0
        %573 = vmatpush1.msra.mxu0 0.0
        %574 = vmatprep.subr.mxu0 0.0
        %575 = vmatpush1.msra.mxu0 0.0
        %576 = vmatprep.subr.mxu0 0.0
        %577 = vmatpush1.msra.mxu0 0.0
        %578 = vmatprep.subr.mxu0 0.0
        %579 = vmatpush1.msra.mxu0 0.0
        %580 = vmatprep.subr.mxu0 0.0
        %581 = vmatpush1.msra.mxu0 0.0
        %582 = vmatprep.subr.mxu0 0.0
        %583 = vmatpush1.msra.mxu0 0.0
        %584 = vmatprep.subr.mxu0 0.0
        %585 = vmatpush1.msra.mxu0 0.0
        %586 = vmatprep.subr.mxu0 0.0
        %587 = vmatpush1.msra.mxu0 0.0
        %588 = vmatprep.subr.mxu0 0.0
        %589 = vmatpush1.msra.mxu0 0.0
        %590 = vmatprep.subr.mxu0 0.0
        %591 = vmatpush1.msra.mxu0 0.0
        %592 = vmatprep.subr.mxu0 0.0
        %593 = vmatpush1.msra.mxu0 0.0
        %594 = vmatprep.subr.mxu0 0.0
        %595 = vmatpush1.msra.mxu0 0.0
        %596 = vmatprep.subr.mxu0 0.0
        %597 = vmatpush1.msra.mxu0 0.0
        %598 = vmatprep.subr.mxu0 0.0
        %599 = vmatpush1.msra.mxu0 0.0
        %600 = vmatprep.subr.mxu0 0.0
        %601 = vmatpush1.msra.mxu0 0.0
        %602 = vmatprep.mubr.f32.mxu0 0.0
        %603 = vmatmul.mubr.f32.gmra.mrb[0].mxu0 %v520
        %v604 = vpop.f32.mrb[0].mxu0
        %v605 = vadd.f32 %v302, %v604
        %v606 = vpop.f32.mrb[0].mxu0
        %v607 = vadd.f32 %v304, %v606
        %608 = vdwg.mxu0
        %609 = vmatprep.subr.mxu0 %v528
        %610 = vmatpush1.msra.mxu0 %v526
        %611 = vmatprep.subr.mxu0 0.0
        %612 = vmatpush1.msra.mxu0 0.0
        %613 = vmatprep.subr.mxu0 0.0
        %614 = vmatpush1.msra.mxu0 0.0
        %615 = vmatprep.subr.mxu0 0.0
        %616 = vmatpush1.msra.mxu0 0.0
        %617 = vmatprep.subr.mxu0 0.0
        %618 = vmatpush1.msra.mxu0 0.0
        %619 = vmatprep.subr.mxu0 0.0
        %620 = vmatpush1.msra.mxu0 0.0
        %621 = vmatprep.subr.mxu0 0.0
        %622 = vmatpush1.msra.mxu0 0.0
        %623 = vmatprep.subr.mxu0 0.0
        %624 = vmatpush1.msra.mxu0 0.0
        %625 = vmatprep.subr.mxu0 0.0
        %626 = vmatpush1.msra.mxu0 0.0
        %627 = vmatprep.subr.mxu0 0.0
        %628 = vmatpush1.msra.mxu0 0.0
        %629 = vmatprep.subr.mxu0 0.0
        %630 = vmatpush1.msra.mxu0 0.0
        %631 = vmatprep.subr.mxu0 0.0
        %632 = vmatpush1.msra.mxu0 0.0
        %633 = vmatprep.subr.mxu0 0.0
        %634 = vmatpush1.msra.mxu0 0.0
        %635 = vmatprep.subr.mxu0 0.0
        %636 = vmatpush1.msra.mxu0 0.0
        %637 = vmatprep.subr.mxu0 0.0
        %638 = vmatpush1.msra.mxu0 0.0
        %639 = vmatprep.subr.mxu0 0.0
        %640 = vmatpush1.msra.mxu0 0.0
        %641 = vmatprep.subr.mxu0 0.0
        %642 = vmatpush1.msra.mxu0 0.0
        %643 = vmatprep.subr.mxu0 0.0
        %644 = vmatpush1.msra.mxu0 0.0
        %645 = vmatprep.subr.mxu0 0.0
        %646 = vmatpush1.msra.mxu0 0.0
        %647 = vmatprep.subr.mxu0 0.0
        %648 = vmatpush1.msra.mxu0 0.0
        %649 = vmatprep.subr.mxu0 0.0
        %650 = vmatpush1.msra.mxu0 0.0
        %651 = vmatprep.subr.mxu0 0.0
        %652 = vmatpush1.msra.mxu0 0.0
        %653 = vmatprep.subr.mxu0 0.0
        %654 = vmatpush1.msra.mxu0 0.0
        %655 = vmatprep.subr.mxu0 0.0
        %656 = vmatpush1.msra.mxu0 0.0
        %657 = vmatprep.subr.mxu0 0.0
        %658 = vmatpush1.msra.mxu0 0.0
        %659 = vmatprep.subr.mxu0 0.0
        %660 = vmatpush1.msra.mxu0 0.0
        %661 = vmatprep.subr.mxu0 0.0
        %662 = vmatpush1.msra.mxu0 0.0
        %663 = vmatprep.subr.mxu0 0.0
        %664 = vmatpush1.msra.mxu0 0.0
        %665 = vmatprep.subr.mxu0 0.0
        %666 = vmatpush1.msra.mxu0 0.0
        %667 = vmatprep.subr.mxu0 0.0
        %668 = vmatpush1.msra.mxu0 0.0
        %669 = vmatprep.subr.mxu0 0.0
        %670 = vmatpush1.msra.mxu0 0.0
        %671 = vmatprep.subr.mxu0 0.0
        %672 = vmatpush1.msra.mxu0 0.0
        %673 = vmatprep.mubr.f32.mxu0 0.0
        %674 = vmatmul.mubr.f32.gmra.mrb[0].mxu0 %v520
        %v675 = vpop.f32.mrb[0].mxu0
        %v676 = vadd.f32 %v373, %v675
        %v677 = vpop.f32.mrb[0].mxu0
        %v678 = vadd.f32 %v375, %v677
        %679 = vdwg.mxu0
        %680 = vmatprep.subr.mxu0 %v532
        %681 = vmatpush1.msra.mxu0 %v530
        %682 = vmatprep.subr.mxu0 0.0
        %683 = vmatpush1.msra.mxu0 0.0
        %684 = vmatprep.subr.mxu0 0.0
        %685 = vmatpush1.msra.mxu0 0.0
        %686 = vmatprep.subr.mxu0 0.0
        %687 = vmatpush1.msra.mxu0 0.0
        %688 = vmatprep.subr.mxu0 0.0
        %689 = vmatpush1.msra.mxu0 0.0
        %690 = vmatprep.subr.mxu0 0.0
        %691 = vmatpush1.msra.mxu0 0.0
        %692 = vmatprep.subr.mxu0 0.0
        %693 = vmatpush1.msra.mxu0 0.0
        %694 = vmatprep.subr.mxu0 0.0
        %695 = vmatpush1.msra.mxu0 0.0
        %696 = vmatprep.subr.mxu0 0.0
        %697 = vmatpush1.msra.mxu0 0.0
        %698 = vmatprep.subr.mxu0 0.0
        %699 = vmatpush1.msra.mxu0 0.0
        %700 = vmatprep.subr.mxu0 0.0
        %701 = vmatpush1.msra.mxu0 0.0
        %702 = vmatprep.subr.mxu0 0.0
        %703 = vmatpush1.msra.mxu0 0.0
        %704 = vmatprep.subr.mxu0 0.0
        %705 = vmatpush1.msra.mxu0 0.0
        %706 = vmatprep.subr.mxu0 0.0
        %707 = vmatpush1.msra.mxu0 0.0
        %708 = vmatprep.subr.mxu0 0.0
        %709 = vmatpush1.msra.mxu0 0.0
        %710 = vmatprep.subr.mxu0 0.0
        %711 = vmatpush1.msra.mxu0 0.0
        %712 = vmatprep.subr.mxu0 0.0
        %713 = vmatpush1.msra.mxu0 0.0
        %714 = vmatprep.subr.mxu0 0.0
        %715 = vmatpush1.msra.mxu0 0.0
        %716 = vmatprep.subr.mxu0 0.0
        %717 = vmatpush1.msra.mxu0 0.0
        %718 = vmatprep.subr.mxu0 0.0
        %719 = vmatpush1.msra.mxu0 0.0
        %720 = vmatprep.subr.mxu0 0.0
        %721 = vmatpush1.msra.mxu0 0.0
        %722 = vmatprep.subr.mxu0 0.0
        %723 = vmatpush1.msra.mxu0 0.0
        %724 = vmatprep.subr.mxu0 0.0
        %725 = vmatpush1.msra.mxu0 0.0
        %726 = vmatprep.subr.mxu0 0.0
        %727 = vmatpush1.msra.mxu0 0.0
        %728 = vmatprep.subr.mxu0 0.0
        %729 = vmatpush1.msra.mxu0 0.0
        %730 = vmatprep.subr.mxu0 0.0
        %731 = vmatpush1.msra.mxu0 0.0
        %732 = vmatprep.subr.mxu0 0.0
        %733 = vmatpush1.msra.mxu0 0.0
        %734 = vmatprep.subr.mxu0 0.0
        %735 = vmatpush1.msra.mxu0 0.0
        %736 = vmatprep.subr.mxu0 0.0
        %737 = vmatpush1.msra.mxu0 0.0
        %738 = vmatprep.subr.mxu0 0.0
        %739 = vmatpush1.msra.mxu0 0.0
        %740 = vmatprep.subr.mxu0 0.0
        %741 = vmatpush1.msra.mxu0 0.0
        %742 = vmatprep.subr.mxu0 0.0
        %743 = vmatpush1.msra.mxu0 0.0
        %744 = vmatprep.mubr.f32.mxu0 0.0
        %745 = vmatmul.mubr.f32.gmra.mrb[0].mxu0 %v520
        %v746 = vpop.f32.mrb[0].mxu0
        %v747 = vadd.f32 %v444, %v746
        %v748 = vpop.f32.mrb[0].mxu0
        %v749 = vadd.f32 %v446, %v748
        %750 = vdwg.mxu0
        %751 = vmatprep.subr.mxu0 %v536
        %752 = vmatpush1.msra.mxu0 %v534
        %753 = vmatprep.subr.mxu0 0.0
        %754 = vmatpush1.msra.mxu0 0.0
        %755 = vmatprep.subr.mxu0 0.0
        %756 = vmatpush1.msra.mxu0 0.0
        %757 = vmatprep.subr.mxu0 0.0
        %758 = vmatpush1.msra.mxu0 0.0
        %759 = vmatprep.subr.mxu0 0.0
        %760 = vmatpush1.msra.mxu0 0.0
        %761 = vmatprep.subr.mxu0 0.0
        %762 = vmatpush1.msra.mxu0 0.0
        %763 = vmatprep.subr.mxu0 0.0
        %764 = vmatpush1.msra.mxu0 0.0
        %765 = vmatprep.subr.mxu0 0.0
        %766 = vmatpush1.msra.mxu0 0.0
        %767 = vmatprep.subr.mxu0 0.0
        %768 = vmatpush1.msra.mxu0 0.0
        %769 = vmatprep.subr.mxu0 0.0
        %770 = vmatpush1.msra.mxu0 0.0
        %771 = vmatprep.subr.mxu0 0.0
        %772 = vmatpush1.msra.mxu0 0.0
        %773 = vmatprep.subr.mxu0 0.0
        %774 = vmatpush1.msra.mxu0 0.0
        %775 = vmatprep.subr.mxu0 0.0
        %776 = vmatpush1.msra.mxu0 0.0
        %777 = vmatprep.subr.mxu0 0.0
        %778 = vmatpush1.msra.mxu0 0.0
        %779 = vmatprep.subr.mxu0 0.0
        %780 = vmatpush1.msra.mxu0 0.0
        %781 = vmatprep.subr.mxu0 0.0
        %782 = vmatpush1.msra.mxu0 0.0
        %783 = vmatprep.subr.mxu0 0.0
        %784 = vmatpush1.msra.mxu0 0.0
        %785 = vmatprep.subr.mxu0 0.0
        %786 = vmatpush1.msra.mxu0 0.0
        %787 = vmatprep.subr.mxu0 0.0
        %788 = vmatpush1.msra.mxu0 0.0
        %789 = vmatprep.subr.mxu0 0.0
        %790 = vmatpush1.msra.mxu0 0.0
        %791 = vmatprep.subr.mxu0 0.0
        %792 = vmatpush1.msra.mxu0 0.0
        %793 = vmatprep.subr.mxu0 0.0
        %794 = vmatpush1.msra.mxu0 0.0
        %795 = vmatprep.subr.mxu0 0.0
        %796 = vmatpush1.msra.mxu0 0.0
        %797 = vmatprep.subr.mxu0 0.0
        %798 = vmatpush1.msra.mxu0 0.0
        %799 = vmatprep.subr.mxu0 0.0
        %800 = vmatpush1.msra.mxu0 0.0
        %801 = vmatprep.subr.mxu0 0.0
        %802 = vmatpush1.msra.mxu0 0.0
        %803 = vmatprep.subr.mxu0 0.0
        %804 = vmatpush1.msra.mxu0 0.0
        %805 = vmatprep.subr.mxu0 0.0
        %806 = vmatpush1.msra.mxu0 0.0
        %807 = vmatprep.subr.mxu0 0.0
        %808 = vmatpush1.msra.mxu0 0.0
        %809 = vmatprep.subr.mxu0 0.0
        %810 = vmatpush1.msra.mxu0 0.0
        %811 = vmatprep.subr.mxu0 0.0
        %812 = vmatpush1.msra.mxu0 0.0
        %813 = vmatprep.subr.mxu0 0.0
        %814 = vmatpush1.msra.mxu0 0.0
        %815 = vmatprep.mubr.f32.mxu0 0.0
        %816 = vmatmul.mubr.f32.gmra.mrb[0].mxu0 %v520
        %v817 = vpop.f32.mrb[0].mxu0
        %v818 = vadd.f32 %v515, %v817
        %v819 = vpop.f32.mrb[0].mxu0
        %v820 = vadd.f32 %v517, %v819
        %821 = vdwg.mxu0
        %s822 = scalar_lea.vmem %s1, 16
        %v823 = vld [vmem:[%s822] sm:$0xff]
        %v824 = vld [vmem:[%s168] sm:$0xff]
        %v825 = vld [vmem:[%s168 + $0x8] sm:$0xff]
        %v826 = vld [vmem:[%s168 + $0x10] sm:$0xff]
        %v827 = vld [vmem:[%s168 + $0x18] sm:$0xff]
        %v828 = vld [vmem:[%s168 + $0x20] sm:$0xf]
        %v834 = vcombine.high %v824, %v824
        %v835 = vcombine.high %v825, %v825
        %v836 = vcombine.high %v826, %v826
        %v837 = vcombine.high %v827, %v827
        %838 = vrot.lane.b32.xlu0 %v824, 126
        %v839 = vpop.permute.xlu0 %838
        %840 = vrot.lane.b32.xlu0 %v834, 126
        %v841 = vpop.permute.xlu0 %840
        %842 = vrot.lane.b32.xlu0 %v825, 126
        %v843 = vpop.permute.xlu0 %842
        %844 = vrot.lane.b32.xlu0 %v835, 126
        %v845 = vpop.permute.xlu0 %844
        %846 = vrot.lane.b32.xlu0 %v826, 126
        %v847 = vpop.permute.xlu0 %846
        %848 = vrot.lane.b32.xlu0 %v836, 126
        %v849 = vpop.permute.xlu0 %848
        %850 = vrot.lane.b32.xlu0 %v827, 126
        %v851 = vpop.permute.xlu0 %850
        %852 = vrot.lane.b32.xlu0 %v837, 126
        %v853 = vpop.permute.xlu0 %852
        %854 = vrot.lane.b32.xlu0 %v828, 126
        %v855 = vpop.permute.xlu0 %854
        %vm856 = vcmask 1031168
        %v857 = vsel %vm856, %v839, %v841
        %v858 = vsel %vm856, %v841, %v843
        %v859 = vsel %vm856, %v843, %v845
        %v860 = vsel %vm856, %v845, %v847
        %v861 = vsel %vm856, %v847, %v849
        %v862 = vsel %vm856, %v849, %v851
        %v863 = vsel %vm856, %v851, %v853
        %v864 = vsel %vm856, %v853, %v855
        %v866 = vsel %vm214, %v823, 0
        %v868 = vsel %vm218, %v857, 0
        %v870 = vsel %vm218, %v858, 0
        %v872 = vsel %vm218, %v859, 0
        %v874 = vsel %vm218, %v860, 0
        %v876 = vsel %vm218, %v861, 0
        %v878 = vsel %vm218, %v862, 0
        %v880 = vsel %vm218, %v863, 0
        %v882 = vsel %vm218, %v864, 0
        %884 = vmatprep.subr.mxu0 %v870
        %885 = vmatpush1.msra.mxu0 %v868
        %886 = vmatprep.subr.mxu0 0.0
        %887 = vmatpush1.msra.mxu0 0.0
        %888 = vmatprep.subr.mxu0 0.0
        %889 = vmatpush1.msra.mxu0 0.0
        %890 = vmatprep.subr.mxu0 0.0
        %891 = vmatpush1.msra.mxu0 0.0
        %892 = vmatprep.subr.mxu0 0.0
        %893 = vmatpush1.msra.mxu0 0.0
        %894 = vmatprep.subr.mxu0 0.0
        %895 = vmatpush1.msra.mxu0 0.0
        %896 = vmatprep.subr.mxu0 0.0
        %897 = vmatpush1.msra.mxu0 0.0
        %898 = vmatprep.subr.mxu0 0.0
        %899 = vmatpush1.msra.mxu0 0.0
        %900 = vmatprep.subr.mxu0 0.0
        %901 = vmatpush1.msra.mxu0 0.0
        %902 = vmatprep.subr.mxu0 0.0
        %903 = vmatpush1.msra.mxu0 0.0
        %904 = vmatprep.subr.mxu0 0.0
        %905 = vmatpush1.msra.mxu0 0.0
        %906 = vmatprep.subr.mxu0 0.0
        %907 = vmatpush1.msra.mxu0 0.0
        %908 = vmatprep.subr.mxu0 0.0
        %909 = vmatpush1.msra.mxu0 0.0
        %910 = vmatprep.subr.mxu0 0.0
        %911 = vmatpush1.msra.mxu0 0.0
        %912 = vmatprep.subr.mxu0 0.0
        %913 = vmatpush1.msra.mxu0 0.0
        %914 = vmatprep.subr.mxu0 0.0
        %915 = vmatpush1.msra.mxu0 0.0
        %916 = vmatprep.subr.mxu0 0.0
        %917 = vmatpush1.msra.mxu0 0.0
        %918 = vmatprep.subr.mxu0 0.0
        %919 = vmatpush1.msra.mxu0 0.0
        %920 = vmatprep.subr.mxu0 0.0
        %921 = vmatpush1.msra.mxu0 0.0
        %922 = vmatprep.subr.mxu0 0.0
        %923 = vmatpush1.msra.mxu0 0.0
        %924 = vmatprep.subr.mxu0 0.0
        %925 = vmatpush1.msra.mxu0 0.0
        %926 = vmatprep.subr.mxu0 0.0
        %927 = vmatpush1.msra.mxu0 0.0
        %928 = vmatprep.subr.mxu0 0.0
        %929 = vmatpush1.msra.mxu0 0.0
        %930 = vmatprep.subr.mxu0 0.0
        %931 = vmatpush1.msra.mxu0 0.0
        %932 = vmatprep.subr.mxu0 0.0
        %933 = vmatpush1.msra.mxu0 0.0
        %934 = vmatprep.subr.mxu0 0.0
        %935 = vmatpush1.msra.mxu0 0.0
        %936 = vmatprep.subr.mxu0 0.0
        %937 = vmatpush1.msra.mxu0 0.0
        %938 = vmatprep.subr.mxu0 0.0
        %939 = vmatpush1.msra.mxu0 0.0
        %940 = vmatprep.subr.mxu0 0.0
        %941 = vmatpush1.msra.mxu0 0.0
        %942 = vmatprep.subr.mxu0 0.0
        %943 = vmatpush1.msra.mxu0 0.0
        %944 = vmatprep.subr.mxu0 0.0
        %945 = vmatpush1.msra.mxu0 0.0
        %946 = vmatprep.subr.mxu0 0.0
        %947 = vmatpush1.msra.mxu0 0.0
        %948 = vmatprep.mubr.f32.mxu0 0.0
        %949 = vmatmul.mubr.f32.gmra.mrb[0].mxu0 %v866
        %v950 = vpop.f32.mrb[0].mxu0
        %v951 = vadd.f32 0.0, %v950
        %v952 = vpop.f32.mrb[0].mxu0
        %v953 = vadd.f32 0.0, %v952
        %954 = vdwg.mxu0
        %955 = vmatprep.subr.mxu0 %v874
        %956 = vmatpush1.msra.mxu0 %v872
        %957 = vmatprep.subr.mxu0 0.0
        %958 = vmatpush1.msra.mxu0 0.0
        %959 = vmatprep.subr.mxu0 0.0
        %960 = vmatpush1.msra.mxu0 0.0
        %961 = vmatprep.subr.mxu0 0.0
        %962 = vmatpush1.msra.mxu0 0.0
        %963 = vmatprep.subr.mxu0 0.0
        %964 = vmatpush1.msra.mxu0 0.0
        %965 = vmatprep.subr.mxu0 0.0
        %966 = vmatpush1.msra.mxu0 0.0
        %967 = vmatprep.subr.mxu0 0.0
        %968 = vmatpush1.msra.mxu0 0.0
        %969 = vmatprep.subr.mxu0 0.0
        %970 = vmatpush1.msra.mxu0 0.0
        %971 = vmatprep.subr.mxu0 0.0
        %972 = vmatpush1.msra.mxu0 0.0
        %973 = vmatprep.subr.mxu0 0.0
        %974 = vmatpush1.msra.mxu0 0.0
        %975 = vmatprep.subr.mxu0 0.0
        %976 = vmatpush1.msra.mxu0 0.0
        %977 = vmatprep.subr.mxu0 0.0
        %978 = vmatpush1.msra.mxu0 0.0
        %979 = vmatprep.subr.mxu0 0.0
        %980 = vmatpush1.msra.mxu0 0.0
        %981 = vmatprep.subr.mxu0 0.0
        %982 = vmatpush1.msra.mxu0 0.0
        %983 = vmatprep.subr.mxu0 0.0
        %984 = vmatpush1.msra.mxu0 0.0
        %985 = vmatprep.subr.mxu0 0.0
        %986 = vmatpush1.msra.mxu0 0.0
        %987 = vmatprep.subr.mxu0 0.0
        %988 = vmatpush1.msra.mxu0 0.0
        %989 = vmatprep.subr.mxu0 0.0
        %990 = vmatpush1.msra.mxu0 0.0
        %991 = vmatprep.subr.mxu0 0.0
        %992 = vmatpush1.msra.mxu0 0.0
        %993 = vmatprep.subr.mxu0 0.0
        %994 = vmatpush1.msra.mxu0 0.0
        %995 = vmatprep.subr.mxu0 0.0
        %996 = vmatpush1.msra.mxu0 0.0
        %997 = vmatprep.subr.mxu0 0.0
        %998 = vmatpush1.msra.mxu0 0.0
        %999 = vmatprep.subr.mxu0 0.0
        %1000 = vmatpush1.msra.mxu0 0.0
        %1001 = vmatprep.subr.mxu0 0.0
        %1002 = vmatpush1.msra.mxu0 0.0
        %1003 = vmatprep.subr.mxu0 0.0
        %1004 = vmatpush1.msra.mxu0 0.0
        %1005 = vmatprep.subr.mxu0 0.0
        %1006 = vmatpush1.msra.mxu0 0.0
        %1007 = vmatprep.subr.mxu0 0.0
        %1008 = vmatpush1.msra.mxu0 0.0
        %1009 = vmatprep.subr.mxu0 0.0
        %1010 = vmatpush1.msra.mxu0 0.0
        %1011 = vmatprep.subr.mxu0 0.0
        %1012 = vmatpush1.msra.mxu0 0.0
        %1013 = vmatprep.subr.mxu0 0.0
        %1014 = vmatpush1.msra.mxu0 0.0
        %1015 = vmatprep.subr.mxu0 0.0
        %1016 = vmatpush1.msra.mxu0 0.0
        %1017 = vmatprep.subr.mxu0 0.0
        %1018 = vmatpush1.msra.mxu0 0.0
        %1019 = vmatprep.mubr.f32.mxu0 0.0
        %1020 = vmatmul.mubr.f32.gmra.mrb[0].mxu0 %v866
        %v1021 = vpop.f32.mrb[0].mxu0
        %v1022 = vadd.f32 0.0, %v1021
        %v1023 = vpop.f32.mrb[0].mxu0
        %v1024 = vadd.f32 0.0, %v1023
        %1025 = vdwg.mxu0
        %1026 = vmatprep.subr.mxu0 %v878
        %1027 = vmatpush1.msra.mxu0 %v876
        %1028 = vmatprep.subr.mxu0 0.0
        %1029 = vmatpush1.msra.mxu0 0.0
        %1030 = vmatprep.subr.mxu0 0.0
        %1031 = vmatpush1.msra.mxu0 0.0
        %1032 = vmatprep.subr.mxu0 0.0
        %1033 = vmatpush1.msra.mxu0 0.0
        %1034 = vmatprep.subr.mxu0 0.0
        %1035 = vmatpush1.msra.mxu0 0.0
        %1036 = vmatprep.subr.mxu0 0.0
        %1037 = vmatpush1.msra.mxu0 0.0
        %1038 = vmatprep.subr.mxu0 0.0
        %1039 = vmatpush1.msra.mxu0 0.0
        %1040 = vmatprep.subr.mxu0 0.0
        %1041 = vmatpush1.msra.mxu0 0.0
        %1042 = vmatprep.subr.mxu0 0.0
        %1043 = vmatpush1.msra.mxu0 0.0
        %1044 = vmatprep.subr.mxu0 0.0
        %1045 = vmatpush1.msra.mxu0 0.0
        %1046 = vmatprep.subr.mxu0 0.0
        %1047 = vmatpush1.msra.mxu0 0.0
        %1048 = vmatprep.subr.mxu0 0.0
        %1049 = vmatpush1.msra.mxu0 0.0
        %1050 = vmatprep.subr.mxu0 0.0
        %1051 = vmatpush1.msra.mxu0 0.0
        %1052 = vmatprep.subr.mxu0 0.0
        %1053 = vmatpush1.msra.mxu0 0.0
        %1054 = vmatprep.subr.mxu0 0.0
        %1055 = vmatpush1.msra.mxu0 0.0
        %1056 = vmatprep.subr.mxu0 0.0
        %1057 = vmatpush1.msra.mxu0 0.0
        %1058 = vmatprep.subr.mxu0 0.0
        %1059 = vmatpush1.msra.mxu0 0.0
        %1060 = vmatprep.subr.mxu0 0.0
        %1061 = vmatpush1.msra.mxu0 0.0
        %1062 = vmatprep.subr.mxu0 0.0
        %1063 = vmatpush1.msra.mxu0 0.0
        %1064 = vmatprep.subr.mxu0 0.0
        %1065 = vmatpush1.msra.mxu0 0.0
        %1066 = vmatprep.subr.mxu0 0.0
        %1067 = vmatpush1.msra.mxu0 0.0
        %1068 = vmatprep.subr.mxu0 0.0
        %1069 = vmatpush1.msra.mxu0 0.0
        %1070 = vmatprep.subr.mxu0 0.0
        %1071 = vmatpush1.msra.mxu0 0.0
        %1072 = vmatprep.subr.mxu0 0.0
        %1073 = vmatpush1.msra.mxu0 0.0
        %1074 = vmatprep.subr.mxu0 0.0
        %1075 = vmatpush1.msra.mxu0 0.0
        %1076 = vmatprep.subr.mxu0 0.0
        %1077 = vmatpush1.msra.mxu0 0.0
        %1078 = vmatprep.subr.mxu0 0.0
        %1079 = vmatpush1.msra.mxu0 0.0
        %1080 = vmatprep.subr.mxu0 0.0
        %1081 = vmatpush1.msra.mxu0 0.0
        %1082 = vmatprep.subr.mxu0 0.0
        %1083 = vmatpush1.msra.mxu0 0.0
        %1084 = vmatprep.subr.mxu0 0.0
        %1085 = vmatpush1.msra.mxu0 0.0
        %1086 = vmatprep.subr.mxu0 0.0
        %1087 = vmatpush1.msra.mxu0 0.0
        %1088 = vmatprep.subr.mxu0 0.0
        %1089 = vmatpush1.msra.mxu0 0.0
        %1090 = vmatprep.mubr.f32.mxu0 0.0
        %1091 = vmatmul.mubr.f32.gmra.mrb[0].mxu0 %v866
        %v1092 = vpop.f32.mrb[0].mxu0
        %v1093 = vadd.f32 0.0, %v1092
        %v1094 = vpop.f32.mrb[0].mxu0
        %v1095 = vadd.f32 0.0, %v1094
        %1096 = vdwg.mxu0
        %1097 = vmatprep.subr.mxu0 %v882
        %1098 = vmatpush1.msra.mxu0 %v880
        %1099 = vmatprep.subr.mxu0 0.0
        %1100 = vmatpush1.msra.mxu0 0.0
        %1101 = vmatprep.subr.mxu0 0.0
        %1102 = vmatpush1.msra.mxu0 0.0
        %1103 = vmatprep.subr.mxu0 0.0
        %1104 = vmatpush1.msra.mxu0 0.0
        %1105 = vmatprep.subr.mxu0 0.0
        %1106 = vmatpush1.msra.mxu0 0.0
        %1107 = vmatprep.subr.mxu0 0.0
        %1108 = vmatpush1.msra.mxu0 0.0
        %1109 = vmatprep.subr.mxu0 0.0
        %1110 = vmatpush1.msra.mxu0 0.0
        %1111 = vmatprep.subr.mxu0 0.0
        %1112 = vmatpush1.msra.mxu0 0.0
        %1113 = vmatprep.subr.mxu0 0.0
        %1114 = vmatpush1.msra.mxu0 0.0
        %1115 = vmatprep.subr.mxu0 0.0
        %1116 = vmatpush1.msra.mxu0 0.0
        %1117 = vmatprep.subr.mxu0 0.0
        %1118 = vmatpush1.msra.mxu0 0.0
        %1119 = vmatprep.subr.mxu0 0.0
        %1120 = vmatpush1.msra.mxu0 0.0
        %1121 = vmatprep.subr.mxu0 0.0
        %1122 = vmatpush1.msra.mxu0 0.0
        %1123 = vmatprep.subr.mxu0 0.0
        %1124 = vmatpush1.msra.mxu0 0.0
        %1125 = vmatprep.subr.mxu0 0.0
        %1126 = vmatpush1.msra.mxu0 0.0
        %1127 = vmatprep.subr.mxu0 0.0
        %1128 = vmatpush1.msra.mxu0 0.0
        %1129 = vmatprep.subr.mxu0 0.0
        %1130 = vmatpush1.msra.mxu0 0.0
        %1131 = vmatprep.subr.mxu0 0.0
        %1132 = vmatpush1.msra.mxu0 0.0
        %1133 = vmatprep.subr.mxu0 0.0
        %1134 = vmatpush1.msra.mxu0 0.0
        %1135 = vmatprep.subr.mxu0 0.0
        %1136 = vmatpush1.msra.mxu0 0.0
        %1137 = vmatprep.subr.mxu0 0.0
        %1138 = vmatpush1.msra.mxu0 0.0
        %1139 = vmatprep.subr.mxu0 0.0
        %1140 = vmatpush1.msra.mxu0 0.0
        %1141 = vmatprep.subr.mxu0 0.0
        %1142 = vmatpush1.msra.mxu0 0.0
        %1143 = vmatprep.subr.mxu0 0.0
        %1144 = vmatpush1.msra.mxu0 0.0
        %1145 = vmatprep.subr.mxu0 0.0
        %1146 = vmatpush1.msra.mxu0 0.0
        %1147 = vmatprep.subr.mxu0 0.0
        %1148 = vmatpush1.msra.mxu0 0.0
        %1149 = vmatprep.subr.mxu0 0.0
        %1150 = vmatpush1.msra.mxu0 0.0
        %1151 = vmatprep.subr.mxu0 0.0
        %1152 = vmatpush1.msra.mxu0 0.0
        %1153 = vmatprep.subr.mxu0 0.0
        %1154 = vmatpush1.msra.mxu0 0.0
        %1155 = vmatprep.subr.mxu0 0.0
        %1156 = vmatpush1.msra.mxu0 0.0
        %1157 = vmatprep.subr.mxu0 0.0
        %1158 = vmatpush1.msra.mxu0 0.0
        %1159 = vmatprep.subr.mxu0 0.0
        %1160 = vmatpush1.msra.mxu0 0.0
        %1161 = vmatprep.mubr.f32.mxu0 0.0
        %1162 = vmatmul.mubr.f32.gmra.mrb[0].mxu0 %v866
        %v1163 = vpop.f32.mrb[0].mxu0
        %v1164 = vadd.f32 0.0, %v1163
        %v1165 = vpop.f32.mrb[0].mxu0
        %v1166 = vadd.f32 0.0, %v1165
        %1167 = vdwg.mxu0
        %v1168 = vadd.f32 %v605, %v951
        %v1169 = vadd.f32 %v607, %v953
        %v1170 = vadd.f32 %v676, %v1022
        %v1171 = vadd.f32 %v678, %v1024
        %v1172 = vadd.f32 %v747, %v1093
        %v1173 = vadd.f32 %v749, %v1095
        %v1174 = vadd.f32 %v818, %v1164
        %v1175 = vadd.f32 %v820, %v1166
        %s1176 = scalar_lea.vmem %s1, 24
        %v1177 = vld [vmem:[%s1176] sm:$0xff]
        %v1178 = vld [vmem:[%s168] sm:$0xff]
        %v1179 = vld [vmem:[%s168 + $0x8] sm:$0xff]
        %v1180 = vld [vmem:[%s168 + $0x10] sm:$0xff]
        %v1181 = vld [vmem:[%s168 + $0x18] sm:$0xff]
        %v1182 = vld [vmem:[%s168 + $0x20] sm:$0xf]
        %v1188 = vcombine.high %v1178, %v1178
        %v1189 = vcombine.high %v1179, %v1179
        %v1190 = vcombine.high %v1180, %v1180
        %v1191 = vcombine.high %v1181, %v1181
        %1192 = vrot.lane.b32.xlu0 %v1178, 118
        %v1193 = vpop.permute.xlu0 %1192
        %1194 = vrot.lane.b32.xlu0 %v1188, 118
        %v1195 = vpop.permute.xlu0 %1194
        %1196 = vrot.lane.b32.xlu0 %v1179, 118
        %v1197 = vpop.permute.xlu0 %1196
        %1198 = vrot.lane.b32.xlu0 %v1189, 118
        %v1199 = vpop.permute.xlu0 %1198
        %1200 = vrot.lane.b32.xlu0 %v1180, 118
        %v1201 = vpop.permute.xlu0 %1200
        %1202 = vrot.lane.b32.xlu0 %v1190, 118
        %v1203 = vpop.permute.xlu0 %1202
        %1204 = vrot.lane.b32.xlu0 %v1181, 118
        %v1205 = vpop.permute.xlu0 %1204
        %1206 = vrot.lane.b32.xlu0 %v1191, 118
        %v1207 = vpop.permute.xlu0 %1206
        %1208 = vrot.lane.b32.xlu0 %v1182, 118
        %v1209 = vpop.permute.xlu0 %1208
        %vm1210 = vcmask 965632
        %v1211 = vsel %vm1210, %v1193, %v1195
        %v1212 = vsel %vm1210, %v1195, %v1197
        %v1213 = vsel %vm1210, %v1197, %v1199
        %v1214 = vsel %vm1210, %v1199, %v1201
        %v1215 = vsel %vm1210, %v1201, %v1203
        %v1216 = vsel %vm1210, %v1203, %v1205
        %v1217 = vsel %vm1210, %v1205, %v1207
        %v1218 = vsel %vm1210, %v1207, %v1209
        %v1220 = vsel %vm214, %v1177, 0
        %v1222 = vsel %vm218, %v1211, 0
        %v1224 = vsel %vm218, %v1212, 0
        %v1226 = vsel %vm218, %v1213, 0
        %v1228 = vsel %vm218, %v1214, 0
        %v1230 = vsel %vm218, %v1215, 0
        %v1232 = vsel %vm218, %v1216, 0
        %v1234 = vsel %vm218, %v1217, 0
        %v1236 = vsel %vm218, %v1218, 0
        %1238 = vmatprep.subr.mxu0 %v1224
        %1239 = vmatpush1.msra.mxu0 %v1222
        %1240 = vmatprep.subr.mxu0 0.0
        %1241 = vmatpush1.msra.mxu0 0.0
        %1242 = vmatprep.subr.mxu0 0.0
        %1243 = vmatpush1.msra.mxu0 0.0
        %1244 = vmatprep.subr.mxu0 0.0
        %1245 = vmatpush1.msra.mxu0 0.0
        %1246 = vmatprep.subr.mxu0 0.0
        %1247 = vmatpush1.msra.mxu0 0.0
        %1248 = vmatprep.subr.mxu0 0.0
        %1249 = vmatpush1.msra.mxu0 0.0
        %1250 = vmatprep.subr.mxu0 0.0
        %1251 = vmatpush1.msra.mxu0 0.0
        %1252 = vmatprep.subr.mxu0 0.0
        %1253 = vmatpush1.msra.mxu0 0.0
        %1254 = vmatprep.subr.mxu0 0.0
        %1255 = vmatpush1.msra.mxu0 0.0
        %1256 = vmatprep.subr.mxu0 0.0
        %1257 = vmatpush1.msra.mxu0 0.0
        %1258 = vmatprep.subr.mxu0 0.0
        %1259 = vmatpush1.msra.mxu0 0.0
        %1260 = vmatprep.subr.mxu0 0.0
        %1261 = vmatpush1.msra.mxu0 0.0
        %1262 = vmatprep.subr.mxu0 0.0
        %1263 = vmatpush1.msra.mxu0 0.0
        %1264 = vmatprep.subr.mxu0 0.0
        %1265 = vmatpush1.msra.mxu0 0.0
        %1266 = vmatprep.subr.mxu0 0.0
        %1267 = vmatpush1.msra.mxu0 0.0
        %1268 = vmatprep.subr.mxu0 0.0
        %1269 = vmatpush1.msra.mxu0 0.0
        %1270 = vmatprep.subr.mxu0 0.0
        %1271 = vmatpush1.msra.mxu0 0.0
        %1272 = vmatprep.subr.mxu0 0.0
        %1273 = vmatpush1.msra.mxu0 0.0
        %1274 = vmatprep.subr.mxu0 0.0
        %1275 = vmatpush1.msra.mxu0 0.0
        %1276 = vmatprep.subr.mxu0 0.0
        %1277 = vmatpush1.msra.mxu0 0.0
        %1278 = vmatprep.subr.mxu0 0.0
        %1279 = vmatpush1.msra.mxu0 0.0
        %1280 = vmatprep.subr.mxu0 0.0
        %1281 = vmatpush1.msra.mxu0 0.0
        %1282 = vmatprep.subr.mxu0 0.0
        %1283 = vmatpush1.msra.mxu0 0.0
        %1284 = vmatprep.subr.mxu0 0.0
        %1285 = vmatpush1.msra.mxu0 0.0
        %1286 = vmatprep.subr.mxu0 0.0
        %1287 = vmatpush1.msra.mxu0 0.0
        %1288 = vmatprep.subr.mxu0 0.0
        %1289 = vmatpush1.msra.mxu0 0.0
        %1290 = vmatprep.subr.mxu0 0.0
        %1291 = vmatpush1.msra.mxu0 0.0
        %1292 = vmatprep.subr.mxu0 0.0
        %1293 = vmatpush1.msra.mxu0 0.0
        %1294 = vmatprep.subr.mxu0 0.0
        %1295 = vmatpush1.msra.mxu0 0.0
        %1296 = vmatprep.subr.mxu0 0.0
        %1297 = vmatpush1.msra.mxu0 0.0
        %1298 = vmatprep.subr.mxu0 0.0
        %1299 = vmatpush1.msra.mxu0 0.0
        %1300 = vmatprep.subr.mxu0 0.0
        %1301 = vmatpush1.msra.mxu0 0.0
        %1302 = vmatprep.mubr.f32.mxu0 0.0
        %1303 = vmatmul.mubr.f32.gmra.mrb[0].mxu0 %v1220
        %v1304 = vpop.f32.mrb[0].mxu0
        %v1305 = vadd.f32 0.0, %v1304
        %v1306 = vpop.f32.mrb[0].mxu0
        %v1307 = vadd.f32 0.0, %v1306
        %1308 = vdwg.mxu0
        %1309 = vmatprep.subr.mxu0 %v1228
        %1310 = vmatpush1.msra.mxu0 %v1226
        %1311 = vmatprep.subr.mxu0 0.0
        %1312 = vmatpush1.msra.mxu0 0.0
        %1313 = vmatprep.subr.mxu0 0.0
        %1314 = vmatpush1.msra.mxu0 0.0
        %1315 = vmatprep.subr.mxu0 0.0
        %1316 = vmatpush1.msra.mxu0 0.0
        %1317 = vmatprep.subr.mxu0 0.0
        %1318 = vmatpush1.msra.mxu0 0.0
        %1319 = vmatprep.subr.mxu0 0.0
        %1320 = vmatpush1.msra.mxu0 0.0
        %1321 = vmatprep.subr.mxu0 0.0
        %1322 = vmatpush1.msra.mxu0 0.0
        %1323 = vmatprep.subr.mxu0 0.0
        %1324 = vmatpush1.msra.mxu0 0.0
        %1325 = vmatprep.subr.mxu0 0.0
        %1326 = vmatpush1.msra.mxu0 0.0
        %1327 = vmatprep.subr.mxu0 0.0
        %1328 = vmatpush1.msra.mxu0 0.0
        %1329 = vmatprep.subr.mxu0 0.0
        %1330 = vmatpush1.msra.mxu0 0.0
        %1331 = vmatprep.subr.mxu0 0.0
        %1332 = vmatpush1.msra.mxu0 0.0
        %1333 = vmatprep.subr.mxu0 0.0
        %1334 = vmatpush1.msra.mxu0 0.0
        %1335 = vmatprep.subr.mxu0 0.0
        %1336 = vmatpush1.msra.mxu0 0.0
        %1337 = vmatprep.subr.mxu0 0.0
        %1338 = vmatpush1.msra.mxu0 0.0
        %1339 = vmatprep.subr.mxu0 0.0
        %1340 = vmatpush1.msra.mxu0 0.0
        %1341 = vmatprep.subr.mxu0 0.0
        %1342 = vmatpush1.msra.mxu0 0.0
        %1343 = vmatprep.subr.mxu0 0.0
        %1344 = vmatpush1.msra.mxu0 0.0
        %1345 = vmatprep.subr.mxu0 0.0
        %1346 = vmatpush1.msra.mxu0 0.0
        %1347 = vmatprep.subr.mxu0 0.0
        %1348 = vmatpush1.msra.mxu0 0.0
        %1349 = vmatprep.subr.mxu0 0.0
        %1350 = vmatpush1.msra.mxu0 0.0
        %1351 = vmatprep.subr.mxu0 0.0
        %1352 = vmatpush1.msra.mxu0 0.0
        %1353 = vmatprep.subr.mxu0 0.0
        %1354 = vmatpush1.msra.mxu0 0.0
        %1355 = vmatprep.subr.mxu0 0.0
        %1356 = vmatpush1.msra.mxu0 0.0
        %1357 = vmatprep.subr.mxu0 0.0
        %1358 = vmatpush1.msra.mxu0 0.0
        %1359 = vmatprep.subr.mxu0 0.0
        %1360 = vmatpush1.msra.mxu0 0.0
        %1361 = vmatprep.subr.mxu0 0.0
        %1362 = vmatpush1.msra.mxu0 0.0
        %1363 = vmatprep.subr.mxu0 0.0
        %1364 = vmatpush1.msra.mxu0 0.0
        %1365 = vmatprep.subr.mxu0 0.0
        %1366 = vmatpush1.msra.mxu0 0.0
        %1367 = vmatprep.subr.mxu0 0.0
        %1368 = vmatpush1.msra.mxu0 0.0
        %1369 = vmatprep.subr.mxu0 0.0
        %1370 = vmatpush1.msra.mxu0 0.0
        %1371 = vmatprep.subr.mxu0 0.0
        %1372 = vmatpush1.msra.mxu0 0.0
        %1373 = vmatprep.mubr.f32.mxu0 0.0
        %1374 = vmatmul.mubr.f32.gmra.mrb[0].mxu0 %v1220
        %v1375 = vpop.f32.mrb[0].mxu0
        %v1376 = vadd.f32 0.0, %v1375
        %v1377 = vpop.f32.mrb[0].mxu0
        %v1378 = vadd.f32 0.0, %v1377
        %1379 = vdwg.mxu0
        %1380 = vmatprep.subr.mxu0 %v1232
        %1381 = vmatpush1.msra.mxu0 %v1230
        %1382 = vmatprep.subr.mxu0 0.0
        %1383 = vmatpush1.msra.mxu0 0.0
        %1384 = vmatprep.subr.mxu0 0.0
        %1385 = vmatpush1.msra.mxu0 0.0
        %1386 = vmatprep.subr.mxu0 0.0
        %1387 = vmatpush1.msra.mxu0 0.0
        %1388 = vmatprep.subr.mxu0 0.0
        %1389 = vmatpush1.msra.mxu0 0.0
        %1390 = vmatprep.subr.mxu0 0.0
        %1391 = vmatpush1.msra.mxu0 0.0
        %1392 = vmatprep.subr.mxu0 0.0
        %1393 = vmatpush1.msra.mxu0 0.0
        %1394 = vmatprep.subr.mxu0 0.0
        %1395 = vmatpush1.msra.mxu0 0.0
        %1396 = vmatprep.subr.mxu0 0.0
        %1397 = vmatpush1.msra.mxu0 0.0
        %1398 = vmatprep.subr.mxu0 0.0
        %1399 = vmatpush1.msra.mxu0 0.0
        %1400 = vmatprep.subr.mxu0 0.0
        %1401 = vmatpush1.msra.mxu0 0.0
        %1402 = vmatprep.subr.mxu0 0.0
        %1403 = vmatpush1.msra.mxu0 0.0
        %1404 = vmatprep.subr.mxu0 0.0
        %1405 = vmatpush1.msra.mxu0 0.0
        %1406 = vmatprep.subr.mxu0 0.0
        %1407 = vmatpush1.msra.mxu0 0.0
        %1408 = vmatprep.subr.mxu0 0.0
        %1409 = vmatpush1.msra.mxu0 0.0
        %1410 = vmatprep.subr.mxu0 0.0
        %1411 = vmatpush1.msra.mxu0 0.0
        %1412 = vmatprep.subr.mxu0 0.0
        %1413 = vmatpush1.msra.mxu0 0.0
        %1414 = vmatprep.subr.mxu0 0.0
        %1415 = vmatpush1.msra.mxu0 0.0
        %1416 = vmatprep.subr.mxu0 0.0
        %1417 = vmatpush1.msra.mxu0 0.0
        %1418 = vmatprep.subr.mxu0 0.0
        %1419 = vmatpush1.msra.mxu0 0.0
        %1420 = vmatprep.subr.mxu0 0.0
        %1421 = vmatpush1.msra.mxu0 0.0
        %1422 = vmatprep.subr.mxu0 0.0
        %1423 = vmatpush1.msra.mxu0 0.0
        %1424 = vmatprep.subr.mxu0 0.0
        %1425 = vmatpush1.msra.mxu0 0.0
        %1426 = vmatprep.subr.mxu0 0.0
        %1427 = vmatpush1.msra.mxu0 0.0
        %1428 = vmatprep.subr.mxu0 0.0
        %1429 = vmatpush1.msra.mxu0 0.0
        %1430 = vmatprep.subr.mxu0 0.0
        %1431 = vmatpush1.msra.mxu0 0.0
        %1432 = vmatprep.subr.mxu0 0.0
        %1433 = vmatpush1.msra.mxu0 0.0
        %1434 = vmatprep.subr.mxu0 0.0
        %1435 = vmatpush1.msra.mxu0 0.0
        %1436 = vmatprep.subr.mxu0 0.0
        %1437 = vmatpush1.msra.mxu0 0.0
        %1438 = vmatprep.subr.mxu0 0.0
        %1439 = vmatpush1.msra.mxu0 0.0
        %1440 = vmatprep.subr.mxu0 0.0
        %1441 = vmatpush1.msra.mxu0 0.0
        %1442 = vmatprep.subr.mxu0 0.0
        %1443 = vmatpush1.msra.mxu0 0.0
        %1444 = vmatprep.mubr.f32.mxu0 0.0
        %1445 = vmatmul.mubr.f32.gmra.mrb[0].mxu0 %v1220
        %v1446 = vpop.f32.mrb[0].mxu0
        %v1447 = vadd.f32 0.0, %v1446
        %v1448 = vpop.f32.mrb[0].mxu0
        %v1449 = vadd.f32 0.0, %v1448
        %1450 = vdwg.mxu0
        %1451 = vmatprep.subr.mxu0 %v1236
        %1452 = vmatpush1.msra.mxu0 %v1234
        %1453 = vmatprep.subr.mxu0 0.0
        %1454 = vmatpush1.msra.mxu0 0.0
        %1455 = vmatprep.subr.mxu0 0.0
        %1456 = vmatpush1.msra.mxu0 0.0
        %1457 = vmatprep.subr.mxu0 0.0
        %1458 = vmatpush1.msra.mxu0 0.0
        %1459 = vmatprep.subr.mxu0 0.0
        %1460 = vmatpush1.msra.mxu0 0.0
        %1461 = vmatprep.subr.mxu0 0.0
        %1462 = vmatpush1.msra.mxu0 0.0
        %1463 = vmatprep.subr.mxu0 0.0
        %1464 = vmatpush1.msra.mxu0 0.0
        %1465 = vmatprep.subr.mxu0 0.0
        %1466 = vmatpush1.msra.mxu0 0.0
        %1467 = vmatprep.subr.mxu0 0.0
        %1468 = vmatpush1.msra.mxu0 0.0
        %1469 = vmatprep.subr.mxu0 0.0
        %1470 = vmatpush1.msra.mxu0 0.0
        %1471 = vmatprep.subr.mxu0 0.0
        %1472 = vmatpush1.msra.mxu0 0.0
        %1473 = vmatprep.subr.mxu0 0.0
        %1474 = vmatpush1.msra.mxu0 0.0
        %1475 = vmatprep.subr.mxu0 0.0
        %1476 = vmatpush1.msra.mxu0 0.0
        %1477 = vmatprep.subr.mxu0 0.0
        %1478 = vmatpush1.msra.mxu0 0.0
        %1479 = vmatprep.subr.mxu0 0.0
        %1480 = vmatpush1.msra.mxu0 0.0
        %1481 = vmatprep.subr.mxu0 0.0
        %1482 = vmatpush1.msra.mxu0 0.0
        %1483 = vmatprep.subr.mxu0 0.0
        %1484 = vmatpush1.msra.mxu0 0.0
        %1485 = vmatprep.subr.mxu0 0.0
        %1486 = vmatpush1.msra.mxu0 0.0
        %1487 = vmatprep.subr.mxu0 0.0
        %1488 = vmatpush1.msra.mxu0 0.0
        %1489 = vmatprep.subr.mxu0 0.0
        %1490 = vmatpush1.msra.mxu0 0.0
        %1491 = vmatprep.subr.mxu0 0.0
        %1492 = vmatpush1.msra.mxu0 0.0
        %1493 = vmatprep.subr.mxu0 0.0
        %1494 = vmatpush1.msra.mxu0 0.0
        %1495 = vmatprep.subr.mxu0 0.0
        %1496 = vmatpush1.msra.mxu0 0.0
        %1497 = vmatprep.subr.mxu0 0.0
        %1498 = vmatpush1.msra.mxu0 0.0
        %1499 = vmatprep.subr.mxu0 0.0
        %1500 = vmatpush1.msra.mxu0 0.0
        %1501 = vmatprep.subr.mxu0 0.0
        %1502 = vmatpush1.msra.mxu0 0.0
        %1503 = vmatprep.subr.mxu0 0.0
        %1504 = vmatpush1.msra.mxu0 0.0
        %1505 = vmatprep.subr.mxu0 0.0
        %1506 = vmatpush1.msra.mxu0 0.0
        %1507 = vmatprep.subr.mxu0 0.0
        %1508 = vmatpush1.msra.mxu0 0.0
        %1509 = vmatprep.subr.mxu0 0.0
        %1510 = vmatpush1.msra.mxu0 0.0
        %1511 = vmatprep.subr.mxu0 0.0
        %1512 = vmatpush1.msra.mxu0 0.0
        %1513 = vmatprep.subr.mxu0 0.0
        %1514 = vmatpush1.msra.mxu0 0.0
        %1515 = vmatprep.mubr.f32.mxu0 0.0
        %1516 = vmatmul.mubr.f32.gmra.mrb[0].mxu0 %v1220
        %v1517 = vpop.f32.mrb[0].mxu0
        %v1518 = vadd.f32 0.0, %v1517
        %v1519 = vpop.f32.mrb[0].mxu0
        %v1520 = vadd.f32 0.0, %v1519
        %1521 = vdwg.mxu0
        %v1522 = vadd.f32 %v1168, %v1305
        %v1523 = vadd.f32 %v1169, %v1307
        %v1524 = vadd.f32 %v1170, %v1376
        %v1525 = vadd.f32 %v1171, %v1378
        %v1526 = vadd.f32 %v1172, %v1447
        %v1527 = vadd.f32 %v1173, %v1449
        %v1528 = vadd.f32 %v1174, %v1518
        %v1529 = vadd.f32 %v1175, %v1520
        %s1530 = scalar_lea.vmem %s1, 32
        %v1531 = vld [vmem:[%s1530] sm:$0xff]
        %v1532 = vld [vmem:[%s168] sm:$0xff]
        %v1533 = vld [vmem:[%s168 + $0x8] sm:$0xff]
        %v1534 = vld [vmem:[%s168 + $0x10] sm:$0xff]
        %v1535 = vld [vmem:[%s168 + $0x18] sm:$0xff]
        %v1536 = vld [vmem:[%s168 + $0x20] sm:$0xf]
        %v1542 = vcombine.high %v1532, %v1532
        %v1543 = vcombine.high %v1533, %v1533
        %v1544 = vcombine.high %v1534, %v1534
        %v1545 = vcombine.high %v1535, %v1535
        %1546 = vrot.lane.b32.xlu0 %v1532, 117
        %v1547 = vpop.permute.xlu0 %1546
        %1548 = vrot.lane.b32.xlu0 %v1542, 117
        %v1549 = vpop.permute.xlu0 %1548
        %1550 = vrot.lane.b32.xlu0 %v1533, 117
        %v1551 = vpop.permute.xlu0 %1550
        %1552 = vrot.lane.b32.xlu0 %v1543, 117
        %v1553 = vpop.permute.xlu0 %1552
        %1554 = vrot.lane.b32.xlu0 %v1534, 117
        %v1555 = vpop.permute.xlu0 %1554
        %1556 = vrot.lane.b32.xlu0 %v1544, 117
        %v1557 = vpop.permute.xlu0 %1556
        %1558 = vrot.lane.b32.xlu0 %v1535, 117
        %v1559 = vpop.permute.xlu0 %1558
        %1560 = vrot.lane.b32.xlu0 %v1545, 117
        %v1561 = vpop.permute.xlu0 %1560
        %1562 = vrot.lane.b32.xlu0 %v1536, 117
        %v1563 = vpop.permute.xlu0 %1562
        %vm1564 = vcmask 957440
        %v1565 = vsel %vm1564, %v1547, %v1549
        %v1566 = vsel %vm1564, %v1549, %v1551
        %v1567 = vsel %vm1564, %v1551, %v1553
        %v1568 = vsel %vm1564, %v1553, %v1555
        %v1569 = vsel %vm1564, %v1555, %v1557
        %v1570 = vsel %vm1564, %v1557, %v1559
        %v1571 = vsel %vm1564, %v1559, %v1561
        %v1572 = vsel %vm1564, %v1561, %v1563
        %v1574 = vsel %vm214, %v1531, 0
        %v1576 = vsel %vm218, %v1565, 0
        %v1578 = vsel %vm218, %v1566, 0
        %v1580 = vsel %vm218, %v1567, 0
        %v1582 = vsel %vm218, %v1568, 0
        %v1584 = vsel %vm218, %v1569, 0
        %v1586 = vsel %vm218, %v1570, 0
        %v1588 = vsel %vm218, %v1571, 0
        %v1590 = vsel %vm218, %v1572, 0
        %1592 = vmatprep.subr.mxu0 %v1578
        %1593 = vmatpush1.msra.mxu0 %v1576
        %1594 = vmatprep.subr.mxu0 0.0
        %1595 = vmatpush1.msra.mxu0 0.0
        %1596 = vmatprep.subr.mxu0 0.0
        %1597 = vmatpush1.msra.mxu0 0.0
        %1598 = vmatprep.subr.mxu0 0.0
        %1599 = vmatpush1.msra.mxu0 0.0
        %1600 = vmatprep.subr.mxu0 0.0
        %1601 = vmatpush1.msra.mxu0 0.0
        %1602 = vmatprep.subr.mxu0 0.0
        %1603 = vmatpush1.msra.mxu0 0.0
        %1604 = vmatprep.subr.mxu0 0.0
        %1605 = vmatpush1.msra.mxu0 0.0
        %1606 = vmatprep.subr.mxu0 0.0
        %1607 = vmatpush1.msra.mxu0 0.0
        %1608 = vmatprep.subr.mxu0 0.0
        %1609 = vmatpush1.msra.mxu0 0.0
        %1610 = vmatprep.subr.mxu0 0.0
        %1611 = vmatpush1.msra.mxu0 0.0
        %1612 = vmatprep.subr.mxu0 0.0
        %1613 = vmatpush1.msra.mxu0 0.0
        %1614 = vmatprep.subr.mxu0 0.0
        %1615 = vmatpush1.msra.mxu0 0.0
        %1616 = vmatprep.subr.mxu0 0.0
        %1617 = vmatpush1.msra.mxu0 0.0
        %1618 = vmatprep.subr.mxu0 0.0
        %1619 = vmatpush1.msra.mxu0 0.0
        %1620 = vmatprep.subr.mxu0 0.0
        %1621 = vmatpush1.msra.mxu0 0.0
        %1622 = vmatprep.subr.mxu0 0.0
        %1623 = vmatpush1.msra.mxu0 0.0
        %1624 = vmatprep.subr.mxu0 0.0
        %1625 = vmatpush1.msra.mxu0 0.0
        %1626 = vmatprep.subr.mxu0 0.0
        %1627 = vmatpush1.msra.mxu0 0.0
        %1628 = vmatprep.subr.mxu0 0.0
        %1629 = vmatpush1.msra.mxu0 0.0
        %1630 = vmatprep.subr.mxu0 0.0
        %1631 = vmatpush1.msra.mxu0 0.0
        %1632 = vmatprep.subr.mxu0 0.0
        %1633 = vmatpush1.msra.mxu0 0.0
        %1634 = vmatprep.subr.mxu0 0.0
        %1635 = vmatpush1.msra.mxu0 0.0
        %1636 = vmatprep.subr.mxu0 0.0
        %1637 = vmatpush1.msra.mxu0 0.0
        %1638 = vmatprep.subr.mxu0 0.0
        %1639 = vmatpush1.msra.mxu0 0.0
        %1640 = vmatprep.subr.mxu0 0.0
        %1641 = vmatpush1.msra.mxu0 0.0
        %1642 = vmatprep.subr.mxu0 0.0
        %1643 = vmatpush1.msra.mxu0 0.0
        %1644 = vmatprep.subr.mxu0 0.0
        %1645 = vmatpush1.msra.mxu0 0.0
        %1646 = vmatprep.subr.mxu0 0.0
        %1647 = vmatpush1.msra.mxu0 0.0
        %1648 = vmatprep.subr.mxu0 0.0
        %1649 = vmatpush1.msra.mxu0 0.0
        %1650 = vmatprep.subr.mxu0 0.0
        %1651 = vmatpush1.msra.mxu0 0.0
        %1652 = vmatprep.subr.mxu0 0.0
        %1653 = vmatpush1.msra.mxu0 0.0
        %1654 = vmatprep.subr.mxu0 0.0
        %1655 = vmatpush1.msra.mxu0 0.0
        %1656 = vmatprep.mubr.f32.mxu0 0.0
        %1657 = vmatmul.mubr.f32.gmra.mrb[0].mxu0 %v1574
        %v1658 = vpop.f32.mrb[0].mxu0
        %v1659 = vadd.f32 0.0, %v1658
        %v1660 = vpop.f32.mrb[0].mxu0
        %v1661 = vadd.f32 0.0, %v1660
        %1662 = vdwg.mxu0
        %1663 = vmatprep.subr.mxu0 %v1582
        %1664 = vmatpush1.msra.mxu0 %v1580
        %1665 = vmatprep.subr.mxu0 0.0
        %1666 = vmatpush1.msra.mxu0 0.0
        %1667 = vmatprep.subr.mxu0 0.0
        %1668 = vmatpush1.msra.mxu0 0.0
        %1669 = vmatprep.subr.mxu0 0.0
        %1670 = vmatpush1.msra.mxu0 0.0
        %1671 = vmatprep.subr.mxu0 0.0
        %1672 = vmatpush1.msra.mxu0 0.0
        %1673 = vmatprep.subr.mxu0 0.0
        %1674 = vmatpush1.msra.mxu0 0.0
        %1675 = vmatprep.subr.mxu0 0.0
        %1676 = vmatpush1.msra.mxu0 0.0
        %1677 = vmatprep.subr.mxu0 0.0
        %1678 = vmatpush1.msra.mxu0 0.0
        %1679 = vmatprep.subr.mxu0 0.0
        %1680 = vmatpush1.msra.mxu0 0.0
        %1681 = vmatprep.subr.mxu0 0.0
        %1682 = vmatpush1.msra.mxu0 0.0
        %1683 = vmatprep.subr.mxu0 0.0
        %1684 = vmatpush1.msra.mxu0 0.0
        %1685 = vmatprep.subr.mxu0 0.0
        %1686 = vmatpush1.msra.mxu0 0.0
        %1687 = vmatprep.subr.mxu0 0.0
        %1688 = vmatpush1.msra.mxu0 0.0
        %1689 = vmatprep.subr.mxu0 0.0
        %1690 = vmatpush1.msra.mxu0 0.0
        %1691 = vmatprep.subr.mxu0 0.0
        %1692 = vmatpush1.msra.mxu0 0.0
        %1693 = vmatprep.subr.mxu0 0.0
        %1694 = vmatpush1.msra.mxu0 0.0
        %1695 = vmatprep.subr.mxu0 0.0
        %1696 = vmatpush1.msra.mxu0 0.0
        %1697 = vmatprep.subr.mxu0 0.0
        %1698 = vmatpush1.msra.mxu0 0.0
        %1699 = vmatprep.subr.mxu0 0.0
        %1700 = vmatpush1.msra.mxu0 0.0
        %1701 = vmatprep.subr.mxu0 0.0
        %1702 = vmatpush1.msra.mxu0 0.0
        %1703 = vmatprep.subr.mxu0 0.0
        %1704 = vmatpush1.msra.mxu0 0.0
        %1705 = vmatprep.subr.mxu0 0.0
        %1706 = vmatpush1.msra.mxu0 0.0
        %1707 = vmatprep.subr.mxu0 0.0
        %1708 = vmatpush1.msra.mxu0 0.0
        %1709 = vmatprep.subr.mxu0 0.0
        %1710 = vmatpush1.msra.mxu0 0.0
        %1711 = vmatprep.subr.mxu0 0.0
        %1712 = vmatpush1.msra.mxu0 0.0
        %1713 = vmatprep.subr.mxu0 0.0
        %1714 = vmatpush1.msra.mxu0 0.0
        %1715 = vmatprep.subr.mxu0 0.0
        %1716 = vmatpush1.msra.mxu0 0.0
        %1717 = vmatprep.subr.mxu0 0.0
        %1718 = vmatpush1.msra.mxu0 0.0
        %1719 = vmatprep.subr.mxu0 0.0
        %1720 = vmatpush1.msra.mxu0 0.0
        %1721 = vmatprep.subr.mxu0 0.0
        %1722 = vmatpush1.msra.mxu0 0.0
        %1723 = vmatprep.subr.mxu0 0.0
        %1724 = vmatpush1.msra.mxu0 0.0
        %1725 = vmatprep.subr.mxu0 0.0
        %1726 = vmatpush1.msra.mxu0 0.0
        %1727 = vmatprep.mubr.f32.mxu0 0.0
        %1728 = vmatmul.mubr.f32.gmra.mrb[0].mxu0 %v1574
        %v1729 = vpop.f32.mrb[0].mxu0
        %v1730 = vadd.f32 0.0, %v1729
        %v1731 = vpop.f32.mrb[0].mxu0
        %v1732 = vadd.f32 0.0, %v1731
        %1733 = vdwg.mxu0
        %1734 = vmatprep.subr.mxu0 %v1586
        %1735 = vmatpush1.msra.mxu0 %v1584
        %1736 = vmatprep.subr.mxu0 0.0
        %1737 = vmatpush1.msra.mxu0 0.0
        %1738 = vmatprep.subr.mxu0 0.0
        %1739 = vmatpush1.msra.mxu0 0.0
        %1740 = vmatprep.subr.mxu0 0.0
        %1741 = vmatpush1.msra.mxu0 0.0
        %1742 = vmatprep.subr.mxu0 0.0
        %1743 = vmatpush1.msra.mxu0 0.0
        %1744 = vmatprep.subr.mxu0 0.0
        %1745 = vmatpush1.msra.mxu0 0.0
        %1746 = vmatprep.subr.mxu0 0.0
        %1747 = vmatpush1.msra.mxu0 0.0
        %1748 = vmatprep.subr.mxu0 0.0
        %1749 = vmatpush1.msra.mxu0 0.0
        %1750 = vmatprep.subr.mxu0 0.0
        %1751 = vmatpush1.msra.mxu0 0.0
        %1752 = vmatprep.subr.mxu0 0.0
        %1753 = vmatpush1.msra.mxu0 0.0
        %1754 = vmatprep.subr.mxu0 0.0
        %1755 = vmatpush1.msra.mxu0 0.0
        %1756 = vmatprep.subr.mxu0 0.0
        %1757 = vmatpush1.msra.mxu0 0.0
        %1758 = vmatprep.subr.mxu0 0.0
        %1759 = vmatpush1.msra.mxu0 0.0
        %1760 = vmatprep.subr.mxu0 0.0
        %1761 = vmatpush1.msra.mxu0 0.0
        %1762 = vmatprep.subr.mxu0 0.0
        %1763 = vmatpush1.msra.mxu0 0.0
        %1764 = vmatprep.subr.mxu0 0.0
        %1765 = vmatpush1.msra.mxu0 0.0
        %1766 = vmatprep.subr.mxu0 0.0
        %1767 = vmatpush1.msra.mxu0 0.0
        %1768 = vmatprep.subr.mxu0 0.0
        %1769 = vmatpush1.msra.mxu0 0.0
        %1770 = vmatprep.subr.mxu0 0.0
        %1771 = vmatpush1.msra.mxu0 0.0
        %1772 = vmatprep.subr.mxu0 0.0
        %1773 = vmatpush1.msra.mxu0 0.0
        %1774 = vmatprep.subr.mxu0 0.0
        %1775 = vmatpush1.msra.mxu0 0.0
        %1776 = vmatprep.subr.mxu0 0.0
        %1777 = vmatpush1.msra.mxu0 0.0
        %1778 = vmatprep.subr.mxu0 0.0
        %1779 = vmatpush1.msra.mxu0 0.0
        %1780 = vmatprep.subr.mxu0 0.0
        %1781 = vmatpush1.msra.mxu0 0.0
        %1782 = vmatprep.subr.mxu0 0.0
        %1783 = vmatpush1.msra.mxu0 0.0
        %1784 = vmatprep.subr.mxu0 0.0
        %1785 = vmatpush1.msra.mxu0 0.0
        %1786 = vmatprep.subr.mxu0 0.0
        %1787 = vmatpush1.msra.mxu0 0.0
        %1788 = vmatprep.subr.mxu0 0.0
        %1789 = vmatpush1.msra.mxu0 0.0
        %1790 = vmatprep.subr.mxu0 0.0
        %1791 = vmatpush1.msra.mxu0 0.0
        %1792 = vmatprep.subr.mxu0 0.0
        %1793 = vmatpush1.msra.mxu0 0.0
        %1794 = vmatprep.subr.mxu0 0.0
        %1795 = vmatpush1.msra.mxu0 0.0
        %1796 = vmatprep.subr.mxu0 0.0
        %1797 = vmatpush1.msra.mxu0 0.0
        %1798 = vmatprep.mubr.f32.mxu0 0.0
        %1799 = vmatmul.mubr.f32.gmra.mrb[0].mxu0 %v1574
        %v1800 = vpop.f32.mrb[0].mxu0
        %v1801 = vadd.f32 0.0, %v1800
        %v1802 = vpop.f32.mrb[0].mxu0
        %v1803 = vadd.f32 0.0, %v1802
        %1804 = vdwg.mxu0
        %1805 = vmatprep.subr.mxu0 %v1590
        %1806 = vmatpush1.msra.mxu0 %v1588
        %1807 = vmatprep.subr.mxu0 0.0
        %1808 = vmatpush1.msra.mxu0 0.0
        %1809 = vmatprep.subr.mxu0 0.0
        %1810 = vmatpush1.msra.mxu0 0.0
        %1811 = vmatprep.subr.mxu0 0.0
        %1812 = vmatpush1.msra.mxu0 0.0
        %1813 = vmatprep.subr.mxu0 0.0
        %1814 = vmatpush1.msra.mxu0 0.0
        %1815 = vmatprep.subr.mxu0 0.0
        %1816 = vmatpush1.msra.mxu0 0.0
        %1817 = vmatprep.subr.mxu0 0.0
        %1818 = vmatpush1.msra.mxu0 0.0
        %1819 = vmatprep.subr.mxu0 0.0
        %1820 = vmatpush1.msra.mxu0 0.0
        %1821 = vmatprep.subr.mxu0 0.0
        %1822 = vmatpush1.msra.mxu0 0.0
        %1823 = vmatprep.subr.mxu0 0.0
        %1824 = vmatpush1.msra.mxu0 0.0
        %1825 = vmatprep.subr.mxu0 0.0
        %1826 = vmatpush1.msra.mxu0 0.0
        %1827 = vmatprep.subr.mxu0 0.0
        %1828 = vmatpush1.msra.mxu0 0.0
        %1829 = vmatprep.subr.mxu0 0.0
        %1830 = vmatpush1.msra.mxu0 0.0
        %1831 = vmatprep.subr.mxu0 0.0
        %1832 = vmatpush1.msra.mxu0 0.0
        %1833 = vmatprep.subr.mxu0 0.0
        %1834 = vmatpush1.msra.mxu0 0.0
        %1835 = vmatprep.subr.mxu0 0.0
        %1836 = vmatpush1.msra.mxu0 0.0
        %1837 = vmatprep.subr.mxu0 0.0
        %1838 = vmatpush1.msra.mxu0 0.0
        %1839 = vmatprep.subr.mxu0 0.0
        %1840 = vmatpush1.msra.mxu0 0.0
        %1841 = vmatprep.subr.mxu0 0.0
        %1842 = vmatpush1.msra.mxu0 0.0
        %1843 = vmatprep.subr.mxu0 0.0
        %1844 = vmatpush1.msra.mxu0 0.0
        %1845 = vmatprep.subr.mxu0 0.0
        %1846 = vmatpush1.msra.mxu0 0.0
        %1847 = vmatprep.subr.mxu0 0.0
        %1848 = vmatpush1.msra.mxu0 0.0
        %1849 = vmatprep.subr.mxu0 0.0
        %1850 = vmatpush1.msra.mxu0 0.0
        %1851 = vmatprep.subr.mxu0 0.0
        %1852 = vmatpush1.msra.mxu0 0.0
        %1853 = vmatprep.subr.mxu0 0.0
        %1854 = vmatpush1.msra.mxu0 0.0
        %1855 = vmatprep.subr.mxu0 0.0
        %1856 = vmatpush1.msra.mxu0 0.0
        %1857 = vmatprep.subr.mxu0 0.0
        %1858 = vmatpush1.msra.mxu0 0.0
        %1859 = vmatprep.subr.mxu0 0.0
        %1860 = vmatpush1.msra.mxu0 0.0
        %1861 = vmatprep.subr.mxu0 0.0
        %1862 = vmatpush1.msra.mxu0 0.0
        %1863 = vmatprep.subr.mxu0 0.0
        %1864 = vmatpush1.msra.mxu0 0.0
        %1865 = vmatprep.subr.mxu0 0.0
        %1866 = vmatpush1.msra.mxu0 0.0
        %1867 = vmatprep.subr.mxu0 0.0
        %1868 = vmatpush1.msra.mxu0 0.0
        %1869 = vmatprep.mubr.f32.mxu0 0.0
        %1870 = vmatmul.mubr.f32.gmra.mrb[0].mxu0 %v1574
        %v1871 = vpop.f32.mrb[0].mxu0
        %v1872 = vadd.f32 0.0, %v1871
        %v1873 = vpop.f32.mrb[0].mxu0
        %v1874 = vadd.f32 0.0, %v1873
        %1875 = vdwg.mxu0
        %v1876 = vadd.f32 %v1522, %v1659
        %v1877 = vadd.f32 %v1523, %v1661
        %v1878 = vadd.f32 %v1524, %v1730
        %v1879 = vadd.f32 %v1525, %v1732
        %v1880 = vadd.f32 %v1526, %v1801
        %v1881 = vadd.f32 %v1527, %v1803
        %v1882 = vadd.f32 %v1528, %v1872
        %v1883 = vadd.f32 %v1529, %v1874
        %s1884 = scalar_lea.vmem %s1, 40
        %v1885 = vld [vmem:[%s1884] sm:$0xff]
        %v1886 = vld [vmem:[%s168] sm:$0xff]
        %v1887 = vld [vmem:[%s168 + $0x8] sm:$0xff]
        %v1888 = vld [vmem:[%s168 + $0x10] sm:$0xff]
        %v1889 = vld [vmem:[%s168 + $0x18] sm:$0xff]
        %v1890 = vld [vmem:[%s168 + $0x20] sm:$0xf]
        %v1896 = vcombine.high %v1886, %v1886
        %v1897 = vcombine.high %v1887, %v1887
        %v1898 = vcombine.high %v1888, %v1888
        %v1899 = vcombine.high %v1889, %v1889
        %1900 = vrot.lane.b32.xlu0 %v1886, 116
        %v1901 = vpop.permute.xlu0 %1900
        %1902 = vrot.lane.b32.xlu0 %v1896, 116
        %v1903 = vpop.permute.xlu0 %1902
        %1904 = vrot.lane.b32.xlu0 %v1887, 116
        %v1905 = vpop.permute.xlu0 %1904
        %1906 = vrot.lane.b32.xlu0 %v1897, 116
        %v1907 = vpop.permute.xlu0 %1906
        %1908 = vrot.lane.b32.xlu0 %v1888, 116
        %v1909 = vpop.permute.xlu0 %1908
        %1910 = vrot.lane.b32.xlu0 %v1898, 116
        %v1911 = vpop.permute.xlu0 %1910
        %1912 = vrot.lane.b32.xlu0 %v1889, 116
        %v1913 = vpop.permute.xlu0 %1912
        %1914 = vrot.lane.b32.xlu0 %v1899, 116
        %v1915 = vpop.permute.xlu0 %1914
        %1916 = vrot.lane.b32.xlu0 %v1890, 116
        %v1917 = vpop.permute.xlu0 %1916
        %vm1918 = vcmask 949248
        %v1919 = vsel %vm1918, %v1901, %v1903
        %v1920 = vsel %vm1918, %v1903, %v1905
        %v1921 = vsel %vm1918, %v1905, %v1907
        %v1922 = vsel %vm1918, %v1907, %v1909
        %v1923 = vsel %vm1918, %v1909, %v1911
        %v1924 = vsel %vm1918, %v1911, %v1913
        %v1925 = vsel %vm1918, %v1913, %v1915
        %v1926 = vsel %vm1918, %v1915, %v1917
        %v1928 = vsel %vm214, %v1885, 0
        %v1930 = vsel %vm218, %v1919, 0
        %v1932 = vsel %vm218, %v1920, 0
        %v1934 = vsel %vm218, %v1921, 0
        %v1936 = vsel %vm218, %v1922, 0
        %v1938 = vsel %vm218, %v1923, 0
        %v1940 = vsel %vm218, %v1924, 0
        %v1942 = vsel %vm218, %v1925, 0
        %v1944 = vsel %vm218, %v1926, 0
        %1946 = vmatprep.subr.mxu0 %v1932
        %1947 = vmatpush1.msra.mxu0 %v1930
        %1948 = vmatprep.subr.mxu0 0.0
        %1949 = vmatpush1.msra.mxu0 0.0
        %1950 = vmatprep.subr.mxu0 0.0
        %1951 = vmatpush1.msra.mxu0 0.0
        %1952 = vmatprep.subr.mxu0 0.0
        %1953 = vmatpush1.msra.mxu0 0.0
        %1954 = vmatprep.subr.mxu0 0.0
        %1955 = vmatpush1.msra.mxu0 0.0
        %1956 = vmatprep.subr.mxu0 0.0
        %1957 = vmatpush1.msra.mxu0 0.0
        %1958 = vmatprep.subr.mxu0 0.0
        %1959 = vmatpush1.msra.mxu0 0.0
        %1960 = vmatprep.subr.mxu0 0.0
        %1961 = vmatpush1.msra.mxu0 0.0
        %1962 = vmatprep.subr.mxu0 0.0
        %1963 = vmatpush1.msra.mxu0 0.0
        %1964 = vmatprep.subr.mxu0 0.0
        %1965 = vmatpush1.msra.mxu0 0.0
        %1966 = vmatprep.subr.mxu0 0.0
        %1967 = vmatpush1.msra.mxu0 0.0
        %1968 = vmatprep.subr.mxu0 0.0
        %1969 = vmatpush1.msra.mxu0 0.0
        %1970 = vmatprep.subr.mxu0 0.0
        %1971 = vmatpush1.msra.mxu0 0.0
        %1972 = vmatprep.subr.mxu0 0.0
        %1973 = vmatpush1.msra.mxu0 0.0
        %1974 = vmatprep.subr.mxu0 0.0
        %1975 = vmatpush1.msra.mxu0 0.0
        %1976 = vmatprep.subr.mxu0 0.0
        %1977 = vmatpush1.msra.mxu0 0.0
        %1978 = vmatprep.subr.mxu0 0.0
        %1979 = vmatpush1.msra.mxu0 0.0
        %1980 = vmatprep.subr.mxu0 0.0
        %1981 = vmatpush1.msra.mxu0 0.0
        %1982 = vmatprep.subr.mxu0 0.0
        %1983 = vmatpush1.msra.mxu0 0.0
        %1984 = vmatprep.subr.mxu0 0.0
        %1985 = vmatpush1.msra.mxu0 0.0
        %1986 = vmatprep.subr.mxu0 0.0
        %1987 = vmatpush1.msra.mxu0 0.0
        %1988 = vmatprep.subr.mxu0 0.0
        %1989 = vmatpush1.msra.mxu0 0.0
        %1990 = vmatprep.subr.mxu0 0.0
        %1991 = vmatpush1.msra.mxu0 0.0
        %1992 = vmatprep.subr.mxu0 0.0
        %1993 = vmatpush1.msra.mxu0 0.0
        %1994 = vmatprep.subr.mxu0 0.0
        %1995 = vmatpush1.msra.mxu0 0.0
        %1996 = vmatprep.subr.mxu0 0.0
        %1997 = vmatpush1.msra.mxu0 0.0
        %1998 = vmatprep.subr.mxu0 0.0
        %1999 = vmatpush1.msra.mxu0 0.0
        %2000 = vmatprep.subr.mxu0 0.0
        %2001 = vmatpush1.msra.mxu0 0.0
        %2002 = vmatprep.subr.mxu0 0.0
        %2003 = vmatpush1.msra.mxu0 0.0
        %2004 = vmatprep.subr.mxu0 0.0
        %2005 = vmatpush1.msra.mxu0 0.0
        %2006 = vmatprep.subr.mxu0 0.0
        %2007 = vmatpush1.msra.mxu0 0.0
        %2008 = vmatprep.subr.mxu0 0.0
        %2009 = vmatpush1.msra.mxu0 0.0
        %2010 = vmatprep.mubr.f32.mxu0 0.0
        %2011 = vmatmul.mubr.f32.gmra.mrb[0].mxu0 %v1928
        %v2012 = vpop.f32.mrb[0].mxu0
        %v2013 = vadd.f32 0.0, %v2012
        %v2014 = vpop.f32.mrb[0].mxu0
        %v2015 = vadd.f32 0.0, %v2014
        %2016 = vdwg.mxu0
        %2017 = vmatprep.subr.mxu0 %v1936
        %2018 = vmatpush1.msra.mxu0 %v1934
        %2019 = vmatprep.subr.mxu0 0.0
        %2020 = vmatpush1.msra.mxu0 0.0
        %2021 = vmatprep.subr.mxu0 0.0
        %2022 = vmatpush1.msra.mxu0 0.0
        %2023 = vmatprep.subr.mxu0 0.0
        %2024 = vmatpush1.msra.mxu0 0.0
        %2025 = vmatprep.subr.mxu0 0.0
        %2026 = vmatpush1.msra.mxu0 0.0
        %2027 = vmatprep.subr.mxu0 0.0
        %2028 = vmatpush1.msra.mxu0 0.0
        %2029 = vmatprep.subr.mxu0 0.0
        %2030 = vmatpush1.msra.mxu0 0.0
        %2031 = vmatprep.subr.mxu0 0.0
        %2032 = vmatpush1.msra.mxu0 0.0
        %2033 = vmatprep.subr.mxu0 0.0
        %2034 = vmatpush1.msra.mxu0 0.0
        %2035 = vmatprep.subr.mxu0 0.0
        %2036 = vmatpush1.msra.mxu0 0.0
        %2037 = vmatprep.subr.mxu0 0.0
        %2038 = vmatpush1.msra.mxu0 0.0
        %2039 = vmatprep.subr.mxu0 0.0
        %2040 = vmatpush1.msra.mxu0 0.0
        %2041 = vmatprep.subr.mxu0 0.0
        %2042 = vmatpush1.msra.mxu0 0.0
        %2043 = vmatprep.subr.mxu0 0.0
        %2044 = vmatpush1.msra.mxu0 0.0
        %2045 = vmatprep.subr.mxu0 0.0
        %2046 = vmatpush1.msra.mxu0 0.0
        %2047 = vmatprep.subr.mxu0 0.0
        %2048 = vmatpush1.msra.mxu0 0.0
        %2049 = vmatprep.subr.mxu0 0.0
        %2050 = vmatpush1.msra.mxu0 0.0
        %2051 = vmatprep.subr.mxu0 0.0
        %2052 = vmatpush1.msra.mxu0 0.0
        %2053 = vmatprep.subr.mxu0 0.0
        %2054 = vmatpush1.msra.mxu0 0.0
        %2055 = vmatprep.subr.mxu0 0.0
        %2056 = vmatpush1.msra.mxu0 0.0
        %2057 = vmatprep.subr.mxu0 0.0
        %2058 = vmatpush1.msra.mxu0 0.0
        %2059 = vmatprep.subr.mxu0 0.0
        %2060 = vmatpush1.msra.mxu0 0.0
        %2061 = vmatprep.subr.mxu0 0.0
        %2062 = vmatpush1.msra.mxu0 0.0
        %2063 = vmatprep.subr.mxu0 0.0
        %2064 = vmatpush1.msra.mxu0 0.0
        %2065 = vmatprep.subr.mxu0 0.0
        %2066 = vmatpush1.msra.mxu0 0.0
        %2067 = vmatprep.subr.mxu0 0.0
        %2068 = vmatpush1.msra.mxu0 0.0
        %2069 = vmatprep.subr.mxu0 0.0
        %2070 = vmatpush1.msra.mxu0 0.0
        %2071 = vmatprep.subr.mxu0 0.0
        %2072 = vmatpush1.msra.mxu0 0.0
        %2073 = vmatprep.subr.mxu0 0.0
        %2074 = vmatpush1.msra.mxu0 0.0
        %2075 = vmatprep.subr.mxu0 0.0
        %2076 = vmatpush1.msra.mxu0 0.0
        %2077 = vmatprep.subr.mxu0 0.0
        %2078 = vmatpush1.msra.mxu0 0.0
        %2079 = vmatprep.subr.mxu0 0.0
        %2080 = vmatpush1.msra.mxu0 0.0
        %2081 = vmatprep.mubr.f32.mxu0 0.0
        %2082 = vmatmul.mubr.f32.gmra.mrb[0].mxu0 %v1928
        %v2083 = vpop.f32.mrb[0].mxu0
        %v2084 = vadd.f32 0.0, %v2083
        %v2085 = vpop.f32.mrb[0].mxu0
        %v2086 = vadd.f32 0.0, %v2085
        %2087 = vdwg.mxu0
        %2088 = vmatprep.subr.mxu0 %v1940
        %2089 = vmatpush1.msra.mxu0 %v1938
        %2090 = vmatprep.subr.mxu0 0.0
        %2091 = vmatpush1.msra.mxu0 0.0
        %2092 = vmatprep.subr.mxu0 0.0
        %2093 = vmatpush1.msra.mxu0 0.0
        %2094 = vmatprep.subr.mxu0 0.0
        %2095 = vmatpush1.msra.mxu0 0.0
        %2096 = vmatprep.subr.mxu0 0.0
        %2097 = vmatpush1.msra.mxu0 0.0
        %2098 = vmatprep.subr.mxu0 0.0
        %2099 = vmatpush1.msra.mxu0 0.0
        %2100 = vmatprep.subr.mxu0 0.0
        %2101 = vmatpush1.msra.mxu0 0.0
        %2102 = vmatprep.subr.mxu0 0.0
        %2103 = vmatpush1.msra.mxu0 0.0
        %2104 = vmatprep.subr.mxu0 0.0
        %2105 = vmatpush1.msra.mxu0 0.0
        %2106 = vmatprep.subr.mxu0 0.0
        %2107 = vmatpush1.msra.mxu0 0.0
        %2108 = vmatprep.subr.mxu0 0.0
        %2109 = vmatpush1.msra.mxu0 0.0
        %2110 = vmatprep.subr.mxu0 0.0
        %2111 = vmatpush1.msra.mxu0 0.0
        %2112 = vmatprep.subr.mxu0 0.0
        %2113 = vmatpush1.msra.mxu0 0.0
        %2114 = vmatprep.subr.mxu0 0.0
        %2115 = vmatpush1.msra.mxu0 0.0
        %2116 = vmatprep.subr.mxu0 0.0
        %2117 = vmatpush1.msra.mxu0 0.0
        %2118 = vmatprep.subr.mxu0 0.0
        %2119 = vmatpush1.msra.mxu0 0.0
        %2120 = vmatprep.subr.mxu0 0.0
        %2121 = vmatpush1.msra.mxu0 0.0
        %2122 = vmatprep.subr.mxu0 0.0
        %2123 = vmatpush1.msra.mxu0 0.0
        %2124 = vmatprep.subr.mxu0 0.0
        %2125 = vmatpush1.msra.mxu0 0.0
        %2126 = vmatprep.subr.mxu0 0.0
        %2127 = vmatpush1.msra.mxu0 0.0
        %2128 = vmatprep.subr.mxu0 0.0
        %2129 = vmatpush1.msra.mxu0 0.0
        %2130 = vmatprep.subr.mxu0 0.0
        %2131 = vmatpush1.msra.mxu0 0.0
        %2132 = vmatprep.subr.mxu0 0.0
        %2133 = vmatpush1.msra.mxu0 0.0
        %2134 = vmatprep.subr.mxu0 0.0
        %2135 = vmatpush1.msra.mxu0 0.0
        %2136 = vmatprep.subr.mxu0 0.0
        %2137 = vmatpush1.msra.mxu0 0.0
        %2138 = vmatprep.subr.mxu0 0.0
        %2139 = vmatpush1.msra.mxu0 0.0
        %2140 = vmatprep.subr.mxu0 0.0
        %2141 = vmatpush1.msra.mxu0 0.0
        %2142 = vmatprep.subr.mxu0 0.0
        %2143 = vmatpush1.msra.mxu0 0.0
        %2144 = vmatprep.subr.mxu0 0.0
        %2145 = vmatpush1.msra.mxu0 0.0
        %2146 = vmatprep.subr.mxu0 0.0
        %2147 = vmatpush1.msra.mxu0 0.0
        %2148 = vmatprep.subr.mxu0 0.0
        %2149 = vmatpush1.msra.mxu0 0.0
        %2150 = vmatprep.subr.mxu0 0.0
        %2151 = vmatpush1.msra.mxu0 0.0
        %2152 = vmatprep.mubr.f32.mxu0 0.0
        %2153 = vmatmul.mubr.f32.gmra.mrb[0].mxu0 %v1928
        %v2154 = vpop.f32.mrb[0].mxu0
        %v2155 = vadd.f32 0.0, %v2154
        %v2156 = vpop.f32.mrb[0].mxu0
        %v2157 = vadd.f32 0.0, %v2156
        %2158 = vdwg.mxu0
        %2159 = vmatprep.subr.mxu0 %v1944
        %2160 = vmatpush1.msra.mxu0 %v1942
        %2161 = vmatprep.subr.mxu0 0.0
        %2162 = vmatpush1.msra.mxu0 0.0
        %2163 = vmatprep.subr.mxu0 0.0
        %2164 = vmatpush1.msra.mxu0 0.0
        %2165 = vmatprep.subr.mxu0 0.0
        %2166 = vmatpush1.msra.mxu0 0.0
        %2167 = vmatprep.subr.mxu0 0.0
        %2168 = vmatpush1.msra.mxu0 0.0
        %2169 = vmatprep.subr.mxu0 0.0
        %2170 = vmatpush1.msra.mxu0 0.0
        %2171 = vmatprep.subr.mxu0 0.0
        %2172 = vmatpush1.msra.mxu0 0.0
        %2173 = vmatprep.subr.mxu0 0.0
        %2174 = vmatpush1.msra.mxu0 0.0
        %2175 = vmatprep.subr.mxu0 0.0
        %2176 = vmatpush1.msra.mxu0 0.0
        %2177 = vmatprep.subr.mxu0 0.0
        %2178 = vmatpush1.msra.mxu0 0.0
        %2179 = vmatprep.subr.mxu0 0.0
        %2180 = vmatpush1.msra.mxu0 0.0
        %2181 = vmatprep.subr.mxu0 0.0
        %2182 = vmatpush1.msra.mxu0 0.0
        %2183 = vmatprep.subr.mxu0 0.0
        %2184 = vmatpush1.msra.mxu0 0.0
        %2185 = vmatprep.subr.mxu0 0.0
        %2186 = vmatpush1.msra.mxu0 0.0
        %2187 = vmatprep.subr.mxu0 0.0
        %2188 = vmatpush1.msra.mxu0 0.0
        %2189 = vmatprep.subr.mxu0 0.0
        %2190 = vmatpush1.msra.mxu0 0.0
        %2191 = vmatprep.subr.mxu0 0.0
        %2192 = vmatpush1.msra.mxu0 0.0
        %2193 = vmatprep.subr.mxu0 0.0
        %2194 = vmatpush1.msra.mxu0 0.0
        %2195 = vmatprep.subr.mxu0 0.0
        %2196 = vmatpush1.msra.mxu0 0.0
        %2197 = vmatprep.subr.mxu0 0.0
        %2198 = vmatpush1.msra.mxu0 0.0
        %2199 = vmatprep.subr.mxu0 0.0
        %2200 = vmatpush1.msra.mxu0 0.0
        %2201 = vmatprep.subr.mxu0 0.0
        %2202 = vmatpush1.msra.mxu0 0.0
        %2203 = vmatprep.subr.mxu0 0.0
        %2204 = vmatpush1.msra.mxu0 0.0
        %2205 = vmatprep.subr.mxu0 0.0
        %2206 = vmatpush1.msra.mxu0 0.0
        %2207 = vmatprep.subr.mxu0 0.0
        %2208 = vmatpush1.msra.mxu0 0.0
        %2209 = vmatprep.subr.mxu0 0.0
        %2210 = vmatpush1.msra.mxu0 0.0
        %2211 = vmatprep.subr.mxu0 0.0
        %2212 = vmatpush1.msra.mxu0 0.0
        %2213 = vmatprep.subr.mxu0 0.0
        %2214 = vmatpush1.msra.mxu0 0.0
        %2215 = vmatprep.subr.mxu0 0.0
        %2216 = vmatpush1.msra.mxu0 0.0
        %2217 = vmatprep.subr.mxu0 0.0
        %2218 = vmatpush1.msra.mxu0 0.0
        %2219 = vmatprep.subr.mxu0 0.0
        %2220 = vmatpush1.msra.mxu0 0.0
        %2221 = vmatprep.subr.mxu0 0.0
        %2222 = vmatpush1.msra.mxu0 0.0
        %2223 = vmatprep.mubr.f32.mxu0 0.0
        %2224 = vmatmul.mubr.f32.gmra.mrb[0].mxu0 %v1928
        %v2225 = vpop.f32.mrb[0].mxu0
        %v2226 = vadd.f32 0.0, %v2225
        %v2227 = vpop.f32.mrb[0].mxu0
        %v2228 = vadd.f32 0.0, %v2227
        %2229 = vdwg.mxu0
        %v2230 = vadd.f32 %v1876, %v2013
        %v2231 = vadd.f32 %v1877, %v2015
        %v2232 = vadd.f32 %v1878, %v2084
        %v2233 = vadd.f32 %v1879, %v2086
        %v2234 = vadd.f32 %v1880, %v2155
        %v2235 = vadd.f32 %v1881, %v2157
        %v2236 = vadd.f32 %v1882, %v2226
        %v2237 = vadd.f32 %v1883, %v2228
        %s2238 = scalar_lea.vmem %s1, 48
        %v2239 = vld [vmem:[%s2238] sm:$0xff]
        %v2240 = vld [vmem:[%s168] sm:$0xff]
        %v2241 = vld [vmem:[%s168 + $0x8] sm:$0xff]
        %v2242 = vld [vmem:[%s168 + $0x10] sm:$0xff]
        %v2243 = vld [vmem:[%s168 + $0x18] sm:$0xff]
        %v2244 = vld [vmem:[%s168 + $0x20] sm:$0xf]
        %v2250 = vcombine.high %v2240, %v2240
        %v2251 = vcombine.high %v2241, %v2241
        %v2252 = vcombine.high %v2242, %v2242
        %v2253 = vcombine.high %v2243, %v2243
        %2254 = vrot.lane.b32.xlu0 %v2240, 108
        %v2255 = vpop.permute.xlu0 %2254
        %2256 = vrot.lane.b32.xlu0 %v2250, 108
        %v2257 = vpop.permute.xlu0 %2256
        %2258 = vrot.lane.b32.xlu0 %v2241, 108
        %v2259 = vpop.permute.xlu0 %2258
        %2260 = vrot.lane.b32.xlu0 %v2251, 108
        %v2261 = vpop.permute.xlu0 %2260
        %2262 = vrot.lane.b32.xlu0 %v2242, 108
        %v2263 = vpop.permute.xlu0 %2262
        %2264 = vrot.lane.b32.xlu0 %v2252, 108
        %v2265 = vpop.permute.xlu0 %2264
        %2266 = vrot.lane.b32.xlu0 %v2243, 108
        %v2267 = vpop.permute.xlu0 %2266
        %2268 = vrot.lane.b32.xlu0 %v2253, 108
        %v2269 = vpop.permute.xlu0 %2268
        %2270 = vrot.lane.b32.xlu0 %v2244, 108
        %v2271 = vpop.permute.xlu0 %2270
        %vm2272 = vcmask 883712
        %v2273 = vsel %vm2272, %v2255, %v2257
        %v2274 = vsel %vm2272, %v2257, %v2259
        %v2275 = vsel %vm2272, %v2259, %v2261
        %v2276 = vsel %vm2272, %v2261, %v2263
        %v2277 = vsel %vm2272, %v2263, %v2265
        %v2278 = vsel %vm2272, %v2265, %v2267
        %v2279 = vsel %vm2272, %v2267, %v2269
        %v2280 = vsel %vm2272, %v2269, %v2271
        %v2282 = vsel %vm214, %v2239, 0
        %v2284 = vsel %vm218, %v2273, 0
        %v2286 = vsel %vm218, %v2274, 0
        %v2288 = vsel %vm218, %v2275, 0
        %v2290 = vsel %vm218, %v2276, 0
        %v2292 = vsel %vm218, %v2277, 0
        %v2294 = vsel %vm218, %v2278, 0
        %v2296 = vsel %vm218, %v2279, 0
        %v2298 = vsel %vm218, %v2280, 0
        %2300 = vmatprep.subr.mxu0 %v2286
        %2301 = vmatpush1.msra.mxu0 %v2284
        %2302 = vmatprep.subr.mxu0 0.0
        %2303 = vmatpush1.msra.mxu0 0.0
        %2304 = vmatprep.subr.mxu0 0.0
        %2305 = vmatpush1.msra.mxu0 0.0
        %2306 = vmatprep.subr.mxu0 0.0
        %2307 = vmatpush1.msra.mxu0 0.0
        %2308 = vmatprep.subr.mxu0 0.0
        %2309 = vmatpush1.msra.mxu0 0.0
        %2310 = vmatprep.subr.mxu0 0.0
        %2311 = vmatpush1.msra.mxu0 0.0
        %2312 = vmatprep.subr.mxu0 0.0
        %2313 = vmatpush1.msra.mxu0 0.0
        %2314 = vmatprep.subr.mxu0 0.0
        %2315 = vmatpush1.msra.mxu0 0.0
        %2316 = vmatprep.subr.mxu0 0.0
        %2317 = vmatpush1.msra.mxu0 0.0
        %2318 = vmatprep.subr.mxu0 0.0
        %2319 = vmatpush1.msra.mxu0 0.0
        %2320 = vmatprep.subr.mxu0 0.0
        %2321 = vmatpush1.msra.mxu0 0.0
        %2322 = vmatprep.subr.mxu0 0.0
        %2323 = vmatpush1.msra.mxu0 0.0
        %2324 = vmatprep.subr.mxu0 0.0
        %2325 = vmatpush1.msra.mxu0 0.0
        %2326 = vmatprep.subr.mxu0 0.0
        %2327 = vmatpush1.msra.mxu0 0.0
        %2328 = vmatprep.subr.mxu0 0.0
        %2329 = vmatpush1.msra.mxu0 0.0
        %2330 = vmatprep.subr.mxu0 0.0
        %2331 = vmatpush1.msra.mxu0 0.0
        %2332 = vmatprep.subr.mxu0 0.0
        %2333 = vmatpush1.msra.mxu0 0.0
        %2334 = vmatprep.subr.mxu0 0.0
        %2335 = vmatpush1.msra.mxu0 0.0
        %2336 = vmatprep.subr.mxu0 0.0
        %2337 = vmatpush1.msra.mxu0 0.0
        %2338 = vmatprep.subr.mxu0 0.0
        %2339 = vmatpush1.msra.mxu0 0.0
        %2340 = vmatprep.subr.mxu0 0.0
        %2341 = vmatpush1.msra.mxu0 0.0
        %2342 = vmatprep.subr.mxu0 0.0
        %2343 = vmatpush1.msra.mxu0 0.0
        %2344 = vmatprep.subr.mxu0 0.0
        %2345 = vmatpush1.msra.mxu0 0.0
        %2346 = vmatprep.subr.mxu0 0.0
        %2347 = vmatpush1.msra.mxu0 0.0
        %2348 = vmatprep.subr.mxu0 0.0
        %2349 = vmatpush1.msra.mxu0 0.0
        %2350 = vmatprep.subr.mxu0 0.0
        %2351 = vmatpush1.msra.mxu0 0.0
        %2352 = vmatprep.subr.mxu0 0.0
        %2353 = vmatpush1.msra.mxu0 0.0
        %2354 = vmatprep.subr.mxu0 0.0
        %2355 = vmatpush1.msra.mxu0 0.0
        %2356 = vmatprep.subr.mxu0 0.0
        %2357 = vmatpush1.msra.mxu0 0.0
        %2358 = vmatprep.subr.mxu0 0.0
        %2359 = vmatpush1.msra.mxu0 0.0
        %2360 = vmatprep.subr.mxu0 0.0
        %2361 = vmatpush1.msra.mxu0 0.0
        %2362 = vmatprep.subr.mxu0 0.0
        %2363 = vmatpush1.msra.mxu0 0.0
        %2364 = vmatprep.mubr.f32.mxu0 0.0
        %2365 = vmatmul.mubr.f32.gmra.mrb[0].mxu0 %v2282
        %v2366 = vpop.f32.mrb[0].mxu0
        %v2367 = vadd.f32 0.0, %v2366
        %v2368 = vpop.f32.mrb[0].mxu0
        %v2369 = vadd.f32 0.0, %v2368
        %2370 = vdwg.mxu0
        %2371 = vmatprep.subr.mxu0 %v2290
        %2372 = vmatpush1.msra.mxu0 %v2288
        %2373 = vmatprep.subr.mxu0 0.0
        %2374 = vmatpush1.msra.mxu0 0.0
        %2375 = vmatprep.subr.mxu0 0.0
        %2376 = vmatpush1.msra.mxu0 0.0
        %2377 = vmatprep.subr.mxu0 0.0
        %2378 = vmatpush1.msra.mxu0 0.0
        %2379 = vmatprep.subr.mxu0 0.0
        %2380 = vmatpush1.msra.mxu0 0.0
        %2381 = vmatprep.subr.mxu0 0.0
        %2382 = vmatpush1.msra.mxu0 0.0
        %2383 = vmatprep.subr.mxu0 0.0
        %2384 = vmatpush1.msra.mxu0 0.0
        %2385 = vmatprep.subr.mxu0 0.0
        %2386 = vmatpush1.msra.mxu0 0.0
        %2387 = vmatprep.subr.mxu0 0.0
        %2388 = vmatpush1.msra.mxu0 0.0
        %2389 = vmatprep.subr.mxu0 0.0
        %2390 = vmatpush1.msra.mxu0 0.0
        %2391 = vmatprep.subr.mxu0 0.0
        %2392 = vmatpush1.msra.mxu0 0.0
        %2393 = vmatprep.subr.mxu0 0.0
        %2394 = vmatpush1.msra.mxu0 0.0
        %2395 = vmatprep.subr.mxu0 0.0
        %2396 = vmatpush1.msra.mxu0 0.0
        %2397 = vmatprep.subr.mxu0 0.0
        %2398 = vmatpush1.msra.mxu0 0.0
        %2399 = vmatprep.subr.mxu0 0.0
        %2400 = vmatpush1.msra.mxu0 0.0
        %2401 = vmatprep.subr.mxu0 0.0
        %2402 = vmatpush1.msra.mxu0 0.0
        %2403 = vmatprep.subr.mxu0 0.0
        %2404 = vmatpush1.msra.mxu0 0.0
        %2405 = vmatprep.subr.mxu0 0.0
        %2406 = vmatpush1.msra.mxu0 0.0
        %2407 = vmatprep.subr.mxu0 0.0
        %2408 = vmatpush1.msra.mxu0 0.0
        %2409 = vmatprep.subr.mxu0 0.0
        %2410 = vmatpush1.msra.mxu0 0.0
        %2411 = vmatprep.subr.mxu0 0.0
        %2412 = vmatpush1.msra.mxu0 0.0
        %2413 = vmatprep.subr.mxu0 0.0
        %2414 = vmatpush1.msra.mxu0 0.0
        %2415 = vmatprep.subr.mxu0 0.0
        %2416 = vmatpush1.msra.mxu0 0.0
        %2417 = vmatprep.subr.mxu0 0.0
        %2418 = vmatpush1.msra.mxu0 0.0
        %2419 = vmatprep.subr.mxu0 0.0
        %2420 = vmatpush1.msra.mxu0 0.0
        %2421 = vmatprep.subr.mxu0 0.0
        %2422 = vmatpush1.msra.mxu0 0.0
        %2423 = vmatprep.subr.mxu0 0.0
        %2424 = vmatpush1.msra.mxu0 0.0
        %2425 = vmatprep.subr.mxu0 0.0
        %2426 = vmatpush1.msra.mxu0 0.0
        %2427 = vmatprep.subr.mxu0 0.0
        %2428 = vmatpush1.msra.mxu0 0.0
        %2429 = vmatprep.subr.mxu0 0.0
        %2430 = vmatpush1.msra.mxu0 0.0
        %2431 = vmatprep.subr.mxu0 0.0
        %2432 = vmatpush1.msra.mxu0 0.0
        %2433 = vmatprep.subr.mxu0 0.0
        %2434 = vmatpush1.msra.mxu0 0.0
        %2435 = vmatprep.mubr.f32.mxu0 0.0
        %2436 = vmatmul.mubr.f32.gmra.mrb[0].mxu0 %v2282
        %v2437 = vpop.f32.mrb[0].mxu0
        %v2438 = vadd.f32 0.0, %v2437
        %v2439 = vpop.f32.mrb[0].mxu0
        %v2440 = vadd.f32 0.0, %v2439
        %2441 = vdwg.mxu0
        %2442 = vmatprep.subr.mxu0 %v2294
        %2443 = vmatpush1.msra.mxu0 %v2292
        %2444 = vmatprep.subr.mxu0 0.0
        %2445 = vmatpush1.msra.mxu0 0.0
        %2446 = vmatprep.subr.mxu0 0.0
        %2447 = vmatpush1.msra.mxu0 0.0
        %2448 = vmatprep.subr.mxu0 0.0
        %2449 = vmatpush1.msra.mxu0 0.0
        %2450 = vmatprep.subr.mxu0 0.0
        %2451 = vmatpush1.msra.mxu0 0.0
        %2452 = vmatprep.subr.mxu0 0.0
        %2453 = vmatpush1.msra.mxu0 0.0
        %2454 = vmatprep.subr.mxu0 0.0
        %2455 = vmatpush1.msra.mxu0 0.0
        %2456 = vmatprep.subr.mxu0 0.0
        %2457 = vmatpush1.msra.mxu0 0.0
        %2458 = vmatprep.subr.mxu0 0.0
        %2459 = vmatpush1.msra.mxu0 0.0
        %2460 = vmatprep.subr.mxu0 0.0
        %2461 = vmatpush1.msra.mxu0 0.0
        %2462 = vmatprep.subr.mxu0 0.0
        %2463 = vmatpush1.msra.mxu0 0.0
        %2464 = vmatprep.subr.mxu0 0.0
        %2465 = vmatpush1.msra.mxu0 0.0
        %2466 = vmatprep.subr.mxu0 0.0
        %2467 = vmatpush1.msra.mxu0 0.0
        %2468 = vmatprep.subr.mxu0 0.0
        %2469 = vmatpush1.msra.mxu0 0.0
        %2470 = vmatprep.subr.mxu0 0.0
        %2471 = vmatpush1.msra.mxu0 0.0
        %2472 = vmatprep.subr.mxu0 0.0
        %2473 = vmatpush1.msra.mxu0 0.0
        %2474 = vmatprep.subr.mxu0 0.0
        %2475 = vmatpush1.msra.mxu0 0.0
        %2476 = vmatprep.subr.mxu0 0.0
        %2477 = vmatpush1.msra.mxu0 0.0
        %2478 = vmatprep.subr.mxu0 0.0
        %2479 = vmatpush1.msra.mxu0 0.0
        %2480 = vmatprep.subr.mxu0 0.0
        %2481 = vmatpush1.msra.mxu0 0.0
        %2482 = vmatprep.subr.mxu0 0.0
        %2483 = vmatpush1.msra.mxu0 0.0
        %2484 = vmatprep.subr.mxu0 0.0
        %2485 = vmatpush1.msra.mxu0 0.0
        %2486 = vmatprep.subr.mxu0 0.0
        %2487 = vmatpush1.msra.mxu0 0.0
        %2488 = vmatprep.subr.mxu0 0.0
        %2489 = vmatpush1.msra.mxu0 0.0
        %2490 = vmatprep.subr.mxu0 0.0
        %2491 = vmatpush1.msra.mxu0 0.0
        %2492 = vmatprep.subr.mxu0 0.0
        %2493 = vmatpush1.msra.mxu0 0.0
        %2494 = vmatprep.subr.mxu0 0.0
        %2495 = vmatpush1.msra.mxu0 0.0
        %2496 = vmatprep.subr.mxu0 0.0
        %2497 = vmatpush1.msra.mxu0 0.0
        %2498 = vmatprep.subr.mxu0 0.0
        %2499 = vmatpush1.msra.mxu0 0.0
        %2500 = vmatprep.subr.mxu0 0.0
        %2501 = vmatpush1.msra.mxu0 0.0
        %2502 = vmatprep.subr.mxu0 0.0
        %2503 = vmatpush1.msra.mxu0 0.0
        %2504 = vmatprep.subr.mxu0 0.0
        %2505 = vmatpush1.msra.mxu0 0.0
        %2506 = vmatprep.mubr.f32.mxu0 0.0
        %2507 = vmatmul.mubr.f32.gmra.mrb[0].mxu0 %v2282
        %v2508 = vpop.f32.mrb[0].mxu0
        %v2509 = vadd.f32 0.0, %v2508
        %v2510 = vpop.f32.mrb[0].mxu0
        %v2511 = vadd.f32 0.0, %v2510
        %2512 = vdwg.mxu0
        %2513 = vmatprep.subr.mxu0 %v2298
        %2514 = vmatpush1.msra.mxu0 %v2296
        %2515 = vmatprep.subr.mxu0 0.0
        %2516 = vmatpush1.msra.mxu0 0.0
        %2517 = vmatprep.subr.mxu0 0.0
        %2518 = vmatpush1.msra.mxu0 0.0
        %2519 = vmatprep.subr.mxu0 0.0
        %2520 = vmatpush1.msra.mxu0 0.0
        %2521 = vmatprep.subr.mxu0 0.0
        %2522 = vmatpush1.msra.mxu0 0.0
        %2523 = vmatprep.subr.mxu0 0.0
        %2524 = vmatpush1.msra.mxu0 0.0
        %2525 = vmatprep.subr.mxu0 0.0
        %2526 = vmatpush1.msra.mxu0 0.0
        %2527 = vmatprep.subr.mxu0 0.0
        %2528 = vmatpush1.msra.mxu0 0.0
        %2529 = vmatprep.subr.mxu0 0.0
        %2530 = vmatpush1.msra.mxu0 0.0
        %2531 = vmatprep.subr.mxu0 0.0
        %2532 = vmatpush1.msra.mxu0 0.0
        %2533 = vmatprep.subr.mxu0 0.0
        %2534 = vmatpush1.msra.mxu0 0.0
        %2535 = vmatprep.subr.mxu0 0.0
        %2536 = vmatpush1.msra.mxu0 0.0
        %2537 = vmatprep.subr.mxu0 0.0
        %2538 = vmatpush1.msra.mxu0 0.0
        %2539 = vmatprep.subr.mxu0 0.0
        %2540 = vmatpush1.msra.mxu0 0.0
        %2541 = vmatprep.subr.mxu0 0.0
        %2542 = vmatpush1.msra.mxu0 0.0
        %2543 = vmatprep.subr.mxu0 0.0
        %2544 = vmatpush1.msra.mxu0 0.0
        %2545 = vmatprep.subr.mxu0 0.0
        %2546 = vmatpush1.msra.mxu0 0.0
        %2547 = vmatprep.subr.mxu0 0.0
        %2548 = vmatpush1.msra.mxu0 0.0
        %2549 = vmatprep.subr.mxu0 0.0
        %2550 = vmatpush1.msra.mxu0 0.0
        %2551 = vmatprep.subr.mxu0 0.0
        %2552 = vmatpush1.msra.mxu0 0.0
        %2553 = vmatprep.subr.mxu0 0.0
        %2554 = vmatpush1.msra.mxu0 0.0
        %2555 = vmatprep.subr.mxu0 0.0
        %2556 = vmatpush1.msra.mxu0 0.0
        %2557 = vmatprep.subr.mxu0 0.0
        %2558 = vmatpush1.msra.mxu0 0.0
        %2559 = vmatprep.subr.mxu0 0.0
        %2560 = vmatpush1.msra.mxu0 0.0
        %2561 = vmatprep.subr.mxu0 0.0
        %2562 = vmatpush1.msra.mxu0 0.0
        %2563 = vmatprep.subr.mxu0 0.0
        %2564 = vmatpush1.msra.mxu0 0.0
        %2565 = vmatprep.subr.mxu0 0.0
        %2566 = vmatpush1.msra.mxu0 0.0
        %2567 = vmatprep.subr.mxu0 0.0
        %2568 = vmatpush1.msra.mxu0 0.0
        %2569 = vmatprep.subr.mxu0 0.0
        %2570 = vmatpush1.msra.mxu0 0.0
        %2571 = vmatprep.subr.mxu0 0.0
        %2572 = vmatpush1.msra.mxu0 0.0
        %2573 = vmatprep.subr.mxu0 0.0
        %2574 = vmatpush1.msra.mxu0 0.0
        %2575 = vmatprep.subr.mxu0 0.0
        %2576 = vmatpush1.msra.mxu0 0.0
        %2577 = vmatprep.mubr.f32.mxu0 0.0
        %2578 = vmatmul.mubr.f32.gmra.mrb[0].mxu0 %v2282
        %v2579 = vpop.f32.mrb[0].mxu0
        %v2580 = vadd.f32 0.0, %v2579
        %v2581 = vpop.f32.mrb[0].mxu0
        %v2582 = vadd.f32 0.0, %v2581
        %2583 = vdwg.mxu0
        %v2584 = vadd.f32 %v2230, %v2367
        %v2585 = vadd.f32 %v2231, %v2369
        %v2586 = vadd.f32 %v2232, %v2438
        %v2587 = vadd.f32 %v2233, %v2440
        %v2588 = vadd.f32 %v2234, %v2509
        %v2589 = vadd.f32 %v2235, %v2511
        %v2590 = vadd.f32 %v2236, %v2580
        %v2591 = vadd.f32 %v2237, %v2582
        %s2592 = scalar_lea.vmem %s1, 56
        %v2593 = vld [vmem:[%s2592] sm:$0xff]
        %v2594 = vld [vmem:[%s168] sm:$0xff]
        %v2595 = vld [vmem:[%s168 + $0x8] sm:$0xff]
        %v2596 = vld [vmem:[%s168 + $0x10] sm:$0xff]
        %v2597 = vld [vmem:[%s168 + $0x18] sm:$0xff]
        %v2598 = vld [vmem:[%s168 + $0x20] sm:$0xf]
        %v2604 = vcombine.high %v2594, %v2594
        %v2605 = vcombine.high %v2595, %v2595
        %v2606 = vcombine.high %v2596, %v2596
        %v2607 = vcombine.high %v2597, %v2597
        %2608 = vrot.lane.b32.xlu0 %v2594, 107
        %v2609 = vpop.permute.xlu0 %2608
        %2610 = vrot.lane.b32.xlu0 %v2604, 107
        %v2611 = vpop.permute.xlu0 %2610
        %2612 = vrot.lane.b32.xlu0 %v2595, 107
        %v2613 = vpop.permute.xlu0 %2612
        %2614 = vrot.lane.b32.xlu0 %v2605, 107
        %v2615 = vpop.permute.xlu0 %2614
        %2616 = vrot.lane.b32.xlu0 %v2596, 107
        %v2617 = vpop.permute.xlu0 %2616
        %2618 = vrot.lane.b32.xlu0 %v2606, 107
        %v2619 = vpop.permute.xlu0 %2618
        %2620 = vrot.lane.b32.xlu0 %v2597, 107
        %v2621 = vpop.permute.xlu0 %2620
        %2622 = vrot.lane.b32.xlu0 %v2607, 107
        %v2623 = vpop.permute.xlu0 %2622
        %2624 = vrot.lane.b32.xlu0 %v2598, 107
        %v2625 = vpop.permute.xlu0 %2624
        %vm2626 = vcmask 875520
        %v2627 = vsel %vm2626, %v2609, %v2611
        %v2628 = vsel %vm2626, %v2611, %v2613
        %v2629 = vsel %vm2626, %v2613, %v2615
        %v2630 = vsel %vm2626, %v2615, %v2617
        %v2631 = vsel %vm2626, %v2617, %v2619
        %v2632 = vsel %vm2626, %v2619, %v2621
        %v2633 = vsel %vm2626, %v2621, %v2623
        %v2634 = vsel %vm2626, %v2623, %v2625
        %v2636 = vsel %vm214, %v2593, 0
        %v2638 = vsel %vm218, %v2627, 0
        %v2640 = vsel %vm218, %v2628, 0
        %v2642 = vsel %vm218, %v2629, 0
        %v2644 = vsel %vm218, %v2630, 0
        %v2646 = vsel %vm218, %v2631, 0
        %v2648 = vsel %vm218, %v2632, 0
        %v2650 = vsel %vm218, %v2633, 0
        %v2652 = vsel %vm218, %v2634, 0
        %2654 = vmatprep.subr.mxu0 %v2640
        %2655 = vmatpush1.msra.mxu0 %v2638
        %2656 = vmatprep.subr.mxu0 0.0
        %2657 = vmatpush1.msra.mxu0 0.0
        %2658 = vmatprep.subr.mxu0 0.0
        %2659 = vmatpush1.msra.mxu0 0.0
        %2660 = vmatprep.subr.mxu0 0.0
        %2661 = vmatpush1.msra.mxu0 0.0
        %2662 = vmatprep.subr.mxu0 0.0
        %2663 = vmatpush1.msra.mxu0 0.0
        %2664 = vmatprep.subr.mxu0 0.0
        %2665 = vmatpush1.msra.mxu0 0.0
        %2666 = vmatprep.subr.mxu0 0.0
        %2667 = vmatpush1.msra.mxu0 0.0
        %2668 = vmatprep.subr.mxu0 0.0
        %2669 = vmatpush1.msra.mxu0 0.0
        %2670 = vmatprep.subr.mxu0 0.0
        %2671 = vmatpush1.msra.mxu0 0.0
        %2672 = vmatprep.subr.mxu0 0.0
        %2673 = vmatpush1.msra.mxu0 0.0
        %2674 = vmatprep.subr.mxu0 0.0
        %2675 = vmatpush1.msra.mxu0 0.0
        %2676 = vmatprep.subr.mxu0 0.0
        %2677 = vmatpush1.msra.mxu0 0.0
        %2678 = vmatprep.subr.mxu0 0.0
        %2679 = vmatpush1.msra.mxu0 0.0
        %2680 = vmatprep.subr.mxu0 0.0
        %2681 = vmatpush1.msra.mxu0 0.0
        %2682 = vmatprep.subr.mxu0 0.0
        %2683 = vmatpush1.msra.mxu0 0.0
        %2684 = vmatprep.subr.mxu0 0.0
        %2685 = vmatpush1.msra.mxu0 0.0
        %2686 = vmatprep.subr.mxu0 0.0
        %2687 = vmatpush1.msra.mxu0 0.0
        %2688 = vmatprep.subr.mxu0 0.0
        %2689 = vmatpush1.msra.mxu0 0.0
        %2690 = vmatprep.subr.mxu0 0.0
        %2691 = vmatpush1.msra.mxu0 0.0
        %2692 = vmatprep.subr.mxu0 0.0
        %2693 = vmatpush1.msra.mxu0 0.0
        %2694 = vmatprep.subr.mxu0 0.0
        %2695 = vmatpush1.msra.mxu0 0.0
        %2696 = vmatprep.subr.mxu0 0.0
        %2697 = vmatpush1.msra.mxu0 0.0
        %2698 = vmatprep.subr.mxu0 0.0
        %2699 = vmatpush1.msra.mxu0 0.0
        %2700 = vmatprep.subr.mxu0 0.0
        %2701 = vmatpush1.msra.mxu0 0.0
        %2702 = vmatprep.subr.mxu0 0.0
        %2703 = vmatpush1.msra.mxu0 0.0
        %2704 = vmatprep.subr.mxu0 0.0
        %2705 = vmatpush1.msra.mxu0 0.0
        %2706 = vmatprep.subr.mxu0 0.0
        %2707 = vmatpush1.msra.mxu0 0.0
        %2708 = vmatprep.subr.mxu0 0.0
        %2709 = vmatpush1.msra.mxu0 0.0
        %2710 = vmatprep.subr.mxu0 0.0
        %2711 = vmatpush1.msra.mxu0 0.0
        %2712 = vmatprep.subr.mxu0 0.0
        %2713 = vmatpush1.msra.mxu0 0.0
        %2714 = vmatprep.subr.mxu0 0.0
        %2715 = vmatpush1.msra.mxu0 0.0
        %2716 = vmatprep.subr.mxu0 0.0
        %2717 = vmatpush1.msra.mxu0 0.0
        %2718 = vmatprep.mubr.f32.mxu0 0.0
        %2719 = vmatmul.mubr.f32.gmra.mrb[0].mxu0 %v2636
        %v2720 = vpop.f32.mrb[0].mxu0
        %v2721 = vadd.f32 0.0, %v2720
        %v2722 = vpop.f32.mrb[0].mxu0
        %v2723 = vadd.f32 0.0, %v2722
        %2724 = vdwg.mxu0
        %2725 = vmatprep.subr.mxu0 %v2644
        %2726 = vmatpush1.msra.mxu0 %v2642
        %2727 = vmatprep.subr.mxu0 0.0
        %2728 = vmatpush1.msra.mxu0 0.0
        %2729 = vmatprep.subr.mxu0 0.0
        %2730 = vmatpush1.msra.mxu0 0.0
        %2731 = vmatprep.subr.mxu0 0.0
        %2732 = vmatpush1.msra.mxu0 0.0
        %2733 = vmatprep.subr.mxu0 0.0
        %2734 = vmatpush1.msra.mxu0 0.0
        %2735 = vmatprep.subr.mxu0 0.0
        %2736 = vmatpush1.msra.mxu0 0.0
        %2737 = vmatprep.subr.mxu0 0.0
        %2738 = vmatpush1.msra.mxu0 0.0
        %2739 = vmatprep.subr.mxu0 0.0
        %2740 = vmatpush1.msra.mxu0 0.0
        %2741 = vmatprep.subr.mxu0 0.0
        %2742 = vmatpush1.msra.mxu0 0.0
        %2743 = vmatprep.subr.mxu0 0.0
        %2744 = vmatpush1.msra.mxu0 0.0
        %2745 = vmatprep.subr.mxu0 0.0
        %2746 = vmatpush1.msra.mxu0 0.0
        %2747 = vmatprep.subr.mxu0 0.0
        %2748 = vmatpush1.msra.mxu0 0.0
        %2749 = vmatprep.subr.mxu0 0.0
        %2750 = vmatpush1.msra.mxu0 0.0
        %2751 = vmatprep.subr.mxu0 0.0
        %2752 = vmatpush1.msra.mxu0 0.0
        %2753 = vmatprep.subr.mxu0 0.0
        %2754 = vmatpush1.msra.mxu0 0.0
        %2755 = vmatprep.subr.mxu0 0.0
        %2756 = vmatpush1.msra.mxu0 0.0
        %2757 = vmatprep.subr.mxu0 0.0
        %2758 = vmatpush1.msra.mxu0 0.0
        %2759 = vmatprep.subr.mxu0 0.0
        %2760 = vmatpush1.msra.mxu0 0.0
        %2761 = vmatprep.subr.mxu0 0.0
        %2762 = vmatpush1.msra.mxu0 0.0
        %2763 = vmatprep.subr.mxu0 0.0
        %2764 = vmatpush1.msra.mxu0 0.0
        %2765 = vmatprep.subr.mxu0 0.0
        %2766 = vmatpush1.msra.mxu0 0.0
        %2767 = vmatprep.subr.mxu0 0.0
        %2768 = vmatpush1.msra.mxu0 0.0
        %2769 = vmatprep.subr.mxu0 0.0
        %2770 = vmatpush1.msra.mxu0 0.0
        %2771 = vmatprep.subr.mxu0 0.0
        %2772 = vmatpush1.msra.mxu0 0.0
        %2773 = vmatprep.subr.mxu0 0.0
        %2774 = vmatpush1.msra.mxu0 0.0
        %2775 = vmatprep.subr.mxu0 0.0
        %2776 = vmatpush1.msra.mxu0 0.0
        %2777 = vmatprep.subr.mxu0 0.0
        %2778 = vmatpush1.msra.mxu0 0.0
        %2779 = vmatprep.subr.mxu0 0.0
        %2780 = vmatpush1.msra.mxu0 0.0
        %2781 = vmatprep.subr.mxu0 0.0
        %2782 = vmatpush1.msra.mxu0 0.0
        %2783 = vmatprep.subr.mxu0 0.0
        %2784 = vmatpush1.msra.mxu0 0.0
        %2785 = vmatprep.subr.mxu0 0.0
        %2786 = vmatpush1.msra.mxu0 0.0
        %2787 = vmatprep.subr.mxu0 0.0
        %2788 = vmatpush1.msra.mxu0 0.0
        %2789 = vmatprep.mubr.f32.mxu0 0.0
        %2790 = vmatmul.mubr.f32.gmra.mrb[0].mxu0 %v2636
        %v2791 = vpop.f32.mrb[0].mxu0
        %v2792 = vadd.f32 0.0, %v2791
        %v2793 = vpop.f32.mrb[0].mxu0
        %v2794 = vadd.f32 0.0, %v2793
        %2795 = vdwg.mxu0
        %2796 = vmatprep.subr.mxu0 %v2648
        %2797 = vmatpush1.msra.mxu0 %v2646
        %2798 = vmatprep.subr.mxu0 0.0
        %2799 = vmatpush1.msra.mxu0 0.0
        %2800 = vmatprep.subr.mxu0 0.0
        %2801 = vmatpush1.msra.mxu0 0.0
        %2802 = vmatprep.subr.mxu0 0.0
        %2803 = vmatpush1.msra.mxu0 0.0
        %2804 = vmatprep.subr.mxu0 0.0
        %2805 = vmatpush1.msra.mxu0 0.0
        %2806 = vmatprep.subr.mxu0 0.0
        %2807 = vmatpush1.msra.mxu0 0.0
        %2808 = vmatprep.subr.mxu0 0.0
        %2809 = vmatpush1.msra.mxu0 0.0
        %2810 = vmatprep.subr.mxu0 0.0
        %2811 = vmatpush1.msra.mxu0 0.0
        %2812 = vmatprep.subr.mxu0 0.0
        %2813 = vmatpush1.msra.mxu0 0.0
        %2814 = vmatprep.subr.mxu0 0.0
        %2815 = vmatpush1.msra.mxu0 0.0
        %2816 = vmatprep.subr.mxu0 0.0
        %2817 = vmatpush1.msra.mxu0 0.0
        %2818 = vmatprep.subr.mxu0 0.0
        %2819 = vmatpush1.msra.mxu0 0.0
        %2820 = vmatprep.subr.mxu0 0.0
        %2821 = vmatpush1.msra.mxu0 0.0
        %2822 = vmatprep.subr.mxu0 0.0
        %2823 = vmatpush1.msra.mxu0 0.0
        %2824 = vmatprep.subr.mxu0 0.0
        %2825 = vmatpush1.msra.mxu0 0.0
        %2826 = vmatprep.subr.mxu0 0.0
        %2827 = vmatpush1.msra.mxu0 0.0
        %2828 = vmatprep.subr.mxu0 0.0
        %2829 = vmatpush1.msra.mxu0 0.0
        %2830 = vmatprep.subr.mxu0 0.0
        %2831 = vmatpush1.msra.mxu0 0.0
        %2832 = vmatprep.subr.mxu0 0.0
        %2833 = vmatpush1.msra.mxu0 0.0
        %2834 = vmatprep.subr.mxu0 0.0
        %2835 = vmatpush1.msra.mxu0 0.0
        %2836 = vmatprep.subr.mxu0 0.0
        %2837 = vmatpush1.msra.mxu0 0.0
        %2838 = vmatprep.subr.mxu0 0.0
        %2839 = vmatpush1.msra.mxu0 0.0
        %2840 = vmatprep.subr.mxu0 0.0
        %2841 = vmatpush1.msra.mxu0 0.0
        %2842 = vmatprep.subr.mxu0 0.0
        %2843 = vmatpush1.msra.mxu0 0.0
        %2844 = vmatprep.subr.mxu0 0.0
        %2845 = vmatpush1.msra.mxu0 0.0
        %2846 = vmatprep.subr.mxu0 0.0
        %2847 = vmatpush1.msra.mxu0 0.0
        %2848 = vmatprep.subr.mxu0 0.0
        %2849 = vmatpush1.msra.mxu0 0.0
        %2850 = vmatprep.subr.mxu0 0.0
        %2851 = vmatpush1.msra.mxu0 0.0
        %2852 = vmatprep.subr.mxu0 0.0
        %2853 = vmatpush1.msra.mxu0 0.0
        %2854 = vmatprep.subr.mxu0 0.0
        %2855 = vmatpush1.msra.mxu0 0.0
        %2856 = vmatprep.subr.mxu0 0.0
        %2857 = vmatpush1.msra.mxu0 0.0
        %2858 = vmatprep.subr.mxu0 0.0
        %2859 = vmatpush1.msra.mxu0 0.0
        %2860 = vmatprep.mubr.f32.mxu0 0.0
        %2861 = vmatmul.mubr.f32.gmra.mrb[0].mxu0 %v2636
        %v2862 = vpop.f32.mrb[0].mxu0
        %v2863 = vadd.f32 0.0, %v2862
        %v2864 = vpop.f32.mrb[0].mxu0
        %v2865 = vadd.f32 0.0, %v2864
        %2866 = vdwg.mxu0
        %2867 = vmatprep.subr.mxu0 %v2652
        %2868 = vmatpush1.msra.mxu0 %v2650
        %2869 = vmatprep.subr.mxu0 0.0
        %2870 = vmatpush1.msra.mxu0 0.0
        %2871 = vmatprep.subr.mxu0 0.0
        %2872 = vmatpush1.msra.mxu0 0.0
        %2873 = vmatprep.subr.mxu0 0.0
        %2874 = vmatpush1.msra.mxu0 0.0
        %2875 = vmatprep.subr.mxu0 0.0
        %2876 = vmatpush1.msra.mxu0 0.0
        %2877 = vmatprep.subr.mxu0 0.0
        %2878 = vmatpush1.msra.mxu0 0.0
        %2879 = vmatprep.subr.mxu0 0.0
        %2880 = vmatpush1.msra.mxu0 0.0
        %2881 = vmatprep.subr.mxu0 0.0
        %2882 = vmatpush1.msra.mxu0 0.0
        %2883 = vmatprep.subr.mxu0 0.0
        %2884 = vmatpush1.msra.mxu0 0.0
        %2885 = vmatprep.subr.mxu0 0.0
        %2886 = vmatpush1.msra.mxu0 0.0
        %2887 = vmatprep.subr.mxu0 0.0
        %2888 = vmatpush1.msra.mxu0 0.0
        %2889 = vmatprep.subr.mxu0 0.0
        %2890 = vmatpush1.msra.mxu0 0.0
        %2891 = vmatprep.subr.mxu0 0.0
        %2892 = vmatpush1.msra.mxu0 0.0
        %2893 = vmatprep.subr.mxu0 0.0
        %2894 = vmatpush1.msra.mxu0 0.0
        %2895 = vmatprep.subr.mxu0 0.0
        %2896 = vmatpush1.msra.mxu0 0.0
        %2897 = vmatprep.subr.mxu0 0.0
        %2898 = vmatpush1.msra.mxu0 0.0
        %2899 = vmatprep.subr.mxu0 0.0
        %2900 = vmatpush1.msra.mxu0 0.0
        %2901 = vmatprep.subr.mxu0 0.0
        %2902 = vmatpush1.msra.mxu0 0.0
        %2903 = vmatprep.subr.mxu0 0.0
        %2904 = vmatpush1.msra.mxu0 0.0
        %2905 = vmatprep.subr.mxu0 0.0
        %2906 = vmatpush1.msra.mxu0 0.0
        %2907 = vmatprep.subr.mxu0 0.0
        %2908 = vmatpush1.msra.mxu0 0.0
        %2909 = vmatprep.subr.mxu0 0.0
        %2910 = vmatpush1.msra.mxu0 0.0
        %2911 = vmatprep.subr.mxu0 0.0
        %2912 = vmatpush1.msra.mxu0 0.0
        %2913 = vmatprep.subr.mxu0 0.0
        %2914 = vmatpush1.msra.mxu0 0.0
        %2915 = vmatprep.subr.mxu0 0.0
        %2916 = vmatpush1.msra.mxu0 0.0
        %2917 = vmatprep.subr.mxu0 0.0
        %2918 = vmatpush1.msra.mxu0 0.0
        %2919 = vmatprep.subr.mxu0 0.0
        %2920 = vmatpush1.msra.mxu0 0.0
        %2921 = vmatprep.subr.mxu0 0.0
        %2922 = vmatpush1.msra.mxu0 0.0
        %2923 = vmatprep.subr.mxu0 0.0
        %2924 = vmatpush1.msra.mxu0 0.0
        %2925 = vmatprep.subr.mxu0 0.0
        %2926 = vmatpush1.msra.mxu0 0.0
        %2927 = vmatprep.subr.mxu0 0.0
        %2928 = vmatpush1.msra.mxu0 0.0
        %2929 = vmatprep.subr.mxu0 0.0
        %2930 = vmatpush1.msra.mxu0 0.0
        %2931 = vmatprep.mubr.f32.mxu0 0.0
        %2932 = vmatmul.mubr.f32.gmra.mrb[0].mxu0 %v2636
        %v2933 = vpop.f32.mrb[0].mxu0
        %v2934 = vadd.f32 0.0, %v2933
        %v2935 = vpop.f32.mrb[0].mxu0
        %v2936 = vadd.f32 0.0, %v2935
        %2937 = vdwg.mxu0
        %v2938 = vadd.f32 %v2584, %v2721
        %v2939 = vadd.f32 %v2585, %v2723
        %v2940 = vadd.f32 %v2586, %v2792
        %v2941 = vadd.f32 %v2587, %v2794
        %v2942 = vadd.f32 %v2588, %v2863
        %v2943 = vadd.f32 %v2589, %v2865
        %v2944 = vadd.f32 %v2590, %v2934
        %v2945 = vadd.f32 %v2591, %v2936
        %s2946 = scalar_lea.vmem %s1, 64
        %v2947 = vld [vmem:[%s2946] sm:$0xff]
        %v2948 = vld [vmem:[%s168] sm:$0xff]
        %v2949 = vld [vmem:[%s168 + $0x8] sm:$0xff]
        %v2950 = vld [vmem:[%s168 + $0x10] sm:$0xff]
        %v2951 = vld [vmem:[%s168 + $0x18] sm:$0xff]
        %v2952 = vld [vmem:[%s168 + $0x20] sm:$0xf]
        %v2958 = vcombine.high %v2948, %v2948
        %v2959 = vcombine.high %v2949, %v2949
        %v2960 = vcombine.high %v2950, %v2950
        %v2961 = vcombine.high %v2951, %v2951
        %2962 = vrot.lane.b32.xlu0 %v2948, 106
        %v2963 = vpop.permute.xlu0 %2962
        %2964 = vrot.lane.b32.xlu0 %v2958, 106
        %v2965 = vpop.permute.xlu0 %2964
        %2966 = vrot.lane.b32.xlu0 %v2949, 106
        %v2967 = vpop.permute.xlu0 %2966
        %2968 = vrot.lane.b32.xlu0 %v2959, 106
        %v2969 = vpop.permute.xlu0 %2968
        %2970 = vrot.lane.b32.xlu0 %v2950, 106
        %v2971 = vpop.permute.xlu0 %2970
        %2972 = vrot.lane.b32.xlu0 %v2960, 106
        %v2973 = vpop.permute.xlu0 %2972
        %2974 = vrot.lane.b32.xlu0 %v2951, 106
        %v2975 = vpop.permute.xlu0 %2974
        %2976 = vrot.lane.b32.xlu0 %v2961, 106
        %v2977 = vpop.permute.xlu0 %2976
        %2978 = vrot.lane.b32.xlu0 %v2952, 106
        %v2979 = vpop.permute.xlu0 %2978
        %vm2980 = vcmask 867328
        %v2981 = vsel %vm2980, %v2963, %v2965
        %v2982 = vsel %vm2980, %v2965, %v2967
        %v2983 = vsel %vm2980, %v2967, %v2969
        %v2984 = vsel %vm2980, %v2969, %v2971
        %v2985 = vsel %vm2980, %v2971, %v2973
        %v2986 = vsel %vm2980, %v2973, %v2975
        %v2987 = vsel %vm2980, %v2975, %v2977
        %v2988 = vsel %vm2980, %v2977, %v2979
        %v2990 = vsel %vm214, %v2947, 0
        %v2992 = vsel %vm218, %v2981, 0
        %v2994 = vsel %vm218, %v2982, 0
        %v2996 = vsel %vm218, %v2983, 0
        %v2998 = vsel %vm218, %v2984, 0
        %v3000 = vsel %vm218, %v2985, 0
        %v3002 = vsel %vm218, %v2986, 0
        %v3004 = vsel %vm218, %v2987, 0
        %v3006 = vsel %vm218, %v2988, 0
        %3008 = vmatprep.subr.mxu0 %v2994
        %3009 = vmatpush1.msra.mxu0 %v2992
        %3010 = vmatprep.subr.mxu0 0.0
        %3011 = vmatpush1.msra.mxu0 0.0
        %3012 = vmatprep.subr.mxu0 0.0
        %3013 = vmatpush1.msra.mxu0 0.0
        %3014 = vmatprep.subr.mxu0 0.0
        %3015 = vmatpush1.msra.mxu0 0.0
        %3016 = vmatprep.subr.mxu0 0.0
        %3017 = vmatpush1.msra.mxu0 0.0
        %3018 = vmatprep.subr.mxu0 0.0
        %3019 = vmatpush1.msra.mxu0 0.0
        %3020 = vmatprep.subr.mxu0 0.0
        %3021 = vmatpush1.msra.mxu0 0.0
        %3022 = vmatprep.subr.mxu0 0.0
        %3023 = vmatpush1.msra.mxu0 0.0
        %3024 = vmatprep.subr.mxu0 0.0
        %3025 = vmatpush1.msra.mxu0 0.0
        %3026 = vmatprep.subr.mxu0 0.0
        %3027 = vmatpush1.msra.mxu0 0.0
        %3028 = vmatprep.subr.mxu0 0.0
        %3029 = vmatpush1.msra.mxu0 0.0
        %3030 = vmatprep.subr.mxu0 0.0
        %3031 = vmatpush1.msra.mxu0 0.0
        %3032 = vmatprep.subr.mxu0 0.0
        %3033 = vmatpush1.msra.mxu0 0.0
        %3034 = vmatprep.subr.mxu0 0.0
        %3035 = vmatpush1.msra.mxu0 0.0
        %3036 = vmatprep.subr.mxu0 0.0
        %3037 = vmatpush1.msra.mxu0 0.0
        %3038 = vmatprep.subr.mxu0 0.0
        %3039 = vmatpush1.msra.mxu0 0.0
        %3040 = vmatprep.subr.mxu0 0.0
        %3041 = vmatpush1.msra.mxu0 0.0
        %3042 = vmatprep.subr.mxu0 0.0
        %3043 = vmatpush1.msra.mxu0 0.0
        %3044 = vmatprep.subr.mxu0 0.0
        %3045 = vmatpush1.msra.mxu0 0.0
        %3046 = vmatprep.subr.mxu0 0.0
        %3047 = vmatpush1.msra.mxu0 0.0
        %3048 = vmatprep.subr.mxu0 0.0
        %3049 = vmatpush1.msra.mxu0 0.0
        %3050 = vmatprep.subr.mxu0 0.0
        %3051 = vmatpush1.msra.mxu0 0.0
        %3052 = vmatprep.subr.mxu0 0.0
        %3053 = vmatpush1.msra.mxu0 0.0
        %3054 = vmatprep.subr.mxu0 0.0
        %3055 = vmatpush1.msra.mxu0 0.0
        %3056 = vmatprep.subr.mxu0 0.0
        %3057 = vmatpush1.msra.mxu0 0.0
        %3058 = vmatprep.subr.mxu0 0.0
        %3059 = vmatpush1.msra.mxu0 0.0
        %3060 = vmatprep.subr.mxu0 0.0
        %3061 = vmatpush1.msra.mxu0 0.0
        %3062 = vmatprep.subr.mxu0 0.0
        %3063 = vmatpush1.msra.mxu0 0.0
        %3064 = vmatprep.subr.mxu0 0.0
        %3065 = vmatpush1.msra.mxu0 0.0
        %3066 = vmatprep.subr.mxu0 0.0
        %3067 = vmatpush1.msra.mxu0 0.0
        %3068 = vmatprep.subr.mxu0 0.0
        %3069 = vmatpush1.msra.mxu0 0.0
        %3070 = vmatprep.subr.mxu0 0.0
        %3071 = vmatpush1.msra.mxu0 0.0
        %3072 = vmatprep.mubr.f32.mxu0 0.0
        %3073 = vmatmul.mubr.f32.gmra.mrb[0].mxu0 %v2990
        %v3074 = vpop.f32.mrb[0].mxu0
        %v3075 = vadd.f32 0.0, %v3074
        %v3076 = vpop.f32.mrb[0].mxu0
        %v3077 = vadd.f32 0.0, %v3076
        %3078 = vdwg.mxu0
        %3079 = vmatprep.subr.mxu0 %v2998
        %3080 = vmatpush1.msra.mxu0 %v2996
        %3081 = vmatprep.subr.mxu0 0.0
        %3082 = vmatpush1.msra.mxu0 0.0
        %3083 = vmatprep.subr.mxu0 0.0
        %3084 = vmatpush1.msra.mxu0 0.0
        %3085 = vmatprep.subr.mxu0 0.0
        %3086 = vmatpush1.msra.mxu0 0.0
        %3087 = vmatprep.subr.mxu0 0.0
        %3088 = vmatpush1.msra.mxu0 0.0
        %3089 = vmatprep.subr.mxu0 0.0
        %3090 = vmatpush1.msra.mxu0 0.0
        %3091 = vmatprep.subr.mxu0 0.0
        %3092 = vmatpush1.msra.mxu0 0.0
        %3093 = vmatprep.subr.mxu0 0.0
        %3094 = vmatpush1.msra.mxu0 0.0
        %3095 = vmatprep.subr.mxu0 0.0
        %3096 = vmatpush1.msra.mxu0 0.0
        %3097 = vmatprep.subr.mxu0 0.0
        %3098 = vmatpush1.msra.mxu0 0.0
        %3099 = vmatprep.subr.mxu0 0.0
        %3100 = vmatpush1.msra.mxu0 0.0
        %3101 = vmatprep.subr.mxu0 0.0
        %3102 = vmatpush1.msra.mxu0 0.0
        %3103 = vmatprep.subr.mxu0 0.0
        %3104 = vmatpush1.msra.mxu0 0.0
        %3105 = vmatprep.subr.mxu0 0.0
        %3106 = vmatpush1.msra.mxu0 0.0
        %3107 = vmatprep.subr.mxu0 0.0
        %3108 = vmatpush1.msra.mxu0 0.0
        %3109 = vmatprep.subr.mxu0 0.0
        %3110 = vmatpush1.msra.mxu0 0.0
        %3111 = vmatprep.subr.mxu0 0.0
        %3112 = vmatpush1.msra.mxu0 0.0
        %3113 = vmatprep.subr.mxu0 0.0
        %3114 = vmatpush1.msra.mxu0 0.0
        %3115 = vmatprep.subr.mxu0 0.0
        %3116 = vmatpush1.msra.mxu0 0.0
        %3117 = vmatprep.subr.mxu0 0.0
        %3118 = vmatpush1.msra.mxu0 0.0
        %3119 = vmatprep.subr.mxu0 0.0
        %3120 = vmatpush1.msra.mxu0 0.0
        %3121 = vmatprep.subr.mxu0 0.0
        %3122 = vmatpush1.msra.mxu0 0.0
        %3123 = vmatprep.subr.mxu0 0.0
        %3124 = vmatpush1.msra.mxu0 0.0
        %3125 = vmatprep.subr.mxu0 0.0
        %3126 = vmatpush1.msra.mxu0 0.0
        %3127 = vmatprep.subr.mxu0 0.0
        %3128 = vmatpush1.msra.mxu0 0.0
        %3129 = vmatprep.subr.mxu0 0.0
        %3130 = vmatpush1.msra.mxu0 0.0
        %3131 = vmatprep.subr.mxu0 0.0
        %3132 = vmatpush1.msra.mxu0 0.0
        %3133 = vmatprep.subr.mxu0 0.0
        %3134 = vmatpush1.msra.mxu0 0.0
        %3135 = vmatprep.subr.mxu0 0.0
        %3136 = vmatpush1.msra.mxu0 0.0
        %3137 = vmatprep.subr.mxu0 0.0
        %3138 = vmatpush1.msra.mxu0 0.0
        %3139 = vmatprep.subr.mxu0 0.0
        %3140 = vmatpush1.msra.mxu0 0.0
        %3141 = vmatprep.subr.mxu0 0.0
        %3142 = vmatpush1.msra.mxu0 0.0
        %3143 = vmatprep.mubr.f32.mxu0 0.0
        %3144 = vmatmul.mubr.f32.gmra.mrb[0].mxu0 %v2990
        %v3145 = vpop.f32.mrb[0].mxu0
        %v3146 = vadd.f32 0.0, %v3145
        %v3147 = vpop.f32.mrb[0].mxu0
        %v3148 = vadd.f32 0.0, %v3147
        %3149 = vdwg.mxu0
        %3150 = vmatprep.subr.mxu0 %v3002
        %3151 = vmatpush1.msra.mxu0 %v3000
        %3152 = vmatprep.subr.mxu0 0.0
        %3153 = vmatpush1.msra.mxu0 0.0
        %3154 = vmatprep.subr.mxu0 0.0
        %3155 = vmatpush1.msra.mxu0 0.0
        %3156 = vmatprep.subr.mxu0 0.0
        %3157 = vmatpush1.msra.mxu0 0.0
        %3158 = vmatprep.subr.mxu0 0.0
        %3159 = vmatpush1.msra.mxu0 0.0
        %3160 = vmatprep.subr.mxu0 0.0
        %3161 = vmatpush1.msra.mxu0 0.0
        %3162 = vmatprep.subr.mxu0 0.0
        %3163 = vmatpush1.msra.mxu0 0.0
        %3164 = vmatprep.subr.mxu0 0.0
        %3165 = vmatpush1.msra.mxu0 0.0
        %3166 = vmatprep.subr.mxu0 0.0
        %3167 = vmatpush1.msra.mxu0 0.0
        %3168 = vmatprep.subr.mxu0 0.0
        %3169 = vmatpush1.msra.mxu0 0.0
        %3170 = vmatprep.subr.mxu0 0.0
        %3171 = vmatpush1.msra.mxu0 0.0
        %3172 = vmatprep.subr.mxu0 0.0
        %3173 = vmatpush1.msra.mxu0 0.0
        %3174 = vmatprep.subr.mxu0 0.0
        %3175 = vmatpush1.msra.mxu0 0.0
        %3176 = vmatprep.subr.mxu0 0.0
        %3177 = vmatpush1.msra.mxu0 0.0
        %3178 = vmatprep.subr.mxu0 0.0
        %3179 = vmatpush1.msra.mxu0 0.0
        %3180 = vmatprep.subr.mxu0 0.0
        %3181 = vmatpush1.msra.mxu0 0.0
        %3182 = vmatprep.subr.mxu0 0.0
        %3183 = vmatpush1.msra.mxu0 0.0
        %3184 = vmatprep.subr.mxu0 0.0
        %3185 = vmatpush1.msra.mxu0 0.0
        %3186 = vmatprep.subr.mxu0 0.0
        %3187 = vmatpush1.msra.mxu0 0.0
        %3188 = vmatprep.subr.mxu0 0.0
        %3189 = vmatpush1.msra.mxu0 0.0
        %3190 = vmatprep.subr.mxu0 0.0
        %3191 = vmatpush1.msra.mxu0 0.0
        %3192 = vmatprep.subr.mxu0 0.0
        %3193 = vmatpush1.msra.mxu0 0.0
        %3194 = vmatprep.subr.mxu0 0.0
        %3195 = vmatpush1.msra.mxu0 0.0
        %3196 = vmatprep.subr.mxu0 0.0
        %3197 = vmatpush1.msra.mxu0 0.0
        %3198 = vmatprep.subr.mxu0 0.0
        %3199 = vmatpush1.msra.mxu0 0.0
        %3200 = vmatprep.subr.mxu0 0.0
        %3201 = vmatpush1.msra.mxu0 0.0
        %3202 = vmatprep.subr.mxu0 0.0
        %3203 = vmatpush1.msra.mxu0 0.0
        %3204 = vmatprep.subr.mxu0 0.0
        %3205 = vmatpush1.msra.mxu0 0.0
        %3206 = vmatprep.subr.mxu0 0.0
        %3207 = vmatpush1.msra.mxu0 0.0
        %3208 = vmatprep.subr.mxu0 0.0
        %3209 = vmatpush1.msra.mxu0 0.0
        %3210 = vmatprep.subr.mxu0 0.0
        %3211 = vmatpush1.msra.mxu0 0.0
        %3212 = vmatprep.subr.mxu0 0.0
        %3213 = vmatpush1.msra.mxu0 0.0
        %3214 = vmatprep.mubr.f32.mxu0 0.0
        %3215 = vmatmul.mubr.f32.gmra.mrb[0].mxu0 %v2990
        %v3216 = vpop.f32.mrb[0].mxu0
        %v3217 = vadd.f32 0.0, %v3216
        %v3218 = vpop.f32.mrb[0].mxu0
        %v3219 = vadd.f32 0.0, %v3218
        %3220 = vdwg.mxu0
        %3221 = vmatprep.subr.mxu0 %v3006
        %3222 = vmatpush1.msra.mxu0 %v3004
        %3223 = vmatprep.subr.mxu0 0.0
        %3224 = vmatpush1.msra.mxu0 0.0
        %3225 = vmatprep.subr.mxu0 0.0
        %3226 = vmatpush1.msra.mxu0 0.0
        %3227 = vmatprep.subr.mxu0 0.0
        %3228 = vmatpush1.msra.mxu0 0.0
        %3229 = vmatprep.subr.mxu0 0.0
        %3230 = vmatpush1.msra.mxu0 0.0
        %3231 = vmatprep.subr.mxu0 0.0
        %3232 = vmatpush1.msra.mxu0 0.0
        %3233 = vmatprep.subr.mxu0 0.0
        %3234 = vmatpush1.msra.mxu0 0.0
        %3235 = vmatprep.subr.mxu0 0.0
        %3236 = vmatpush1.msra.mxu0 0.0
        %3237 = vmatprep.subr.mxu0 0.0
        %3238 = vmatpush1.msra.mxu0 0.0
        %3239 = vmatprep.subr.mxu0 0.0
        %3240 = vmatpush1.msra.mxu0 0.0
        %3241 = vmatprep.subr.mxu0 0.0
        %3242 = vmatpush1.msra.mxu0 0.0
        %3243 = vmatprep.subr.mxu0 0.0
        %3244 = vmatpush1.msra.mxu0 0.0
        %3245 = vmatprep.subr.mxu0 0.0
        %3246 = vmatpush1.msra.mxu0 0.0
        %3247 = vmatprep.subr.mxu0 0.0
        %3248 = vmatpush1.msra.mxu0 0.0
        %3249 = vmatprep.subr.mxu0 0.0
        %3250 = vmatpush1.msra.mxu0 0.0
        %3251 = vmatprep.subr.mxu0 0.0
        %3252 = vmatpush1.msra.mxu0 0.0
        %3253 = vmatprep.subr.mxu0 0.0
        %3254 = vmatpush1.msra.mxu0 0.0
        %3255 = vmatprep.subr.mxu0 0.0
        %3256 = vmatpush1.msra.mxu0 0.0
        %3257 = vmatprep.subr.mxu0 0.0
        %3258 = vmatpush1.msra.mxu0 0.0
        %3259 = vmatprep.subr.mxu0 0.0
        %3260 = vmatpush1.msra.mxu0 0.0
        %3261 = vmatprep.subr.mxu0 0.0
        %3262 = vmatpush1.msra.mxu0 0.0
        %3263 = vmatprep.subr.mxu0 0.0
        %3264 = vmatpush1.msra.mxu0 0.0
        %3265 = vmatprep.subr.mxu0 0.0
        %3266 = vmatpush1.msra.mxu0 0.0
        %3267 = vmatprep.subr.mxu0 0.0
        %3268 = vmatpush1.msra.mxu0 0.0
        %3269 = vmatprep.subr.mxu0 0.0
        %3270 = vmatpush1.msra.mxu0 0.0
        %3271 = vmatprep.subr.mxu0 0.0
        %3272 = vmatpush1.msra.mxu0 0.0
        %3273 = vmatprep.subr.mxu0 0.0
        %3274 = vmatpush1.msra.mxu0 0.0
        %3275 = vmatprep.subr.mxu0 0.0
        %3276 = vmatpush1.msra.mxu0 0.0
        %3277 = vmatprep.subr.mxu0 0.0
        %3278 = vmatpush1.msra.mxu0 0.0
        %3279 = vmatprep.subr.mxu0 0.0
        %3280 = vmatpush1.msra.mxu0 0.0
        %3281 = vmatprep.subr.mxu0 0.0
        %3282 = vmatpush1.msra.mxu0 0.0
        %3283 = vmatprep.subr.mxu0 0.0
        %3284 = vmatpush1.msra.mxu0 0.0
        %3285 = vmatprep.mubr.f32.mxu0 0.0
        %3286 = vmatmul.mubr.f32.gmra.mrb[0].mxu0 %v2990
        %v3287 = vpop.f32.mrb[0].mxu0
        %v3288 = vadd.f32 0.0, %v3287
        %v3289 = vpop.f32.mrb[0].mxu0
        %v3290 = vadd.f32 0.0, %v3289
        %3291 = vdwg.mxu0
        %v3292 = vadd.f32 %v2938, %v3075
        %v3293 = vadd.f32 %v2939, %v3077
        %v3294 = vadd.f32 %v2940, %v3146
        %v3295 = vadd.f32 %v2941, %v3148
        %v3296 = vadd.f32 %v2942, %v3217
        %v3297 = vadd.f32 %v2943, %v3219
        %v3298 = vadd.f32 %v2944, %v3288
        %v3299 = vadd.f32 %v2945, %v3290
        %s3300 = scalar_lea.vmem %s1, 72
        %v3301 = vld [vmem:[%s3300] sm:$0xff]
        %v3302 = vld [vmem:[%s168] sm:$0xff]
        %v3303 = vld [vmem:[%s168 + $0x8] sm:$0xff]
        %v3304 = vld [vmem:[%s168 + $0x10] sm:$0xff]
        %v3305 = vld [vmem:[%s168 + $0x18] sm:$0xff]
        %v3306 = vld [vmem:[%s168 + $0x20] sm:$0xf]
        %v3312 = vcombine.high %v3302, %v3302
        %v3313 = vcombine.high %v3303, %v3303
        %v3314 = vcombine.high %v3304, %v3304
        %v3315 = vcombine.high %v3305, %v3305
        %3316 = vrot.lane.b32.xlu0 %v3302, 28
        %v3317 = vpop.permute.xlu0 %3316
        %3318 = vrot.lane.b32.xlu0 %v3312, 28
        %v3319 = vpop.permute.xlu0 %3318
        %3320 = vrot.lane.b32.xlu0 %v3303, 28
        %v3321 = vpop.permute.xlu0 %3320
        %3322 = vrot.lane.b32.xlu0 %v3313, 28
        %v3323 = vpop.permute.xlu0 %3322
        %3324 = vrot.lane.b32.xlu0 %v3304, 28
        %v3325 = vpop.permute.xlu0 %3324
        %3326 = vrot.lane.b32.xlu0 %v3314, 28
        %v3327 = vpop.permute.xlu0 %3326
        %3328 = vrot.lane.b32.xlu0 %v3305, 28
        %v3329 = vpop.permute.xlu0 %3328
        %3330 = vrot.lane.b32.xlu0 %v3315, 28
        %v3331 = vpop.permute.xlu0 %3330
        %3332 = vrot.lane.b32.xlu0 %v3306, 28
        %v3333 = vpop.permute.xlu0 %3332
        %vm3334 = vcmask 228352
        %v3335 = vsel %vm3334, %v3317, %v3319
        %v3336 = vsel %vm3334, %v3319, %v3321
        %v3337 = vsel %vm3334, %v3321, %v3323
        %v3338 = vsel %vm3334, %v3323, %v3325
        %v3339 = vsel %vm3334, %v3325, %v3327
        %v3340 = vsel %vm3334, %v3327, %v3329
        %v3341 = vsel %vm3334, %v3329, %v3331
        %v3342 = vsel %vm3334, %v3331, %v3333
        %v3344 = vsel %vm214, %v3301, 0
        %v3346 = vsel %vm218, %v3335, 0
        %v3348 = vsel %vm218, %v3336, 0
        %v3350 = vsel %vm218, %v3337, 0
        %v3352 = vsel %vm218, %v3338, 0
        %v3354 = vsel %vm218, %v3339, 0
        %v3356 = vsel %vm218, %v3340, 0
        %v3358 = vsel %vm218, %v3341, 0
        %v3360 = vsel %vm218, %v3342, 0
        %3362 = vmatprep.subr.mxu0 %v3348
        %3363 = vmatpush1.msra.mxu0 %v3346
        %3364 = vmatprep.subr.mxu0 0.0
        %3365 = vmatpush1.msra.mxu0 0.0
        %3366 = vmatprep.subr.mxu0 0.0
        %3367 = vmatpush1.msra.mxu0 0.0
        %3368 = vmatprep.subr.mxu0 0.0
        %3369 = vmatpush1.msra.mxu0 0.0
        %3370 = vmatprep.subr.mxu0 0.0
        %3371 = vmatpush1.msra.mxu0 0.0
        %3372 = vmatprep.subr.mxu0 0.0
        %3373 = vmatpush1.msra.mxu0 0.0
        %3374 = vmatprep.subr.mxu0 0.0
        %3375 = vmatpush1.msra.mxu0 0.0
        %3376 = vmatprep.subr.mxu0 0.0
        %3377 = vmatpush1.msra.mxu0 0.0
        %3378 = vmatprep.subr.mxu0 0.0
        %3379 = vmatpush1.msra.mxu0 0.0
        %3380 = vmatprep.subr.mxu0 0.0
        %3381 = vmatpush1.msra.mxu0 0.0
        %3382 = vmatprep.subr.mxu0 0.0
        %3383 = vmatpush1.msra.mxu0 0.0
        %3384 = vmatprep.subr.mxu0 0.0
        %3385 = vmatpush1.msra.mxu0 0.0
        %3386 = vmatprep.subr.mxu0 0.0
        %3387 = vmatpush1.msra.mxu0 0.0
        %3388 = vmatprep.subr.mxu0 0.0
        %3389 = vmatpush1.msra.mxu0 0.0
        %3390 = vmatprep.subr.mxu0 0.0
        %3391 = vmatpush1.msra.mxu0 0.0
        %3392 = vmatprep.subr.mxu0 0.0
        %3393 = vmatpush1.msra.mxu0 0.0
        %3394 = vmatprep.subr.mxu0 0.0
        %3395 = vmatpush1.msra.mxu0 0.0
        %3396 = vmatprep.subr.mxu0 0.0
        %3397 = vmatpush1.msra.mxu0 0.0
        %3398 = vmatprep.subr.mxu0 0.0
        %3399 = vmatpush1.msra.mxu0 0.0
        %3400 = vmatprep.subr.mxu0 0.0
        %3401 = vmatpush1.msra.mxu0 0.0
        %3402 = vmatprep.subr.mxu0 0.0
        %3403 = vmatpush1.msra.mxu0 0.0
        %3404 = vmatprep.subr.mxu0 0.0
        %3405 = vmatpush1.msra.mxu0 0.0
        %3406 = vmatprep.subr.mxu0 0.0
        %3407 = vmatpush1.msra.mxu0 0.0
        %3408 = vmatprep.subr.mxu0 0.0
        %3409 = vmatpush1.msra.mxu0 0.0
        %3410 = vmatprep.subr.mxu0 0.0
        %3411 = vmatpush1.msra.mxu0 0.0
        %3412 = vmatprep.subr.mxu0 0.0
        %3413 = vmatpush1.msra.mxu0 0.0
        %3414 = vmatprep.subr.mxu0 0.0
        %3415 = vmatpush1.msra.mxu0 0.0
        %3416 = vmatprep.subr.mxu0 0.0
        %3417 = vmatpush1.msra.mxu0 0.0
        %3418 = vmatprep.subr.mxu0 0.0
        %3419 = vmatpush1.msra.mxu0 0.0
        %3420 = vmatprep.subr.mxu0 0.0
        %3421 = vmatpush1.msra.mxu0 0.0
        %3422 = vmatprep.subr.mxu0 0.0
        %3423 = vmatpush1.msra.mxu0 0.0
        %3424 = vmatprep.subr.mxu0 0.0
        %3425 = vmatpush1.msra.mxu0 0.0
        %3426 = vmatprep.mubr.f32.mxu0 0.0
        %3427 = vmatmul.mubr.f32.gmra.mrb[0].mxu0 %v3344
        %v3428 = vpop.f32.mrb[0].mxu0
        %v3429 = vadd.f32 0.0, %v3428
        %v3430 = vpop.f32.mrb[0].mxu0
        %v3431 = vadd.f32 0.0, %v3430
        %3432 = vdwg.mxu0
        %3433 = vmatprep.subr.mxu0 %v3352
        %3434 = vmatpush1.msra.mxu0 %v3350
        %3435 = vmatprep.subr.mxu0 0.0
        %3436 = vmatpush1.msra.mxu0 0.0
        %3437 = vmatprep.subr.mxu0 0.0
        %3438 = vmatpush1.msra.mxu0 0.0
        %3439 = vmatprep.subr.mxu0 0.0
        %3440 = vmatpush1.msra.mxu0 0.0
        %3441 = vmatprep.subr.mxu0 0.0
        %3442 = vmatpush1.msra.mxu0 0.0
        %3443 = vmatprep.subr.mxu0 0.0
        %3444 = vmatpush1.msra.mxu0 0.0
        %3445 = vmatprep.subr.mxu0 0.0
        %3446 = vmatpush1.msra.mxu0 0.0
        %3447 = vmatprep.subr.mxu0 0.0
        %3448 = vmatpush1.msra.mxu0 0.0
        %3449 = vmatprep.subr.mxu0 0.0
        %3450 = vmatpush1.msra.mxu0 0.0
        %3451 = vmatprep.subr.mxu0 0.0
        %3452 = vmatpush1.msra.mxu0 0.0
        %3453 = vmatprep.subr.mxu0 0.0
        %3454 = vmatpush1.msra.mxu0 0.0
        %3455 = vmatprep.subr.mxu0 0.0
        %3456 = vmatpush1.msra.mxu0 0.0
        %3457 = vmatprep.subr.mxu0 0.0
        %3458 = vmatpush1.msra.mxu0 0.0
        %3459 = vmatprep.subr.mxu0 0.0
        %3460 = vmatpush1.msra.mxu0 0.0
        %3461 = vmatprep.subr.mxu0 0.0
        %3462 = vmatpush1.msra.mxu0 0.0
        %3463 = vmatprep.subr.mxu0 0.0
        %3464 = vmatpush1.msra.mxu0 0.0
        %3465 = vmatprep.subr.mxu0 0.0
        %3466 = vmatpush1.msra.mxu0 0.0
        %3467 = vmatprep.subr.mxu0 0.0
        %3468 = vmatpush1.msra.mxu0 0.0
        %3469 = vmatprep.subr.mxu0 0.0
        %3470 = vmatpush1.msra.mxu0 0.0
        %3471 = vmatprep.subr.mxu0 0.0
        %3472 = vmatpush1.msra.mxu0 0.0
        %3473 = vmatprep.subr.mxu0 0.0
        %3474 = vmatpush1.msra.mxu0 0.0
        %3475 = vmatprep.subr.mxu0 0.0
        %3476 = vmatpush1.msra.mxu0 0.0
        %3477 = vmatprep.subr.mxu0 0.0
        %3478 = vmatpush1.msra.mxu0 0.0
        %3479 = vmatprep.subr.mxu0 0.0
        %3480 = vmatpush1.msra.mxu0 0.0
        %3481 = vmatprep.subr.mxu0 0.0
        %3482 = vmatpush1.msra.mxu0 0.0
        %3483 = vmatprep.subr.mxu0 0.0
        %3484 = vmatpush1.msra.mxu0 0.0
        %3485 = vmatprep.subr.mxu0 0.0
        %3486 = vmatpush1.msra.mxu0 0.0
        %3487 = vmatprep.subr.mxu0 0.0
        %3488 = vmatpush1.msra.mxu0 0.0
        %3489 = vmatprep.subr.mxu0 0.0
        %3490 = vmatpush1.msra.mxu0 0.0
        %3491 = vmatprep.subr.mxu0 0.0
        %3492 = vmatpush1.msra.mxu0 0.0
        %3493 = vmatprep.subr.mxu0 0.0
        %3494 = vmatpush1.msra.mxu0 0.0
        %3495 = vmatprep.subr.mxu0 0.0
        %3496 = vmatpush1.msra.mxu0 0.0
        %3497 = vmatprep.mubr.f32.mxu0 0.0
        %3498 = vmatmul.mubr.f32.gmra.mrb[0].mxu0 %v3344
        %v3499 = vpop.f32.mrb[0].mxu0
        %v3500 = vadd.f32 0.0, %v3499
        %v3501 = vpop.f32.mrb[0].mxu0
        %v3502 = vadd.f32 0.0, %v3501
        %3503 = vdwg.mxu0
        %3504 = vmatprep.subr.mxu0 %v3356
        %3505 = vmatpush1.msra.mxu0 %v3354
        %3506 = vmatprep.subr.mxu0 0.0
        %3507 = vmatpush1.msra.mxu0 0.0
        %3508 = vmatprep.subr.mxu0 0.0
        %3509 = vmatpush1.msra.mxu0 0.0
        %3510 = vmatprep.subr.mxu0 0.0
        %3511 = vmatpush1.msra.mxu0 0.0
        %3512 = vmatprep.subr.mxu0 0.0
        %3513 = vmatpush1.msra.mxu0 0.0
        %3514 = vmatprep.subr.mxu0 0.0
        %3515 = vmatpush1.msra.mxu0 0.0
        %3516 = vmatprep.subr.mxu0 0.0
        %3517 = vmatpush1.msra.mxu0 0.0
        %3518 = vmatprep.subr.mxu0 0.0
        %3519 = vmatpush1.msra.mxu0 0.0
        %3520 = vmatprep.subr.mxu0 0.0
        %3521 = vmatpush1.msra.mxu0 0.0
        %3522 = vmatprep.subr.mxu0 0.0
        %3523 = vmatpush1.msra.mxu0 0.0
        %3524 = vmatprep.subr.mxu0 0.0
        %3525 = vmatpush1.msra.mxu0 0.0
        %3526 = vmatprep.subr.mxu0 0.0
        %3527 = vmatpush1.msra.mxu0 0.0
        %3528 = vmatprep.subr.mxu0 0.0
        %3529 = vmatpush1.msra.mxu0 0.0
        %3530 = vmatprep.subr.mxu0 0.0
        %3531 = vmatpush1.msra.mxu0 0.0
        %3532 = vmatprep.subr.mxu0 0.0
        %3533 = vmatpush1.msra.mxu0 0.0
        %3534 = vmatprep.subr.mxu0 0.0
        %3535 = vmatpush1.msra.mxu0 0.0
        %3536 = vmatprep.subr.mxu0 0.0
        %3537 = vmatpush1.msra.mxu0 0.0
        %3538 = vmatprep.subr.mxu0 0.0
        %3539 = vmatpush1.msra.mxu0 0.0
        %3540 = vmatprep.subr.mxu0 0.0
        %3541 = vmatpush1.msra.mxu0 0.0
        %3542 = vmatprep.subr.mxu0 0.0
        %3543 = vmatpush1.msra.mxu0 0.0
        %3544 = vmatprep.subr.mxu0 0.0
        %3545 = vmatpush1.msra.mxu0 0.0
        %3546 = vmatprep.subr.mxu0 0.0
        %3547 = vmatpush1.msra.mxu0 0.0
        %3548 = vmatprep.subr.mxu0 0.0
        %3549 = vmatpush1.msra.mxu0 0.0
        %3550 = vmatprep.subr.mxu0 0.0
        %3551 = vmatpush1.msra.mxu0 0.0
        %3552 = vmatprep.subr.mxu0 0.0
        %3553 = vmatpush1.msra.mxu0 0.0
        %3554 = vmatprep.subr.mxu0 0.0
        %3555 = vmatpush1.msra.mxu0 0.0
        %3556 = vmatprep.subr.mxu0 0.0
        %3557 = vmatpush1.msra.mxu0 0.0
        %3558 = vmatprep.subr.mxu0 0.0
        %3559 = vmatpush1.msra.mxu0 0.0
        %3560 = vmatprep.subr.mxu0 0.0
        %3561 = vmatpush1.msra.mxu0 0.0
        %3562 = vmatprep.subr.mxu0 0.0
        %3563 = vmatpush1.msra.mxu0 0.0
        %3564 = vmatprep.subr.mxu0 0.0
        %3565 = vmatpush1.msra.mxu0 0.0
        %3566 = vmatprep.subr.mxu0 0.0
        %3567 = vmatpush1.msra.mxu0 0.0
        %3568 = vmatprep.mubr.f32.mxu0 0.0
        %3569 = vmatmul.mubr.f32.gmra.mrb[0].mxu0 %v3344
        %v3570 = vpop.f32.mrb[0].mxu0
        %v3571 = vadd.f32 0.0, %v3570
        %v3572 = vpop.f32.mrb[0].mxu0
        %v3573 = vadd.f32 0.0, %v3572
        %3574 = vdwg.mxu0
        %3575 = vmatprep.subr.mxu0 %v3360
        %3576 = vmatpush1.msra.mxu0 %v3358
        %3577 = vmatprep.subr.mxu0 0.0
        %3578 = vmatpush1.msra.mxu0 0.0
        %3579 = vmatprep.subr.mxu0 0.0
        %3580 = vmatpush1.msra.mxu0 0.0
        %3581 = vmatprep.subr.mxu0 0.0
        %3582 = vmatpush1.msra.mxu0 0.0
        %3583 = vmatprep.subr.mxu0 0.0
        %3584 = vmatpush1.msra.mxu0 0.0
        %3585 = vmatprep.subr.mxu0 0.0
        %3586 = vmatpush1.msra.mxu0 0.0
        %3587 = vmatprep.subr.mxu0 0.0
        %3588 = vmatpush1.msra.mxu0 0.0
        %3589 = vmatprep.subr.mxu0 0.0
        %3590 = vmatpush1.msra.mxu0 0.0
        %3591 = vmatprep.subr.mxu0 0.0
        %3592 = vmatpush1.msra.mxu0 0.0
        %3593 = vmatprep.subr.mxu0 0.0
        %3594 = vmatpush1.msra.mxu0 0.0
        %3595 = vmatprep.subr.mxu0 0.0
        %3596 = vmatpush1.msra.mxu0 0.0
        %3597 = vmatprep.subr.mxu0 0.0
        %3598 = vmatpush1.msra.mxu0 0.0
        %3599 = vmatprep.subr.mxu0 0.0
        %3600 = vmatpush1.msra.mxu0 0.0
        %3601 = vmatprep.subr.mxu0 0.0
        %3602 = vmatpush1.msra.mxu0 0.0
        %3603 = vmatprep.subr.mxu0 0.0
        %3604 = vmatpush1.msra.mxu0 0.0
        %3605 = vmatprep.subr.mxu0 0.0
        %3606 = vmatpush1.msra.mxu0 0.0
        %3607 = vmatprep.subr.mxu0 0.0
        %3608 = vmatpush1.msra.mxu0 0.0
        %3609 = vmatprep.subr.mxu0 0.0
        %3610 = vmatpush1.msra.mxu0 0.0
        %3611 = vmatprep.subr.mxu0 0.0
        %3612 = vmatpush1.msra.mxu0 0.0
        %3613 = vmatprep.subr.mxu0 0.0
        %3614 = vmatpush1.msra.mxu0 0.0
        %3615 = vmatprep.subr.mxu0 0.0
        %3616 = vmatpush1.msra.mxu0 0.0
        %3617 = vmatprep.subr.mxu0 0.0
        %3618 = vmatpush1.msra.mxu0 0.0
        %3619 = vmatprep.subr.mxu0 0.0
        %3620 = vmatpush1.msra.mxu0 0.0
        %3621 = vmatprep.subr.mxu0 0.0
        %3622 = vmatpush1.msra.mxu0 0.0
        %3623 = vmatprep.subr.mxu0 0.0
        %3624 = vmatpush1.msra.mxu0 0.0
        %3625 = vmatprep.subr.mxu0 0.0
        %3626 = vmatpush1.msra.mxu0 0.0
        %3627 = vmatprep.subr.mxu0 0.0
        %3628 = vmatpush1.msra.mxu0 0.0
        %3629 = vmatprep.subr.mxu0 0.0
        %3630 = vmatpush1.msra.mxu0 0.0
        %3631 = vmatprep.subr.mxu0 0.0
        %3632 = vmatpush1.msra.mxu0 0.0
        %3633 = vmatprep.subr.mxu0 0.0
        %3634 = vmatpush1.msra.mxu0 0.0
        %3635 = vmatprep.subr.mxu0 0.0
        %3636 = vmatpush1.msra.mxu0 0.0
        %3637 = vmatprep.subr.mxu0 0.0
        %3638 = vmatpush1.msra.mxu0 0.0
        %3639 = vmatprep.mubr.f32.mxu0 0.0
        %3640 = vmatmul.mubr.f32.gmra.mrb[0].mxu0 %v3344
        %v3641 = vpop.f32.mrb[0].mxu0
        %v3642 = vadd.f32 0.0, %v3641
        %v3643 = vpop.f32.mrb[0].mxu0
        %v3644 = vadd.f32 0.0, %v3643
        %3645 = vdwg.mxu0
        %v3646 = vadd.f32 %v3292, %v3429
        %v3647 = vadd.f32 %v3293, %v3431
        %v3648 = vadd.f32 %v3294, %v3500
        %v3649 = vadd.f32 %v3295, %v3502
        %v3650 = vadd.f32 %v3296, %v3571
        %v3651 = vadd.f32 %v3297, %v3573
        %v3652 = vadd.f32 %v3298, %v3642
        %v3653 = vadd.f32 %v3299, %v3644
        %s3654 = scalar_lea.vmem %s1, 80
        %v3655 = vld [vmem:[%s3654] sm:$0xff]
        %v3656 = vld [vmem:[%s168] sm:$0xff]
        %v3657 = vld [vmem:[%s168 + $0x8] sm:$0xff]
        %v3658 = vld [vmem:[%s168 + $0x10] sm:$0xff]
        %v3659 = vld [vmem:[%s168 + $0x18] sm:$0xff]
        %v3660 = vld [vmem:[%s168 + $0x20] sm:$0xf]
        %v3666 = vcombine.high %v3656, %v3656
        %v3667 = vcombine.high %v3657, %v3657
        %v3668 = vcombine.high %v3658, %v3658
        %v3669 = vcombine.high %v3659, %v3659
        %3670 = vrot.lane.b32.xlu0 %v3656, 27
        %v3671 = vpop.permute.xlu0 %3670
        %3672 = vrot.lane.b32.xlu0 %v3666, 27
        %v3673 = vpop.permute.xlu0 %3672
        %3674 = vrot.lane.b32.xlu0 %v3657, 27
        %v3675 = vpop.permute.xlu0 %3674
        %3676 = vrot.lane.b32.xlu0 %v3667, 27
        %v3677 = vpop.permute.xlu0 %3676
        %3678 = vrot.lane.b32.xlu0 %v3658, 27
        %v3679 = vpop.permute.xlu0 %3678
        %3680 = vrot.lane.b32.xlu0 %v3668, 27
        %v3681 = vpop.permute.xlu0 %3680
        %3682 = vrot.lane.b32.xlu0 %v3659, 27
        %v3683 = vpop.permute.xlu0 %3682
        %3684 = vrot.lane.b32.xlu0 %v3669, 27
        %v3685 = vpop.permute.xlu0 %3684
        %3686 = vrot.lane.b32.xlu0 %v3660, 27
        %v3687 = vpop.permute.xlu0 %3686
        %vm3688 = vcmask 220160
        %v3689 = vsel %vm3688, %v3671, %v3673
        %v3690 = vsel %vm3688, %v3673, %v3675
        %v3691 = vsel %vm3688, %v3675, %v3677
        %v3692 = vsel %vm3688, %v3677, %v3679
        %v3693 = vsel %vm3688, %v3679, %v3681
        %v3694 = vsel %vm3688, %v3681, %v3683
        %v3695 = vsel %vm3688, %v3683, %v3685
        %v3696 = vsel %vm3688, %v3685, %v3687
        %v3698 = vsel %vm214, %v3655, 0
        %v3700 = vsel %vm218, %v3689, 0
        %v3702 = vsel %vm218, %v3690, 0
        %v3704 = vsel %vm218, %v3691, 0
        %v3706 = vsel %vm218, %v3692, 0
        %v3708 = vsel %vm218, %v3693, 0
        %v3710 = vsel %vm218, %v3694, 0
        %v3712 = vsel %vm218, %v3695, 0
        %v3714 = vsel %vm218, %v3696, 0
        %3716 = vmatprep.subr.mxu0 %v3702
        %3717 = vmatpush1.msra.mxu0 %v3700
        %3718 = vmatprep.subr.mxu0 0.0
        %3719 = vmatpush1.msra.mxu0 0.0
        %3720 = vmatprep.subr.mxu0 0.0
        %3721 = vmatpush1.msra.mxu0 0.0
        %3722 = vmatprep.subr.mxu0 0.0
        %3723 = vmatpush1.msra.mxu0 0.0
        %3724 = vmatprep.subr.mxu0 0.0
        %3725 = vmatpush1.msra.mxu0 0.0
        %3726 = vmatprep.subr.mxu0 0.0
        %3727 = vmatpush1.msra.mxu0 0.0
        %3728 = vmatprep.subr.mxu0 0.0
        %3729 = vmatpush1.msra.mxu0 0.0
        %3730 = vmatprep.subr.mxu0 0.0
        %3731 = vmatpush1.msra.mxu0 0.0
        %3732 = vmatprep.subr.mxu0 0.0
        %3733 = vmatpush1.msra.mxu0 0.0
        %3734 = vmatprep.subr.mxu0 0.0
        %3735 = vmatpush1.msra.mxu0 0.0
        %3736 = vmatprep.subr.mxu0 0.0
        %3737 = vmatpush1.msra.mxu0 0.0
        %3738 = vmatprep.subr.mxu0 0.0
        %3739 = vmatpush1.msra.mxu0 0.0
        %3740 = vmatprep.subr.mxu0 0.0
        %3741 = vmatpush1.msra.mxu0 0.0
        %3742 = vmatprep.subr.mxu0 0.0
        %3743 = vmatpush1.msra.mxu0 0.0
        %3744 = vmatprep.subr.mxu0 0.0
        %3745 = vmatpush1.msra.mxu0 0.0
        %3746 = vmatprep.subr.mxu0 0.0
        %3747 = vmatpush1.msra.mxu0 0.0
        %3748 = vmatprep.subr.mxu0 0.0
        %3749 = vmatpush1.msra.mxu0 0.0
        %3750 = vmatprep.subr.mxu0 0.0
        %3751 = vmatpush1.msra.mxu0 0.0
        %3752 = vmatprep.subr.mxu0 0.0
        %3753 = vmatpush1.msra.mxu0 0.0
        %3754 = vmatprep.subr.mxu0 0.0
        %3755 = vmatpush1.msra.mxu0 0.0
        %3756 = vmatprep.subr.mxu0 0.0
        %3757 = vmatpush1.msra.mxu0 0.0
        %3758 = vmatprep.subr.mxu0 0.0
        %3759 = vmatpush1.msra.mxu0 0.0
        %3760 = vmatprep.subr.mxu0 0.0
        %3761 = vmatpush1.msra.mxu0 0.0
        %3762 = vmatprep.subr.mxu0 0.0
        %3763 = vmatpush1.msra.mxu0 0.0
        %3764 = vmatprep.subr.mxu0 0.0
        %3765 = vmatpush1.msra.mxu0 0.0
        %3766 = vmatprep.subr.mxu0 0.0
        %3767 = vmatpush1.msra.mxu0 0.0
        %3768 = vmatprep.subr.mxu0 0.0
        %3769 = vmatpush1.msra.mxu0 0.0
        %3770 = vmatprep.subr.mxu0 0.0
        %3771 = vmatpush1.msra.mxu0 0.0
        %3772 = vmatprep.subr.mxu0 0.0
        %3773 = vmatpush1.msra.mxu0 0.0
        %3774 = vmatprep.subr.mxu0 0.0
        %3775 = vmatpush1.msra.mxu0 0.0
        %3776 = vmatprep.subr.mxu0 0.0
        %3777 = vmatpush1.msra.mxu0 0.0
        %3778 = vmatprep.subr.mxu0 0.0
        %3779 = vmatpush1.msra.mxu0 0.0
        %3780 = vmatprep.mubr.f32.mxu0 0.0
        %3781 = vmatmul.mubr.f32.gmra.mrb[0].mxu0 %v3698
        %v3782 = vpop.f32.mrb[0].mxu0
        %v3783 = vadd.f32 0.0, %v3782
        %v3784 = vpop.f32.mrb[0].mxu0
        %v3785 = vadd.f32 0.0, %v3784
        %3786 = vdwg.mxu0
        %3787 = vmatprep.subr.mxu0 %v3706
        %3788 = vmatpush1.msra.mxu0 %v3704
        %3789 = vmatprep.subr.mxu0 0.0
        %3790 = vmatpush1.msra.mxu0 0.0
        %3791 = vmatprep.subr.mxu0 0.0
        %3792 = vmatpush1.msra.mxu0 0.0
        %3793 = vmatprep.subr.mxu0 0.0
        %3794 = vmatpush1.msra.mxu0 0.0
        %3795 = vmatprep.subr.mxu0 0.0
        %3796 = vmatpush1.msra.mxu0 0.0
        %3797 = vmatprep.subr.mxu0 0.0
        %3798 = vmatpush1.msra.mxu0 0.0
        %3799 = vmatprep.subr.mxu0 0.0
        %3800 = vmatpush1.msra.mxu0 0.0
        %3801 = vmatprep.subr.mxu0 0.0
        %3802 = vmatpush1.msra.mxu0 0.0
        %3803 = vmatprep.subr.mxu0 0.0
        %3804 = vmatpush1.msra.mxu0 0.0
        %3805 = vmatprep.subr.mxu0 0.0
        %3806 = vmatpush1.msra.mxu0 0.0
        %3807 = vmatprep.subr.mxu0 0.0
        %3808 = vmatpush1.msra.mxu0 0.0
        %3809 = vmatprep.subr.mxu0 0.0
        %3810 = vmatpush1.msra.mxu0 0.0
        %3811 = vmatprep.subr.mxu0 0.0
        %3812 = vmatpush1.msra.mxu0 0.0
        %3813 = vmatprep.subr.mxu0 0.0
        %3814 = vmatpush1.msra.mxu0 0.0
        %3815 = vmatprep.subr.mxu0 0.0
        %3816 = vmatpush1.msra.mxu0 0.0
        %3817 = vmatprep.subr.mxu0 0.0
        %3818 = vmatpush1.msra.mxu0 0.0
        %3819 = vmatprep.subr.mxu0 0.0
        %3820 = vmatpush1.msra.mxu0 0.0
        %3821 = vmatprep.subr.mxu0 0.0
        %3822 = vmatpush1.msra.mxu0 0.0
        %3823 = vmatprep.subr.mxu0 0.0
        %3824 = vmatpush1.msra.mxu0 0.0
        %3825 = vmatprep.subr.mxu0 0.0
        %3826 = vmatpush1.msra.mxu0 0.0
        %3827 = vmatprep.subr.mxu0 0.0
        %3828 = vmatpush1.msra.mxu0 0.0
        %3829 = vmatprep.subr.mxu0 0.0
        %3830 = vmatpush1.msra.mxu0 0.0
        %3831 = vmatprep.subr.mxu0 0.0
        %3832 = vmatpush1.msra.mxu0 0.0
        %3833 = vmatprep.subr.mxu0 0.0
        %3834 = vmatpush1.msra.mxu0 0.0
        %3835 = vmatprep.subr.mxu0 0.0
        %3836 = vmatpush1.msra.mxu0 0.0
        %3837 = vmatprep.subr.mxu0 0.0
        %3838 = vmatpush1.msra.mxu0 0.0
        %3839 = vmatprep.subr.mxu0 0.0
        %3840 = vmatpush1.msra.mxu0 0.0
        %3841 = vmatprep.subr.mxu0 0.0
        %3842 = vmatpush1.msra.mxu0 0.0
        %3843 = vmatprep.subr.mxu0 0.0
        %3844 = vmatpush1.msra.mxu0 0.0
        %3845 = vmatprep.subr.mxu0 0.0
        %3846 = vmatpush1.msra.mxu0 0.0
        %3847 = vmatprep.subr.mxu0 0.0
        %3848 = vmatpush1.msra.mxu0 0.0
        %3849 = vmatprep.subr.mxu0 0.0
        %3850 = vmatpush1.msra.mxu0 0.0
        %3851 = vmatprep.mubr.f32.mxu0 0.0
        %3852 = vmatmul.mubr.f32.gmra.mrb[0].mxu0 %v3698
        %v3853 = vpop.f32.mrb[0].mxu0
        %v3854 = vadd.f32 0.0, %v3853
        %v3855 = vpop.f32.mrb[0].mxu0
        %v3856 = vadd.f32 0.0, %v3855
        %3857 = vdwg.mxu0
        %3858 = vmatprep.subr.mxu0 %v3710
        %3859 = vmatpush1.msra.mxu0 %v3708
        %3860 = vmatprep.subr.mxu0 0.0
        %3861 = vmatpush1.msra.mxu0 0.0
        %3862 = vmatprep.subr.mxu0 0.0
        %3863 = vmatpush1.msra.mxu0 0.0
        %3864 = vmatprep.subr.mxu0 0.0
        %3865 = vmatpush1.msra.mxu0 0.0
        %3866 = vmatprep.subr.mxu0 0.0
        %3867 = vmatpush1.msra.mxu0 0.0
        %3868 = vmatprep.subr.mxu0 0.0
        %3869 = vmatpush1.msra.mxu0 0.0
        %3870 = vmatprep.subr.mxu0 0.0
        %3871 = vmatpush1.msra.mxu0 0.0
        %3872 = vmatprep.subr.mxu0 0.0
        %3873 = vmatpush1.msra.mxu0 0.0
        %3874 = vmatprep.subr.mxu0 0.0
        %3875 = vmatpush1.msra.mxu0 0.0
        %3876 = vmatprep.subr.mxu0 0.0
        %3877 = vmatpush1.msra.mxu0 0.0
        %3878 = vmatprep.subr.mxu0 0.0
        %3879 = vmatpush1.msra.mxu0 0.0
        %3880 = vmatprep.subr.mxu0 0.0
        %3881 = vmatpush1.msra.mxu0 0.0
        %3882 = vmatprep.subr.mxu0 0.0
        %3883 = vmatpush1.msra.mxu0 0.0
        %3884 = vmatprep.subr.mxu0 0.0
        %3885 = vmatpush1.msra.mxu0 0.0
        %3886 = vmatprep.subr.mxu0 0.0
        %3887 = vmatpush1.msra.mxu0 0.0
        %3888 = vmatprep.subr.mxu0 0.0
        %3889 = vmatpush1.msra.mxu0 0.0
        %3890 = vmatprep.subr.mxu0 0.0
        %3891 = vmatpush1.msra.mxu0 0.0
        %3892 = vmatprep.subr.mxu0 0.0
        %3893 = vmatpush1.msra.mxu0 0.0
        %3894 = vmatprep.subr.mxu0 0.0
        %3895 = vmatpush1.msra.mxu0 0.0
        %3896 = vmatprep.subr.mxu0 0.0
        %3897 = vmatpush1.msra.mxu0 0.0
        %3898 = vmatprep.subr.mxu0 0.0
        %3899 = vmatpush1.msra.mxu0 0.0
        %3900 = vmatprep.subr.mxu0 0.0
        %3901 = vmatpush1.msra.mxu0 0.0
        %3902 = vmatprep.subr.mxu0 0.0
        %3903 = vmatpush1.msra.mxu0 0.0
        %3904 = vmatprep.subr.mxu0 0.0
        %3905 = vmatpush1.msra.mxu0 0.0
        %3906 = vmatprep.subr.mxu0 0.0
        %3907 = vmatpush1.msra.mxu0 0.0
        %3908 = vmatprep.subr.mxu0 0.0
        %3909 = vmatpush1.msra.mxu0 0.0
        %3910 = vmatprep.subr.mxu0 0.0
        %3911 = vmatpush1.msra.mxu0 0.0
        %3912 = vmatprep.subr.mxu0 0.0
        %3913 = vmatpush1.msra.mxu0 0.0
        %3914 = vmatprep.subr.mxu0 0.0
        %3915 = vmatpush1.msra.mxu0 0.0
        %3916 = vmatprep.subr.mxu0 0.0
        %3917 = vmatpush1.msra.mxu0 0.0
        %3918 = vmatprep.subr.mxu0 0.0
        %3919 = vmatpush1.msra.mxu0 0.0
        %3920 = vmatprep.subr.mxu0 0.0
        %3921 = vmatpush1.msra.mxu0 0.0
        %3922 = vmatprep.mubr.f32.mxu0 0.0
        %3923 = vmatmul.mubr.f32.gmra.mrb[0].mxu0 %v3698
        %v3924 = vpop.f32.mrb[0].mxu0
        %v3925 = vadd.f32 0.0, %v3924
        %v3926 = vpop.f32.mrb[0].mxu0
        %v3927 = vadd.f32 0.0, %v3926
        %3928 = vdwg.mxu0
        %3929 = vmatprep.subr.mxu0 %v3714
        %3930 = vmatpush1.msra.mxu0 %v3712
        %3931 = vmatprep.subr.mxu0 0.0
        %3932 = vmatpush1.msra.mxu0 0.0
        %3933 = vmatprep.subr.mxu0 0.0
        %3934 = vmatpush1.msra.mxu0 0.0
        %3935 = vmatprep.subr.mxu0 0.0
        %3936 = vmatpush1.msra.mxu0 0.0
        %3937 = vmatprep.subr.mxu0 0.0
        %3938 = vmatpush1.msra.mxu0 0.0
        %3939 = vmatprep.subr.mxu0 0.0
        %3940 = vmatpush1.msra.mxu0 0.0
        %3941 = vmatprep.subr.mxu0 0.0
        %3942 = vmatpush1.msra.mxu0 0.0
        %3943 = vmatprep.subr.mxu0 0.0
        %3944 = vmatpush1.msra.mxu0 0.0
        %3945 = vmatprep.subr.mxu0 0.0
        %3946 = vmatpush1.msra.mxu0 0.0
        %3947 = vmatprep.subr.mxu0 0.0
        %3948 = vmatpush1.msra.mxu0 0.0
        %3949 = vmatprep.subr.mxu0 0.0
        %3950 = vmatpush1.msra.mxu0 0.0
        %3951 = vmatprep.subr.mxu0 0.0
        %3952 = vmatpush1.msra.mxu0 0.0
        %3953 = vmatprep.subr.mxu0 0.0
        %3954 = vmatpush1.msra.mxu0 0.0
        %3955 = vmatprep.subr.mxu0 0.0
        %3956 = vmatpush1.msra.mxu0 0.0
        %3957 = vmatprep.subr.mxu0 0.0
        %3958 = vmatpush1.msra.mxu0 0.0
        %3959 = vmatprep.subr.mxu0 0.0
        %3960 = vmatpush1.msra.mxu0 0.0
        %3961 = vmatprep.subr.mxu0 0.0
        %3962 = vmatpush1.msra.mxu0 0.0
        %3963 = vmatprep.subr.mxu0 0.0
        %3964 = vmatpush1.msra.mxu0 0.0
        %3965 = vmatprep.subr.mxu0 0.0
        %3966 = vmatpush1.msra.mxu0 0.0
        %3967 = vmatprep.subr.mxu0 0.0
        %3968 = vmatpush1.msra.mxu0 0.0
        %3969 = vmatprep.subr.mxu0 0.0
        %3970 = vmatpush1.msra.mxu0 0.0
        %3971 = vmatprep.subr.mxu0 0.0
        %3972 = vmatpush1.msra.mxu0 0.0
        %3973 = vmatprep.subr.mxu0 0.0
        %3974 = vmatpush1.msra.mxu0 0.0
        %3975 = vmatprep.subr.mxu0 0.0
        %3976 = vmatpush1.msra.mxu0 0.0
        %3977 = vmatprep.subr.mxu0 0.0
        %3978 = vmatpush1.msra.mxu0 0.0
        %3979 = vmatprep.subr.mxu0 0.0
        %3980 = vmatpush1.msra.mxu0 0.0
        %3981 = vmatprep.subr.mxu0 0.0
        %3982 = vmatpush1.msra.mxu0 0.0
        %3983 = vmatprep.subr.mxu0 0.0
        %3984 = vmatpush1.msra.mxu0 0.0
        %3985 = vmatprep.subr.mxu0 0.0
        %3986 = vmatpush1.msra.mxu0 0.0
        %3987 = vmatprep.subr.mxu0 0.0
        %3988 = vmatpush1.msra.mxu0 0.0
        %3989 = vmatprep.subr.mxu0 0.0
        %3990 = vmatpush1.msra.mxu0 0.0
        %3991 = vmatprep.subr.mxu0 0.0
        %3992 = vmatpush1.msra.mxu0 0.0
        %3993 = vmatprep.mubr.f32.mxu0 0.0
        %3994 = vmatmul.mubr.f32.gmra.mrb[0].mxu0 %v3698
        %v3995 = vpop.f32.mrb[0].mxu0
        %v3996 = vadd.f32 0.0, %v3995
        %v3997 = vpop.f32.mrb[0].mxu0
        %v3998 = vadd.f32 0.0, %v3997
        %3999 = vdwg.mxu0
        %v4000 = vadd.f32 %v3646, %v3783
        %v4001 = vadd.f32 %v3647, %v3785
        %v4002 = vadd.f32 %v3648, %v3854
        %v4003 = vadd.f32 %v3649, %v3856
        %v4004 = vadd.f32 %v3650, %v3925
        %v4005 = vadd.f32 %v3651, %v3927
        %v4006 = vadd.f32 %v3652, %v3996
        %v4007 = vadd.f32 %v3653, %v3998
        %s4008 = scalar_lea.vmem %s1, 88
        %v4009 = vld [vmem:[%s4008] sm:$0xff]
        %v4010 = vld [vmem:[%s168] sm:$0xff]
        %v4011 = vld [vmem:[%s168 + $0x8] sm:$0xff]
        %v4012 = vld [vmem:[%s168 + $0x10] sm:$0xff]
        %v4013 = vld [vmem:[%s168 + $0x18] sm:$0xff]
        %v4014 = vld [vmem:[%s168 + $0x20] sm:$0xf]
        %v4020 = vcombine.high %v4010, %v4010
        %v4021 = vcombine.high %v4011, %v4011
        %v4022 = vcombine.high %v4012, %v4012
        %v4023 = vcombine.high %v4013, %v4013
        %4024 = vrot.lane.b32.xlu0 %v4010, 26
        %v4025 = vpop.permute.xlu0 %4024
        %4026 = vrot.lane.b32.xlu0 %v4020, 26
        %v4027 = vpop.permute.xlu0 %4026
        %4028 = vrot.lane.b32.xlu0 %v4011, 26
        %v4029 = vpop.permute.xlu0 %4028
        %4030 = vrot.lane.b32.xlu0 %v4021, 26
        %v4031 = vpop.permute.xlu0 %4030
        %4032 = vrot.lane.b32.xlu0 %v4012, 26
        %v4033 = vpop.permute.xlu0 %4032
        %4034 = vrot.lane.b32.xlu0 %v4022, 26
        %v4035 = vpop.permute.xlu0 %4034
        %4036 = vrot.lane.b32.xlu0 %v4013, 26
        %v4037 = vpop.permute.xlu0 %4036
        %4038 = vrot.lane.b32.xlu0 %v4023, 26
        %v4039 = vpop.permute.xlu0 %4038
        %4040 = vrot.lane.b32.xlu0 %v4014, 26
        %v4041 = vpop.permute.xlu0 %4040
        %vm4042 = vcmask 211968
        %v4043 = vsel %vm4042, %v4025, %v4027
        %v4044 = vsel %vm4042, %v4027, %v4029
        %v4045 = vsel %vm4042, %v4029, %v4031
        %v4046 = vsel %vm4042, %v4031, %v4033
        %v4047 = vsel %vm4042, %v4033, %v4035
        %v4048 = vsel %vm4042, %v4035, %v4037
        %v4049 = vsel %vm4042, %v4037, %v4039
        %v4050 = vsel %vm4042, %v4039, %v4041
        %v4052 = vsel %vm214, %v4009, 0
        %v4054 = vsel %vm218, %v4043, 0
        %v4056 = vsel %vm218, %v4044, 0
        %v4058 = vsel %vm218, %v4045, 0
        %v4060 = vsel %vm218, %v4046, 0
        %v4062 = vsel %vm218, %v4047, 0
        %v4064 = vsel %vm218, %v4048, 0
        %v4066 = vsel %vm218, %v4049, 0
        %v4068 = vsel %vm218, %v4050, 0
        %4070 = vmatprep.subr.mxu0 %v4056
        %4071 = vmatpush1.msra.mxu0 %v4054
        %4072 = vmatprep.subr.mxu0 0.0
        %4073 = vmatpush1.msra.mxu0 0.0
        %4074 = vmatprep.subr.mxu0 0.0
        %4075 = vmatpush1.msra.mxu0 0.0
        %4076 = vmatprep.subr.mxu0 0.0
        %4077 = vmatpush1.msra.mxu0 0.0
        %4078 = vmatprep.subr.mxu0 0.0
        %4079 = vmatpush1.msra.mxu0 0.0
        %4080 = vmatprep.subr.mxu0 0.0
        %4081 = vmatpush1.msra.mxu0 0.0
        %4082 = vmatprep.subr.mxu0 0.0
        %4083 = vmatpush1.msra.mxu0 0.0
        %4084 = vmatprep.subr.mxu0 0.0
        %4085 = vmatpush1.msra.mxu0 0.0
        %4086 = vmatprep.subr.mxu0 0.0
        %4087 = vmatpush1.msra.mxu0 0.0
        %4088 = vmatprep.subr.mxu0 0.0
        %4089 = vmatpush1.msra.mxu0 0.0
        %4090 = vmatprep.subr.mxu0 0.0
        %4091 = vmatpush1.msra.mxu0 0.0
        %4092 = vmatprep.subr.mxu0 0.0
        %4093 = vmatpush1.msra.mxu0 0.0
        %4094 = vmatprep.subr.mxu0 0.0
        %4095 = vmatpush1.msra.mxu0 0.0
        %4096 = vmatprep.subr.mxu0 0.0
        %4097 = vmatpush1.msra.mxu0 0.0
        %4098 = vmatprep.subr.mxu0 0.0
        %4099 = vmatpush1.msra.mxu0 0.0
        %4100 = vmatprep.subr.mxu0 0.0
        %4101 = vmatpush1.msra.mxu0 0.0
        %4102 = vmatprep.subr.mxu0 0.0
        %4103 = vmatpush1.msra.mxu0 0.0
        %4104 = vmatprep.subr.mxu0 0.0
        %4105 = vmatpush1.msra.mxu0 0.0
        %4106 = vmatprep.subr.mxu0 0.0
        %4107 = vmatpush1.msra.mxu0 0.0
        %4108 = vmatprep.subr.mxu0 0.0
        %4109 = vmatpush1.msra.mxu0 0.0
        %4110 = vmatprep.subr.mxu0 0.0
        %4111 = vmatpush1.msra.mxu0 0.0
        %4112 = vmatprep.subr.mxu0 0.0
        %4113 = vmatpush1.msra.mxu0 0.0
        %4114 = vmatprep.subr.mxu0 0.0
        %4115 = vmatpush1.msra.mxu0 0.0
        %4116 = vmatprep.subr.mxu0 0.0
        %4117 = vmatpush1.msra.mxu0 0.0
        %4118 = vmatprep.subr.mxu0 0.0
        %4119 = vmatpush1.msra.mxu0 0.0
        %4120 = vmatprep.subr.mxu0 0.0
        %4121 = vmatpush1.msra.mxu0 0.0
        %4122 = vmatprep.subr.mxu0 0.0
        %4123 = vmatpush1.msra.mxu0 0.0
        %4124 = vmatprep.subr.mxu0 0.0
        %4125 = vmatpush1.msra.mxu0 0.0
        %4126 = vmatprep.subr.mxu0 0.0
        %4127 = vmatpush1.msra.mxu0 0.0
        %4128 = vmatprep.subr.mxu0 0.0
        %4129 = vmatpush1.msra.mxu0 0.0
        %4130 = vmatprep.subr.mxu0 0.0
        %4131 = vmatpush1.msra.mxu0 0.0
        %4132 = vmatprep.subr.mxu0 0.0
        %4133 = vmatpush1.msra.mxu0 0.0
        %4134 = vmatprep.mubr.f32.mxu0 0.0
        %4135 = vmatmul.mubr.f32.gmra.mrb[0].mxu0 %v4052
        %v4136 = vpop.f32.mrb[0].mxu0
        %v4137 = vadd.f32 0.0, %v4136
        %v4138 = vpop.f32.mrb[0].mxu0
        %v4139 = vadd.f32 0.0, %v4138
        %4140 = vdwg.mxu0
        %4141 = vmatprep.subr.mxu0 %v4060
        %4142 = vmatpush1.msra.mxu0 %v4058
        %4143 = vmatprep.subr.mxu0 0.0
        %4144 = vmatpush1.msra.mxu0 0.0
        %4145 = vmatprep.subr.mxu0 0.0
        %4146 = vmatpush1.msra.mxu0 0.0
        %4147 = vmatprep.subr.mxu0 0.0
        %4148 = vmatpush1.msra.mxu0 0.0
        %4149 = vmatprep.subr.mxu0 0.0
        %4150 = vmatpush1.msra.mxu0 0.0
        %4151 = vmatprep.subr.mxu0 0.0
        %4152 = vmatpush1.msra.mxu0 0.0
        %4153 = vmatprep.subr.mxu0 0.0
        %4154 = vmatpush1.msra.mxu0 0.0
        %4155 = vmatprep.subr.mxu0 0.0
        %4156 = vmatpush1.msra.mxu0 0.0
        %4157 = vmatprep.subr.mxu0 0.0
        %4158 = vmatpush1.msra.mxu0 0.0
        %4159 = vmatprep.subr.mxu0 0.0
        %4160 = vmatpush1.msra.mxu0 0.0
        %4161 = vmatprep.subr.mxu0 0.0
        %4162 = vmatpush1.msra.mxu0 0.0
        %4163 = vmatprep.subr.mxu0 0.0
        %4164 = vmatpush1.msra.mxu0 0.0
        %4165 = vmatprep.subr.mxu0 0.0
        %4166 = vmatpush1.msra.mxu0 0.0
        %4167 = vmatprep.subr.mxu0 0.0
        %4168 = vmatpush1.msra.mxu0 0.0
        %4169 = vmatprep.subr.mxu0 0.0
        %4170 = vmatpush1.msra.mxu0 0.0
        %4171 = vmatprep.subr.mxu0 0.0
        %4172 = vmatpush1.msra.mxu0 0.0
        %4173 = vmatprep.subr.mxu0 0.0
        %4174 = vmatpush1.msra.mxu0 0.0
        %4175 = vmatprep.subr.mxu0 0.0
        %4176 = vmatpush1.msra.mxu0 0.0
        %4177 = vmatprep.subr.mxu0 0.0
        %4178 = vmatpush1.msra.mxu0 0.0
        %4179 = vmatprep.subr.mxu0 0.0
        %4180 = vmatpush1.msra.mxu0 0.0
        %4181 = vmatprep.subr.mxu0 0.0
        %4182 = vmatpush1.msra.mxu0 0.0
        %4183 = vmatprep.subr.mxu0 0.0
        %4184 = vmatpush1.msra.mxu0 0.0
        %4185 = vmatprep.subr.mxu0 0.0
        %4186 = vmatpush1.msra.mxu0 0.0
        %4187 = vmatprep.subr.mxu0 0.0
        %4188 = vmatpush1.msra.mxu0 0.0
        %4189 = vmatprep.subr.mxu0 0.0
        %4190 = vmatpush1.msra.mxu0 0.0
        %4191 = vmatprep.subr.mxu0 0.0
        %4192 = vmatpush1.msra.mxu0 0.0
        %4193 = vmatprep.subr.mxu0 0.0
        %4194 = vmatpush1.msra.mxu0 0.0
        %4195 = vmatprep.subr.mxu0 0.0
        %4196 = vmatpush1.msra.mxu0 0.0
        %4197 = vmatprep.subr.mxu0 0.0
        %4198 = vmatpush1.msra.mxu0 0.0
        %4199 = vmatprep.subr.mxu0 0.0
        %4200 = vmatpush1.msra.mxu0 0.0
        %4201 = vmatprep.subr.mxu0 0.0
        %4202 = vmatpush1.msra.mxu0 0.0
        %4203 = vmatprep.subr.mxu0 0.0
        %4204 = vmatpush1.msra.mxu0 0.0
        %4205 = vmatprep.mubr.f32.mxu0 0.0
        %4206 = vmatmul.mubr.f32.gmra.mrb[0].mxu0 %v4052
        %v4207 = vpop.f32.mrb[0].mxu0
        %v4208 = vadd.f32 0.0, %v4207
        %v4209 = vpop.f32.mrb[0].mxu0
        %v4210 = vadd.f32 0.0, %v4209
        %4211 = vdwg.mxu0
        %4212 = vmatprep.subr.mxu0 %v4064
        %4213 = vmatpush1.msra.mxu0 %v4062
        %4214 = vmatprep.subr.mxu0 0.0
        %4215 = vmatpush1.msra.mxu0 0.0
        %4216 = vmatprep.subr.mxu0 0.0
        %4217 = vmatpush1.msra.mxu0 0.0
        %4218 = vmatprep.subr.mxu0 0.0
        %4219 = vmatpush1.msra.mxu0 0.0
        %4220 = vmatprep.subr.mxu0 0.0
        %4221 = vmatpush1.msra.mxu0 0.0
        %4222 = vmatprep.subr.mxu0 0.0
        %4223 = vmatpush1.msra.mxu0 0.0
        %4224 = vmatprep.subr.mxu0 0.0
        %4225 = vmatpush1.msra.mxu0 0.0
        %4226 = vmatprep.subr.mxu0 0.0
        %4227 = vmatpush1.msra.mxu0 0.0
        %4228 = vmatprep.subr.mxu0 0.0
        %4229 = vmatpush1.msra.mxu0 0.0
        %4230 = vmatprep.subr.mxu0 0.0
        %4231 = vmatpush1.msra.mxu0 0.0
        %4232 = vmatprep.subr.mxu0 0.0
        %4233 = vmatpush1.msra.mxu0 0.0
        %4234 = vmatprep.subr.mxu0 0.0
        %4235 = vmatpush1.msra.mxu0 0.0
        %4236 = vmatprep.subr.mxu0 0.0
        %4237 = vmatpush1.msra.mxu0 0.0
        %4238 = vmatprep.subr.mxu0 0.0
        %4239 = vmatpush1.msra.mxu0 0.0
        %4240 = vmatprep.subr.mxu0 0.0
        %4241 = vmatpush1.msra.mxu0 0.0
        %4242 = vmatprep.subr.mxu0 0.0
        %4243 = vmatpush1.msra.mxu0 0.0
        %4244 = vmatprep.subr.mxu0 0.0
        %4245 = vmatpush1.msra.mxu0 0.0
        %4246 = vmatprep.subr.mxu0 0.0
        %4247 = vmatpush1.msra.mxu0 0.0
        %4248 = vmatprep.subr.mxu0 0.0
        %4249 = vmatpush1.msra.mxu0 0.0
        %4250 = vmatprep.subr.mxu0 0.0
        %4251 = vmatpush1.msra.mxu0 0.0
        %4252 = vmatprep.subr.mxu0 0.0
        %4253 = vmatpush1.msra.mxu0 0.0
        %4254 = vmatprep.subr.mxu0 0.0
        %4255 = vmatpush1.msra.mxu0 0.0
        %4256 = vmatprep.subr.mxu0 0.0
        %4257 = vmatpush1.msra.mxu0 0.0
        %4258 = vmatprep.subr.mxu0 0.0
        %4259 = vmatpush1.msra.mxu0 0.0
        %4260 = vmatprep.subr.mxu0 0.0
        %4261 = vmatpush1.msra.mxu0 0.0
        %4262 = vmatprep.subr.mxu0 0.0
        %4263 = vmatpush1.msra.mxu0 0.0
        %4264 = vmatprep.subr.mxu0 0.0
        %4265 = vmatpush1.msra.mxu0 0.0
        %4266 = vmatprep.subr.mxu0 0.0
        %4267 = vmatpush1.msra.mxu0 0.0
        %4268 = vmatprep.subr.mxu0 0.0
        %4269 = vmatpush1.msra.mxu0 0.0
        %4270 = vmatprep.subr.mxu0 0.0
        %4271 = vmatpush1.msra.mxu0 0.0
        %4272 = vmatprep.subr.mxu0 0.0
        %4273 = vmatpush1.msra.mxu0 0.0
        %4274 = vmatprep.subr.mxu0 0.0
        %4275 = vmatpush1.msra.mxu0 0.0
        %4276 = vmatprep.mubr.f32.mxu0 0.0
        %4277 = vmatmul.mubr.f32.gmra.mrb[0].mxu0 %v4052
        %v4278 = vpop.f32.mrb[0].mxu0
        %v4279 = vadd.f32 0.0, %v4278
        %v4280 = vpop.f32.mrb[0].mxu0
        %v4281 = vadd.f32 0.0, %v4280
        %4282 = vdwg.mxu0
        %4283 = vmatprep.subr.mxu0 %v4068
        %4284 = vmatpush1.msra.mxu0 %v4066
        %4285 = vmatprep.subr.mxu0 0.0
        %4286 = vmatpush1.msra.mxu0 0.0
        %4287 = vmatprep.subr.mxu0 0.0
        %4288 = vmatpush1.msra.mxu0 0.0
        %4289 = vmatprep.subr.mxu0 0.0
        %4290 = vmatpush1.msra.mxu0 0.0
        %4291 = vmatprep.subr.mxu0 0.0
        %4292 = vmatpush1.msra.mxu0 0.0
        %4293 = vmatprep.subr.mxu0 0.0
        %4294 = vmatpush1.msra.mxu0 0.0
        %4295 = vmatprep.subr.mxu0 0.0
        %4296 = vmatpush1.msra.mxu0 0.0
        %4297 = vmatprep.subr.mxu0 0.0
        %4298 = vmatpush1.msra.mxu0 0.0
        %4299 = vmatprep.subr.mxu0 0.0
        %4300 = vmatpush1.msra.mxu0 0.0
        %4301 = vmatprep.subr.mxu0 0.0
        %4302 = vmatpush1.msra.mxu0 0.0
        %4303 = vmatprep.subr.mxu0 0.0
        %4304 = vmatpush1.msra.mxu0 0.0
        %4305 = vmatprep.subr.mxu0 0.0
        %4306 = vmatpush1.msra.mxu0 0.0
        %4307 = vmatprep.subr.mxu0 0.0
        %4308 = vmatpush1.msra.mxu0 0.0
        %4309 = vmatprep.subr.mxu0 0.0
        %4310 = vmatpush1.msra.mxu0 0.0
        %4311 = vmatprep.subr.mxu0 0.0
        %4312 = vmatpush1.msra.mxu0 0.0
        %4313 = vmatprep.subr.mxu0 0.0
        %4314 = vmatpush1.msra.mxu0 0.0
        %4315 = vmatprep.subr.mxu0 0.0
        %4316 = vmatpush1.msra.mxu0 0.0
        %4317 = vmatprep.subr.mxu0 0.0
        %4318 = vmatpush1.msra.mxu0 0.0
        %4319 = vmatprep.subr.mxu0 0.0
        %4320 = vmatpush1.msra.mxu0 0.0
        %4321 = vmatprep.subr.mxu0 0.0
        %4322 = vmatpush1.msra.mxu0 0.0
        %4323 = vmatprep.subr.mxu0 0.0
        %4324 = vmatpush1.msra.mxu0 0.0
        %4325 = vmatprep.subr.mxu0 0.0
        %4326 = vmatpush1.msra.mxu0 0.0
        %4327 = vmatprep.subr.mxu0 0.0
        %4328 = vmatpush1.msra.mxu0 0.0
        %4329 = vmatprep.subr.mxu0 0.0
        %4330 = vmatpush1.msra.mxu0 0.0
        %4331 = vmatprep.subr.mxu0 0.0
        %4332 = vmatpush1.msra.mxu0 0.0
        %4333 = vmatprep.subr.mxu0 0.0
        %4334 = vmatpush1.msra.mxu0 0.0
        %4335 = vmatprep.subr.mxu0 0.0
        %4336 = vmatpush1.msra.mxu0 0.0
        %4337 = vmatprep.subr.mxu0 0.0
        %4338 = vmatpush1.msra.mxu0 0.0
        %4339 = vmatprep.subr.mxu0 0.0
        %4340 = vmatpush1.msra.mxu0 0.0
        %4341 = vmatprep.subr.mxu0 0.0
        %4342 = vmatpush1.msra.mxu0 0.0
        %4343 = vmatprep.subr.mxu0 0.0
        %4344 = vmatpush1.msra.mxu0 0.0
        %4345 = vmatprep.subr.mxu0 0.0
        %4346 = vmatpush1.msra.mxu0 0.0
        %4347 = vmatprep.mubr.f32.mxu0 0.0
        %4348 = vmatmul.mubr.f32.gmra.mrb[0].mxu0 %v4052
        %v4349 = vpop.f32.mrb[0].mxu0
        %v4350 = vadd.f32 0.0, %v4349
        %v4351 = vpop.f32.mrb[0].mxu0
        %v4352 = vadd.f32 0.0, %v4351
        %4353 = vdwg.mxu0
        %v4354 = vadd.f32 %v4000, %v4137
        %v4355 = vadd.f32 %v4001, %v4139
        %v4356 = vadd.f32 %v4002, %v4208
        %v4357 = vadd.f32 %v4003, %v4210
        %v4358 = vadd.f32 %v4004, %v4279
        %v4359 = vadd.f32 %v4005, %v4281
        %v4360 = vadd.f32 %v4006, %v4350
        %v4361 = vadd.f32 %v4007, %v4352
        %s4362 = scalar_lea.vmem %s1, 96
        %v4363 = vld [vmem:[%s4362] sm:$0xff]
        %v4364 = vld [vmem:[%s168] sm:$0xff]
        %v4365 = vld [vmem:[%s168 + $0x8] sm:$0xff]
        %v4366 = vld [vmem:[%s168 + $0x10] sm:$0xff]
        %v4367 = vld [vmem:[%s168 + $0x18] sm:$0xff]
        %v4368 = vld [vmem:[%s168 + $0x20] sm:$0xf]
        %v4374 = vcombine.high %v4364, %v4364
        %v4375 = vcombine.high %v4365, %v4365
        %v4376 = vcombine.high %v4366, %v4366
        %v4377 = vcombine.high %v4367, %v4367
        %4378 = vrot.lane.b32.xlu0 %v4364, 18
        %v4379 = vpop.permute.xlu0 %4378
        %4380 = vrot.lane.b32.xlu0 %v4374, 18
        %v4381 = vpop.permute.xlu0 %4380
        %4382 = vrot.lane.b32.xlu0 %v4365, 18
        %v4383 = vpop.permute.xlu0 %4382
        %4384 = vrot.lane.b32.xlu0 %v4375, 18
        %v4385 = vpop.permute.xlu0 %4384
        %4386 = vrot.lane.b32.xlu0 %v4366, 18
        %v4387 = vpop.permute.xlu0 %4386
        %4388 = vrot.lane.b32.xlu0 %v4376, 18
        %v4389 = vpop.permute.xlu0 %4388
        %4390 = vrot.lane.b32.xlu0 %v4367, 18
        %v4391 = vpop.permute.xlu0 %4390
        %4392 = vrot.lane.b32.xlu0 %v4377, 18
        %v4393 = vpop.permute.xlu0 %4392
        %4394 = vrot.lane.b32.xlu0 %v4368, 18
        %v4395 = vpop.permute.xlu0 %4394
        %vm4396 = vcmask 146432
        %v4397 = vsel %vm4396, %v4379, %v4381
        %v4398 = vsel %vm4396, %v4381, %v4383
        %v4399 = vsel %vm4396, %v4383, %v4385
        %v4400 = vsel %vm4396, %v4385, %v4387
        %v4401 = vsel %vm4396, %v4387, %v4389
        %v4402 = vsel %vm4396, %v4389, %v4391
        %v4403 = vsel %vm4396, %v4391, %v4393
        %v4404 = vsel %vm4396, %v4393, %v4395
        %v4406 = vsel %vm214, %v4363, 0
        %v4408 = vsel %vm218, %v4397, 0
        %v4410 = vsel %vm218, %v4398, 0
        %v4412 = vsel %vm218, %v4399, 0
        %v4414 = vsel %vm218, %v4400, 0
        %v4416 = vsel %vm218, %v4401, 0
        %v4418 = vsel %vm218, %v4402, 0
        %v4420 = vsel %vm218, %v4403, 0
        %v4422 = vsel %vm218, %v4404, 0
        %4424 = vmatprep.subr.mxu0 %v4410
        %4425 = vmatpush1.msra.mxu0 %v4408
        %4426 = vmatprep.subr.mxu0 0.0
        %4427 = vmatpush1.msra.mxu0 0.0
        %4428 = vmatprep.subr.mxu0 0.0
        %4429 = vmatpush1.msra.mxu0 0.0
        %4430 = vmatprep.subr.mxu0 0.0
        %4431 = vmatpush1.msra.mxu0 0.0
        %4432 = vmatprep.subr.mxu0 0.0
        %4433 = vmatpush1.msra.mxu0 0.0
        %4434 = vmatprep.subr.mxu0 0.0
        %4435 = vmatpush1.msra.mxu0 0.0
        %4436 = vmatprep.subr.mxu0 0.0
        %4437 = vmatpush1.msra.mxu0 0.0
        %4438 = vmatprep.subr.mxu0 0.0
        %4439 = vmatpush1.msra.mxu0 0.0
        %4440 = vmatprep.subr.mxu0 0.0
        %4441 = vmatpush1.msra.mxu0 0.0
        %4442 = vmatprep.subr.mxu0 0.0
        %4443 = vmatpush1.msra.mxu0 0.0
        %4444 = vmatprep.subr.mxu0 0.0
        %4445 = vmatpush1.msra.mxu0 0.0
        %4446 = vmatprep.subr.mxu0 0.0
        %4447 = vmatpush1.msra.mxu0 0.0
        %4448 = vmatprep.subr.mxu0 0.0
        %4449 = vmatpush1.msra.mxu0 0.0
        %4450 = vmatprep.subr.mxu0 0.0
        %4451 = vmatpush1.msra.mxu0 0.0
        %4452 = vmatprep.subr.mxu0 0.0
        %4453 = vmatpush1.msra.mxu0 0.0
        %4454 = vmatprep.subr.mxu0 0.0
        %4455 = vmatpush1.msra.mxu0 0.0
        %4456 = vmatprep.subr.mxu0 0.0
        %4457 = vmatpush1.msra.mxu0 0.0
        %4458 = vmatprep.subr.mxu0 0.0
        %4459 = vmatpush1.msra.mxu0 0.0
        %4460 = vmatprep.subr.mxu0 0.0
        %4461 = vmatpush1.msra.mxu0 0.0
        %4462 = vmatprep.subr.mxu0 0.0
        %4463 = vmatpush1.msra.mxu0 0.0
        %4464 = vmatprep.subr.mxu0 0.0
        %4465 = vmatpush1.msra.mxu0 0.0
        %4466 = vmatprep.subr.mxu0 0.0
        %4467 = vmatpush1.msra.mxu0 0.0
        %4468 = vmatprep.subr.mxu0 0.0
        %4469 = vmatpush1.msra.mxu0 0.0
        %4470 = vmatprep.subr.mxu0 0.0
        %4471 = vmatpush1.msra.mxu0 0.0
        %4472 = vmatprep.subr.mxu0 0.0
        %4473 = vmatpush1.msra.mxu0 0.0
        %4474 = vmatprep.subr.mxu0 0.0
        %4475 = vmatpush1.msra.mxu0 0.0
        %4476 = vmatprep.subr.mxu0 0.0
        %4477 = vmatpush1.msra.mxu0 0.0
        %4478 = vmatprep.subr.mxu0 0.0
        %4479 = vmatpush1.msra.mxu0 0.0
        %4480 = vmatprep.subr.mxu0 0.0
        %4481 = vmatpush1.msra.mxu0 0.0
        %4482 = vmatprep.subr.mxu0 0.0
        %4483 = vmatpush1.msra.mxu0 0.0
        %4484 = vmatprep.subr.mxu0 0.0
        %4485 = vmatpush1.msra.mxu0 0.0
        %4486 = vmatprep.subr.mxu0 0.0
        %4487 = vmatpush1.msra.mxu0 0.0
        %4488 = vmatprep.mubr.f32.mxu0 0.0
        %4489 = vmatmul.mubr.f32.gmra.mrb[0].mxu0 %v4406
        %v4490 = vpop.f32.mrb[0].mxu0
        %v4491 = vadd.f32 0.0, %v4490
        %v4492 = vpop.f32.mrb[0].mxu0
        %v4493 = vadd.f32 0.0, %v4492
        %4494 = vdwg.mxu0
        %4495 = vmatprep.subr.mxu0 %v4414
        %4496 = vmatpush1.msra.mxu0 %v4412
        %4497 = vmatprep.subr.mxu0 0.0
        %4498 = vmatpush1.msra.mxu0 0.0
        %4499 = vmatprep.subr.mxu0 0.0
        %4500 = vmatpush1.msra.mxu0 0.0
        %4501 = vmatprep.subr.mxu0 0.0
        %4502 = vmatpush1.msra.mxu0 0.0
        %4503 = vmatprep.subr.mxu0 0.0
        %4504 = vmatpush1.msra.mxu0 0.0
        %4505 = vmatprep.subr.mxu0 0.0
        %4506 = vmatpush1.msra.mxu0 0.0
        %4507 = vmatprep.subr.mxu0 0.0
        %4508 = vmatpush1.msra.mxu0 0.0
        %4509 = vmatprep.subr.mxu0 0.0
        %4510 = vmatpush1.msra.mxu0 0.0
        %4511 = vmatprep.subr.mxu0 0.0
        %4512 = vmatpush1.msra.mxu0 0.0
        %4513 = vmatprep.subr.mxu0 0.0
        %4514 = vmatpush1.msra.mxu0 0.0
        %4515 = vmatprep.subr.mxu0 0.0
        %4516 = vmatpush1.msra.mxu0 0.0
        %4517 = vmatprep.subr.mxu0 0.0
        %4518 = vmatpush1.msra.mxu0 0.0
        %4519 = vmatprep.subr.mxu0 0.0
        %4520 = vmatpush1.msra.mxu0 0.0
        %4521 = vmatprep.subr.mxu0 0.0
        %4522 = vmatpush1.msra.mxu0 0.0
        %4523 = vmatprep.subr.mxu0 0.0
        %4524 = vmatpush1.msra.mxu0 0.0
        %4525 = vmatprep.subr.mxu0 0.0
        %4526 = vmatpush1.msra.mxu0 0.0
        %4527 = vmatprep.subr.mxu0 0.0
        %4528 = vmatpush1.msra.mxu0 0.0
        %4529 = vmatprep.subr.mxu0 0.0
        %4530 = vmatpush1.msra.mxu0 0.0
        %4531 = vmatprep.subr.mxu0 0.0
        %4532 = vmatpush1.msra.mxu0 0.0
        %4533 = vmatprep.subr.mxu0 0.0
        %4534 = vmatpush1.msra.mxu0 0.0
        %4535 = vmatprep.subr.mxu0 0.0
        %4536 = vmatpush1.msra.mxu0 0.0
        %4537 = vmatprep.subr.mxu0 0.0
        %4538 = vmatpush1.msra.mxu0 0.0
        %4539 = vmatprep.subr.mxu0 0.0
        %4540 = vmatpush1.msra.mxu0 0.0
        %4541 = vmatprep.subr.mxu0 0.0
        %4542 = vmatpush1.msra.mxu0 0.0
        %4543 = vmatprep.subr.mxu0 0.0
        %4544 = vmatpush1.msra.mxu0 0.0
        %4545 = vmatprep.subr.mxu0 0.0
        %4546 = vmatpush1.msra.mxu0 0.0
        %4547 = vmatprep.subr.mxu0 0.0
        %4548 = vmatpush1.msra.mxu0 0.0
        %4549 = vmatprep.subr.mxu0 0.0
        %4550 = vmatpush1.msra.mxu0 0.0
        %4551 = vmatprep.subr.mxu0 0.0
        %4552 = vmatpush1.msra.mxu0 0.0
        %4553 = vmatprep.subr.mxu0 0.0
        %4554 = vmatpush1.msra.mxu0 0.0
        %4555 = vmatprep.subr.mxu0 0.0
        %4556 = vmatpush1.msra.mxu0 0.0
        %4557 = vmatprep.subr.mxu0 0.0
        %4558 = vmatpush1.msra.mxu0 0.0
        %4559 = vmatprep.mubr.f32.mxu0 0.0
        %4560 = vmatmul.mubr.f32.gmra.mrb[0].mxu0 %v4406
        %v4561 = vpop.f32.mrb[0].mxu0
        %v4562 = vadd.f32 0.0, %v4561
        %v4563 = vpop.f32.mrb[0].mxu0
        %v4564 = vadd.f32 0.0, %v4563
        %4565 = vdwg.mxu0
        %4566 = vmatprep.subr.mxu0 %v4418
        %4567 = vmatpush1.msra.mxu0 %v4416
        %4568 = vmatprep.subr.mxu0 0.0
        %4569 = vmatpush1.msra.mxu0 0.0
        %4570 = vmatprep.subr.mxu0 0.0
        %4571 = vmatpush1.msra.mxu0 0.0
        %4572 = vmatprep.subr.mxu0 0.0
        %4573 = vmatpush1.msra.mxu0 0.0
        %4574 = vmatprep.subr.mxu0 0.0
        %4575 = vmatpush1.msra.mxu0 0.0
        %4576 = vmatprep.subr.mxu0 0.0
        %4577 = vmatpush1.msra.mxu0 0.0
        %4578 = vmatprep.subr.mxu0 0.0
        %4579 = vmatpush1.msra.mxu0 0.0
        %4580 = vmatprep.subr.mxu0 0.0
        %4581 = vmatpush1.msra.mxu0 0.0
        %4582 = vmatprep.subr.mxu0 0.0
        %4583 = vmatpush1.msra.mxu0 0.0
        %4584 = vmatprep.subr.mxu0 0.0
        %4585 = vmatpush1.msra.mxu0 0.0
        %4586 = vmatprep.subr.mxu0 0.0
        %4587 = vmatpush1.msra.mxu0 0.0
        %4588 = vmatprep.subr.mxu0 0.0
        %4589 = vmatpush1.msra.mxu0 0.0
        %4590 = vmatprep.subr.mxu0 0.0
        %4591 = vmatpush1.msra.mxu0 0.0
        %4592 = vmatprep.subr.mxu0 0.0
        %4593 = vmatpush1.msra.mxu0 0.0
        %4594 = vmatprep.subr.mxu0 0.0
        %4595 = vmatpush1.msra.mxu0 0.0
        %4596 = vmatprep.subr.mxu0 0.0
        %4597 = vmatpush1.msra.mxu0 0.0
        %4598 = vmatprep.subr.mxu0 0.0
        %4599 = vmatpush1.msra.mxu0 0.0
        %4600 = vmatprep.subr.mxu0 0.0
        %4601 = vmatpush1.msra.mxu0 0.0
        %4602 = vmatprep.subr.mxu0 0.0
        %4603 = vmatpush1.msra.mxu0 0.0
        %4604 = vmatprep.subr.mxu0 0.0
        %4605 = vmatpush1.msra.mxu0 0.0
        %4606 = vmatprep.subr.mxu0 0.0
        %4607 = vmatpush1.msra.mxu0 0.0
        %4608 = vmatprep.subr.mxu0 0.0
        %4609 = vmatpush1.msra.mxu0 0.0
        %4610 = vmatprep.subr.mxu0 0.0
        %4611 = vmatpush1.msra.mxu0 0.0
        %4612 = vmatprep.subr.mxu0 0.0
        %4613 = vmatpush1.msra.mxu0 0.0
        %4614 = vmatprep.subr.mxu0 0.0
        %4615 = vmatpush1.msra.mxu0 0.0
        %4616 = vmatprep.subr.mxu0 0.0
        %4617 = vmatpush1.msra.mxu0 0.0
        %4618 = vmatprep.subr.mxu0 0.0
        %4619 = vmatpush1.msra.mxu0 0.0
        %4620 = vmatprep.subr.mxu0 0.0
        %4621 = vmatpush1.msra.mxu0 0.0
        %4622 = vmatprep.subr.mxu0 0.0
        %4623 = vmatpush1.msra.mxu0 0.0
        %4624 = vmatprep.subr.mxu0 0.0
        %4625 = vmatpush1.msra.mxu0 0.0
        %4626 = vmatprep.subr.mxu0 0.0
        %4627 = vmatpush1.msra.mxu0 0.0
        %4628 = vmatprep.subr.mxu0 0.0
        %4629 = vmatpush1.msra.mxu0 0.0
        %4630 = vmatprep.mubr.f32.mxu0 0.0
        %4631 = vmatmul.mubr.f32.gmra.mrb[0].mxu0 %v4406
        %v4632 = vpop.f32.mrb[0].mxu0
        %v4633 = vadd.f32 0.0, %v4632
        %v4634 = vpop.f32.mrb[0].mxu0
        %v4635 = vadd.f32 0.0, %v4634
        %4636 = vdwg.mxu0
        %4637 = vmatprep.subr.mxu0 %v4422
        %4638 = vmatpush1.msra.mxu0 %v4420
        %4639 = vmatprep.subr.mxu0 0.0
        %4640 = vmatpush1.msra.mxu0 0.0
        %4641 = vmatprep.subr.mxu0 0.0
        %4642 = vmatpush1.msra.mxu0 0.0
        %4643 = vmatprep.subr.mxu0 0.0
        %4644 = vmatpush1.msra.mxu0 0.0
        %4645 = vmatprep.subr.mxu0 0.0
        %4646 = vmatpush1.msra.mxu0 0.0
        %4647 = vmatprep.subr.mxu0 0.0
        %4648 = vmatpush1.msra.mxu0 0.0
        %4649 = vmatprep.subr.mxu0 0.0
        %4650 = vmatpush1.msra.mxu0 0.0
        %4651 = vmatprep.subr.mxu0 0.0
        %4652 = vmatpush1.msra.mxu0 0.0
        %4653 = vmatprep.subr.mxu0 0.0
        %4654 = vmatpush1.msra.mxu0 0.0
        %4655 = vmatprep.subr.mxu0 0.0
        %4656 = vmatpush1.msra.mxu0 0.0
        %4657 = vmatprep.subr.mxu0 0.0
        %4658 = vmatpush1.msra.mxu0 0.0
        %4659 = vmatprep.subr.mxu0 0.0
        %4660 = vmatpush1.msra.mxu0 0.0
        %4661 = vmatprep.subr.mxu0 0.0
        %4662 = vmatpush1.msra.mxu0 0.0
        %4663 = vmatprep.subr.mxu0 0.0
        %4664 = vmatpush1.msra.mxu0 0.0
        %4665 = vmatprep.subr.mxu0 0.0
        %4666 = vmatpush1.msra.mxu0 0.0
        %4667 = vmatprep.subr.mxu0 0.0
        %4668 = vmatpush1.msra.mxu0 0.0
        %4669 = vmatprep.subr.mxu0 0.0
        %4670 = vmatpush1.msra.mxu0 0.0
        %4671 = vmatprep.subr.mxu0 0.0
        %4672 = vmatpush1.msra.mxu0 0.0
        %4673 = vmatprep.subr.mxu0 0.0
        %4674 = vmatpush1.msra.mxu0 0.0
        %4675 = vmatprep.subr.mxu0 0.0
        %4676 = vmatpush1.msra.mxu0 0.0
        %4677 = vmatprep.subr.mxu0 0.0
        %4678 = vmatpush1.msra.mxu0 0.0
        %4679 = vmatprep.subr.mxu0 0.0
        %4680 = vmatpush1.msra.mxu0 0.0
        %4681 = vmatprep.subr.mxu0 0.0
        %4682 = vmatpush1.msra.mxu0 0.0
        %4683 = vmatprep.subr.mxu0 0.0
        %4684 = vmatpush1.msra.mxu0 0.0
        %4685 = vmatprep.subr.mxu0 0.0
        %4686 = vmatpush1.msra.mxu0 0.0
        %4687 = vmatprep.subr.mxu0 0.0
        %4688 = vmatpush1.msra.mxu0 0.0
        %4689 = vmatprep.subr.mxu0 0.0
        %4690 = vmatpush1.msra.mxu0 0.0
        %4691 = vmatprep.subr.mxu0 0.0
        %4692 = vmatpush1.msra.mxu0 0.0
        %4693 = vmatprep.subr.mxu0 0.0
        %4694 = vmatpush1.msra.mxu0 0.0
        %4695 = vmatprep.subr.mxu0 0.0
        %4696 = vmatpush1.msra.mxu0 0.0
        %4697 = vmatprep.subr.mxu0 0.0
        %4698 = vmatpush1.msra.mxu0 0.0
        %4699 = vmatprep.subr.mxu0 0.0
        %4700 = vmatpush1.msra.mxu0 0.0
        %4701 = vmatprep.mubr.f32.mxu0 0.0
        %4702 = vmatmul.mubr.f32.gmra.mrb[0].mxu0 %v4406
        %v4703 = vpop.f32.mrb[0].mxu0
        %v4704 = vadd.f32 0.0, %v4703
        %v4705 = vpop.f32.mrb[0].mxu0
        %v4706 = vadd.f32 0.0, %v4705
        %4707 = vdwg.mxu0
        %v4708 = vadd.f32 %v4354, %v4491
        %v4709 = vadd.f32 %v4355, %v4493
        %v4710 = vadd.f32 %v4356, %v4562
        %v4711 = vadd.f32 %v4357, %v4564
        %v4712 = vadd.f32 %v4358, %v4633
        %v4713 = vadd.f32 %v4359, %v4635
        %v4714 = vadd.f32 %v4360, %v4704
        %v4715 = vadd.f32 %v4361, %v4706
        %s4716 = scalar_lea.vmem %s1, 104
        %v4717 = vld [vmem:[%s4716] sm:$0xff]
        %v4718 = vld [vmem:[%s168] sm:$0xff]
        %v4719 = vld [vmem:[%s168 + $0x8] sm:$0xff]
        %v4720 = vld [vmem:[%s168 + $0x10] sm:$0xff]
        %v4721 = vld [vmem:[%s168 + $0x18] sm:$0xff]
        %v4722 = vld [vmem:[%s168 + $0x20] sm:$0xf]
        %v4728 = vcombine.high %v4718, %v4718
        %v4729 = vcombine.high %v4719, %v4719
        %v4730 = vcombine.high %v4720, %v4720
        %v4731 = vcombine.high %v4721, %v4721
        %4732 = vrot.lane.b32.xlu0 %v4718, 17
        %v4733 = vpop.permute.xlu0 %4732
        %4734 = vrot.lane.b32.xlu0 %v4728, 17
        %v4735 = vpop.permute.xlu0 %4734
        %4736 = vrot.lane.b32.xlu0 %v4719, 17
        %v4737 = vpop.permute.xlu0 %4736
        %4738 = vrot.lane.b32.xlu0 %v4729, 17
        %v4739 = vpop.permute.xlu0 %4738
        %4740 = vrot.lane.b32.xlu0 %v4720, 17
        %v4741 = vpop.permute.xlu0 %4740
        %4742 = vrot.lane.b32.xlu0 %v4730, 17
        %v4743 = vpop.permute.xlu0 %4742
        %4744 = vrot.lane.b32.xlu0 %v4721, 17
        %v4745 = vpop.permute.xlu0 %4744
        %4746 = vrot.lane.b32.xlu0 %v4731, 17
        %v4747 = vpop.permute.xlu0 %4746
        %4748 = vrot.lane.b32.xlu0 %v4722, 17
        %v4749 = vpop.permute.xlu0 %4748
        %vm4750 = vcmask 138240
        %v4751 = vsel %vm4750, %v4733, %v4735
        %v4752 = vsel %vm4750, %v4735, %v4737
        %v4753 = vsel %vm4750, %v4737, %v4739
        %v4754 = vsel %vm4750, %v4739, %v4741
        %v4755 = vsel %vm4750, %v4741, %v4743
        %v4756 = vsel %vm4750, %v4743, %v4745
        %v4757 = vsel %vm4750, %v4745, %v4747
        %v4758 = vsel %vm4750, %v4747, %v4749
        %v4760 = vsel %vm214, %v4717, 0
        %v4762 = vsel %vm218, %v4751, 0
        %v4764 = vsel %vm218, %v4752, 0
        %v4766 = vsel %vm218, %v4753, 0
        %v4768 = vsel %vm218, %v4754, 0
        %v4770 = vsel %vm218, %v4755, 0
        %v4772 = vsel %vm218, %v4756, 0
        %v4774 = vsel %vm218, %v4757, 0
        %v4776 = vsel %vm218, %v4758, 0
        %4778 = vmatprep.subr.mxu0 %v4764
        %4779 = vmatpush1.msra.mxu0 %v4762
        %4780 = vmatprep.subr.mxu0 0.0
        %4781 = vmatpush1.msra.mxu0 0.0
        %4782 = vmatprep.subr.mxu0 0.0
        %4783 = vmatpush1.msra.mxu0 0.0
        %4784 = vmatprep.subr.mxu0 0.0
        %4785 = vmatpush1.msra.mxu0 0.0
        %4786 = vmatprep.subr.mxu0 0.0
        %4787 = vmatpush1.msra.mxu0 0.0
        %4788 = vmatprep.subr.mxu0 0.0
        %4789 = vmatpush1.msra.mxu0 0.0
        %4790 = vmatprep.subr.mxu0 0.0
        %4791 = vmatpush1.msra.mxu0 0.0
        %4792 = vmatprep.subr.mxu0 0.0
        %4793 = vmatpush1.msra.mxu0 0.0
        %4794 = vmatprep.subr.mxu0 0.0
        %4795 = vmatpush1.msra.mxu0 0.0
        %4796 = vmatprep.subr.mxu0 0.0
        %4797 = vmatpush1.msra.mxu0 0.0
        %4798 = vmatprep.subr.mxu0 0.0
        %4799 = vmatpush1.msra.mxu0 0.0
        %4800 = vmatprep.subr.mxu0 0.0
        %4801 = vmatpush1.msra.mxu0 0.0
        %4802 = vmatprep.subr.mxu0 0.0
        %4803 = vmatpush1.msra.mxu0 0.0
        %4804 = vmatprep.subr.mxu0 0.0
        %4805 = vmatpush1.msra.mxu0 0.0
        %4806 = vmatprep.subr.mxu0 0.0
        %4807 = vmatpush1.msra.mxu0 0.0
        %4808 = vmatprep.subr.mxu0 0.0
        %4809 = vmatpush1.msra.mxu0 0.0
        %4810 = vmatprep.subr.mxu0 0.0
        %4811 = vmatpush1.msra.mxu0 0.0
        %4812 = vmatprep.subr.mxu0 0.0
        %4813 = vmatpush1.msra.mxu0 0.0
        %4814 = vmatprep.subr.mxu0 0.0
        %4815 = vmatpush1.msra.mxu0 0.0
        %4816 = vmatprep.subr.mxu0 0.0
        %4817 = vmatpush1.msra.mxu0 0.0
        %4818 = vmatprep.subr.mxu0 0.0
        %4819 = vmatpush1.msra.mxu0 0.0
        %4820 = vmatprep.subr.mxu0 0.0
        %4821 = vmatpush1.msra.mxu0 0.0
        %4822 = vmatprep.subr.mxu0 0.0
        %4823 = vmatpush1.msra.mxu0 0.0
        %4824 = vmatprep.subr.mxu0 0.0
        %4825 = vmatpush1.msra.mxu0 0.0
        %4826 = vmatprep.subr.mxu0 0.0
        %4827 = vmatpush1.msra.mxu0 0.0
        %4828 = vmatprep.subr.mxu0 0.0
        %4829 = vmatpush1.msra.mxu0 0.0
        %4830 = vmatprep.subr.mxu0 0.0
        %4831 = vmatpush1.msra.mxu0 0.0
        %4832 = vmatprep.subr.mxu0 0.0
        %4833 = vmatpush1.msra.mxu0 0.0
        %4834 = vmatprep.subr.mxu0 0.0
        %4835 = vmatpush1.msra.mxu0 0.0
        %4836 = vmatprep.subr.mxu0 0.0
        %4837 = vmatpush1.msra.mxu0 0.0
        %4838 = vmatprep.subr.mxu0 0.0
        %4839 = vmatpush1.msra.mxu0 0.0
        %4840 = vmatprep.subr.mxu0 0.0
        %4841 = vmatpush1.msra.mxu0 0.0
        %4842 = vmatprep.mubr.f32.mxu0 0.0
        %4843 = vmatmul.mubr.f32.gmra.mrb[0].mxu0 %v4760
        %v4844 = vpop.f32.mrb[0].mxu0
        %v4845 = vadd.f32 0.0, %v4844
        %v4846 = vpop.f32.mrb[0].mxu0
        %v4847 = vadd.f32 0.0, %v4846
        %4848 = vdwg.mxu0
        %4849 = vmatprep.subr.mxu0 %v4768
        %4850 = vmatpush1.msra.mxu0 %v4766
        %4851 = vmatprep.subr.mxu0 0.0
        %4852 = vmatpush1.msra.mxu0 0.0
        %4853 = vmatprep.subr.mxu0 0.0
        %4854 = vmatpush1.msra.mxu0 0.0
        %4855 = vmatprep.subr.mxu0 0.0
        %4856 = vmatpush1.msra.mxu0 0.0
        %4857 = vmatprep.subr.mxu0 0.0
        %4858 = vmatpush1.msra.mxu0 0.0
        %4859 = vmatprep.subr.mxu0 0.0
        %4860 = vmatpush1.msra.mxu0 0.0
        %4861 = vmatprep.subr.mxu0 0.0
        %4862 = vmatpush1.msra.mxu0 0.0
        %4863 = vmatprep.subr.mxu0 0.0
        %4864 = vmatpush1.msra.mxu0 0.0
        %4865 = vmatprep.subr.mxu0 0.0
        %4866 = vmatpush1.msra.mxu0 0.0
        %4867 = vmatprep.subr.mxu0 0.0
        %4868 = vmatpush1.msra.mxu0 0.0
        %4869 = vmatprep.subr.mxu0 0.0
        %4870 = vmatpush1.msra.mxu0 0.0
        %4871 = vmatprep.subr.mxu0 0.0
        %4872 = vmatpush1.msra.mxu0 0.0
        %4873 = vmatprep.subr.mxu0 0.0
        %4874 = vmatpush1.msra.mxu0 0.0
        %4875 = vmatprep.subr.mxu0 0.0
        %4876 = vmatpush1.msra.mxu0 0.0
        %4877 = vmatprep.subr.mxu0 0.0
        %4878 = vmatpush1.msra.mxu0 0.0
        %4879 = vmatprep.subr.mxu0 0.0
        %4880 = vmatpush1.msra.mxu0 0.0
        %4881 = vmatprep.subr.mxu0 0.0
        %4882 = vmatpush1.msra.mxu0 0.0
        %4883 = vmatprep.subr.mxu0 0.0
        %4884 = vmatpush1.msra.mxu0 0.0
        %4885 = vmatprep.subr.mxu0 0.0
        %4886 = vmatpush1.msra.mxu0 0.0
        %4887 = vmatprep.subr.mxu0 0.0
        %4888 = vmatpush1.msra.mxu0 0.0
        %4889 = vmatprep.subr.mxu0 0.0
        %4890 = vmatpush1.msra.mxu0 0.0
        %4891 = vmatprep.subr.mxu0 0.0
        %4892 = vmatpush1.msra.mxu0 0.0
        %4893 = vmatprep.subr.mxu0 0.0
        %4894 = vmatpush1.msra.mxu0 0.0
        %4895 = vmatprep.subr.mxu0 0.0
        %4896 = vmatpush1.msra.mxu0 0.0
        %4897 = vmatprep.subr.mxu0 0.0
        %4898 = vmatpush1.msra.mxu0 0.0
        %4899 = vmatprep.subr.mxu0 0.0
        %4900 = vmatpush1.msra.mxu0 0.0
        %4901 = vmatprep.subr.mxu0 0.0
        %4902 = vmatpush1.msra.mxu0 0.0
        %4903 = vmatprep.subr.mxu0 0.0
        %4904 = vmatpush1.msra.mxu0 0.0
        %4905 = vmatprep.subr.mxu0 0.0
        %4906 = vmatpush1.msra.mxu0 0.0
        %4907 = vmatprep.subr.mxu0 0.0
        %4908 = vmatpush1.msra.mxu0 0.0
        %4909 = vmatprep.subr.mxu0 0.0
        %4910 = vmatpush1.msra.mxu0 0.0
        %4911 = vmatprep.subr.mxu0 0.0
        %4912 = vmatpush1.msra.mxu0 0.0
        %4913 = vmatprep.mubr.f32.mxu0 0.0
        %4914 = vmatmul.mubr.f32.gmra.mrb[0].mxu0 %v4760
        %v4915 = vpop.f32.mrb[0].mxu0
        %v4916 = vadd.f32 0.0, %v4915
        %v4917 = vpop.f32.mrb[0].mxu0
        %v4918 = vadd.f32 0.0, %v4917
        %4919 = vdwg.mxu0
        %4920 = vmatprep.subr.mxu0 %v4772
        %4921 = vmatpush1.msra.mxu0 %v4770
        %4922 = vmatprep.subr.mxu0 0.0
        %4923 = vmatpush1.msra.mxu0 0.0
        %4924 = vmatprep.subr.mxu0 0.0
        %4925 = vmatpush1.msra.mxu0 0.0
        %4926 = vmatprep.subr.mxu0 0.0
        %4927 = vmatpush1.msra.mxu0 0.0
        %4928 = vmatprep.subr.mxu0 0.0
        %4929 = vmatpush1.msra.mxu0 0.0
        %4930 = vmatprep.subr.mxu0 0.0
        %4931 = vmatpush1.msra.mxu0 0.0
        %4932 = vmatprep.subr.mxu0 0.0
        %4933 = vmatpush1.msra.mxu0 0.0
        %4934 = vmatprep.subr.mxu0 0.0
        %4935 = vmatpush1.msra.mxu0 0.0
        %4936 = vmatprep.subr.mxu0 0.0
        %4937 = vmatpush1.msra.mxu0 0.0
        %4938 = vmatprep.subr.mxu0 0.0
        %4939 = vmatpush1.msra.mxu0 0.0
        %4940 = vmatprep.subr.mxu0 0.0
        %4941 = vmatpush1.msra.mxu0 0.0
        %4942 = vmatprep.subr.mxu0 0.0
        %4943 = vmatpush1.msra.mxu0 0.0
        %4944 = vmatprep.subr.mxu0 0.0
        %4945 = vmatpush1.msra.mxu0 0.0
        %4946 = vmatprep.subr.mxu0 0.0
        %4947 = vmatpush1.msra.mxu0 0.0
        %4948 = vmatprep.subr.mxu0 0.0
        %4949 = vmatpush1.msra.mxu0 0.0
        %4950 = vmatprep.subr.mxu0 0.0
        %4951 = vmatpush1.msra.mxu0 0.0
        %4952 = vmatprep.subr.mxu0 0.0
        %4953 = vmatpush1.msra.mxu0 0.0
        %4954 = vmatprep.subr.mxu0 0.0
        %4955 = vmatpush1.msra.mxu0 0.0
        %4956 = vmatprep.subr.mxu0 0.0
        %4957 = vmatpush1.msra.mxu0 0.0
        %4958 = vmatprep.subr.mxu0 0.0
        %4959 = vmatpush1.msra.mxu0 0.0
        %4960 = vmatprep.subr.mxu0 0.0
        %4961 = vmatpush1.msra.mxu0 0.0
        %4962 = vmatprep.subr.mxu0 0.0
        %4963 = vmatpush1.msra.mxu0 0.0
        %4964 = vmatprep.subr.mxu0 0.0
        %4965 = vmatpush1.msra.mxu0 0.0
        %4966 = vmatprep.subr.mxu0 0.0
        %4967 = vmatpush1.msra.mxu0 0.0
        %4968 = vmatprep.subr.mxu0 0.0
        %4969 = vmatpush1.msra.mxu0 0.0
        %4970 = vmatprep.subr.mxu0 0.0
        %4971 = vmatpush1.msra.mxu0 0.0
        %4972 = vmatprep.subr.mxu0 0.0
        %4973 = vmatpush1.msra.mxu0 0.0
        %4974 = vmatprep.subr.mxu0 0.0
        %4975 = vmatpush1.msra.mxu0 0.0
        %4976 = vmatprep.subr.mxu0 0.0
        %4977 = vmatpush1.msra.mxu0 0.0
        %4978 = vmatprep.subr.mxu0 0.0
        %4979 = vmatpush1.msra.mxu0 0.0
        %4980 = vmatprep.subr.mxu0 0.0
        %4981 = vmatpush1.msra.mxu0 0.0
        %4982 = vmatprep.subr.mxu0 0.0
        %4983 = vmatpush1.msra.mxu0 0.0
        %4984 = vmatprep.mubr.f32.mxu0 0.0
        %4985 = vmatmul.mubr.f32.gmra.mrb[0].mxu0 %v4760
        %v4986 = vpop.f32.mrb[0].mxu0
        %v4987 = vadd.f32 0.0, %v4986
        %v4988 = vpop.f32.mrb[0].mxu0
        %v4989 = vadd.f32 0.0, %v4988
        %4990 = vdwg.mxu0
        %4991 = vmatprep.subr.mxu0 %v4776
        %4992 = vmatpush1.msra.mxu0 %v4774
        %4993 = vmatprep.subr.mxu0 0.0
        %4994 = vmatpush1.msra.mxu0 0.0
        %4995 = vmatprep.subr.mxu0 0.0
        %4996 = vmatpush1.msra.mxu0 0.0
        %4997 = vmatprep.subr.mxu0 0.0
        %4998 = vmatpush1.msra.mxu0 0.0
        %4999 = vmatprep.subr.mxu0 0.0
        %5000 = vmatpush1.msra.mxu0 0.0
        %5001 = vmatprep.subr.mxu0 0.0
        %5002 = vmatpush1.msra.mxu0 0.0
        %5003 = vmatprep.subr.mxu0 0.0
        %5004 = vmatpush1.msra.mxu0 0.0
        %5005 = vmatprep.subr.mxu0 0.0
        %5006 = vmatpush1.msra.mxu0 0.0
        %5007 = vmatprep.subr.mxu0 0.0
        %5008 = vmatpush1.msra.mxu0 0.0
        %5009 = vmatprep.subr.mxu0 0.0
        %5010 = vmatpush1.msra.mxu0 0.0
        %5011 = vmatprep.subr.mxu0 0.0
        %5012 = vmatpush1.msra.mxu0 0.0
        %5013 = vmatprep.subr.mxu0 0.0
        %5014 = vmatpush1.msra.mxu0 0.0
        %5015 = vmatprep.subr.mxu0 0.0
        %5016 = vmatpush1.msra.mxu0 0.0
        %5017 = vmatprep.subr.mxu0 0.0
        %5018 = vmatpush1.msra.mxu0 0.0
        %5019 = vmatprep.subr.mxu0 0.0
        %5020 = vmatpush1.msra.mxu0 0.0
        %5021 = vmatprep.subr.mxu0 0.0
        %5022 = vmatpush1.msra.mxu0 0.0
        %5023 = vmatprep.subr.mxu0 0.0
        %5024 = vmatpush1.msra.mxu0 0.0
        %5025 = vmatprep.subr.mxu0 0.0
        %5026 = vmatpush1.msra.mxu0 0.0
        %5027 = vmatprep.subr.mxu0 0.0
        %5028 = vmatpush1.msra.mxu0 0.0
        %5029 = vmatprep.subr.mxu0 0.0
        %5030 = vmatpush1.msra.mxu0 0.0
        %5031 = vmatprep.subr.mxu0 0.0
        %5032 = vmatpush1.msra.mxu0 0.0
        %5033 = vmatprep.subr.mxu0 0.0
        %5034 = vmatpush1.msra.mxu0 0.0
        %5035 = vmatprep.subr.mxu0 0.0
        %5036 = vmatpush1.msra.mxu0 0.0
        %5037 = vmatprep.subr.mxu0 0.0
        %5038 = vmatpush1.msra.mxu0 0.0
        %5039 = vmatprep.subr.mxu0 0.0
        %5040 = vmatpush1.msra.mxu0 0.0
        %5041 = vmatprep.subr.mxu0 0.0
        %5042 = vmatpush1.msra.mxu0 0.0
        %5043 = vmatprep.subr.mxu0 0.0
        %5044 = vmatpush1.msra.mxu0 0.0
        %5045 = vmatprep.subr.mxu0 0.0
        %5046 = vmatpush1.msra.mxu0 0.0
        %5047 = vmatprep.subr.mxu0 0.0
        %5048 = vmatpush1.msra.mxu0 0.0
        %5049 = vmatprep.subr.mxu0 0.0
        %5050 = vmatpush1.msra.mxu0 0.0
        %5051 = vmatprep.subr.mxu0 0.0
        %5052 = vmatpush1.msra.mxu0 0.0
        %5053 = vmatprep.subr.mxu0 0.0
        %5054 = vmatpush1.msra.mxu0 0.0
        %5055 = vmatprep.mubr.f32.mxu0 0.0
        %5056 = vmatmul.mubr.f32.gmra.mrb[0].mxu0 %v4760
        %v5057 = vpop.f32.mrb[0].mxu0
        %v5058 = vadd.f32 0.0, %v5057
        %v5059 = vpop.f32.mrb[0].mxu0
        %v5060 = vadd.f32 0.0, %v5059
        %5061 = vdwg.mxu0
        %v5062 = vadd.f32 %v4708, %v4845
        %v5063 = vadd.f32 %v4709, %v4847
        %v5064 = vadd.f32 %v4710, %v4916
        %v5065 = vadd.f32 %v4711, %v4918
        %v5066 = vadd.f32 %v4712, %v4987
        %v5067 = vadd.f32 %v4713, %v4989
        %v5068 = vadd.f32 %v4714, %v5058
        %v5069 = vadd.f32 %v4715, %v5060
        %s5070 = scalar_lea.vmem %s1, 112
        %v5071 = vld [vmem:[%s5070] sm:$0xff]
        %v5072 = vld [vmem:[%s168] sm:$0xff]
        %v5073 = vld [vmem:[%s168 + $0x8] sm:$0xff]
        %v5074 = vld [vmem:[%s168 + $0x10] sm:$0xff]
        %v5075 = vld [vmem:[%s168 + $0x18] sm:$0xff]
        %v5076 = vld [vmem:[%s168 + $0x20] sm:$0xf]
        %v5082 = vcombine.high %v5072, %v5072
        %v5083 = vcombine.high %v5073, %v5073
        %v5084 = vcombine.high %v5074, %v5074
        %v5085 = vcombine.high %v5075, %v5075
        %5086 = vrot.lane.b32.xlu0 %v5072, 16
        %v5087 = vpop.permute.xlu0 %5086
        %5088 = vrot.lane.b32.xlu0 %v5082, 16
        %v5089 = vpop.permute.xlu0 %5088
        %5090 = vrot.lane.b32.xlu0 %v5073, 16
        %v5091 = vpop.permute.xlu0 %5090
        %5092 = vrot.lane.b32.xlu0 %v5083, 16
        %v5093 = vpop.permute.xlu0 %5092
        %5094 = vrot.lane.b32.xlu0 %v5074, 16
        %v5095 = vpop.permute.xlu0 %5094
        %5096 = vrot.lane.b32.xlu0 %v5084, 16
        %v5097 = vpop.permute.xlu0 %5096
        %5098 = vrot.lane.b32.xlu0 %v5075, 16
        %v5099 = vpop.permute.xlu0 %5098
        %5100 = vrot.lane.b32.xlu0 %v5085, 16
        %v5101 = vpop.permute.xlu0 %5100
        %5102 = vrot.lane.b32.xlu0 %v5076, 16
        %v5103 = vpop.permute.xlu0 %5102
        %vm5104 = vcmask 130048
        %v5105 = vsel %vm5104, %v5087, %v5089
        %v5106 = vsel %vm5104, %v5089, %v5091
        %v5107 = vsel %vm5104, %v5091, %v5093
        %v5108 = vsel %vm5104, %v5093, %v5095
        %v5109 = vsel %vm5104, %v5095, %v5097
        %v5110 = vsel %vm5104, %v5097, %v5099
        %v5111 = vsel %vm5104, %v5099, %v5101
        %v5112 = vsel %vm5104, %v5101, %v5103
        %v5114 = vsel %vm214, %v5071, 0
        %v5116 = vsel %vm218, %v5105, 0
        %v5118 = vsel %vm218, %v5106, 0
        %v5120 = vsel %vm218, %v5107, 0
        %v5122 = vsel %vm218, %v5108, 0
        %v5124 = vsel %vm218, %v5109, 0
        %v5126 = vsel %vm218, %v5110, 0
        %v5128 = vsel %vm218, %v5111, 0
        %v5130 = vsel %vm218, %v5112, 0
        %5132 = vmatprep.subr.mxu0 %v5118
        %5133 = vmatpush1.msra.mxu0 %v5116
        %5134 = vmatprep.subr.mxu0 0.0
        %5135 = vmatpush1.msra.mxu0 0.0
        %5136 = vmatprep.subr.mxu0 0.0
        %5137 = vmatpush1.msra.mxu0 0.0
        %5138 = vmatprep.subr.mxu0 0.0
        %5139 = vmatpush1.msra.mxu0 0.0
        %5140 = vmatprep.subr.mxu0 0.0
        %5141 = vmatpush1.msra.mxu0 0.0
        %5142 = vmatprep.subr.mxu0 0.0
        %5143 = vmatpush1.msra.mxu0 0.0
        %5144 = vmatprep.subr.mxu0 0.0
        %5145 = vmatpush1.msra.mxu0 0.0
        %5146 = vmatprep.subr.mxu0 0.0
        %5147 = vmatpush1.msra.mxu0 0.0
        %5148 = vmatprep.subr.mxu0 0.0
        %5149 = vmatpush1.msra.mxu0 0.0
        %5150 = vmatprep.subr.mxu0 0.0
        %5151 = vmatpush1.msra.mxu0 0.0
        %5152 = vmatprep.subr.mxu0 0.0
        %5153 = vmatpush1.msra.mxu0 0.0
        %5154 = vmatprep.subr.mxu0 0.0
        %5155 = vmatpush1.msra.mxu0 0.0
        %5156 = vmatprep.subr.mxu0 0.0
        %5157 = vmatpush1.msra.mxu0 0.0
        %5158 = vmatprep.subr.mxu0 0.0
        %5159 = vmatpush1.msra.mxu0 0.0
        %5160 = vmatprep.subr.mxu0 0.0
        %5161 = vmatpush1.msra.mxu0 0.0
        %5162 = vmatprep.subr.mxu0 0.0
        %5163 = vmatpush1.msra.mxu0 0.0
        %5164 = vmatprep.subr.mxu0 0.0
        %5165 = vmatpush1.msra.mxu0 0.0
        %5166 = vmatprep.subr.mxu0 0.0
        %5167 = vmatpush1.msra.mxu0 0.0
        %5168 = vmatprep.subr.mxu0 0.0
        %5169 = vmatpush1.msra.mxu0 0.0
        %5170 = vmatprep.subr.mxu0 0.0
        %5171 = vmatpush1.msra.mxu0 0.0
        %5172 = vmatprep.subr.mxu0 0.0
        %5173 = vmatpush1.msra.mxu0 0.0
        %5174 = vmatprep.subr.mxu0 0.0
        %5175 = vmatpush1.msra.mxu0 0.0
        %5176 = vmatprep.subr.mxu0 0.0
        %5177 = vmatpush1.msra.mxu0 0.0
        %5178 = vmatprep.subr.mxu0 0.0
        %5179 = vmatpush1.msra.mxu0 0.0
        %5180 = vmatprep.subr.mxu0 0.0
        %5181 = vmatpush1.msra.mxu0 0.0
        %5182 = vmatprep.subr.mxu0 0.0
        %5183 = vmatpush1.msra.mxu0 0.0
        %5184 = vmatprep.subr.mxu0 0.0
        %5185 = vmatpush1.msra.mxu0 0.0
        %5186 = vmatprep.subr.mxu0 0.0
        %5187 = vmatpush1.msra.mxu0 0.0
        %5188 = vmatprep.subr.mxu0 0.0
        %5189 = vmatpush1.msra.mxu0 0.0
        %5190 = vmatprep.subr.mxu0 0.0
        %5191 = vmatpush1.msra.mxu0 0.0
        %5192 = vmatprep.subr.mxu0 0.0
        %5193 = vmatpush1.msra.mxu0 0.0
        %5194 = vmatprep.subr.mxu0 0.0
        %5195 = vmatpush1.msra.mxu0 0.0
        %5196 = vmatprep.mubr.f32.mxu0 0.0
        %5197 = vmatmul.mubr.f32.gmra.mrb[0].mxu0 %v5114
        %v5198 = vpop.f32.mrb[0].mxu0
        %v5199 = vadd.f32 0.0, %v5198
        %v5200 = vpop.f32.mrb[0].mxu0
        %v5201 = vadd.f32 0.0, %v5200
        %5202 = vdwg.mxu0
        %5203 = vmatprep.subr.mxu0 %v5122
        %5204 = vmatpush1.msra.mxu0 %v5120
        %5205 = vmatprep.subr.mxu0 0.0
        %5206 = vmatpush1.msra.mxu0 0.0
        %5207 = vmatprep.subr.mxu0 0.0
        %5208 = vmatpush1.msra.mxu0 0.0
        %5209 = vmatprep.subr.mxu0 0.0
        %5210 = vmatpush1.msra.mxu0 0.0
        %5211 = vmatprep.subr.mxu0 0.0
        %5212 = vmatpush1.msra.mxu0 0.0
        %5213 = vmatprep.subr.mxu0 0.0
        %5214 = vmatpush1.msra.mxu0 0.0
        %5215 = vmatprep.subr.mxu0 0.0
        %5216 = vmatpush1.msra.mxu0 0.0
        %5217 = vmatprep.subr.mxu0 0.0
        %5218 = vmatpush1.msra.mxu0 0.0
        %5219 = vmatprep.subr.mxu0 0.0
        %5220 = vmatpush1.msra.mxu0 0.0
        %5221 = vmatprep.subr.mxu0 0.0
        %5222 = vmatpush1.msra.mxu0 0.0
        %5223 = vmatprep.subr.mxu0 0.0
        %5224 = vmatpush1.msra.mxu0 0.0
        %5225 = vmatprep.subr.mxu0 0.0
        %5226 = vmatpush1.msra.mxu0 0.0
        %5227 = vmatprep.subr.mxu0 0.0
        %5228 = vmatpush1.msra.mxu0 0.0
        %5229 = vmatprep.subr.mxu0 0.0
        %5230 = vmatpush1.msra.mxu0 0.0
        %5231 = vmatprep.subr.mxu0 0.0
        %5232 = vmatpush1.msra.mxu0 0.0
        %5233 = vmatprep.subr.mxu0 0.0
        %5234 = vmatpush1.msra.mxu0 0.0
        %5235 = vmatprep.subr.mxu0 0.0
        %5236 = vmatpush1.msra.mxu0 0.0
        %5237 = vmatprep.subr.mxu0 0.0
        %5238 = vmatpush1.msra.mxu0 0.0
        %5239 = vmatprep.subr.mxu0 0.0
        %5240 = vmatpush1.msra.mxu0 0.0
        %5241 = vmatprep.subr.mxu0 0.0
        %5242 = vmatpush1.msra.mxu0 0.0
        %5243 = vmatprep.subr.mxu0 0.0
        %5244 = vmatpush1.msra.mxu0 0.0
        %5245 = vmatprep.subr.mxu0 0.0
        %5246 = vmatpush1.msra.mxu0 0.0
        %5247 = vmatprep.subr.mxu0 0.0
        %5248 = vmatpush1.msra.mxu0 0.0
        %5249 = vmatprep.subr.mxu0 0.0
        %5250 = vmatpush1.msra.mxu0 0.0
        %5251 = vmatprep.subr.mxu0 0.0
        %5252 = vmatpush1.msra.mxu0 0.0
        %5253 = vmatprep.subr.mxu0 0.0
        %5254 = vmatpush1.msra.mxu0 0.0
        %5255 = vmatprep.subr.mxu0 0.0
        %5256 = vmatpush1.msra.mxu0 0.0
        %5257 = vmatprep.subr.mxu0 0.0
        %5258 = vmatpush1.msra.mxu0 0.0
        %5259 = vmatprep.subr.mxu0 0.0
        %5260 = vmatpush1.msra.mxu0 0.0
        %5261 = vmatprep.subr.mxu0 0.0
        %5262 = vmatpush1.msra.mxu0 0.0
        %5263 = vmatprep.subr.mxu0 0.0
        %5264 = vmatpush1.msra.mxu0 0.0
        %5265 = vmatprep.subr.mxu0 0.0
        %5266 = vmatpush1.msra.mxu0 0.0
        %5267 = vmatprep.mubr.f32.mxu0 0.0
        %5268 = vmatmul.mubr.f32.gmra.mrb[0].mxu0 %v5114
        %v5269 = vpop.f32.mrb[0].mxu0
        %v5270 = vadd.f32 0.0, %v5269
        %v5271 = vpop.f32.mrb[0].mxu0
        %v5272 = vadd.f32 0.0, %v5271
        %5273 = vdwg.mxu0
        %5274 = vmatprep.subr.mxu0 %v5126
        %5275 = vmatpush1.msra.mxu0 %v5124
        %5276 = vmatprep.subr.mxu0 0.0
        %5277 = vmatpush1.msra.mxu0 0.0
        %5278 = vmatprep.subr.mxu0 0.0
        %5279 = vmatpush1.msra.mxu0 0.0
        %5280 = vmatprep.subr.mxu0 0.0
        %5281 = vmatpush1.msra.mxu0 0.0
        %5282 = vmatprep.subr.mxu0 0.0
        %5283 = vmatpush1.msra.mxu0 0.0
        %5284 = vmatprep.subr.mxu0 0.0
        %5285 = vmatpush1.msra.mxu0 0.0
        %5286 = vmatprep.subr.mxu0 0.0
        %5287 = vmatpush1.msra.mxu0 0.0
        %5288 = vmatprep.subr.mxu0 0.0
        %5289 = vmatpush1.msra.mxu0 0.0
        %5290 = vmatprep.subr.mxu0 0.0
        %5291 = vmatpush1.msra.mxu0 0.0
        %5292 = vmatprep.subr.mxu0 0.0
        %5293 = vmatpush1.msra.mxu0 0.0
        %5294 = vmatprep.subr.mxu0 0.0
        %5295 = vmatpush1.msra.mxu0 0.0
        %5296 = vmatprep.subr.mxu0 0.0
        %5297 = vmatpush1.msra.mxu0 0.0
        %5298 = vmatprep.subr.mxu0 0.0
        %5299 = vmatpush1.msra.mxu0 0.0
        %5300 = vmatprep.subr.mxu0 0.0
        %5301 = vmatpush1.msra.mxu0 0.0
        %5302 = vmatprep.subr.mxu0 0.0
        %5303 = vmatpush1.msra.mxu0 0.0
        %5304 = vmatprep.subr.mxu0 0.0
        %5305 = vmatpush1.msra.mxu0 0.0
        %5306 = vmatprep.subr.mxu0 0.0
        %5307 = vmatpush1.msra.mxu0 0.0
        %5308 = vmatprep.subr.mxu0 0.0
        %5309 = vmatpush1.msra.mxu0 0.0
        %5310 = vmatprep.subr.mxu0 0.0
        %5311 = vmatpush1.msra.mxu0 0.0
        %5312 = vmatprep.subr.mxu0 0.0
        %5313 = vmatpush1.msra.mxu0 0.0
        %5314 = vmatprep.subr.mxu0 0.0
        %5315 = vmatpush1.msra.mxu0 0.0
        %5316 = vmatprep.subr.mxu0 0.0
        %5317 = vmatpush1.msra.mxu0 0.0
        %5318 = vmatprep.subr.mxu0 0.0
        %5319 = vmatpush1.msra.mxu0 0.0
        %5320 = vmatprep.subr.mxu0 0.0
        %5321 = vmatpush1.msra.mxu0 0.0
        %5322 = vmatprep.subr.mxu0 0.0
        %5323 = vmatpush1.msra.mxu0 0.0
        %5324 = vmatprep.subr.mxu0 0.0
        %5325 = vmatpush1.msra.mxu0 0.0
        %5326 = vmatprep.subr.mxu0 0.0
        %5327 = vmatpush1.msra.mxu0 0.0
        %5328 = vmatprep.subr.mxu0 0.0
        %5329 = vmatpush1.msra.mxu0 0.0
        %5330 = vmatprep.subr.mxu0 0.0
        %5331 = vmatpush1.msra.mxu0 0.0
        %5332 = vmatprep.subr.mxu0 0.0
        %5333 = vmatpush1.msra.mxu0 0.0
        %5334 = vmatprep.subr.mxu0 0.0
        %5335 = vmatpush1.msra.mxu0 0.0
        %5336 = vmatprep.subr.mxu0 0.0
        %5337 = vmatpush1.msra.mxu0 0.0
        %5338 = vmatprep.mubr.f32.mxu0 0.0
        %5339 = vmatmul.mubr.f32.gmra.mrb[0].mxu0 %v5114
        %v5340 = vpop.f32.mrb[0].mxu0
        %v5341 = vadd.f32 0.0, %v5340
        %v5342 = vpop.f32.mrb[0].mxu0
        %v5343 = vadd.f32 0.0, %v5342
        %5344 = vdwg.mxu0
        %5345 = vmatprep.subr.mxu0 %v5130
        %5346 = vmatpush1.msra.mxu0 %v5128
        %5347 = vmatprep.subr.mxu0 0.0
        %5348 = vmatpush1.msra.mxu0 0.0
        %5349 = vmatprep.subr.mxu0 0.0
        %5350 = vmatpush1.msra.mxu0 0.0
        %5351 = vmatprep.subr.mxu0 0.0
        %5352 = vmatpush1.msra.mxu0 0.0
        %5353 = vmatprep.subr.mxu0 0.0
        %5354 = vmatpush1.msra.mxu0 0.0
        %5355 = vmatprep.subr.mxu0 0.0
        %5356 = vmatpush1.msra.mxu0 0.0
        %5357 = vmatprep.subr.mxu0 0.0
        %5358 = vmatpush1.msra.mxu0 0.0
        %5359 = vmatprep.subr.mxu0 0.0
        %5360 = vmatpush1.msra.mxu0 0.0
        %5361 = vmatprep.subr.mxu0 0.0
        %5362 = vmatpush1.msra.mxu0 0.0
        %5363 = vmatprep.subr.mxu0 0.0
        %5364 = vmatpush1.msra.mxu0 0.0
        %5365 = vmatprep.subr.mxu0 0.0
        %5366 = vmatpush1.msra.mxu0 0.0
        %5367 = vmatprep.subr.mxu0 0.0
        %5368 = vmatpush1.msra.mxu0 0.0
        %5369 = vmatprep.subr.mxu0 0.0
        %5370 = vmatpush1.msra.mxu0 0.0
        %5371 = vmatprep.subr.mxu0 0.0
        %5372 = vmatpush1.msra.mxu0 0.0
        %5373 = vmatprep.subr.mxu0 0.0
        %5374 = vmatpush1.msra.mxu0 0.0
        %5375 = vmatprep.subr.mxu0 0.0
        %5376 = vmatpush1.msra.mxu0 0.0
        %5377 = vmatprep.subr.mxu0 0.0
        %5378 = vmatpush1.msra.mxu0 0.0
        %5379 = vmatprep.subr.mxu0 0.0
        %5380 = vmatpush1.msra.mxu0 0.0
        %5381 = vmatprep.subr.mxu0 0.0
        %5382 = vmatpush1.msra.mxu0 0.0
        %5383 = vmatprep.subr.mxu0 0.0
        %5384 = vmatpush1.msra.mxu0 0.0
        %5385 = vmatprep.subr.mxu0 0.0
        %5386 = vmatpush1.msra.mxu0 0.0
        %5387 = vmatprep.subr.mxu0 0.0
        %5388 = vmatpush1.msra.mxu0 0.0
        %5389 = vmatprep.subr.mxu0 0.0
        %5390 = vmatpush1.msra.mxu0 0.0
        %5391 = vmatprep.subr.mxu0 0.0
        %5392 = vmatpush1.msra.mxu0 0.0
        %5393 = vmatprep.subr.mxu0 0.0
        %5394 = vmatpush1.msra.mxu0 0.0
        %5395 = vmatprep.subr.mxu0 0.0
        %5396 = vmatpush1.msra.mxu0 0.0
        %5397 = vmatprep.subr.mxu0 0.0
        %5398 = vmatpush1.msra.mxu0 0.0
        %5399 = vmatprep.subr.mxu0 0.0
        %5400 = vmatpush1.msra.mxu0 0.0
        %5401 = vmatprep.subr.mxu0 0.0
        %5402 = vmatpush1.msra.mxu0 0.0
        %5403 = vmatprep.subr.mxu0 0.0
        %5404 = vmatpush1.msra.mxu0 0.0
        %5405 = vmatprep.subr.mxu0 0.0
        %5406 = vmatpush1.msra.mxu0 0.0
        %5407 = vmatprep.subr.mxu0 0.0
        %5408 = vmatpush1.msra.mxu0 0.0
        %5409 = vmatprep.mubr.f32.mxu0 0.0
        %5410 = vmatmul.mubr.f32.gmra.mrb[0].mxu0 %v5114
        %v5411 = vpop.f32.mrb[0].mxu0
        %v5412 = vadd.f32 0.0, %v5411
        %v5413 = vpop.f32.mrb[0].mxu0
        %v5414 = vadd.f32 0.0, %v5413
        %5415 = vdwg.mxu0
        %v5416 = vadd.f32 %v5062, %v5199
        %v5417 = vadd.f32 %v5063, %v5201
        %v5418 = vadd.f32 %v5064, %v5270
        %v5419 = vadd.f32 %v5065, %v5272
        %v5420 = vadd.f32 %v5066, %v5341
        %v5421 = vadd.f32 %v5067, %v5343
        %v5422 = vadd.f32 %v5068, %v5412
        %v5423 = vadd.f32 %v5069, %v5414
        %s5424 = scalar_lea.vmem %s1, 120
        %v5425 = vld [vmem:[%s5424] sm:$0xff]
        %v5426 = vld [vmem:[%s168] sm:$0xff]
        %v5427 = vld [vmem:[%s168 + $0x8] sm:$0xff]
        %v5428 = vld [vmem:[%s168 + $0x10] sm:$0xff]
        %v5429 = vld [vmem:[%s168 + $0x18] sm:$0xff]
        %v5430 = vld [vmem:[%s168 + $0x20] sm:$0xf]
        %v5436 = vcombine.high %v5426, %v5426
        %v5437 = vcombine.high %v5427, %v5427
        %v5438 = vcombine.high %v5428, %v5428
        %v5439 = vcombine.high %v5429, %v5429
        %5440 = vrot.lane.b32.xlu0 %v5426, 8
        %v5441 = vpop.permute.xlu0 %5440
        %5442 = vrot.lane.b32.xlu0 %v5436, 8
        %v5443 = vpop.permute.xlu0 %5442
        %5444 = vrot.lane.b32.xlu0 %v5427, 8
        %v5445 = vpop.permute.xlu0 %5444
        %5446 = vrot.lane.b32.xlu0 %v5437, 8
        %v5447 = vpop.permute.xlu0 %5446
        %5448 = vrot.lane.b32.xlu0 %v5428, 8
        %v5449 = vpop.permute.xlu0 %5448
        %5450 = vrot.lane.b32.xlu0 %v5438, 8
        %v5451 = vpop.permute.xlu0 %5450
        %5452 = vrot.lane.b32.xlu0 %v5429, 8
        %v5453 = vpop.permute.xlu0 %5452
        %5454 = vrot.lane.b32.xlu0 %v5439, 8
        %v5455 = vpop.permute.xlu0 %5454
        %5456 = vrot.lane.b32.xlu0 %v5430, 8
        %v5457 = vpop.permute.xlu0 %5456
        %vm5458 = vcmask 64512
        %v5459 = vsel %vm5458, %v5441, %v5443
        %v5460 = vsel %vm5458, %v5443, %v5445
        %v5461 = vsel %vm5458, %v5445, %v5447
        %v5462 = vsel %vm5458, %v5447, %v5449
        %v5463 = vsel %vm5458, %v5449, %v5451
        %v5464 = vsel %vm5458, %v5451, %v5453
        %v5465 = vsel %vm5458, %v5453, %v5455
        %v5466 = vsel %vm5458, %v5455, %v5457
        %v5468 = vsel %vm214, %v5425, 0
        %v5470 = vsel %vm218, %v5459, 0
        %v5472 = vsel %vm218, %v5460, 0
        %v5474 = vsel %vm218, %v5461, 0
        %v5476 = vsel %vm218, %v5462, 0
        %v5478 = vsel %vm218, %v5463, 0
        %v5480 = vsel %vm218, %v5464, 0
        %v5482 = vsel %vm218, %v5465, 0
        %v5484 = vsel %vm218, %v5466, 0
        %5486 = vmatprep.subr.mxu0 %v5472
        %5487 = vmatpush1.msra.mxu0 %v5470
        %5488 = vmatprep.subr.mxu0 0.0
        %5489 = vmatpush1.msra.mxu0 0.0
        %5490 = vmatprep.subr.mxu0 0.0
        %5491 = vmatpush1.msra.mxu0 0.0
        %5492 = vmatprep.subr.mxu0 0.0
        %5493 = vmatpush1.msra.mxu0 0.0
        %5494 = vmatprep.subr.mxu0 0.0
        %5495 = vmatpush1.msra.mxu0 0.0
        %5496 = vmatprep.subr.mxu0 0.0
        %5497 = vmatpush1.msra.mxu0 0.0
        %5498 = vmatprep.subr.mxu0 0.0
        %5499 = vmatpush1.msra.mxu0 0.0
        %5500 = vmatprep.subr.mxu0 0.0
        %5501 = vmatpush1.msra.mxu0 0.0
        %5502 = vmatprep.subr.mxu0 0.0
        %5503 = vmatpush1.msra.mxu0 0.0
        %5504 = vmatprep.subr.mxu0 0.0
        %5505 = vmatpush1.msra.mxu0 0.0
        %5506 = vmatprep.subr.mxu0 0.0
        %5507 = vmatpush1.msra.mxu0 0.0
        %5508 = vmatprep.subr.mxu0 0.0
        %5509 = vmatpush1.msra.mxu0 0.0
        %5510 = vmatprep.subr.mxu0 0.0
        %5511 = vmatpush1.msra.mxu0 0.0
        %5512 = vmatprep.subr.mxu0 0.0
        %5513 = vmatpush1.msra.mxu0 0.0
        %5514 = vmatprep.subr.mxu0 0.0
        %5515 = vmatpush1.msra.mxu0 0.0
        %5516 = vmatprep.subr.mxu0 0.0
        %5517 = vmatpush1.msra.mxu0 0.0
        %5518 = vmatprep.subr.mxu0 0.0
        %5519 = vmatpush1.msra.mxu0 0.0
        %5520 = vmatprep.subr.mxu0 0.0
        %5521 = vmatpush1.msra.mxu0 0.0
        %5522 = vmatprep.subr.mxu0 0.0
        %5523 = vmatpush1.msra.mxu0 0.0
        %5524 = vmatprep.subr.mxu0 0.0
        %5525 = vmatpush1.msra.mxu0 0.0
        %5526 = vmatprep.subr.mxu0 0.0
        %5527 = vmatpush1.msra.mxu0 0.0
        %5528 = vmatprep.subr.mxu0 0.0
        %5529 = vmatpush1.msra.mxu0 0.0
        %5530 = vmatprep.subr.mxu0 0.0
        %5531 = vmatpush1.msra.mxu0 0.0
        %5532 = vmatprep.subr.mxu0 0.0
        %5533 = vmatpush1.msra.mxu0 0.0
        %5534 = vmatprep.subr.mxu0 0.0
        %5535 = vmatpush1.msra.mxu0 0.0
        %5536 = vmatprep.subr.mxu0 0.0
        %5537 = vmatpush1.msra.mxu0 0.0
        %5538 = vmatprep.subr.mxu0 0.0
        %5539 = vmatpush1.msra.mxu0 0.0
        %5540 = vmatprep.subr.mxu0 0.0
        %5541 = vmatpush1.msra.mxu0 0.0
        %5542 = vmatprep.subr.mxu0 0.0
        %5543 = vmatpush1.msra.mxu0 0.0
        %5544 = vmatprep.subr.mxu0 0.0
        %5545 = vmatpush1.msra.mxu0 0.0
        %5546 = vmatprep.subr.mxu0 0.0
        %5547 = vmatpush1.msra.mxu0 0.0
        %5548 = vmatprep.subr.mxu0 0.0
        %5549 = vmatpush1.msra.mxu0 0.0
        %5550 = vmatprep.mubr.f32.mxu0 0.0
        %5551 = vmatmul.mubr.f32.gmra.mrb[0].mxu0 %v5468
        %v5552 = vpop.f32.mrb[0].mxu0
        %v5553 = vadd.f32 0.0, %v5552
        %v5554 = vpop.f32.mrb[0].mxu0
        %v5555 = vadd.f32 0.0, %v5554
        %5556 = vdwg.mxu0
        %5557 = vmatprep.subr.mxu0 %v5476
        %5558 = vmatpush1.msra.mxu0 %v5474
        %5559 = vmatprep.subr.mxu0 0.0
        %5560 = vmatpush1.msra.mxu0 0.0
        %5561 = vmatprep.subr.mxu0 0.0
        %5562 = vmatpush1.msra.mxu0 0.0
        %5563 = vmatprep.subr.mxu0 0.0
        %5564 = vmatpush1.msra.mxu0 0.0
        %5565 = vmatprep.subr.mxu0 0.0
        %5566 = vmatpush1.msra.mxu0 0.0
        %5567 = vmatprep.subr.mxu0 0.0
        %5568 = vmatpush1.msra.mxu0 0.0
        %5569 = vmatprep.subr.mxu0 0.0
        %5570 = vmatpush1.msra.mxu0 0.0
        %5571 = vmatprep.subr.mxu0 0.0
        %5572 = vmatpush1.msra.mxu0 0.0
        %5573 = vmatprep.subr.mxu0 0.0
        %5574 = vmatpush1.msra.mxu0 0.0
        %5575 = vmatprep.subr.mxu0 0.0
        %5576 = vmatpush1.msra.mxu0 0.0
        %5577 = vmatprep.subr.mxu0 0.0
        %5578 = vmatpush1.msra.mxu0 0.0
        %5579 = vmatprep.subr.mxu0 0.0
        %5580 = vmatpush1.msra.mxu0 0.0
        %5581 = vmatprep.subr.mxu0 0.0
        %5582 = vmatpush1.msra.mxu0 0.0
        %5583 = vmatprep.subr.mxu0 0.0
        %5584 = vmatpush1.msra.mxu0 0.0
        %5585 = vmatprep.subr.mxu0 0.0
        %5586 = vmatpush1.msra.mxu0 0.0
        %5587 = vmatprep.subr.mxu0 0.0
        %5588 = vmatpush1.msra.mxu0 0.0
        %5589 = vmatprep.subr.mxu0 0.0
        %5590 = vmatpush1.msra.mxu0 0.0
        %5591 = vmatprep.subr.mxu0 0.0
        %5592 = vmatpush1.msra.mxu0 0.0
        %5593 = vmatprep.subr.mxu0 0.0
        %5594 = vmatpush1.msra.mxu0 0.0
        %5595 = vmatprep.subr.mxu0 0.0
        %5596 = vmatpush1.msra.mxu0 0.0
        %5597 = vmatprep.subr.mxu0 0.0
        %5598 = vmatpush1.msra.mxu0 0.0
        %5599 = vmatprep.subr.mxu0 0.0
        %5600 = vmatpush1.msra.mxu0 0.0
        %5601 = vmatprep.subr.mxu0 0.0
        %5602 = vmatpush1.msra.mxu0 0.0
        %5603 = vmatprep.subr.mxu0 0.0
        %5604 = vmatpush1.msra.mxu0 0.0
        %5605 = vmatprep.subr.mxu0 0.0
        %5606 = vmatpush1.msra.mxu0 0.0
        %5607 = vmatprep.subr.mxu0 0.0
        %5608 = vmatpush1.msra.mxu0 0.0
        %5609 = vmatprep.subr.mxu0 0.0
        %5610 = vmatpush1.msra.mxu0 0.0
        %5611 = vmatprep.subr.mxu0 0.0
        %5612 = vmatpush1.msra.mxu0 0.0
        %5613 = vmatprep.subr.mxu0 0.0
        %5614 = vmatpush1.msra.mxu0 0.0
        %5615 = vmatprep.subr.mxu0 0.0
        %5616 = vmatpush1.msra.mxu0 0.0
        %5617 = vmatprep.subr.mxu0 0.0
        %5618 = vmatpush1.msra.mxu0 0.0
        %5619 = vmatprep.subr.mxu0 0.0
        %5620 = vmatpush1.msra.mxu0 0.0
        %5621 = vmatprep.mubr.f32.mxu0 0.0
        %5622 = vmatmul.mubr.f32.gmra.mrb[0].mxu0 %v5468
        %v5623 = vpop.f32.mrb[0].mxu0
        %v5624 = vadd.f32 0.0, %v5623
        %v5625 = vpop.f32.mrb[0].mxu0
        %v5626 = vadd.f32 0.0, %v5625
        %5627 = vdwg.mxu0
        %5628 = vmatprep.subr.mxu0 %v5480
        %5629 = vmatpush1.msra.mxu0 %v5478
        %5630 = vmatprep.subr.mxu0 0.0
        %5631 = vmatpush1.msra.mxu0 0.0
        %5632 = vmatprep.subr.mxu0 0.0
        %5633 = vmatpush1.msra.mxu0 0.0
        %5634 = vmatprep.subr.mxu0 0.0
        %5635 = vmatpush1.msra.mxu0 0.0
        %5636 = vmatprep.subr.mxu0 0.0
        %5637 = vmatpush1.msra.mxu0 0.0
        %5638 = vmatprep.subr.mxu0 0.0
        %5639 = vmatpush1.msra.mxu0 0.0
        %5640 = vmatprep.subr.mxu0 0.0
        %5641 = vmatpush1.msra.mxu0 0.0
        %5642 = vmatprep.subr.mxu0 0.0
        %5643 = vmatpush1.msra.mxu0 0.0
        %5644 = vmatprep.subr.mxu0 0.0
        %5645 = vmatpush1.msra.mxu0 0.0
        %5646 = vmatprep.subr.mxu0 0.0
        %5647 = vmatpush1.msra.mxu0 0.0
        %5648 = vmatprep.subr.mxu0 0.0
        %5649 = vmatpush1.msra.mxu0 0.0
        %5650 = vmatprep.subr.mxu0 0.0
        %5651 = vmatpush1.msra.mxu0 0.0
        %5652 = vmatprep.subr.mxu0 0.0
        %5653 = vmatpush1.msra.mxu0 0.0
        %5654 = vmatprep.subr.mxu0 0.0
        %5655 = vmatpush1.msra.mxu0 0.0
        %5656 = vmatprep.subr.mxu0 0.0
        %5657 = vmatpush1.msra.mxu0 0.0
        %5658 = vmatprep.subr.mxu0 0.0
        %5659 = vmatpush1.msra.mxu0 0.0
        %5660 = vmatprep.subr.mxu0 0.0
        %5661 = vmatpush1.msra.mxu0 0.0
        %5662 = vmatprep.subr.mxu0 0.0
        %5663 = vmatpush1.msra.mxu0 0.0
        %5664 = vmatprep.subr.mxu0 0.0
        %5665 = vmatpush1.msra.mxu0 0.0
        %5666 = vmatprep.subr.mxu0 0.0
        %5667 = vmatpush1.msra.mxu0 0.0
        %5668 = vmatprep.subr.mxu0 0.0
        %5669 = vmatpush1.msra.mxu0 0.0
        %5670 = vmatprep.subr.mxu0 0.0
        %5671 = vmatpush1.msra.mxu0 0.0
        %5672 = vmatprep.subr.mxu0 0.0
        %5673 = vmatpush1.msra.mxu0 0.0
        %5674 = vmatprep.subr.mxu0 0.0
        %5675 = vmatpush1.msra.mxu0 0.0
        %5676 = vmatprep.subr.mxu0 0.0
        %5677 = vmatpush1.msra.mxu0 0.0
        %5678 = vmatprep.subr.mxu0 0.0
        %5679 = vmatpush1.msra.mxu0 0.0
        %5680 = vmatprep.subr.mxu0 0.0
        %5681 = vmatpush1.msra.mxu0 0.0
        %5682 = vmatprep.subr.mxu0 0.0
        %5683 = vmatpush1.msra.mxu0 0.0
        %5684 = vmatprep.subr.mxu0 0.0
        %5685 = vmatpush1.msra.mxu0 0.0
        %5686 = vmatprep.subr.mxu0 0.0
        %5687 = vmatpush1.msra.mxu0 0.0
        %5688 = vmatprep.subr.mxu0 0.0
        %5689 = vmatpush1.msra.mxu0 0.0
        %5690 = vmatprep.subr.mxu0 0.0
        %5691 = vmatpush1.msra.mxu0 0.0
        %5692 = vmatprep.mubr.f32.mxu0 0.0
        %5693 = vmatmul.mubr.f32.gmra.mrb[0].mxu0 %v5468
        %v5694 = vpop.f32.mrb[0].mxu0
        %v5695 = vadd.f32 0.0, %v5694
        %v5696 = vpop.f32.mrb[0].mxu0
        %v5697 = vadd.f32 0.0, %v5696
        %5698 = vdwg.mxu0
        %5699 = vmatprep.subr.mxu0 %v5484
        %5700 = vmatpush1.msra.mxu0 %v5482
        %5701 = vmatprep.subr.mxu0 0.0
        %5702 = vmatpush1.msra.mxu0 0.0
        %5703 = vmatprep.subr.mxu0 0.0
        %5704 = vmatpush1.msra.mxu0 0.0
        %5705 = vmatprep.subr.mxu0 0.0
        %5706 = vmatpush1.msra.mxu0 0.0
        %5707 = vmatprep.subr.mxu0 0.0
        %5708 = vmatpush1.msra.mxu0 0.0
        %5709 = vmatprep.subr.mxu0 0.0
        %5710 = vmatpush1.msra.mxu0 0.0
        %5711 = vmatprep.subr.mxu0 0.0
        %5712 = vmatpush1.msra.mxu0 0.0
        %5713 = vmatprep.subr.mxu0 0.0
        %5714 = vmatpush1.msra.mxu0 0.0
        %5715 = vmatprep.subr.mxu0 0.0
        %5716 = vmatpush1.msra.mxu0 0.0
        %5717 = vmatprep.subr.mxu0 0.0
        %5718 = vmatpush1.msra.mxu0 0.0
        %5719 = vmatprep.subr.mxu0 0.0
        %5720 = vmatpush1.msra.mxu0 0.0
        %5721 = vmatprep.subr.mxu0 0.0
        %5722 = vmatpush1.msra.mxu0 0.0
        %5723 = vmatprep.subr.mxu0 0.0
        %5724 = vmatpush1.msra.mxu0 0.0
        %5725 = vmatprep.subr.mxu0 0.0
        %5726 = vmatpush1.msra.mxu0 0.0
        %5727 = vmatprep.subr.mxu0 0.0
        %5728 = vmatpush1.msra.mxu0 0.0
        %5729 = vmatprep.subr.mxu0 0.0
        %5730 = vmatpush1.msra.mxu0 0.0
        %5731 = vmatprep.subr.mxu0 0.0
        %5732 = vmatpush1.msra.mxu0 0.0
        %5733 = vmatprep.subr.mxu0 0.0
        %5734 = vmatpush1.msra.mxu0 0.0
        %5735 = vmatprep.subr.mxu0 0.0
        %5736 = vmatpush1.msra.mxu0 0.0
        %5737 = vmatprep.subr.mxu0 0.0
        %5738 = vmatpush1.msra.mxu0 0.0
        %5739 = vmatprep.subr.mxu0 0.0
        %5740 = vmatpush1.msra.mxu0 0.0
        %5741 = vmatprep.subr.mxu0 0.0
        %5742 = vmatpush1.msra.mxu0 0.0
        %5743 = vmatprep.subr.mxu0 0.0
        %5744 = vmatpush1.msra.mxu0 0.0
        %5745 = vmatprep.subr.mxu0 0.0
        %5746 = vmatpush1.msra.mxu0 0.0
        %5747 = vmatprep.subr.mxu0 0.0
        %5748 = vmatpush1.msra.mxu0 0.0
        %5749 = vmatprep.subr.mxu0 0.0
        %5750 = vmatpush1.msra.mxu0 0.0
        %5751 = vmatprep.subr.mxu0 0.0
        %5752 = vmatpush1.msra.mxu0 0.0
        %5753 = vmatprep.subr.mxu0 0.0
        %5754 = vmatpush1.msra.mxu0 0.0
        %5755 = vmatprep.subr.mxu0 0.0
        %5756 = vmatpush1.msra.mxu0 0.0
        %5757 = vmatprep.subr.mxu0 0.0
        %5758 = vmatpush1.msra.mxu0 0.0
        %5759 = vmatprep.subr.mxu0 0.0
        %5760 = vmatpush1.msra.mxu0 0.0
        %5761 = vmatprep.subr.mxu0 0.0
        %5762 = vmatpush1.msra.mxu0 0.0
        %5763 = vmatprep.mubr.f32.mxu0 0.0
        %5764 = vmatmul.mubr.f32.gmra.mrb[0].mxu0 %v5468
        %v5765 = vpop.f32.mrb[0].mxu0
        %v5766 = vadd.f32 0.0, %v5765
        %v5767 = vpop.f32.mrb[0].mxu0
        %v5768 = vadd.f32 0.0, %v5767
        %5769 = vdwg.mxu0
        %v5770 = vadd.f32 %v5416, %v5553
        %v5771 = vadd.f32 %v5417, %v5555
        %v5772 = vadd.f32 %v5418, %v5624
        %v5773 = vadd.f32 %v5419, %v5626
        %v5774 = vadd.f32 %v5420, %v5695
        %v5775 = vadd.f32 %v5421, %v5697
        %v5776 = vadd.f32 %v5422, %v5766
        %v5777 = vadd.f32 %v5423, %v5768
        %s5778 = scalar_lea.vmem %s1, 128
        %v5779 = vld [vmem:[%s5778] sm:$0xff]
        %v5780 = vld [vmem:[%s168] sm:$0xff]
        %v5781 = vld [vmem:[%s168 + $0x8] sm:$0xff]
        %v5782 = vld [vmem:[%s168 + $0x10] sm:$0xff]
        %v5783 = vld [vmem:[%s168 + $0x18] sm:$0xff]
        %v5784 = vld [vmem:[%s168 + $0x20] sm:$0xf]
        %v5790 = vcombine.high %v5780, %v5780
        %v5791 = vcombine.high %v5781, %v5781
        %v5792 = vcombine.high %v5782, %v5782
        %v5793 = vcombine.high %v5783, %v5783
        %5794 = vrot.lane.b32.xlu0 %v5780, 7
        %v5795 = vpop.permute.xlu0 %5794
        %5796 = vrot.lane.b32.xlu0 %v5790, 7
        %v5797 = vpop.permute.xlu0 %5796
        %5798 = vrot.lane.b32.xlu0 %v5781, 7
        %v5799 = vpop.permute.xlu0 %5798
        %5800 = vrot.lane.b32.xlu0 %v5791, 7
        %v5801 = vpop.permute.xlu0 %5800
        %5802 = vrot.lane.b32.xlu0 %v5782, 7
        %v5803 = vpop.permute.xlu0 %5802
        %5804 = vrot.lane.b32.xlu0 %v5792, 7
        %v5805 = vpop.permute.xlu0 %5804
        %5806 = vrot.lane.b32.xlu0 %v5783, 7
        %v5807 = vpop.permute.xlu0 %5806
        %5808 = vrot.lane.b32.xlu0 %v5793, 7
        %v5809 = vpop.permute.xlu0 %5808
        %5810 = vrot.lane.b32.xlu0 %v5784, 7
        %v5811 = vpop.permute.xlu0 %5810
        %vm5812 = vcmask 56320
        %v5813 = vsel %vm5812, %v5795, %v5797
        %v5814 = vsel %vm5812, %v5797, %v5799
        %v5815 = vsel %vm5812, %v5799, %v5801
        %v5816 = vsel %vm5812, %v5801, %v5803
        %v5817 = vsel %vm5812, %v5803, %v5805
        %v5818 = vsel %vm5812, %v5805, %v5807
        %v5819 = vsel %vm5812, %v5807, %v5809
        %v5820 = vsel %vm5812, %v5809, %v5811
        %v5822 = vsel %vm214, %v5779, 0
        %v5824 = vsel %vm218, %v5813, 0
        %v5826 = vsel %vm218, %v5814, 0
        %v5828 = vsel %vm218, %v5815, 0
        %v5830 = vsel %vm218, %v5816, 0
        %v5832 = vsel %vm218, %v5817, 0
        %v5834 = vsel %vm218, %v5818, 0
        %v5836 = vsel %vm218, %v5819, 0
        %v5838 = vsel %vm218, %v5820, 0
        %5840 = vmatprep.subr.mxu0 %v5826
        %5841 = vmatpush1.msra.mxu0 %v5824
        %5842 = vmatprep.subr.mxu0 0.0
        %5843 = vmatpush1.msra.mxu0 0.0
        %5844 = vmatprep.subr.mxu0 0.0
        %5845 = vmatpush1.msra.mxu0 0.0
        %5846 = vmatprep.subr.mxu0 0.0
        %5847 = vmatpush1.msra.mxu0 0.0
        %5848 = vmatprep.subr.mxu0 0.0
        %5849 = vmatpush1.msra.mxu0 0.0
        %5850 = vmatprep.subr.mxu0 0.0
        %5851 = vmatpush1.msra.mxu0 0.0
        %5852 = vmatprep.subr.mxu0 0.0
        %5853 = vmatpush1.msra.mxu0 0.0
        %5854 = vmatprep.subr.mxu0 0.0
        %5855 = vmatpush1.msra.mxu0 0.0
        %5856 = vmatprep.subr.mxu0 0.0
        %5857 = vmatpush1.msra.mxu0 0.0
        %5858 = vmatprep.subr.mxu0 0.0
        %5859 = vmatpush1.msra.mxu0 0.0
        %5860 = vmatprep.subr.mxu0 0.0
        %5861 = vmatpush1.msra.mxu0 0.0
        %5862 = vmatprep.subr.mxu0 0.0
        %5863 = vmatpush1.msra.mxu0 0.0
        %5864 = vmatprep.subr.mxu0 0.0
        %5865 = vmatpush1.msra.mxu0 0.0
        %5866 = vmatprep.subr.mxu0 0.0
        %5867 = vmatpush1.msra.mxu0 0.0
        %5868 = vmatprep.subr.mxu0 0.0
        %5869 = vmatpush1.msra.mxu0 0.0
        %5870 = vmatprep.subr.mxu0 0.0
        %5871 = vmatpush1.msra.mxu0 0.0
        %5872 = vmatprep.subr.mxu0 0.0
        %5873 = vmatpush1.msra.mxu0 0.0
        %5874 = vmatprep.subr.mxu0 0.0
        %5875 = vmatpush1.msra.mxu0 0.0
        %5876 = vmatprep.subr.mxu0 0.0
        %5877 = vmatpush1.msra.mxu0 0.0
        %5878 = vmatprep.subr.mxu0 0.0
        %5879 = vmatpush1.msra.mxu0 0.0
        %5880 = vmatprep.subr.mxu0 0.0
        %5881 = vmatpush1.msra.mxu0 0.0
        %5882 = vmatprep.subr.mxu0 0.0
        %5883 = vmatpush1.msra.mxu0 0.0
        %5884 = vmatprep.subr.mxu0 0.0
        %5885 = vmatpush1.msra.mxu0 0.0
        %5886 = vmatprep.subr.mxu0 0.0
        %5887 = vmatpush1.msra.mxu0 0.0
        %5888 = vmatprep.subr.mxu0 0.0
        %5889 = vmatpush1.msra.mxu0 0.0
        %5890 = vmatprep.subr.mxu0 0.0
        %5891 = vmatpush1.msra.mxu0 0.0
        %5892 = vmatprep.subr.mxu0 0.0
        %5893 = vmatpush1.msra.mxu0 0.0
        %5894 = vmatprep.subr.mxu0 0.0
        %5895 = vmatpush1.msra.mxu0 0.0
        %5896 = vmatprep.subr.mxu0 0.0
        %5897 = vmatpush1.msra.mxu0 0.0
        %5898 = vmatprep.subr.mxu0 0.0
        %5899 = vmatpush1.msra.mxu0 0.0
        %5900 = vmatprep.subr.mxu0 0.0
        %5901 = vmatpush1.msra.mxu0 0.0
        %5902 = vmatprep.subr.mxu0 0.0
        %5903 = vmatpush1.msra.mxu0 0.0
        %5904 = vmatprep.mubr.f32.mxu0 0.0
        %5905 = vmatmul.mubr.f32.gmra.mrb[0].mxu0 %v5822
        %v5906 = vpop.f32.mrb[0].mxu0
        %v5907 = vadd.f32 0.0, %v5906
        %v5908 = vpop.f32.mrb[0].mxu0
        %v5909 = vadd.f32 0.0, %v5908
        %5910 = vdwg.mxu0
        %5911 = vmatprep.subr.mxu0 %v5830
        %5912 = vmatpush1.msra.mxu0 %v5828
        %5913 = vmatprep.subr.mxu0 0.0
        %5914 = vmatpush1.msra.mxu0 0.0
        %5915 = vmatprep.subr.mxu0 0.0
        %5916 = vmatpush1.msra.mxu0 0.0
        %5917 = vmatprep.subr.mxu0 0.0
        %5918 = vmatpush1.msra.mxu0 0.0
        %5919 = vmatprep.subr.mxu0 0.0
        %5920 = vmatpush1.msra.mxu0 0.0
        %5921 = vmatprep.subr.mxu0 0.0
        %5922 = vmatpush1.msra.mxu0 0.0
        %5923 = vmatprep.subr.mxu0 0.0
        %5924 = vmatpush1.msra.mxu0 0.0
        %5925 = vmatprep.subr.mxu0 0.0
        %5926 = vmatpush1.msra.mxu0 0.0
        %5927 = vmatprep.subr.mxu0 0.0
        %5928 = vmatpush1.msra.mxu0 0.0
        %5929 = vmatprep.subr.mxu0 0.0
        %5930 = vmatpush1.msra.mxu0 0.0
        %5931 = vmatprep.subr.mxu0 0.0
        %5932 = vmatpush1.msra.mxu0 0.0
        %5933 = vmatprep.subr.mxu0 0.0
        %5934 = vmatpush1.msra.mxu0 0.0
        %5935 = vmatprep.subr.mxu0 0.0
        %5936 = vmatpush1.msra.mxu0 0.0
        %5937 = vmatprep.subr.mxu0 0.0
        %5938 = vmatpush1.msra.mxu0 0.0
        %5939 = vmatprep.subr.mxu0 0.0
        %5940 = vmatpush1.msra.mxu0 0.0
        %5941 = vmatprep.subr.mxu0 0.0
        %5942 = vmatpush1.msra.mxu0 0.0
        %5943 = vmatprep.subr.mxu0 0.0
        %5944 = vmatpush1.msra.mxu0 0.0
        %5945 = vmatprep.subr.mxu0 0.0
        %5946 = vmatpush1.msra.mxu0 0.0
        %5947 = vmatprep.subr.mxu0 0.0
        %5948 = vmatpush1.msra.mxu0 0.0
        %5949 = vmatprep.subr.mxu0 0.0
        %5950 = vmatpush1.msra.mxu0 0.0
        %5951 = vmatprep.subr.mxu0 0.0
        %5952 = vmatpush1.msra.mxu0 0.0
        %5953 = vmatprep.subr.mxu0 0.0
        %5954 = vmatpush1.msra.mxu0 0.0
        %5955 = vmatprep.subr.mxu0 0.0
        %5956 = vmatpush1.msra.mxu0 0.0
        %5957 = vmatprep.subr.mxu0 0.0
        %5958 = vmatpush1.msra.mxu0 0.0
        %5959 = vmatprep.subr.mxu0 0.0
        %5960 = vmatpush1.msra.mxu0 0.0
        %5961 = vmatprep.subr.mxu0 0.0
        %5962 = vmatpush1.msra.mxu0 0.0
        %5963 = vmatprep.subr.mxu0 0.0
        %5964 = vmatpush1.msra.mxu0 0.0
        %5965 = vmatprep.subr.mxu0 0.0
        %5966 = vmatpush1.msra.mxu0 0.0
        %5967 = vmatprep.subr.mxu0 0.0
        %5968 = vmatpush1.msra.mxu0 0.0
        %5969 = vmatprep.subr.mxu0 0.0
        %5970 = vmatpush1.msra.mxu0 0.0
        %5971 = vmatprep.subr.mxu0 0.0
        %5972 = vmatpush1.msra.mxu0 0.0
        %5973 = vmatprep.subr.mxu0 0.0
        %5974 = vmatpush1.msra.mxu0 0.0
        %5975 = vmatprep.mubr.f32.mxu0 0.0
        %5976 = vmatmul.mubr.f32.gmra.mrb[0].mxu0 %v5822
        %v5977 = vpop.f32.mrb[0].mxu0
        %v5978 = vadd.f32 0.0, %v5977
        %v5979 = vpop.f32.mrb[0].mxu0
        %v5980 = vadd.f32 0.0, %v5979
        %5981 = vdwg.mxu0
        %5982 = vmatprep.subr.mxu0 %v5834
        %5983 = vmatpush1.msra.mxu0 %v5832
        %5984 = vmatprep.subr.mxu0 0.0
        %5985 = vmatpush1.msra.mxu0 0.0
        %5986 = vmatprep.subr.mxu0 0.0
        %5987 = vmatpush1.msra.mxu0 0.0
        %5988 = vmatprep.subr.mxu0 0.0
        %5989 = vmatpush1.msra.mxu0 0.0
        %5990 = vmatprep.subr.mxu0 0.0
        %5991 = vmatpush1.msra.mxu0 0.0
        %5992 = vmatprep.subr.mxu0 0.0
        %5993 = vmatpush1.msra.mxu0 0.0
        %5994 = vmatprep.subr.mxu0 0.0
        %5995 = vmatpush1.msra.mxu0 0.0
        %5996 = vmatprep.subr.mxu0 0.0
        %5997 = vmatpush1.msra.mxu0 0.0
        %5998 = vmatprep.subr.mxu0 0.0
        %5999 = vmatpush1.msra.mxu0 0.0
        %6000 = vmatprep.subr.mxu0 0.0
        %6001 = vmatpush1.msra.mxu0 0.0
        %6002 = vmatprep.subr.mxu0 0.0
        %6003 = vmatpush1.msra.mxu0 0.0
        %6004 = vmatprep.subr.mxu0 0.0
        %6005 = vmatpush1.msra.mxu0 0.0
        %6006 = vmatprep.subr.mxu0 0.0
        %6007 = vmatpush1.msra.mxu0 0.0
        %6008 = vmatprep.subr.mxu0 0.0
        %6009 = vmatpush1.msra.mxu0 0.0
        %6010 = vmatprep.subr.mxu0 0.0
        %6011 = vmatpush1.msra.mxu0 0.0
        %6012 = vmatprep.subr.mxu0 0.0
        %6013 = vmatpush1.msra.mxu0 0.0
        %6014 = vmatprep.subr.mxu0 0.0
        %6015 = vmatpush1.msra.mxu0 0.0
        %6016 = vmatprep.subr.mxu0 0.0
        %6017 = vmatpush1.msra.mxu0 0.0
        %6018 = vmatprep.subr.mxu0 0.0
        %6019 = vmatpush1.msra.mxu0 0.0
        %6020 = vmatprep.subr.mxu0 0.0
        %6021 = vmatpush1.msra.mxu0 0.0
        %6022 = vmatprep.subr.mxu0 0.0
        %6023 = vmatpush1.msra.mxu0 0.0
        %6024 = vmatprep.subr.mxu0 0.0
        %6025 = vmatpush1.msra.mxu0 0.0
        %6026 = vmatprep.subr.mxu0 0.0
        %6027 = vmatpush1.msra.mxu0 0.0
        %6028 = vmatprep.subr.mxu0 0.0
        %6029 = vmatpush1.msra.mxu0 0.0
        %6030 = vmatprep.subr.mxu0 0.0
        %6031 = vmatpush1.msra.mxu0 0.0
        %6032 = vmatprep.subr.mxu0 0.0
        %6033 = vmatpush1.msra.mxu0 0.0
        %6034 = vmatprep.subr.mxu0 0.0
        %6035 = vmatpush1.msra.mxu0 0.0
        %6036 = vmatprep.subr.mxu0 0.0
        %6037 = vmatpush1.msra.mxu0 0.0
        %6038 = vmatprep.subr.mxu0 0.0
        %6039 = vmatpush1.msra.mxu0 0.0
        %6040 = vmatprep.subr.mxu0 0.0
        %6041 = vmatpush1.msra.mxu0 0.0
        %6042 = vmatprep.subr.mxu0 0.0
        %6043 = vmatpush1.msra.mxu0 0.0
        %6044 = vmatprep.subr.mxu0 0.0
        %6045 = vmatpush1.msra.mxu0 0.0
        %6046 = vmatprep.mubr.f32.mxu0 0.0
        %6047 = vmatmul.mubr.f32.gmra.mrb[0].mxu0 %v5822
        %v6048 = vpop.f32.mrb[0].mxu0
        %v6049 = vadd.f32 0.0, %v6048
        %v6050 = vpop.f32.mrb[0].mxu0
        %v6051 = vadd.f32 0.0, %v6050
        %6052 = vdwg.mxu0
        %6053 = vmatprep.subr.mxu0 %v5838
        %6054 = vmatpush1.msra.mxu0 %v5836
        %6055 = vmatprep.subr.mxu0 0.0
        %6056 = vmatpush1.msra.mxu0 0.0
        %6057 = vmatprep.subr.mxu0 0.0
        %6058 = vmatpush1.msra.mxu0 0.0
        %6059 = vmatprep.subr.mxu0 0.0
        %6060 = vmatpush1.msra.mxu0 0.0
        %6061 = vmatprep.subr.mxu0 0.0
        %6062 = vmatpush1.msra.mxu0 0.0
        %6063 = vmatprep.subr.mxu0 0.0
        %6064 = vmatpush1.msra.mxu0 0.0
        %6065 = vmatprep.subr.mxu0 0.0
        %6066 = vmatpush1.msra.mxu0 0.0
        %6067 = vmatprep.subr.mxu0 0.0
        %6068 = vmatpush1.msra.mxu0 0.0
        %6069 = vmatprep.subr.mxu0 0.0
        %6070 = vmatpush1.msra.mxu0 0.0
        %6071 = vmatprep.subr.mxu0 0.0
        %6072 = vmatpush1.msra.mxu0 0.0
        %6073 = vmatprep.subr.mxu0 0.0
        %6074 = vmatpush1.msra.mxu0 0.0
        %6075 = vmatprep.subr.mxu0 0.0
        %6076 = vmatpush1.msra.mxu0 0.0
        %6077 = vmatprep.subr.mxu0 0.0
        %6078 = vmatpush1.msra.mxu0 0.0
        %6079 = vmatprep.subr.mxu0 0.0
        %6080 = vmatpush1.msra.mxu0 0.0
        %6081 = vmatprep.subr.mxu0 0.0
        %6082 = vmatpush1.msra.mxu0 0.0
        %6083 = vmatprep.subr.mxu0 0.0
        %6084 = vmatpush1.msra.mxu0 0.0
        %6085 = vmatprep.subr.mxu0 0.0
        %6086 = vmatpush1.msra.mxu0 0.0
        %6087 = vmatprep.subr.mxu0 0.0
        %6088 = vmatpush1.msra.mxu0 0.0
        %6089 = vmatprep.subr.mxu0 0.0
        %6090 = vmatpush1.msra.mxu0 0.0
        %6091 = vmatprep.subr.mxu0 0.0
        %6092 = vmatpush1.msra.mxu0 0.0
        %6093 = vmatprep.subr.mxu0 0.0
        %6094 = vmatpush1.msra.mxu0 0.0
        %6095 = vmatprep.subr.mxu0 0.0
        %6096 = vmatpush1.msra.mxu0 0.0
        %6097 = vmatprep.subr.mxu0 0.0
        %6098 = vmatpush1.msra.mxu0 0.0
        %6099 = vmatprep.subr.mxu0 0.0
        %6100 = vmatpush1.msra.mxu0 0.0
        %6101 = vmatprep.subr.mxu0 0.0
        %6102 = vmatpush1.msra.mxu0 0.0
        %6103 = vmatprep.subr.mxu0 0.0
        %6104 = vmatpush1.msra.mxu0 0.0
        %6105 = vmatprep.subr.mxu0 0.0
        %6106 = vmatpush1.msra.mxu0 0.0
        %6107 = vmatprep.subr.mxu0 0.0
        %6108 = vmatpush1.msra.mxu0 0.0
        %6109 = vmatprep.subr.mxu0 0.0
        %6110 = vmatpush1.msra.mxu0 0.0
        %6111 = vmatprep.subr.mxu0 0.0
        %6112 = vmatpush1.msra.mxu0 0.0
        %6113 = vmatprep.subr.mxu0 0.0
        %6114 = vmatpush1.msra.mxu0 0.0
        %6115 = vmatprep.subr.mxu0 0.0
        %6116 = vmatpush1.msra.mxu0 0.0
        %6117 = vmatprep.mubr.f32.mxu0 0.0
        %6118 = vmatmul.mubr.f32.gmra.mrb[0].mxu0 %v5822
        %v6119 = vpop.f32.mrb[0].mxu0
        %v6120 = vadd.f32 0.0, %v6119
        %v6121 = vpop.f32.mrb[0].mxu0
        %v6122 = vadd.f32 0.0, %v6121
        %6123 = vdwg.mxu0
        %v6124 = vadd.f32 %v5770, %v5907
        %v6125 = vadd.f32 %v5771, %v5909
        %v6126 = vadd.f32 %v5772, %v5978
        %v6127 = vadd.f32 %v5773, %v5980
        %v6128 = vadd.f32 %v5774, %v6049
        %v6129 = vadd.f32 %v5775, %v6051
        %v6130 = vadd.f32 %v5776, %v6120
        %v6131 = vadd.f32 %v5777, %v6122
        %s6132 = scalar_lea.vmem %s1, 136
        %v6133 = vld [vmem:[%s6132] sm:$0xff]
        %v6134 = vld [vmem:[%s168] sm:$0xff]
        %v6135 = vld [vmem:[%s168 + $0x8] sm:$0xff]
        %v6136 = vld [vmem:[%s168 + $0x10] sm:$0xff]
        %v6137 = vld [vmem:[%s168 + $0x18] sm:$0xff]
        %v6138 = vld [vmem:[%s168 + $0x20] sm:$0xf]
        %v6144 = vcombine.high %v6134, %v6134
        %v6145 = vcombine.high %v6135, %v6135
        %v6146 = vcombine.high %v6136, %v6136
        %v6147 = vcombine.high %v6137, %v6137
        %6148 = vrot.lane.b32.xlu0 %v6134, 6
        %v6149 = vpop.permute.xlu0 %6148
        %6150 = vrot.lane.b32.xlu0 %v6144, 6
        %v6151 = vpop.permute.xlu0 %6150
        %6152 = vrot.lane.b32.xlu0 %v6135, 6
        %v6153 = vpop.permute.xlu0 %6152
        %6154 = vrot.lane.b32.xlu0 %v6145, 6
        %v6155 = vpop.permute.xlu0 %6154
        %6156 = vrot.lane.b32.xlu0 %v6136, 6
        %v6157 = vpop.permute.xlu0 %6156
        %6158 = vrot.lane.b32.xlu0 %v6146, 6
        %v6159 = vpop.permute.xlu0 %6158
        %6160 = vrot.lane.b32.xlu0 %v6137, 6
        %v6161 = vpop.permute.xlu0 %6160
        %6162 = vrot.lane.b32.xlu0 %v6147, 6
        %v6163 = vpop.permute.xlu0 %6162
        %6164 = vrot.lane.b32.xlu0 %v6138, 6
        %v6165 = vpop.permute.xlu0 %6164
        %vm6166 = vcmask 48128
        %v6167 = vsel %vm6166, %v6149, %v6151
        %v6168 = vsel %vm6166, %v6151, %v6153
        %v6169 = vsel %vm6166, %v6153, %v6155
        %v6170 = vsel %vm6166, %v6155, %v6157
        %v6171 = vsel %vm6166, %v6157, %v6159
        %v6172 = vsel %vm6166, %v6159, %v6161
        %v6173 = vsel %vm6166, %v6161, %v6163
        %v6174 = vsel %vm6166, %v6163, %v6165
        %v6176 = vsel %vm214, %v6133, 0
        %v6178 = vsel %vm218, %v6167, 0
        %v6180 = vsel %vm218, %v6168, 0
        %v6182 = vsel %vm218, %v6169, 0
        %v6184 = vsel %vm218, %v6170, 0
        %v6186 = vsel %vm218, %v6171, 0
        %v6188 = vsel %vm218, %v6172, 0
        %v6190 = vsel %vm218, %v6173, 0
        %v6192 = vsel %vm218, %v6174, 0
        %6194 = vmatprep.subr.mxu0 %v6180
        %6195 = vmatpush1.msra.mxu0 %v6178
        %6196 = vmatprep.subr.mxu0 0.0
        %6197 = vmatpush1.msra.mxu0 0.0
        %6198 = vmatprep.subr.mxu0 0.0
        %6199 = vmatpush1.msra.mxu0 0.0
        %6200 = vmatprep.subr.mxu0 0.0
        %6201 = vmatpush1.msra.mxu0 0.0
        %6202 = vmatprep.subr.mxu0 0.0
        %6203 = vmatpush1.msra.mxu0 0.0
        %6204 = vmatprep.subr.mxu0 0.0
        %6205 = vmatpush1.msra.mxu0 0.0
        %6206 = vmatprep.subr.mxu0 0.0
        %6207 = vmatpush1.msra.mxu0 0.0
        %6208 = vmatprep.subr.mxu0 0.0
        %6209 = vmatpush1.msra.mxu0 0.0
        %6210 = vmatprep.subr.mxu0 0.0
        %6211 = vmatpush1.msra.mxu0 0.0
        %6212 = vmatprep.subr.mxu0 0.0
        %6213 = vmatpush1.msra.mxu0 0.0
        %6214 = vmatprep.subr.mxu0 0.0
        %6215 = vmatpush1.msra.mxu0 0.0
        %6216 = vmatprep.subr.mxu0 0.0
        %6217 = vmatpush1.msra.mxu0 0.0
        %6218 = vmatprep.subr.mxu0 0.0
        %6219 = vmatpush1.msra.mxu0 0.0
        %6220 = vmatprep.subr.mxu0 0.0
        %6221 = vmatpush1.msra.mxu0 0.0
        %6222 = vmatprep.subr.mxu0 0.0
        %6223 = vmatpush1.msra.mxu0 0.0
        %6224 = vmatprep.subr.mxu0 0.0
        %6225 = vmatpush1.msra.mxu0 0.0
        %6226 = vmatprep.subr.mxu0 0.0
        %6227 = vmatpush1.msra.mxu0 0.0
        %6228 = vmatprep.subr.mxu0 0.0
        %6229 = vmatpush1.msra.mxu0 0.0
        %6230 = vmatprep.subr.mxu0 0.0
        %6231 = vmatpush1.msra.mxu0 0.0
        %6232 = vmatprep.subr.mxu0 0.0
        %6233 = vmatpush1.msra.mxu0 0.0
        %6234 = vmatprep.subr.mxu0 0.0
        %6235 = vmatpush1.msra.mxu0 0.0
        %6236 = vmatprep.subr.mxu0 0.0
        %6237 = vmatpush1.msra.mxu0 0.0
        %6238 = vmatprep.subr.mxu0 0.0
        %6239 = vmatpush1.msra.mxu0 0.0
        %6240 = vmatprep.subr.mxu0 0.0
        %6241 = vmatpush1.msra.mxu0 0.0
        %6242 = vmatprep.subr.mxu0 0.0
        %6243 = vmatpush1.msra.mxu0 0.0
        %6244 = vmatprep.subr.mxu0 0.0
        %6245 = vmatpush1.msra.mxu0 0.0
        %6246 = vmatprep.subr.mxu0 0.0
        %6247 = vmatpush1.msra.mxu0 0.0
        %6248 = vmatprep.subr.mxu0 0.0
        %6249 = vmatpush1.msra.mxu0 0.0
        %6250 = vmatprep.subr.mxu0 0.0
        %6251 = vmatpush1.msra.mxu0 0.0
        %6252 = vmatprep.subr.mxu0 0.0
        %6253 = vmatpush1.msra.mxu0 0.0
        %6254 = vmatprep.subr.mxu0 0.0
        %6255 = vmatpush1.msra.mxu0 0.0
        %6256 = vmatprep.subr.mxu0 0.0
        %6257 = vmatpush1.msra.mxu0 0.0
        %6258 = vmatprep.mubr.f32.mxu0 0.0
        %6259 = vmatmul.mubr.f32.gmra.mrb[0].mxu0 %v6176
        %v6260 = vpop.f32.mrb[0].mxu0
        %v6261 = vadd.f32 0.0, %v6260
        %v6262 = vpop.f32.mrb[0].mxu0
        %v6263 = vadd.f32 0.0, %v6262
        %6264 = vdwg.mxu0
        %6265 = vmatprep.subr.mxu0 %v6184
        %6266 = vmatpush1.msra.mxu0 %v6182
        %6267 = vmatprep.subr.mxu0 0.0
        %6268 = vmatpush1.msra.mxu0 0.0
        %6269 = vmatprep.subr.mxu0 0.0
        %6270 = vmatpush1.msra.mxu0 0.0
        %6271 = vmatprep.subr.mxu0 0.0
        %6272 = vmatpush1.msra.mxu0 0.0
        %6273 = vmatprep.subr.mxu0 0.0
        %6274 = vmatpush1.msra.mxu0 0.0
        %6275 = vmatprep.subr.mxu0 0.0
        %6276 = vmatpush1.msra.mxu0 0.0
        %6277 = vmatprep.subr.mxu0 0.0
        %6278 = vmatpush1.msra.mxu0 0.0
        %6279 = vmatprep.subr.mxu0 0.0
        %6280 = vmatpush1.msra.mxu0 0.0
        %6281 = vmatprep.subr.mxu0 0.0
        %6282 = vmatpush1.msra.mxu0 0.0
        %6283 = vmatprep.subr.mxu0 0.0
        %6284 = vmatpush1.msra.mxu0 0.0
        %6285 = vmatprep.subr.mxu0 0.0
        %6286 = vmatpush1.msra.mxu0 0.0
        %6287 = vmatprep.subr.mxu0 0.0
        %6288 = vmatpush1.msra.mxu0 0.0
        %6289 = vmatprep.subr.mxu0 0.0
        %6290 = vmatpush1.msra.mxu0 0.0
        %6291 = vmatprep.subr.mxu0 0.0
        %6292 = vmatpush1.msra.mxu0 0.0
        %6293 = vmatprep.subr.mxu0 0.0
        %6294 = vmatpush1.msra.mxu0 0.0
        %6295 = vmatprep.subr.mxu0 0.0
        %6296 = vmatpush1.msra.mxu0 0.0
        %6297 = vmatprep.subr.mxu0 0.0
        %6298 = vmatpush1.msra.mxu0 0.0
        %6299 = vmatprep.subr.mxu0 0.0
        %6300 = vmatpush1.msra.mxu0 0.0
        %6301 = vmatprep.subr.mxu0 0.0
        %6302 = vmatpush1.msra.mxu0 0.0
        %6303 = vmatprep.subr.mxu0 0.0
        %6304 = vmatpush1.msra.mxu0 0.0
        %6305 = vmatprep.subr.mxu0 0.0
        %6306 = vmatpush1.msra.mxu0 0.0
        %6307 = vmatprep.subr.mxu0 0.0
        %6308 = vmatpush1.msra.mxu0 0.0
        %6309 = vmatprep.subr.mxu0 0.0
        %6310 = vmatpush1.msra.mxu0 0.0
        %6311 = vmatprep.subr.mxu0 0.0
        %6312 = vmatpush1.msra.mxu0 0.0
        %6313 = vmatprep.subr.mxu0 0.0
        %6314 = vmatpush1.msra.mxu0 0.0
        %6315 = vmatprep.subr.mxu0 0.0
        %6316 = vmatpush1.msra.mxu0 0.0
        %6317 = vmatprep.subr.mxu0 0.0
        %6318 = vmatpush1.msra.mxu0 0.0
        %6319 = vmatprep.subr.mxu0 0.0
        %6320 = vmatpush1.msra.mxu0 0.0
        %6321 = vmatprep.subr.mxu0 0.0
        %6322 = vmatpush1.msra.mxu0 0.0
        %6323 = vmatprep.subr.mxu0 0.0
        %6324 = vmatpush1.msra.mxu0 0.0
        %6325 = vmatprep.subr.mxu0 0.0
        %6326 = vmatpush1.msra.mxu0 0.0
        %6327 = vmatprep.subr.mxu0 0.0
        %6328 = vmatpush1.msra.mxu0 0.0
        %6329 = vmatprep.mubr.f32.mxu0 0.0
        %6330 = vmatmul.mubr.f32.gmra.mrb[0].mxu0 %v6176
        %v6331 = vpop.f32.mrb[0].mxu0
        %v6332 = vadd.f32 0.0, %v6331
        %v6333 = vpop.f32.mrb[0].mxu0
        %v6334 = vadd.f32 0.0, %v6333
        %6335 = vdwg.mxu0
        %6336 = vmatprep.subr.mxu0 %v6188
        %6337 = vmatpush1.msra.mxu0 %v6186
        %6338 = vmatprep.subr.mxu0 0.0
        %6339 = vmatpush1.msra.mxu0 0.0
        %6340 = vmatprep.subr.mxu0 0.0
        %6341 = vmatpush1.msra.mxu0 0.0
        %6342 = vmatprep.subr.mxu0 0.0
        %6343 = vmatpush1.msra.mxu0 0.0
        %6344 = vmatprep.subr.mxu0 0.0
        %6345 = vmatpush1.msra.mxu0 0.0
        %6346 = vmatprep.subr.mxu0 0.0
        %6347 = vmatpush1.msra.mxu0 0.0
        %6348 = vmatprep.subr.mxu0 0.0
        %6349 = vmatpush1.msra.mxu0 0.0
        %6350 = vmatprep.subr.mxu0 0.0
        %6351 = vmatpush1.msra.mxu0 0.0
        %6352 = vmatprep.subr.mxu0 0.0
        %6353 = vmatpush1.msra.mxu0 0.0
        %6354 = vmatprep.subr.mxu0 0.0
        %6355 = vmatpush1.msra.mxu0 0.0
        %6356 = vmatprep.subr.mxu0 0.0
        %6357 = vmatpush1.msra.mxu0 0.0
        %6358 = vmatprep.subr.mxu0 0.0
        %6359 = vmatpush1.msra.mxu0 0.0
        %6360 = vmatprep.subr.mxu0 0.0
        %6361 = vmatpush1.msra.mxu0 0.0
        %6362 = vmatprep.subr.mxu0 0.0
        %6363 = vmatpush1.msra.mxu0 0.0
        %6364 = vmatprep.subr.mxu0 0.0
        %6365 = vmatpush1.msra.mxu0 0.0
        %6366 = vmatprep.subr.mxu0 0.0
        %6367 = vmatpush1.msra.mxu0 0.0
        %6368 = vmatprep.subr.mxu0 0.0
        %6369 = vmatpush1.msra.mxu0 0.0
        %6370 = vmatprep.subr.mxu0 0.0
        %6371 = vmatpush1.msra.mxu0 0.0
        %6372 = vmatprep.subr.mxu0 0.0
        %6373 = vmatpush1.msra.mxu0 0.0
        %6374 = vmatprep.subr.mxu0 0.0
        %6375 = vmatpush1.msra.mxu0 0.0
        %6376 = vmatprep.subr.mxu0 0.0
        %6377 = vmatpush1.msra.mxu0 0.0
        %6378 = vmatprep.subr.mxu0 0.0
        %6379 = vmatpush1.msra.mxu0 0.0
        %6380 = vmatprep.subr.mxu0 0.0
        %6381 = vmatpush1.msra.mxu0 0.0
        %6382 = vmatprep.subr.mxu0 0.0
        %6383 = vmatpush1.msra.mxu0 0.0
        %6384 = vmatprep.subr.mxu0 0.0
        %6385 = vmatpush1.msra.mxu0 0.0
        %6386 = vmatprep.subr.mxu0 0.0
        %6387 = vmatpush1.msra.mxu0 0.0
        %6388 = vmatprep.subr.mxu0 0.0
        %6389 = vmatpush1.msra.mxu0 0.0
        %6390 = vmatprep.subr.mxu0 0.0
        %6391 = vmatpush1.msra.mxu0 0.0
        %6392 = vmatprep.subr.mxu0 0.0
        %6393 = vmatpush1.msra.mxu0 0.0
        %6394 = vmatprep.subr.mxu0 0.0
        %6395 = vmatpush1.msra.mxu0 0.0
        %6396 = vmatprep.subr.mxu0 0.0
        %6397 = vmatpush1.msra.mxu0 0.0
        %6398 = vmatprep.subr.mxu0 0.0
        %6399 = vmatpush1.msra.mxu0 0.0
        %6400 = vmatprep.mubr.f32.mxu0 0.0
        %6401 = vmatmul.mubr.f32.gmra.mrb[0].mxu0 %v6176
        %v6402 = vpop.f32.mrb[0].mxu0
        %v6403 = vadd.f32 0.0, %v6402
        %v6404 = vpop.f32.mrb[0].mxu0
        %v6405 = vadd.f32 0.0, %v6404
        %6406 = vdwg.mxu0
        %6407 = vmatprep.subr.mxu0 %v6192
        %6408 = vmatpush1.msra.mxu0 %v6190
        %6409 = vmatprep.subr.mxu0 0.0
        %6410 = vmatpush1.msra.mxu0 0.0
        %6411 = vmatprep.subr.mxu0 0.0
        %6412 = vmatpush1.msra.mxu0 0.0
        %6413 = vmatprep.subr.mxu0 0.0
        %6414 = vmatpush1.msra.mxu0 0.0
        %6415 = vmatprep.subr.mxu0 0.0
        %6416 = vmatpush1.msra.mxu0 0.0
        %6417 = vmatprep.subr.mxu0 0.0
        %6418 = vmatpush1.msra.mxu0 0.0
        %6419 = vmatprep.subr.mxu0 0.0
        %6420 = vmatpush1.msra.mxu0 0.0
        %6421 = vmatprep.subr.mxu0 0.0
        %6422 = vmatpush1.msra.mxu0 0.0
        %6423 = vmatprep.subr.mxu0 0.0
        %6424 = vmatpush1.msra.mxu0 0.0
        %6425 = vmatprep.subr.mxu0 0.0
        %6426 = vmatpush1.msra.mxu0 0.0
        %6427 = vmatprep.subr.mxu0 0.0
        %6428 = vmatpush1.msra.mxu0 0.0
        %6429 = vmatprep.subr.mxu0 0.0
        %6430 = vmatpush1.msra.mxu0 0.0
        %6431 = vmatprep.subr.mxu0 0.0
        %6432 = vmatpush1.msra.mxu0 0.0
        %6433 = vmatprep.subr.mxu0 0.0
        %6434 = vmatpush1.msra.mxu0 0.0
        %6435 = vmatprep.subr.mxu0 0.0
        %6436 = vmatpush1.msra.mxu0 0.0
        %6437 = vmatprep.subr.mxu0 0.0
        %6438 = vmatpush1.msra.mxu0 0.0
        %6439 = vmatprep.subr.mxu0 0.0
        %6440 = vmatpush1.msra.mxu0 0.0
        %6441 = vmatprep.subr.mxu0 0.0
        %6442 = vmatpush1.msra.mxu0 0.0
        %6443 = vmatprep.subr.mxu0 0.0
        %6444 = vmatpush1.msra.mxu0 0.0
        %6445 = vmatprep.subr.mxu0 0.0
        %6446 = vmatpush1.msra.mxu0 0.0
        %6447 = vmatprep.subr.mxu0 0.0
        %6448 = vmatpush1.msra.mxu0 0.0
        %6449 = vmatprep.subr.mxu0 0.0
        %6450 = vmatpush1.msra.mxu0 0.0
        %6451 = vmatprep.subr.mxu0 0.0
        %6452 = vmatpush1.msra.mxu0 0.0
        %6453 = vmatprep.subr.mxu0 0.0
        %6454 = vmatpush1.msra.mxu0 0.0
        %6455 = vmatprep.subr.mxu0 0.0
        %6456 = vmatpush1.msra.mxu0 0.0
        %6457 = vmatprep.subr.mxu0 0.0
        %6458 = vmatpush1.msra.mxu0 0.0
        %6459 = vmatprep.subr.mxu0 0.0
        %6460 = vmatpush1.msra.mxu0 0.0
        %6461 = vmatprep.subr.mxu0 0.0
        %6462 = vmatpush1.msra.mxu0 0.0
        %6463 = vmatprep.subr.mxu0 0.0
        %6464 = vmatpush1.msra.mxu0 0.0
        %6465 = vmatprep.subr.mxu0 0.0
        %6466 = vmatpush1.msra.mxu0 0.0
        %6467 = vmatprep.subr.mxu0 0.0
        %6468 = vmatpush1.msra.mxu0 0.0
        %6469 = vmatprep.subr.mxu0 0.0
        %6470 = vmatpush1.msra.mxu0 0.0
        %6471 = vmatprep.mubr.f32.mxu0 0.0
        %6472 = vmatmul.mubr.f32.gmra.mrb[0].mxu0 %v6176
        %v6473 = vpop.f32.mrb[0].mxu0
        %v6474 = vadd.f32 0.0, %v6473
        %v6475 = vpop.f32.mrb[0].mxu0
        %v6476 = vadd.f32 0.0, %v6475
        %6477 = vdwg.mxu0
        %v6478 = vadd.f32 %v6124, %v6261
        %v6479 = vadd.f32 %v6125, %v6263
        %v6480 = vadd.f32 %v6126, %v6332
        %v6481 = vadd.f32 %v6127, %v6334
        %v6482 = vadd.f32 %v6128, %v6403
        %v6483 = vadd.f32 %v6129, %v6405
        %v6484 = vadd.f32 %v6130, %v6474
        %v6485 = vadd.f32 %v6131, %v6476
        %s6486 = scalar_lea.vmem %s1, 144
        %v6487 = vld [vmem:[%s6486] sm:$0xff]
        %v6488 = vld [vmem:[%s168 + $0x4] sm:$0xff]
        %v6489 = vld [vmem:[%s168 + $0xc] sm:$0xff]
        %v6490 = vld [vmem:[%s168 + $0x14] sm:$0xff]
        %v6491 = vld [vmem:[%s168 + $0x1c] sm:$0xff]
        %v6492 = vld [vmem:[%s168 + $0x24] sm:$0xf]
        %v6498 = vcombine.high %v6488, %v6488
        %v6499 = vcombine.high %v6489, %v6489
        %v6500 = vcombine.high %v6490, %v6490
        %v6501 = vcombine.high %v6491, %v6491
        %6502 = vrot.lane.b32.xlu0 %v6488, 56
        %v6503 = vpop.permute.xlu0 %6502
        %6504 = vrot.lane.b32.xlu0 %v6498, 56
        %v6505 = vpop.permute.xlu0 %6504
        %6506 = vrot.lane.b32.xlu0 %v6489, 56
        %v6507 = vpop.permute.xlu0 %6506
        %6508 = vrot.lane.b32.xlu0 %v6499, 56
        %v6509 = vpop.permute.xlu0 %6508
        %6510 = vrot.lane.b32.xlu0 %v6490, 56
        %v6511 = vpop.permute.xlu0 %6510
        %6512 = vrot.lane.b32.xlu0 %v6500, 56
        %v6513 = vpop.permute.xlu0 %6512
        %6514 = vrot.lane.b32.xlu0 %v6491, 56
        %v6515 = vpop.permute.xlu0 %6514
        %6516 = vrot.lane.b32.xlu0 %v6501, 56
        %v6517 = vpop.permute.xlu0 %6516
        %6518 = vrot.lane.b32.xlu0 %v6492, 56
        %v6519 = vpop.permute.xlu0 %6518
        %vm6520 = vcmask 457728
        %v6521 = vsel %vm6520, %v6503, %v6505
        %v6522 = vsel %vm6520, %v6505, %v6507
        %v6523 = vsel %vm6520, %v6507, %v6509
        %v6524 = vsel %vm6520, %v6509, %v6511
        %v6525 = vsel %vm6520, %v6511, %v6513
        %v6526 = vsel %vm6520, %v6513, %v6515
        %v6527 = vsel %vm6520, %v6515, %v6517
        %v6528 = vsel %vm6520, %v6517, %v6519
        %v6530 = vsel %vm214, %v6487, 0
        %v6532 = vsel %vm218, %v6521, 0
        %v6534 = vsel %vm218, %v6522, 0
        %v6536 = vsel %vm218, %v6523, 0
        %v6538 = vsel %vm218, %v6524, 0
        %v6540 = vsel %vm218, %v6525, 0
        %v6542 = vsel %vm218, %v6526, 0
        %v6544 = vsel %vm218, %v6527, 0
        %v6546 = vsel %vm218, %v6528, 0
        %6548 = vmatprep.subr.mxu0 %v6534
        %6549 = vmatpush1.msra.mxu0 %v6532
        %6550 = vmatprep.subr.mxu0 0.0
        %6551 = vmatpush1.msra.mxu0 0.0
        %6552 = vmatprep.subr.mxu0 0.0
        %6553 = vmatpush1.msra.mxu0 0.0
        %6554 = vmatprep.subr.mxu0 0.0
        %6555 = vmatpush1.msra.mxu0 0.0
        %6556 = vmatprep.subr.mxu0 0.0
        %6557 = vmatpush1.msra.mxu0 0.0
        %6558 = vmatprep.subr.mxu0 0.0
        %6559 = vmatpush1.msra.mxu0 0.0
        %6560 = vmatprep.subr.mxu0 0.0
        %6561 = vmatpush1.msra.mxu0 0.0
        %6562 = vmatprep.subr.mxu0 0.0
        %6563 = vmatpush1.msra.mxu0 0.0
        %6564 = vmatprep.subr.mxu0 0.0
        %6565 = vmatpush1.msra.mxu0 0.0
        %6566 = vmatprep.subr.mxu0 0.0
        %6567 = vmatpush1.msra.mxu0 0.0
        %6568 = vmatprep.subr.mxu0 0.0
        %6569 = vmatpush1.msra.mxu0 0.0
        %6570 = vmatprep.subr.mxu0 0.0
        %6571 = vmatpush1.msra.mxu0 0.0
        %6572 = vmatprep.subr.mxu0 0.0
        %6573 = vmatpush1.msra.mxu0 0.0
        %6574 = vmatprep.subr.mxu0 0.0
        %6575 = vmatpush1.msra.mxu0 0.0
        %6576 = vmatprep.subr.mxu0 0.0
        %6577 = vmatpush1.msra.mxu0 0.0
        %6578 = vmatprep.subr.mxu0 0.0
        %6579 = vmatpush1.msra.mxu0 0.0
        %6580 = vmatprep.subr.mxu0 0.0
        %6581 = vmatpush1.msra.mxu0 0.0
        %6582 = vmatprep.subr.mxu0 0.0
        %6583 = vmatpush1.msra.mxu0 0.0
        %6584 = vmatprep.subr.mxu0 0.0
        %6585 = vmatpush1.msra.mxu0 0.0
        %6586 = vmatprep.subr.mxu0 0.0
        %6587 = vmatpush1.msra.mxu0 0.0
        %6588 = vmatprep.subr.mxu0 0.0
        %6589 = vmatpush1.msra.mxu0 0.0
        %6590 = vmatprep.subr.mxu0 0.0
        %6591 = vmatpush1.msra.mxu0 0.0
        %6592 = vmatprep.subr.mxu0 0.0
        %6593 = vmatpush1.msra.mxu0 0.0
        %6594 = vmatprep.subr.mxu0 0.0
        %6595 = vmatpush1.msra.mxu0 0.0
        %6596 = vmatprep.subr.mxu0 0.0
        %6597 = vmatpush1.msra.mxu0 0.0
        %6598 = vmatprep.subr.mxu0 0.0
        %6599 = vmatpush1.msra.mxu0 0.0
        %6600 = vmatprep.subr.mxu0 0.0
        %6601 = vmatpush1.msra.mxu0 0.0
        %6602 = vmatprep.subr.mxu0 0.0
        %6603 = vmatpush1.msra.mxu0 0.0
        %6604 = vmatprep.subr.mxu0 0.0
        %6605 = vmatpush1.msra.mxu0 0.0
        %6606 = vmatprep.subr.mxu0 0.0
        %6607 = vmatpush1.msra.mxu0 0.0
        %6608 = vmatprep.subr.mxu0 0.0
        %6609 = vmatpush1.msra.mxu0 0.0
        %6610 = vmatprep.subr.mxu0 0.0
        %6611 = vmatpush1.msra.mxu0 0.0
        %6612 = vmatprep.mubr.f32.mxu0 0.0
        %6613 = vmatmul.mubr.f32.gmra.mrb[0].mxu0 %v6530
        %v6614 = vpop.f32.mrb[0].mxu0
        %v6615 = vadd.f32 0.0, %v6614
        %v6616 = vpop.f32.mrb[0].mxu0
        %v6617 = vadd.f32 0.0, %v6616
        %6618 = vdwg.mxu0
        %6619 = vmatprep.subr.mxu0 %v6538
        %6620 = vmatpush1.msra.mxu0 %v6536
        %6621 = vmatprep.subr.mxu0 0.0
        %6622 = vmatpush1.msra.mxu0 0.0
        %6623 = vmatprep.subr.mxu0 0.0
        %6624 = vmatpush1.msra.mxu0 0.0
        %6625 = vmatprep.subr.mxu0 0.0
        %6626 = vmatpush1.msra.mxu0 0.0
        %6627 = vmatprep.subr.mxu0 0.0
        %6628 = vmatpush1.msra.mxu0 0.0
        %6629 = vmatprep.subr.mxu0 0.0
        %6630 = vmatpush1.msra.mxu0 0.0
        %6631 = vmatprep.subr.mxu0 0.0
        %6632 = vmatpush1.msra.mxu0 0.0
        %6633 = vmatprep.subr.mxu0 0.0
        %6634 = vmatpush1.msra.mxu0 0.0
        %6635 = vmatprep.subr.mxu0 0.0
        %6636 = vmatpush1.msra.mxu0 0.0
        %6637 = vmatprep.subr.mxu0 0.0
        %6638 = vmatpush1.msra.mxu0 0.0
        %6639 = vmatprep.subr.mxu0 0.0
        %6640 = vmatpush1.msra.mxu0 0.0
        %6641 = vmatprep.subr.mxu0 0.0
        %6642 = vmatpush1.msra.mxu0 0.0
        %6643 = vmatprep.subr.mxu0 0.0
        %6644 = vmatpush1.msra.mxu0 0.0
        %6645 = vmatprep.subr.mxu0 0.0
        %6646 = vmatpush1.msra.mxu0 0.0
        %6647 = vmatprep.subr.mxu0 0.0
        %6648 = vmatpush1.msra.mxu0 0.0
        %6649 = vmatprep.subr.mxu0 0.0
        %6650 = vmatpush1.msra.mxu0 0.0
        %6651 = vmatprep.subr.mxu0 0.0
        %6652 = vmatpush1.msra.mxu0 0.0
        %6653 = vmatprep.subr.mxu0 0.0
        %6654 = vmatpush1.msra.mxu0 0.0
        %6655 = vmatprep.subr.mxu0 0.0
        %6656 = vmatpush1.msra.mxu0 0.0
        %6657 = vmatprep.subr.mxu0 0.0
        %6658 = vmatpush1.msra.mxu0 0.0
        %6659 = vmatprep.subr.mxu0 0.0
        %6660 = vmatpush1.msra.mxu0 0.0
        %6661 = vmatprep.subr.mxu0 0.0
        %6662 = vmatpush1.msra.mxu0 0.0
        %6663 = vmatprep.subr.mxu0 0.0
        %6664 = vmatpush1.msra.mxu0 0.0
        %6665 = vmatprep.subr.mxu0 0.0
        %6666 = vmatpush1.msra.mxu0 0.0
        %6667 = vmatprep.subr.mxu0 0.0
        %6668 = vmatpush1.msra.mxu0 0.0
        %6669 = vmatprep.subr.mxu0 0.0
        %6670 = vmatpush1.msra.mxu0 0.0
        %6671 = vmatprep.subr.mxu0 0.0
        %6672 = vmatpush1.msra.mxu0 0.0
        %6673 = vmatprep.subr.mxu0 0.0
        %6674 = vmatpush1.msra.mxu0 0.0
        %6675 = vmatprep.subr.mxu0 0.0
        %6676 = vmatpush1.msra.mxu0 0.0
        %6677 = vmatprep.subr.mxu0 0.0
        %6678 = vmatpush1.msra.mxu0 0.0
        %6679 = vmatprep.subr.mxu0 0.0
        %6680 = vmatpush1.msra.mxu0 0.0
        %6681 = vmatprep.subr.mxu0 0.0
        %6682 = vmatpush1.msra.mxu0 0.0
        %6683 = vmatprep.mubr.f32.mxu0 0.0
        %6684 = vmatmul.mubr.f32.gmra.mrb[0].mxu0 %v6530
        %v6685 = vpop.f32.mrb[0].mxu0
        %v6686 = vadd.f32 0.0, %v6685
        %v6687 = vpop.f32.mrb[0].mxu0
        %v6688 = vadd.f32 0.0, %v6687
        %6689 = vdwg.mxu0
        %6690 = vmatprep.subr.mxu0 %v6542
        %6691 = vmatpush1.msra.mxu0 %v6540
        %6692 = vmatprep.subr.mxu0 0.0
        %6693 = vmatpush1.msra.mxu0 0.0
        %6694 = vmatprep.subr.mxu0 0.0
        %6695 = vmatpush1.msra.mxu0 0.0
        %6696 = vmatprep.subr.mxu0 0.0
        %6697 = vmatpush1.msra.mxu0 0.0
        %6698 = vmatprep.subr.mxu0 0.0
        %6699 = vmatpush1.msra.mxu0 0.0
        %6700 = vmatprep.subr.mxu0 0.0
        %6701 = vmatpush1.msra.mxu0 0.0
        %6702 = vmatprep.subr.mxu0 0.0
        %6703 = vmatpush1.msra.mxu0 0.0
        %6704 = vmatprep.subr.mxu0 0.0
        %6705 = vmatpush1.msra.mxu0 0.0
        %6706 = vmatprep.subr.mxu0 0.0
        %6707 = vmatpush1.msra.mxu0 0.0
        %6708 = vmatprep.subr.mxu0 0.0
        %6709 = vmatpush1.msra.mxu0 0.0
        %6710 = vmatprep.subr.mxu0 0.0
        %6711 = vmatpush1.msra.mxu0 0.0
        %6712 = vmatprep.subr.mxu0 0.0
        %6713 = vmatpush1.msra.mxu0 0.0
        %6714 = vmatprep.subr.mxu0 0.0
        %6715 = vmatpush1.msra.mxu0 0.0
        %6716 = vmatprep.subr.mxu0 0.0
        %6717 = vmatpush1.msra.mxu0 0.0
        %6718 = vmatprep.subr.mxu0 0.0
        %6719 = vmatpush1.msra.mxu0 0.0
        %6720 = vmatprep.subr.mxu0 0.0
        %6721 = vmatpush1.msra.mxu0 0.0
        %6722 = vmatprep.subr.mxu0 0.0
        %6723 = vmatpush1.msra.mxu0 0.0
        %6724 = vmatprep.subr.mxu0 0.0
        %6725 = vmatpush1.msra.mxu0 0.0
        %6726 = vmatprep.subr.mxu0 0.0
        %6727 = vmatpush1.msra.mxu0 0.0
        %6728 = vmatprep.subr.mxu0 0.0
        %6729 = vmatpush1.msra.mxu0 0.0
        %6730 = vmatprep.subr.mxu0 0.0
        %6731 = vmatpush1.msra.mxu0 0.0
        %6732 = vmatprep.subr.mxu0 0.0
        %6733 = vmatpush1.msra.mxu0 0.0
        %6734 = vmatprep.subr.mxu0 0.0
        %6735 = vmatpush1.msra.mxu0 0.0
        %6736 = vmatprep.subr.mxu0 0.0
        %6737 = vmatpush1.msra.mxu0 0.0
        %6738 = vmatprep.subr.mxu0 0.0
        %6739 = vmatpush1.msra.mxu0 0.0
        %6740 = vmatprep.subr.mxu0 0.0
        %6741 = vmatpush1.msra.mxu0 0.0
        %6742 = vmatprep.subr.mxu0 0.0
        %6743 = vmatpush1.msra.mxu0 0.0
        %6744 = vmatprep.subr.mxu0 0.0
        %6745 = vmatpush1.msra.mxu0 0.0
        %6746 = vmatprep.subr.mxu0 0.0
        %6747 = vmatpush1.msra.mxu0 0.0
        %6748 = vmatprep.subr.mxu0 0.0
        %6749 = vmatpush1.msra.mxu0 0.0
        %6750 = vmatprep.subr.mxu0 0.0
        %6751 = vmatpush1.msra.mxu0 0.0
        %6752 = vmatprep.subr.mxu0 0.0
        %6753 = vmatpush1.msra.mxu0 0.0
        %6754 = vmatprep.mubr.f32.mxu0 0.0
        %6755 = vmatmul.mubr.f32.gmra.mrb[0].mxu0 %v6530
        %v6756 = vpop.f32.mrb[0].mxu0
        %v6757 = vadd.f32 0.0, %v6756
        %v6758 = vpop.f32.mrb[0].mxu0
        %v6759 = vadd.f32 0.0, %v6758
        %6760 = vdwg.mxu0
        %6761 = vmatprep.subr.mxu0 %v6546
        %6762 = vmatpush1.msra.mxu0 %v6544
        %6763 = vmatprep.subr.mxu0 0.0
        %6764 = vmatpush1.msra.mxu0 0.0
        %6765 = vmatprep.subr.mxu0 0.0
        %6766 = vmatpush1.msra.mxu0 0.0
        %6767 = vmatprep.subr.mxu0 0.0
        %6768 = vmatpush1.msra.mxu0 0.0
        %6769 = vmatprep.subr.mxu0 0.0
        %6770 = vmatpush1.msra.mxu0 0.0
        %6771 = vmatprep.subr.mxu0 0.0
        %6772 = vmatpush1.msra.mxu0 0.0
        %6773 = vmatprep.subr.mxu0 0.0
        %6774 = vmatpush1.msra.mxu0 0.0
        %6775 = vmatprep.subr.mxu0 0.0
        %6776 = vmatpush1.msra.mxu0 0.0
        %6777 = vmatprep.subr.mxu0 0.0
        %6778 = vmatpush1.msra.mxu0 0.0
        %6779 = vmatprep.subr.mxu0 0.0
        %6780 = vmatpush1.msra.mxu0 0.0
        %6781 = vmatprep.subr.mxu0 0.0
        %6782 = vmatpush1.msra.mxu0 0.0
        %6783 = vmatprep.subr.mxu0 0.0
        %6784 = vmatpush1.msra.mxu0 0.0
        %6785 = vmatprep.subr.mxu0 0.0
        %6786 = vmatpush1.msra.mxu0 0.0
        %6787 = vmatprep.subr.mxu0 0.0
        %6788 = vmatpush1.msra.mxu0 0.0
        %6789 = vmatprep.subr.mxu0 0.0
        %6790 = vmatpush1.msra.mxu0 0.0
        %6791 = vmatprep.subr.mxu0 0.0
        %6792 = vmatpush1.msra.mxu0 0.0
        %6793 = vmatprep.subr.mxu0 0.0
        %6794 = vmatpush1.msra.mxu0 0.0
        %6795 = vmatprep.subr.mxu0 0.0
        %6796 = vmatpush1.msra.mxu0 0.0
        %6797 = vmatprep.subr.mxu0 0.0
        %6798 = vmatpush1.msra.mxu0 0.0
        %6799 = vmatprep.subr.mxu0 0.0
        %6800 = vmatpush1.msra.mxu0 0.0
        %6801 = vmatprep.subr.mxu0 0.0
        %6802 = vmatpush1.msra.mxu0 0.0
        %6803 = vmatprep.subr.mxu0 0.0
        %6804 = vmatpush1.msra.mxu0 0.0
        %6805 = vmatprep.subr.mxu0 0.0
        %6806 = vmatpush1.msra.mxu0 0.0
        %6807 = vmatprep.subr.mxu0 0.0
        %6808 = vmatpush1.msra.mxu0 0.0
        %6809 = vmatprep.subr.mxu0 0.0
        %6810 = vmatpush1.msra.mxu0 0.0
        %6811 = vmatprep.subr.mxu0 0.0
        %6812 = vmatpush1.msra.mxu0 0.0
        %6813 = vmatprep.subr.mxu0 0.0
        %6814 = vmatpush1.msra.mxu0 0.0
        %6815 = vmatprep.subr.mxu0 0.0
        %6816 = vmatpush1.msra.mxu0 0.0
        %6817 = vmatprep.subr.mxu0 0.0
        %6818 = vmatpush1.msra.mxu0 0.0
        %6819 = vmatprep.subr.mxu0 0.0
        %6820 = vmatpush1.msra.mxu0 0.0
        %6821 = vmatprep.subr.mxu0 0.0
        %6822 = vmatpush1.msra.mxu0 0.0
        %6823 = vmatprep.subr.mxu0 0.0
        %6824 = vmatpush1.msra.mxu0 0.0
        %6825 = vmatprep.mubr.f32.mxu0 0.0
        %6826 = vmatmul.mubr.f32.gmra.mrb[0].mxu0 %v6530
        %v6827 = vpop.f32.mrb[0].mxu0
        %v6828 = vadd.f32 0.0, %v6827
        %v6829 = vpop.f32.mrb[0].mxu0
        %v6830 = vadd.f32 0.0, %v6829
        %6831 = vdwg.mxu0
        %v6832 = vadd.f32 %v6478, %v6615
        %v6833 = vadd.f32 %v6479, %v6617
        %v6834 = vadd.f32 %v6480, %v6686
        %v6835 = vadd.f32 %v6481, %v6688
        %v6836 = vadd.f32 %v6482, %v6757
        %v6837 = vadd.f32 %v6483, %v6759
        %v6838 = vadd.f32 %v6484, %v6828
        %v6839 = vadd.f32 %v6485, %v6830
        %s6840 = scalar_lea.vmem %s1, 152
        %v6841 = vld [vmem:[%s6840] sm:$0xff]
        %v6842 = vld [vmem:[%s168 + $0x4] sm:$0xff]
        %v6843 = vld [vmem:[%s168 + $0xc] sm:$0xff]
        %v6844 = vld [vmem:[%s168 + $0x14] sm:$0xff]
        %v6845 = vld [vmem:[%s168 + $0x1c] sm:$0xff]
        %v6846 = vld [vmem:[%s168 + $0x24] sm:$0xf]
        %v6852 = vcombine.high %v6842, %v6842
        %v6853 = vcombine.high %v6843, %v6843
        %v6854 = vcombine.high %v6844, %v6844
        %v6855 = vcombine.high %v6845, %v6845
        %6856 = vrot.lane.b32.xlu0 %v6842, 55
        %v6857 = vpop.permute.xlu0 %6856
        %6858 = vrot.lane.b32.xlu0 %v6852, 55
        %v6859 = vpop.permute.xlu0 %6858
        %6860 = vrot.lane.b32.xlu0 %v6843, 55
        %v6861 = vpop.permute.xlu0 %6860
        %6862 = vrot.lane.b32.xlu0 %v6853, 55
        %v6863 = vpop.permute.xlu0 %6862
        %6864 = vrot.lane.b32.xlu0 %v6844, 55
        %v6865 = vpop.permute.xlu0 %6864
        %6866 = vrot.lane.b32.xlu0 %v6854, 55
        %v6867 = vpop.permute.xlu0 %6866
        %6868 = vrot.lane.b32.xlu0 %v6845, 55
        %v6869 = vpop.permute.xlu0 %6868
        %6870 = vrot.lane.b32.xlu0 %v6855, 55
        %v6871 = vpop.permute.xlu0 %6870
        %6872 = vrot.lane.b32.xlu0 %v6846, 55
        %v6873 = vpop.permute.xlu0 %6872
        %vm6874 = vcmask 449536
        %v6875 = vsel %vm6874, %v6857, %v6859
        %v6876 = vsel %vm6874, %v6859, %v6861
        %v6877 = vsel %vm6874, %v6861, %v6863
        %v6878 = vsel %vm6874, %v6863, %v6865
        %v6879 = vsel %vm6874, %v6865, %v6867
        %v6880 = vsel %vm6874, %v6867, %v6869
        %v6881 = vsel %vm6874, %v6869, %v6871
        %v6882 = vsel %vm6874, %v6871, %v6873
        %v6884 = vsel %vm214, %v6841, 0
        %v6886 = vsel %vm218, %v6875, 0
        %v6888 = vsel %vm218, %v6876, 0
        %v6890 = vsel %vm218, %v6877, 0
        %v6892 = vsel %vm218, %v6878, 0
        %v6894 = vsel %vm218, %v6879, 0
        %v6896 = vsel %vm218, %v6880, 0
        %v6898 = vsel %vm218, %v6881, 0
        %v6900 = vsel %vm218, %v6882, 0
        %6902 = vmatprep.subr.mxu0 %v6888
        %6903 = vmatpush1.msra.mxu0 %v6886
        %6904 = vmatprep.subr.mxu0 0.0
        %6905 = vmatpush1.msra.mxu0 0.0
        %6906 = vmatprep.subr.mxu0 0.0
        %6907 = vmatpush1.msra.mxu0 0.0
        %6908 = vmatprep.subr.mxu0 0.0
        %6909 = vmatpush1.msra.mxu0 0.0
        %6910 = vmatprep.subr.mxu0 0.0
        %6911 = vmatpush1.msra.mxu0 0.0
        %6912 = vmatprep.subr.mxu0 0.0
        %6913 = vmatpush1.msra.mxu0 0.0
        %6914 = vmatprep.subr.mxu0 0.0
        %6915 = vmatpush1.msra.mxu0 0.0
        %6916 = vmatprep.subr.mxu0 0.0
        %6917 = vmatpush1.msra.mxu0 0.0
        %6918 = vmatprep.subr.mxu0 0.0
        %6919 = vmatpush1.msra.mxu0 0.0
        %6920 = vmatprep.subr.mxu0 0.0
        %6921 = vmatpush1.msra.mxu0 0.0
        %6922 = vmatprep.subr.mxu0 0.0
        %6923 = vmatpush1.msra.mxu0 0.0
        %6924 = vmatprep.subr.mxu0 0.0
        %6925 = vmatpush1.msra.mxu0 0.0
        %6926 = vmatprep.subr.mxu0 0.0
        %6927 = vmatpush1.msra.mxu0 0.0
        %6928 = vmatprep.subr.mxu0 0.0
        %6929 = vmatpush1.msra.mxu0 0.0
        %6930 = vmatprep.subr.mxu0 0.0
        %6931 = vmatpush1.msra.mxu0 0.0
        %6932 = vmatprep.subr.mxu0 0.0
        %6933 = vmatpush1.msra.mxu0 0.0
        %6934 = vmatprep.subr.mxu0 0.0
        %6935 = vmatpush1.msra.mxu0 0.0
        %6936 = vmatprep.subr.mxu0 0.0
        %6937 = vmatpush1.msra.mxu0 0.0
        %6938 = vmatprep.subr.mxu0 0.0
        %6939 = vmatpush1.msra.mxu0 0.0
        %6940 = vmatprep.subr.mxu0 0.0
        %6941 = vmatpush1.msra.mxu0 0.0
        %6942 = vmatprep.subr.mxu0 0.0
        %6943 = vmatpush1.msra.mxu0 0.0
        %6944 = vmatprep.subr.mxu0 0.0
        %6945 = vmatpush1.msra.mxu0 0.0
        %6946 = vmatprep.subr.mxu0 0.0
        %6947 = vmatpush1.msra.mxu0 0.0
        %6948 = vmatprep.subr.mxu0 0.0
        %6949 = vmatpush1.msra.mxu0 0.0
        %6950 = vmatprep.subr.mxu0 0.0
        %6951 = vmatpush1.msra.mxu0 0.0
        %6952 = vmatprep.subr.mxu0 0.0
        %6953 = vmatpush1.msra.mxu0 0.0
        %6954 = vmatprep.subr.mxu0 0.0
        %6955 = vmatpush1.msra.mxu0 0.0
        %6956 = vmatprep.subr.mxu0 0.0
        %6957 = vmatpush1.msra.mxu0 0.0
        %6958 = vmatprep.subr.mxu0 0.0
        %6959 = vmatpush1.msra.mxu0 0.0
        %6960 = vmatprep.subr.mxu0 0.0
        %6961 = vmatpush1.msra.mxu0 0.0
        %6962 = vmatprep.subr.mxu0 0.0
        %6963 = vmatpush1.msra.mxu0 0.0
        %6964 = vmatprep.subr.mxu0 0.0
        %6965 = vmatpush1.msra.mxu0 0.0
        %6966 = vmatprep.mubr.f32.mxu0 0.0
        %6967 = vmatmul.mubr.f32.gmra.mrb[0].mxu0 %v6884
        %v6968 = vpop.f32.mrb[0].mxu0
        %v6969 = vadd.f32 0.0, %v6968
        %v6970 = vpop.f32.mrb[0].mxu0
        %v6971 = vadd.f32 0.0, %v6970
        %6972 = vdwg.mxu0
        %6973 = vmatprep.subr.mxu0 %v6892
        %6974 = vmatpush1.msra.mxu0 %v6890
        %6975 = vmatprep.subr.mxu0 0.0
        %6976 = vmatpush1.msra.mxu0 0.0
        %6977 = vmatprep.subr.mxu0 0.0
        %6978 = vmatpush1.msra.mxu0 0.0
        %6979 = vmatprep.subr.mxu0 0.0
        %6980 = vmatpush1.msra.mxu0 0.0
        %6981 = vmatprep.subr.mxu0 0.0
        %6982 = vmatpush1.msra.mxu0 0.0
        %6983 = vmatprep.subr.mxu0 0.0
        %6984 = vmatpush1.msra.mxu0 0.0
        %6985 = vmatprep.subr.mxu0 0.0
        %6986 = vmatpush1.msra.mxu0 0.0
        %6987 = vmatprep.subr.mxu0 0.0
        %6988 = vmatpush1.msra.mxu0 0.0
        %6989 = vmatprep.subr.mxu0 0.0
        %6990 = vmatpush1.msra.mxu0 0.0
        %6991 = vmatprep.subr.mxu0 0.0
        %6992 = vmatpush1.msra.mxu0 0.0
        %6993 = vmatprep.subr.mxu0 0.0
        %6994 = vmatpush1.msra.mxu0 0.0
        %6995 = vmatprep.subr.mxu0 0.0
        %6996 = vmatpush1.msra.mxu0 0.0
        %6997 = vmatprep.subr.mxu0 0.0
        %6998 = vmatpush1.msra.mxu0 0.0
        %6999 = vmatprep.subr.mxu0 0.0
        %7000 = vmatpush1.msra.mxu0 0.0
        %7001 = vmatprep.subr.mxu0 0.0
        %7002 = vmatpush1.msra.mxu0 0.0
        %7003 = vmatprep.subr.mxu0 0.0
        %7004 = vmatpush1.msra.mxu0 0.0
        %7005 = vmatprep.subr.mxu0 0.0
        %7006 = vmatpush1.msra.mxu0 0.0
        %7007 = vmatprep.subr.mxu0 0.0
        %7008 = vmatpush1.msra.mxu0 0.0
        %7009 = vmatprep.subr.mxu0 0.0
        %7010 = vmatpush1.msra.mxu0 0.0
        %7011 = vmatprep.subr.mxu0 0.0
        %7012 = vmatpush1.msra.mxu0 0.0
        %7013 = vmatprep.subr.mxu0 0.0
        %7014 = vmatpush1.msra.mxu0 0.0
        %7015 = vmatprep.subr.mxu0 0.0
        %7016 = vmatpush1.msra.mxu0 0.0
        %7017 = vmatprep.subr.mxu0 0.0
        %7018 = vmatpush1.msra.mxu0 0.0
        %7019 = vmatprep.subr.mxu0 0.0
        %7020 = vmatpush1.msra.mxu0 0.0
        %7021 = vmatprep.subr.mxu0 0.0
        %7022 = vmatpush1.msra.mxu0 0.0
        %7023 = vmatprep.subr.mxu0 0.0
        %7024 = vmatpush1.msra.mxu0 0.0
        %7025 = vmatprep.subr.mxu0 0.0
        %7026 = vmatpush1.msra.mxu0 0.0
        %7027 = vmatprep.subr.mxu0 0.0
        %7028 = vmatpush1.msra.mxu0 0.0
        %7029 = vmatprep.subr.mxu0 0.0
        %7030 = vmatpush1.msra.mxu0 0.0
        %7031 = vmatprep.subr.mxu0 0.0
        %7032 = vmatpush1.msra.mxu0 0.0
        %7033 = vmatprep.subr.mxu0 0.0
        %7034 = vmatpush1.msra.mxu0 0.0
        %7035 = vmatprep.subr.mxu0 0.0
        %7036 = vmatpush1.msra.mxu0 0.0
        %7037 = vmatprep.mubr.f32.mxu0 0.0
        %7038 = vmatmul.mubr.f32.gmra.mrb[0].mxu0 %v6884
        %v7039 = vpop.f32.mrb[0].mxu0
        %v7040 = vadd.f32 0.0, %v7039
        %v7041 = vpop.f32.mrb[0].mxu0
        %v7042 = vadd.f32 0.0, %v7041
        %7043 = vdwg.mxu0
        %7044 = vmatprep.subr.mxu0 %v6896
        %7045 = vmatpush1.msra.mxu0 %v6894
        %7046 = vmatprep.subr.mxu0 0.0
        %7047 = vmatpush1.msra.mxu0 0.0
        %7048 = vmatprep.subr.mxu0 0.0
        %7049 = vmatpush1.msra.mxu0 0.0
        %7050 = vmatprep.subr.mxu0 0.0
        %7051 = vmatpush1.msra.mxu0 0.0
        %7052 = vmatprep.subr.mxu0 0.0
        %7053 = vmatpush1.msra.mxu0 0.0
        %7054 = vmatprep.subr.mxu0 0.0
        %7055 = vmatpush1.msra.mxu0 0.0
        %7056 = vmatprep.subr.mxu0 0.0
        %7057 = vmatpush1.msra.mxu0 0.0
        %7058 = vmatprep.subr.mxu0 0.0
        %7059 = vmatpush1.msra.mxu0 0.0
        %7060 = vmatprep.subr.mxu0 0.0
        %7061 = vmatpush1.msra.mxu0 0.0
        %7062 = vmatprep.subr.mxu0 0.0
        %7063 = vmatpush1.msra.mxu0 0.0
        %7064 = vmatprep.subr.mxu0 0.0
        %7065 = vmatpush1.msra.mxu0 0.0
        %7066 = vmatprep.subr.mxu0 0.0
        %7067 = vmatpush1.msra.mxu0 0.0
        %7068 = vmatprep.subr.mxu0 0.0
        %7069 = vmatpush1.msra.mxu0 0.0
        %7070 = vmatprep.subr.mxu0 0.0
        %7071 = vmatpush1.msra.mxu0 0.0
        %7072 = vmatprep.subr.mxu0 0.0
        %7073 = vmatpush1.msra.mxu0 0.0
        %7074 = vmatprep.subr.mxu0 0.0
        %7075 = vmatpush1.msra.mxu0 0.0
        %7076 = vmatprep.subr.mxu0 0.0
        %7077 = vmatpush1.msra.mxu0 0.0
        %7078 = vmatprep.subr.mxu0 0.0
        %7079 = vmatpush1.msra.mxu0 0.0
        %7080 = vmatprep.subr.mxu0 0.0
        %7081 = vmatpush1.msra.mxu0 0.0
        %7082 = vmatprep.subr.mxu0 0.0
        %7083 = vmatpush1.msra.mxu0 0.0
        %7084 = vmatprep.subr.mxu0 0.0
        %7085 = vmatpush1.msra.mxu0 0.0
        %7086 = vmatprep.subr.mxu0 0.0
        %7087 = vmatpush1.msra.mxu0 0.0
        %7088 = vmatprep.subr.mxu0 0.0
        %7089 = vmatpush1.msra.mxu0 0.0
        %7090 = vmatprep.subr.mxu0 0.0
        %7091 = vmatpush1.msra.mxu0 0.0
        %7092 = vmatprep.subr.mxu0 0.0
        %7093 = vmatpush1.msra.mxu0 0.0
        %7094 = vmatprep.subr.mxu0 0.0
        %7095 = vmatpush1.msra.mxu0 0.0
        %7096 = vmatprep.subr.mxu0 0.0
        %7097 = vmatpush1.msra.mxu0 0.0
        %7098 = vmatprep.subr.mxu0 0.0
        %7099 = vmatpush1.msra.mxu0 0.0
        %7100 = vmatprep.subr.mxu0 0.0
        %7101 = vmatpush1.msra.mxu0 0.0
        %7102 = vmatprep.subr.mxu0 0.0
        %7103 = vmatpush1.msra.mxu0 0.0
        %7104 = vmatprep.subr.mxu0 0.0
        %7105 = vmatpush1.msra.mxu0 0.0
        %7106 = vmatprep.subr.mxu0 0.0
        %7107 = vmatpush1.msra.mxu0 0.0
        %7108 = vmatprep.mubr.f32.mxu0 0.0
        %7109 = vmatmul.mubr.f32.gmra.mrb[0].mxu0 %v6884
        %v7110 = vpop.f32.mrb[0].mxu0
        %v7111 = vadd.f32 0.0, %v7110
        %v7112 = vpop.f32.mrb[0].mxu0
        %v7113 = vadd.f32 0.0, %v7112
        %7114 = vdwg.mxu0
        %7115 = vmatprep.subr.mxu0 %v6900
        %7116 = vmatpush1.msra.mxu0 %v6898
        %7117 = vmatprep.subr.mxu0 0.0
        %7118 = vmatpush1.msra.mxu0 0.0
        %7119 = vmatprep.subr.mxu0 0.0
        %7120 = vmatpush1.msra.mxu0 0.0
        %7121 = vmatprep.subr.mxu0 0.0
        %7122 = vmatpush1.msra.mxu0 0.0
        %7123 = vmatprep.subr.mxu0 0.0
        %7124 = vmatpush1.msra.mxu0 0.0
        %7125 = vmatprep.subr.mxu0 0.0
        %7126 = vmatpush1.msra.mxu0 0.0
        %7127 = vmatprep.subr.mxu0 0.0
        %7128 = vmatpush1.msra.mxu0 0.0
        %7129 = vmatprep.subr.mxu0 0.0
        %7130 = vmatpush1.msra.mxu0 0.0
        %7131 = vmatprep.subr.mxu0 0.0
        %7132 = vmatpush1.msra.mxu0 0.0
        %7133 = vmatprep.subr.mxu0 0.0
        %7134 = vmatpush1.msra.mxu0 0.0
        %7135 = vmatprep.subr.mxu0 0.0
        %7136 = vmatpush1.msra.mxu0 0.0
        %7137 = vmatprep.subr.mxu0 0.0
        %7138 = vmatpush1.msra.mxu0 0.0
        %7139 = vmatprep.subr.mxu0 0.0
        %7140 = vmatpush1.msra.mxu0 0.0
        %7141 = vmatprep.subr.mxu0 0.0
        %7142 = vmatpush1.msra.mxu0 0.0
        %7143 = vmatprep.subr.mxu0 0.0
        %7144 = vmatpush1.msra.mxu0 0.0
        %7145 = vmatprep.subr.mxu0 0.0
        %7146 = vmatpush1.msra.mxu0 0.0
        %7147 = vmatprep.subr.mxu0 0.0
        %7148 = vmatpush1.msra.mxu0 0.0
        %7149 = vmatprep.subr.mxu0 0.0
        %7150 = vmatpush1.msra.mxu0 0.0
        %7151 = vmatprep.subr.mxu0 0.0
        %7152 = vmatpush1.msra.mxu0 0.0
        %7153 = vmatprep.subr.mxu0 0.0
        %7154 = vmatpush1.msra.mxu0 0.0
        %7155 = vmatprep.subr.mxu0 0.0
        %7156 = vmatpush1.msra.mxu0 0.0
        %7157 = vmatprep.subr.mxu0 0.0
        %7158 = vmatpush1.msra.mxu0 0.0
        %7159 = vmatprep.subr.mxu0 0.0
        %7160 = vmatpush1.msra.mxu0 0.0
        %7161 = vmatprep.subr.mxu0 0.0
        %7162 = vmatpush1.msra.mxu0 0.0
        %7163 = vmatprep.subr.mxu0 0.0
        %7164 = vmatpush1.msra.mxu0 0.0
        %7165 = vmatprep.subr.mxu0 0.0
        %7166 = vmatpush1.msra.mxu0 0.0
        %7167 = vmatprep.subr.mxu0 0.0
        %7168 = vmatpush1.msra.mxu0 0.0
        %7169 = vmatprep.subr.mxu0 0.0
        %7170 = vmatpush1.msra.mxu0 0.0
        %7171 = vmatprep.subr.mxu0 0.0
        %7172 = vmatpush1.msra.mxu0 0.0
        %7173 = vmatprep.subr.mxu0 0.0
        %7174 = vmatpush1.msra.mxu0 0.0
        %7175 = vmatprep.subr.mxu0 0.0
        %7176 = vmatpush1.msra.mxu0 0.0
        %7177 = vmatprep.subr.mxu0 0.0
        %7178 = vmatpush1.msra.mxu0 0.0
        %7179 = vmatprep.mubr.f32.mxu0 0.0
        %7180 = vmatmul.mubr.f32.gmra.mrb[0].mxu0 %v6884
        %v7181 = vpop.f32.mrb[0].mxu0
        %v7182 = vadd.f32 0.0, %v7181
        %v7183 = vpop.f32.mrb[0].mxu0
        %v7184 = vadd.f32 0.0, %v7183
        %7185 = vdwg.mxu0
        %v7186 = vadd.f32 %v6832, %v6969
        %v7187 = vadd.f32 %v6833, %v6971
        %v7188 = vadd.f32 %v6834, %v7040
        %v7189 = vadd.f32 %v6835, %v7042
        %v7190 = vadd.f32 %v6836, %v7111
        %v7191 = vadd.f32 %v6837, %v7113
        %v7192 = vadd.f32 %v6838, %v7182
        %v7193 = vadd.f32 %v6839, %v7184
        %s7194 = scalar_lea.vmem %s1, 160
        %v7195 = vld [vmem:[%s7194] sm:$0xff]
        %v7196 = vld [vmem:[%s168 + $0x4] sm:$0xff]
        %v7197 = vld [vmem:[%s168 + $0xc] sm:$0xff]
        %v7198 = vld [vmem:[%s168 + $0x14] sm:$0xff]
        %v7199 = vld [vmem:[%s168 + $0x1c] sm:$0xff]
        %v7200 = vld [vmem:[%s168 + $0x24] sm:$0xf]
        %v7206 = vcombine.high %v7196, %v7196
        %v7207 = vcombine.high %v7197, %v7197
        %v7208 = vcombine.high %v7198, %v7198
        %v7209 = vcombine.high %v7199, %v7199
        %7210 = vrot.lane.b32.xlu0 %v7196, 54
        %v7211 = vpop.permute.xlu0 %7210
        %7212 = vrot.lane.b32.xlu0 %v7206, 54
        %v7213 = vpop.permute.xlu0 %7212
        %7214 = vrot.lane.b32.xlu0 %v7197, 54
        %v7215 = vpop.permute.xlu0 %7214
        %7216 = vrot.lane.b32.xlu0 %v7207, 54
        %v7217 = vpop.permute.xlu0 %7216
        %7218 = vrot.lane.b32.xlu0 %v7198, 54
        %v7219 = vpop.permute.xlu0 %7218
        %7220 = vrot.lane.b32.xlu0 %v7208, 54
        %v7221 = vpop.permute.xlu0 %7220
        %7222 = vrot.lane.b32.xlu0 %v7199, 54
        %v7223 = vpop.permute.xlu0 %7222
        %7224 = vrot.lane.b32.xlu0 %v7209, 54
        %v7225 = vpop.permute.xlu0 %7224
        %7226 = vrot.lane.b32.xlu0 %v7200, 54
        %v7227 = vpop.permute.xlu0 %7226
        %vm7228 = vcmask 441344
        %v7229 = vsel %vm7228, %v7211, %v7213
        %v7230 = vsel %vm7228, %v7213, %v7215
        %v7231 = vsel %vm7228, %v7215, %v7217
        %v7232 = vsel %vm7228, %v7217, %v7219
        %v7233 = vsel %vm7228, %v7219, %v7221
        %v7234 = vsel %vm7228, %v7221, %v7223
        %v7235 = vsel %vm7228, %v7223, %v7225
        %v7236 = vsel %vm7228, %v7225, %v7227
        %v7238 = vsel %vm214, %v7195, 0
        %v7240 = vsel %vm218, %v7229, 0
        %v7242 = vsel %vm218, %v7230, 0
        %v7244 = vsel %vm218, %v7231, 0
        %v7246 = vsel %vm218, %v7232, 0
        %v7248 = vsel %vm218, %v7233, 0
        %v7250 = vsel %vm218, %v7234, 0
        %v7252 = vsel %vm218, %v7235, 0
        %v7254 = vsel %vm218, %v7236, 0
        %7256 = vmatprep.subr.mxu0 %v7242
        %7257 = vmatpush1.msra.mxu0 %v7240
        %7258 = vmatprep.subr.mxu0 0.0
        %7259 = vmatpush1.msra.mxu0 0.0
        %7260 = vmatprep.subr.mxu0 0.0
        %7261 = vmatpush1.msra.mxu0 0.0
        %7262 = vmatprep.subr.mxu0 0.0
        %7263 = vmatpush1.msra.mxu0 0.0
        %7264 = vmatprep.subr.mxu0 0.0
        %7265 = vmatpush1.msra.mxu0 0.0
        %7266 = vmatprep.subr.mxu0 0.0
        %7267 = vmatpush1.msra.mxu0 0.0
        %7268 = vmatprep.subr.mxu0 0.0
        %7269 = vmatpush1.msra.mxu0 0.0
        %7270 = vmatprep.subr.mxu0 0.0
        %7271 = vmatpush1.msra.mxu0 0.0
        %7272 = vmatprep.subr.mxu0 0.0
        %7273 = vmatpush1.msra.mxu0 0.0
        %7274 = vmatprep.subr.mxu0 0.0
        %7275 = vmatpush1.msra.mxu0 0.0
        %7276 = vmatprep.subr.mxu0 0.0
        %7277 = vmatpush1.msra.mxu0 0.0
        %7278 = vmatprep.subr.mxu0 0.0
        %7279 = vmatpush1.msra.mxu0 0.0
        %7280 = vmatprep.subr.mxu0 0.0
        %7281 = vmatpush1.msra.mxu0 0.0
        %7282 = vmatprep.subr.mxu0 0.0
        %7283 = vmatpush1.msra.mxu0 0.0
        %7284 = vmatprep.subr.mxu0 0.0
        %7285 = vmatpush1.msra.mxu0 0.0
        %7286 = vmatprep.subr.mxu0 0.0
        %7287 = vmatpush1.msra.mxu0 0.0
        %7288 = vmatprep.subr.mxu0 0.0
        %7289 = vmatpush1.msra.mxu0 0.0
        %7290 = vmatprep.subr.mxu0 0.0
        %7291 = vmatpush1.msra.mxu0 0.0
        %7292 = vmatprep.subr.mxu0 0.0
        %7293 = vmatpush1.msra.mxu0 0.0
        %7294 = vmatprep.subr.mxu0 0.0
        %7295 = vmatpush1.msra.mxu0 0.0
        %7296 = vmatprep.subr.mxu0 0.0
        %7297 = vmatpush1.msra.mxu0 0.0
        %7298 = vmatprep.subr.mxu0 0.0
        %7299 = vmatpush1.msra.mxu0 0.0
        %7300 = vmatprep.subr.mxu0 0.0
        %7301 = vmatpush1.msra.mxu0 0.0
        %7302 = vmatprep.subr.mxu0 0.0
        %7303 = vmatpush1.msra.mxu0 0.0
        %7304 = vmatprep.subr.mxu0 0.0
        %7305 = vmatpush1.msra.mxu0 0.0
        %7306 = vmatprep.subr.mxu0 0.0
        %7307 = vmatpush1.msra.mxu0 0.0
        %7308 = vmatprep.subr.mxu0 0.0
        %7309 = vmatpush1.msra.mxu0 0.0
        %7310 = vmatprep.subr.mxu0 0.0
        %7311 = vmatpush1.msra.mxu0 0.0
        %7312 = vmatprep.subr.mxu0 0.0
        %7313 = vmatpush1.msra.mxu0 0.0
        %7314 = vmatprep.subr.mxu0 0.0
        %7315 = vmatpush1.msra.mxu0 0.0
        %7316 = vmatprep.subr.mxu0 0.0
        %7317 = vmatpush1.msra.mxu0 0.0
        %7318 = vmatprep.subr.mxu0 0.0
        %7319 = vmatpush1.msra.mxu0 0.0
        %7320 = vmatprep.mubr.f32.mxu0 0.0
        %7321 = vmatmul.mubr.f32.gmra.mrb[0].mxu0 %v7238
        %v7322 = vpop.f32.mrb[0].mxu0
        %v7323 = vadd.f32 0.0, %v7322
        %v7324 = vpop.f32.mrb[0].mxu0
        %v7325 = vadd.f32 0.0, %v7324
        %7326 = vdwg.mxu0
        %7327 = vmatprep.subr.mxu0 %v7246
        %7328 = vmatpush1.msra.mxu0 %v7244
        %7329 = vmatprep.subr.mxu0 0.0
        %7330 = vmatpush1.msra.mxu0 0.0
        %7331 = vmatprep.subr.mxu0 0.0
        %7332 = vmatpush1.msra.mxu0 0.0
        %7333 = vmatprep.subr.mxu0 0.0
        %7334 = vmatpush1.msra.mxu0 0.0
        %7335 = vmatprep.subr.mxu0 0.0
        %7336 = vmatpush1.msra.mxu0 0.0
        %7337 = vmatprep.subr.mxu0 0.0
        %7338 = vmatpush1.msra.mxu0 0.0
        %7339 = vmatprep.subr.mxu0 0.0
        %7340 = vmatpush1.msra.mxu0 0.0
        %7341 = vmatprep.subr.mxu0 0.0
        %7342 = vmatpush1.msra.mxu0 0.0
        %7343 = vmatprep.subr.mxu0 0.0
        %7344 = vmatpush1.msra.mxu0 0.0
        %7345 = vmatprep.subr.mxu0 0.0
        %7346 = vmatpush1.msra.mxu0 0.0
        %7347 = vmatprep.subr.mxu0 0.0
        %7348 = vmatpush1.msra.mxu0 0.0
        %7349 = vmatprep.subr.mxu0 0.0
        %7350 = vmatpush1.msra.mxu0 0.0
        %7351 = vmatprep.subr.mxu0 0.0
        %7352 = vmatpush1.msra.mxu0 0.0
        %7353 = vmatprep.subr.mxu0 0.0
        %7354 = vmatpush1.msra.mxu0 0.0
        %7355 = vmatprep.subr.mxu0 0.0
        %7356 = vmatpush1.msra.mxu0 0.0
        %7357 = vmatprep.subr.mxu0 0.0
        %7358 = vmatpush1.msra.mxu0 0.0
        %7359 = vmatprep.subr.mxu0 0.0
        %7360 = vmatpush1.msra.mxu0 0.0
        %7361 = vmatprep.subr.mxu0 0.0
        %7362 = vmatpush1.msra.mxu0 0.0
        %7363 = vmatprep.subr.mxu0 0.0
        %7364 = vmatpush1.msra.mxu0 0.0
        %7365 = vmatprep.subr.mxu0 0.0
        %7366 = vmatpush1.msra.mxu0 0.0
        %7367 = vmatprep.subr.mxu0 0.0
        %7368 = vmatpush1.msra.mxu0 0.0
        %7369 = vmatprep.subr.mxu0 0.0
        %7370 = vmatpush1.msra.mxu0 0.0
        %7371 = vmatprep.subr.mxu0 0.0
        %7372 = vmatpush1.msra.mxu0 0.0
        %7373 = vmatprep.subr.mxu0 0.0
        %7374 = vmatpush1.msra.mxu0 0.0
        %7375 = vmatprep.subr.mxu0 0.0
        %7376 = vmatpush1.msra.mxu0 0.0
        %7377 = vmatprep.subr.mxu0 0.0
        %7378 = vmatpush1.msra.mxu0 0.0
        %7379 = vmatprep.subr.mxu0 0.0
        %7380 = vmatpush1.msra.mxu0 0.0
        %7381 = vmatprep.subr.mxu0 0.0
        %7382 = vmatpush1.msra.mxu0 0.0
        %7383 = vmatprep.subr.mxu0 0.0
        %7384 = vmatpush1.msra.mxu0 0.0
        %7385 = vmatprep.subr.mxu0 0.0
        %7386 = vmatpush1.msra.mxu0 0.0
        %7387 = vmatprep.subr.mxu0 0.0
        %7388 = vmatpush1.msra.mxu0 0.0
        %7389 = vmatprep.subr.mxu0 0.0
        %7390 = vmatpush1.msra.mxu0 0.0
        %7391 = vmatprep.mubr.f32.mxu0 0.0
        %7392 = vmatmul.mubr.f32.gmra.mrb[0].mxu0 %v7238
        %v7393 = vpop.f32.mrb[0].mxu0
        %v7394 = vadd.f32 0.0, %v7393
        %v7395 = vpop.f32.mrb[0].mxu0
        %v7396 = vadd.f32 0.0, %v7395
        %7397 = vdwg.mxu0
        %7398 = vmatprep.subr.mxu0 %v7250
        %7399 = vmatpush1.msra.mxu0 %v7248
        %7400 = vmatprep.subr.mxu0 0.0
        %7401 = vmatpush1.msra.mxu0 0.0
        %7402 = vmatprep.subr.mxu0 0.0
        %7403 = vmatpush1.msra.mxu0 0.0
        %7404 = vmatprep.subr.mxu0 0.0
        %7405 = vmatpush1.msra.mxu0 0.0
        %7406 = vmatprep.subr.mxu0 0.0
        %7407 = vmatpush1.msra.mxu0 0.0
        %7408 = vmatprep.subr.mxu0 0.0
        %7409 = vmatpush1.msra.mxu0 0.0
        %7410 = vmatprep.subr.mxu0 0.0
        %7411 = vmatpush1.msra.mxu0 0.0
        %7412 = vmatprep.subr.mxu0 0.0
        %7413 = vmatpush1.msra.mxu0 0.0
        %7414 = vmatprep.subr.mxu0 0.0
        %7415 = vmatpush1.msra.mxu0 0.0
        %7416 = vmatprep.subr.mxu0 0.0
        %7417 = vmatpush1.msra.mxu0 0.0
        %7418 = vmatprep.subr.mxu0 0.0
        %7419 = vmatpush1.msra.mxu0 0.0
        %7420 = vmatprep.subr.mxu0 0.0
        %7421 = vmatpush1.msra.mxu0 0.0
        %7422 = vmatprep.subr.mxu0 0.0
        %7423 = vmatpush1.msra.mxu0 0.0
        %7424 = vmatprep.subr.mxu0 0.0
        %7425 = vmatpush1.msra.mxu0 0.0
        %7426 = vmatprep.subr.mxu0 0.0
        %7427 = vmatpush1.msra.mxu0 0.0
        %7428 = vmatprep.subr.mxu0 0.0
        %7429 = vmatpush1.msra.mxu0 0.0
        %7430 = vmatprep.subr.mxu0 0.0
        %7431 = vmatpush1.msra.mxu0 0.0
        %7432 = vmatprep.subr.mxu0 0.0
        %7433 = vmatpush1.msra.mxu0 0.0
        %7434 = vmatprep.subr.mxu0 0.0
        %7435 = vmatpush1.msra.mxu0 0.0
        %7436 = vmatprep.subr.mxu0 0.0
        %7437 = vmatpush1.msra.mxu0 0.0
        %7438 = vmatprep.subr.mxu0 0.0
        %7439 = vmatpush1.msra.mxu0 0.0
        %7440 = vmatprep.subr.mxu0 0.0
        %7441 = vmatpush1.msra.mxu0 0.0
        %7442 = vmatprep.subr.mxu0 0.0
        %7443 = vmatpush1.msra.mxu0 0.0
        %7444 = vmatprep.subr.mxu0 0.0
        %7445 = vmatpush1.msra.mxu0 0.0
        %7446 = vmatprep.subr.mxu0 0.0
        %7447 = vmatpush1.msra.mxu0 0.0
        %7448 = vmatprep.subr.mxu0 0.0
        %7449 = vmatpush1.msra.mxu0 0.0
        %7450 = vmatprep.subr.mxu0 0.0
        %7451 = vmatpush1.msra.mxu0 0.0
        %7452 = vmatprep.subr.mxu0 0.0
        %7453 = vmatpush1.msra.mxu0 0.0
        %7454 = vmatprep.subr.mxu0 0.0
        %7455 = vmatpush1.msra.mxu0 0.0
        %7456 = vmatprep.subr.mxu0 0.0
        %7457 = vmatpush1.msra.mxu0 0.0
        %7458 = vmatprep.subr.mxu0 0.0
        %7459 = vmatpush1.msra.mxu0 0.0
        %7460 = vmatprep.subr.mxu0 0.0
        %7461 = vmatpush1.msra.mxu0 0.0
        %7462 = vmatprep.mubr.f32.mxu0 0.0
        %7463 = vmatmul.mubr.f32.gmra.mrb[0].mxu0 %v7238
        %v7464 = vpop.f32.mrb[0].mxu0
        %v7465 = vadd.f32 0.0, %v7464
        %v7466 = vpop.f32.mrb[0].mxu0
        %v7467 = vadd.f32 0.0, %v7466
        %7468 = vdwg.mxu0
        %7469 = vmatprep.subr.mxu0 %v7254
        %7470 = vmatpush1.msra.mxu0 %v7252
        %7471 = vmatprep.subr.mxu0 0.0
        %7472 = vmatpush1.msra.mxu0 0.0
        %7473 = vmatprep.subr.mxu0 0.0
        %7474 = vmatpush1.msra.mxu0 0.0
        %7475 = vmatprep.subr.mxu0 0.0
        %7476 = vmatpush1.msra.mxu0 0.0
        %7477 = vmatprep.subr.mxu0 0.0
        %7478 = vmatpush1.msra.mxu0 0.0
        %7479 = vmatprep.subr.mxu0 0.0
        %7480 = vmatpush1.msra.mxu0 0.0
        %7481 = vmatprep.subr.mxu0 0.0
        %7482 = vmatpush1.msra.mxu0 0.0
        %7483 = vmatprep.subr.mxu0 0.0
        %7484 = vmatpush1.msra.mxu0 0.0
        %7485 = vmatprep.subr.mxu0 0.0
        %7486 = vmatpush1.msra.mxu0 0.0
        %7487 = vmatprep.subr.mxu0 0.0
        %7488 = vmatpush1.msra.mxu0 0.0
        %7489 = vmatprep.subr.mxu0 0.0
        %7490 = vmatpush1.msra.mxu0 0.0
        %7491 = vmatprep.subr.mxu0 0.0
        %7492 = vmatpush1.msra.mxu0 0.0
        %7493 = vmatprep.subr.mxu0 0.0
        %7494 = vmatpush1.msra.mxu0 0.0
        %7495 = vmatprep.subr.mxu0 0.0
        %7496 = vmatpush1.msra.mxu0 0.0
        %7497 = vmatprep.subr.mxu0 0.0
        %7498 = vmatpush1.msra.mxu0 0.0
        %7499 = vmatprep.subr.mxu0 0.0
        %7500 = vmatpush1.msra.mxu0 0.0
        %7501 = vmatprep.subr.mxu0 0.0
        %7502 = vmatpush1.msra.mxu0 0.0
        %7503 = vmatprep.subr.mxu0 0.0
        %7504 = vmatpush1.msra.mxu0 0.0
        %7505 = vmatprep.subr.mxu0 0.0
        %7506 = vmatpush1.msra.mxu0 0.0
        %7507 = vmatprep.subr.mxu0 0.0
        %7508 = vmatpush1.msra.mxu0 0.0
        %7509 = vmatprep.subr.mxu0 0.0
        %7510 = vmatpush1.msra.mxu0 0.0
        %7511 = vmatprep.subr.mxu0 0.0
        %7512 = vmatpush1.msra.mxu0 0.0
        %7513 = vmatprep.subr.mxu0 0.0
        %7514 = vmatpush1.msra.mxu0 0.0
        %7515 = vmatprep.subr.mxu0 0.0
        %7516 = vmatpush1.msra.mxu0 0.0
        %7517 = vmatprep.subr.mxu0 0.0
        %7518 = vmatpush1.msra.mxu0 0.0
        %7519 = vmatprep.subr.mxu0 0.0
        %7520 = vmatpush1.msra.mxu0 0.0
        %7521 = vmatprep.subr.mxu0 0.0
        %7522 = vmatpush1.msra.mxu0 0.0
        %7523 = vmatprep.subr.mxu0 0.0
        %7524 = vmatpush1.msra.mxu0 0.0
        %7525 = vmatprep.subr.mxu0 0.0
        %7526 = vmatpush1.msra.mxu0 0.0
        %7527 = vmatprep.subr.mxu0 0.0
        %7528 = vmatpush1.msra.mxu0 0.0
        %7529 = vmatprep.subr.mxu0 0.0
        %7530 = vmatpush1.msra.mxu0 0.0
        %7531 = vmatprep.subr.mxu0 0.0
        %7532 = vmatpush1.msra.mxu0 0.0
        %7533 = vmatprep.mubr.f32.mxu0 0.0
        %7534 = vmatmul.mubr.f32.gmra.mrb[0].mxu0 %v7238
        %v7535 = vpop.f32.mrb[0].mxu0
        %v7536 = vadd.f32 0.0, %v7535
        %v7537 = vpop.f32.mrb[0].mxu0
        %v7538 = vadd.f32 0.0, %v7537
        %7539 = vdwg.mxu0
        %v7540 = vadd.f32 %v7186, %v7323
        %v7541 = vadd.f32 %v7187, %v7325
        %v7542 = vadd.f32 %v7188, %v7394
        %v7543 = vadd.f32 %v7189, %v7396
        %v7544 = vadd.f32 %v7190, %v7465
        %v7545 = vadd.f32 %v7191, %v7467
        %v7546 = vadd.f32 %v7192, %v7536
        %v7547 = vadd.f32 %v7193, %v7538
        %s7548 = scalar_lea.vmem %s1, 168
        %v7549 = vld [vmem:[%s7548] sm:$0xff]
        %v7550 = vld [vmem:[%s168 + $0x4] sm:$0xff]
        %v7551 = vld [vmem:[%s168 + $0xc] sm:$0xff]
        %v7552 = vld [vmem:[%s168 + $0x14] sm:$0xff]
        %v7553 = vld [vmem:[%s168 + $0x1c] sm:$0xff]
        %v7554 = vld [vmem:[%s168 + $0x24] sm:$0xf]
        %v7560 = vcombine.high %v7550, %v7550
        %v7561 = vcombine.high %v7551, %v7551
        %v7562 = vcombine.high %v7552, %v7552
        %v7563 = vcombine.high %v7553, %v7553
        %7564 = vrot.lane.b32.xlu0 %v7550, 46
        %v7565 = vpop.permute.xlu0 %7564
        %7566 = vrot.lane.b32.xlu0 %v7560, 46
        %v7567 = vpop.permute.xlu0 %7566
        %7568 = vrot.lane.b32.xlu0 %v7551, 46
        %v7569 = vpop.permute.xlu0 %7568
        %7570 = vrot.lane.b32.xlu0 %v7561, 46
        %v7571 = vpop.permute.xlu0 %7570
        %7572 = vrot.lane.b32.xlu0 %v7552, 46
        %v7573 = vpop.permute.xlu0 %7572
        %7574 = vrot.lane.b32.xlu0 %v7562, 46
        %v7575 = vpop.permute.xlu0 %7574
        %7576 = vrot.lane.b32.xlu0 %v7553, 46
        %v7577 = vpop.permute.xlu0 %7576
        %7578 = vrot.lane.b32.xlu0 %v7563, 46
        %v7579 = vpop.permute.xlu0 %7578
        %7580 = vrot.lane.b32.xlu0 %v7554, 46
        %v7581 = vpop.permute.xlu0 %7580
        %vm7582 = vcmask 375808
        %v7583 = vsel %vm7582, %v7565, %v7567
        %v7584 = vsel %vm7582, %v7567, %v7569
        %v7585 = vsel %vm7582, %v7569, %v7571
        %v7586 = vsel %vm7582, %v7571, %v7573
        %v7587 = vsel %vm7582, %v7573, %v7575
        %v7588 = vsel %vm7582, %v7575, %v7577
        %v7589 = vsel %vm7582, %v7577, %v7579
        %v7590 = vsel %vm7582, %v7579, %v7581
        %v7592 = vsel %vm214, %v7549, 0
        %v7594 = vsel %vm218, %v7583, 0
        %v7596 = vsel %vm218, %v7584, 0
        %v7598 = vsel %vm218, %v7585, 0
        %v7600 = vsel %vm218, %v7586, 0
        %v7602 = vsel %vm218, %v7587, 0
        %v7604 = vsel %vm218, %v7588, 0
        %v7606 = vsel %vm218, %v7589, 0
        %v7608 = vsel %vm218, %v7590, 0
        %7610 = vmatprep.subr.mxu0 %v7596
        %7611 = vmatpush1.msra.mxu0 %v7594
        %7612 = vmatprep.subr.mxu0 0.0
        %7613 = vmatpush1.msra.mxu0 0.0
        %7614 = vmatprep.subr.mxu0 0.0
        %7615 = vmatpush1.msra.mxu0 0.0
        %7616 = vmatprep.subr.mxu0 0.0
        %7617 = vmatpush1.msra.mxu0 0.0
        %7618 = vmatprep.subr.mxu0 0.0
        %7619 = vmatpush1.msra.mxu0 0.0
        %7620 = vmatprep.subr.mxu0 0.0
        %7621 = vmatpush1.msra.mxu0 0.0
        %7622 = vmatprep.subr.mxu0 0.0
        %7623 = vmatpush1.msra.mxu0 0.0
        %7624 = vmatprep.subr.mxu0 0.0
        %7625 = vmatpush1.msra.mxu0 0.0
        %7626 = vmatprep.subr.mxu0 0.0
        %7627 = vmatpush1.msra.mxu0 0.0
        %7628 = vmatprep.subr.mxu0 0.0
        %7629 = vmatpush1.msra.mxu0 0.0
        %7630 = vmatprep.subr.mxu0 0.0
        %7631 = vmatpush1.msra.mxu0 0.0
        %7632 = vmatprep.subr.mxu0 0.0
        %7633 = vmatpush1.msra.mxu0 0.0
        %7634 = vmatprep.subr.mxu0 0.0
        %7635 = vmatpush1.msra.mxu0 0.0
        %7636 = vmatprep.subr.mxu0 0.0
        %7637 = vmatpush1.msra.mxu0 0.0
        %7638 = vmatprep.subr.mxu0 0.0
        %7639 = vmatpush1.msra.mxu0 0.0
        %7640 = vmatprep.subr.mxu0 0.0
        %7641 = vmatpush1.msra.mxu0 0.0
        %7642 = vmatprep.subr.mxu0 0.0
        %7643 = vmatpush1.msra.mxu0 0.0
        %7644 = vmatprep.subr.mxu0 0.0
        %7645 = vmatpush1.msra.mxu0 0.0
        %7646 = vmatprep.subr.mxu0 0.0
        %7647 = vmatpush1.msra.mxu0 0.0
        %7648 = vmatprep.subr.mxu0 0.0
        %7649 = vmatpush1.msra.mxu0 0.0
        %7650 = vmatprep.subr.mxu0 0.0
        %7651 = vmatpush1.msra.mxu0 0.0
        %7652 = vmatprep.subr.mxu0 0.0
        %7653 = vmatpush1.msra.mxu0 0.0
        %7654 = vmatprep.subr.mxu0 0.0
        %7655 = vmatpush1.msra.mxu0 0.0
        %7656 = vmatprep.subr.mxu0 0.0
        %7657 = vmatpush1.msra.mxu0 0.0
        %7658 = vmatprep.subr.mxu0 0.0
        %7659 = vmatpush1.msra.mxu0 0.0
        %7660 = vmatprep.subr.mxu0 0.0
        %7661 = vmatpush1.msra.mxu0 0.0
        %7662 = vmatprep.subr.mxu0 0.0
        %7663 = vmatpush1.msra.mxu0 0.0
        %7664 = vmatprep.subr.mxu0 0.0
        %7665 = vmatpush1.msra.mxu0 0.0
        %7666 = vmatprep.subr.mxu0 0.0
        %7667 = vmatpush1.msra.mxu0 0.0
        %7668 = vmatprep.subr.mxu0 0.0
        %7669 = vmatpush1.msra.mxu0 0.0
        %7670 = vmatprep.subr.mxu0 0.0
        %7671 = vmatpush1.msra.mxu0 0.0
        %7672 = vmatprep.subr.mxu0 0.0
        %7673 = vmatpush1.msra.mxu0 0.0
        %7674 = vmatprep.mubr.f32.mxu0 0.0
        %7675 = vmatmul.mubr.f32.gmra.mrb[0].mxu0 %v7592
        %v7676 = vpop.f32.mrb[0].mxu0
        %v7677 = vadd.f32 0.0, %v7676
        %v7678 = vpop.f32.mrb[0].mxu0
        %v7679 = vadd.f32 0.0, %v7678
        %7680 = vdwg.mxu0
        %7681 = vmatprep.subr.mxu0 %v7600
        %7682 = vmatpush1.msra.mxu0 %v7598
        %7683 = vmatprep.subr.mxu0 0.0
        %7684 = vmatpush1.msra.mxu0 0.0
        %7685 = vmatprep.subr.mxu0 0.0
        %7686 = vmatpush1.msra.mxu0 0.0
        %7687 = vmatprep.subr.mxu0 0.0
        %7688 = vmatpush1.msra.mxu0 0.0
        %7689 = vmatprep.subr.mxu0 0.0
        %7690 = vmatpush1.msra.mxu0 0.0
        %7691 = vmatprep.subr.mxu0 0.0
        %7692 = vmatpush1.msra.mxu0 0.0
        %7693 = vmatprep.subr.mxu0 0.0
        %7694 = vmatpush1.msra.mxu0 0.0
        %7695 = vmatprep.subr.mxu0 0.0
        %7696 = vmatpush1.msra.mxu0 0.0
        %7697 = vmatprep.subr.mxu0 0.0
        %7698 = vmatpush1.msra.mxu0 0.0
        %7699 = vmatprep.subr.mxu0 0.0
        %7700 = vmatpush1.msra.mxu0 0.0
        %7701 = vmatprep.subr.mxu0 0.0
        %7702 = vmatpush1.msra.mxu0 0.0
        %7703 = vmatprep.subr.mxu0 0.0
        %7704 = vmatpush1.msra.mxu0 0.0
        %7705 = vmatprep.subr.mxu0 0.0
        %7706 = vmatpush1.msra.mxu0 0.0
        %7707 = vmatprep.subr.mxu0 0.0
        %7708 = vmatpush1.msra.mxu0 0.0
        %7709 = vmatprep.subr.mxu0 0.0
        %7710 = vmatpush1.msra.mxu0 0.0
        %7711 = vmatprep.subr.mxu0 0.0
        %7712 = vmatpush1.msra.mxu0 0.0
        %7713 = vmatprep.subr.mxu0 0.0
        %7714 = vmatpush1.msra.mxu0 0.0
        %7715 = vmatprep.subr.mxu0 0.0
        %7716 = vmatpush1.msra.mxu0 0.0
        %7717 = vmatprep.subr.mxu0 0.0
        %7718 = vmatpush1.msra.mxu0 0.0
        %7719 = vmatprep.subr.mxu0 0.0
        %7720 = vmatpush1.msra.mxu0 0.0
        %7721 = vmatprep.subr.mxu0 0.0
        %7722 = vmatpush1.msra.mxu0 0.0
        %7723 = vmatprep.subr.mxu0 0.0
        %7724 = vmatpush1.msra.mxu0 0.0
        %7725 = vmatprep.subr.mxu0 0.0
        %7726 = vmatpush1.msra.mxu0 0.0
        %7727 = vmatprep.subr.mxu0 0.0
        %7728 = vmatpush1.msra.mxu0 0.0
        %7729 = vmatprep.subr.mxu0 0.0
        %7730 = vmatpush1.msra.mxu0 0.0
        %7731 = vmatprep.subr.mxu0 0.0
        %7732 = vmatpush1.msra.mxu0 0.0
        %7733 = vmatprep.subr.mxu0 0.0
        %7734 = vmatpush1.msra.mxu0 0.0
        %7735 = vmatprep.subr.mxu0 0.0
        %7736 = vmatpush1.msra.mxu0 0.0
        %7737 = vmatprep.subr.mxu0 0.0
        %7738 = vmatpush1.msra.mxu0 0.0
        %7739 = vmatprep.subr.mxu0 0.0
        %7740 = vmatpush1.msra.mxu0 0.0
        %7741 = vmatprep.subr.mxu0 0.0
        %7742 = vmatpush1.msra.mxu0 0.0
        %7743 = vmatprep.subr.mxu0 0.0
        %7744 = vmatpush1.msra.mxu0 0.0
        %7745 = vmatprep.mubr.f32.mxu0 0.0
        %7746 = vmatmul.mubr.f32.gmra.mrb[0].mxu0 %v7592
        %v7747 = vpop.f32.mrb[0].mxu0
        %v7748 = vadd.f32 0.0, %v7747
        %v7749 = vpop.f32.mrb[0].mxu0
        %v7750 = vadd.f32 0.0, %v7749
        %7751 = vdwg.mxu0
        %7752 = vmatprep.subr.mxu0 %v7604
        %7753 = vmatpush1.msra.mxu0 %v7602
        %7754 = vmatprep.subr.mxu0 0.0
        %7755 = vmatpush1.msra.mxu0 0.0
        %7756 = vmatprep.subr.mxu0 0.0
        %7757 = vmatpush1.msra.mxu0 0.0
        %7758 = vmatprep.subr.mxu0 0.0
        %7759 = vmatpush1.msra.mxu0 0.0
        %7760 = vmatprep.subr.mxu0 0.0
        %7761 = vmatpush1.msra.mxu0 0.0
        %7762 = vmatprep.subr.mxu0 0.0
        %7763 = vmatpush1.msra.mxu0 0.0
        %7764 = vmatprep.subr.mxu0 0.0
        %7765 = vmatpush1.msra.mxu0 0.0
        %7766 = vmatprep.subr.mxu0 0.0
        %7767 = vmatpush1.msra.mxu0 0.0
        %7768 = vmatprep.subr.mxu0 0.0
        %7769 = vmatpush1.msra.mxu0 0.0
        %7770 = vmatprep.subr.mxu0 0.0
        %7771 = vmatpush1.msra.mxu0 0.0
        %7772 = vmatprep.subr.mxu0 0.0
        %7773 = vmatpush1.msra.mxu0 0.0
        %7774 = vmatprep.subr.mxu0 0.0
        %7775 = vmatpush1.msra.mxu0 0.0
        %7776 = vmatprep.subr.mxu0 0.0
        %7777 = vmatpush1.msra.mxu0 0.0
        %7778 = vmatprep.subr.mxu0 0.0
        %7779 = vmatpush1.msra.mxu0 0.0
        %7780 = vmatprep.subr.mxu0 0.0
        %7781 = vmatpush1.msra.mxu0 0.0
        %7782 = vmatprep.subr.mxu0 0.0
        %7783 = vmatpush1.msra.mxu0 0.0
        %7784 = vmatprep.subr.mxu0 0.0
        %7785 = vmatpush1.msra.mxu0 0.0
        %7786 = vmatprep.subr.mxu0 0.0
        %7787 = vmatpush1.msra.mxu0 0.0
        %7788 = vmatprep.subr.mxu0 0.0
        %7789 = vmatpush1.msra.mxu0 0.0
        %7790 = vmatprep.subr.mxu0 0.0
        %7791 = vmatpush1.msra.mxu0 0.0
        %7792 = vmatprep.subr.mxu0 0.0
        %7793 = vmatpush1.msra.mxu0 0.0
        %7794 = vmatprep.subr.mxu0 0.0
        %7795 = vmatpush1.msra.mxu0 0.0
        %7796 = vmatprep.subr.mxu0 0.0
        %7797 = vmatpush1.msra.mxu0 0.0
        %7798 = vmatprep.subr.mxu0 0.0
        %7799 = vmatpush1.msra.mxu0 0.0
        %7800 = vmatprep.subr.mxu0 0.0
        %7801 = vmatpush1.msra.mxu0 0.0
        %7802 = vmatprep.subr.mxu0 0.0
        %7803 = vmatpush1.msra.mxu0 0.0
        %7804 = vmatprep.subr.mxu0 0.0
        %7805 = vmatpush1.msra.mxu0 0.0
        %7806 = vmatprep.subr.mxu0 0.0
        %7807 = vmatpush1.msra.mxu0 0.0
        %7808 = vmatprep.subr.mxu0 0.0
        %7809 = vmatpush1.msra.mxu0 0.0
        %7810 = vmatprep.subr.mxu0 0.0
        %7811 = vmatpush1.msra.mxu0 0.0
        %7812 = vmatprep.subr.mxu0 0.0
        %7813 = vmatpush1.msra.mxu0 0.0
        %7814 = vmatprep.subr.mxu0 0.0
        %7815 = vmatpush1.msra.mxu0 0.0
        %7816 = vmatprep.mubr.f32.mxu0 0.0
        %7817 = vmatmul.mubr.f32.gmra.mrb[0].mxu0 %v7592
        %v7818 = vpop.f32.mrb[0].mxu0
        %v7819 = vadd.f32 0.0, %v7818
        %v7820 = vpop.f32.mrb[0].mxu0
        %v7821 = vadd.f32 0.0, %v7820
        %7822 = vdwg.mxu0
        %7823 = vmatprep.subr.mxu0 %v7608
        %7824 = vmatpush1.msra.mxu0 %v7606
        %7825 = vmatprep.subr.mxu0 0.0
        %7826 = vmatpush1.msra.mxu0 0.0
        %7827 = vmatprep.subr.mxu0 0.0
        %7828 = vmatpush1.msra.mxu0 0.0
        %7829 = vmatprep.subr.mxu0 0.0
        %7830 = vmatpush1.msra.mxu0 0.0
        %7831 = vmatprep.subr.mxu0 0.0
        %7832 = vmatpush1.msra.mxu0 0.0
        %7833 = vmatprep.subr.mxu0 0.0
        %7834 = vmatpush1.msra.mxu0 0.0
        %7835 = vmatprep.subr.mxu0 0.0
        %7836 = vmatpush1.msra.mxu0 0.0
        %7837 = vmatprep.subr.mxu0 0.0
        %7838 = vmatpush1.msra.mxu0 0.0
        %7839 = vmatprep.subr.mxu0 0.0
        %7840 = vmatpush1.msra.mxu0 0.0
        %7841 = vmatprep.subr.mxu0 0.0
        %7842 = vmatpush1.msra.mxu0 0.0
        %7843 = vmatprep.subr.mxu0 0.0
        %7844 = vmatpush1.msra.mxu0 0.0
        %7845 = vmatprep.subr.mxu0 0.0
        %7846 = vmatpush1.msra.mxu0 0.0
        %7847 = vmatprep.subr.mxu0 0.0
        %7848 = vmatpush1.msra.mxu0 0.0
        %7849 = vmatprep.subr.mxu0 0.0
        %7850 = vmatpush1.msra.mxu0 0.0
        %7851 = vmatprep.subr.mxu0 0.0
        %7852 = vmatpush1.msra.mxu0 0.0
        %7853 = vmatprep.subr.mxu0 0.0
        %7854 = vmatpush1.msra.mxu0 0.0
        %7855 = vmatprep.subr.mxu0 0.0
        %7856 = vmatpush1.msra.mxu0 0.0
        %7857 = vmatprep.subr.mxu0 0.0
        %7858 = vmatpush1.msra.mxu0 0.0
        %7859 = vmatprep.subr.mxu0 0.0
        %7860 = vmatpush1.msra.mxu0 0.0
        %7861 = vmatprep.subr.mxu0 0.0
        %7862 = vmatpush1.msra.mxu0 0.0
        %7863 = vmatprep.subr.mxu0 0.0
        %7864 = vmatpush1.msra.mxu0 0.0
        %7865 = vmatprep.subr.mxu0 0.0
        %7866 = vmatpush1.msra.mxu0 0.0
        %7867 = vmatprep.subr.mxu0 0.0
        %7868 = vmatpush1.msra.mxu0 0.0
        %7869 = vmatprep.subr.mxu0 0.0
        %7870 = vmatpush1.msra.mxu0 0.0
        %7871 = vmatprep.subr.mxu0 0.0
        %7872 = vmatpush1.msra.mxu0 0.0
        %7873 = vmatprep.subr.mxu0 0.0
        %7874 = vmatpush1.msra.mxu0 0.0
        %7875 = vmatprep.subr.mxu0 0.0
        %7876 = vmatpush1.msra.mxu0 0.0
        %7877 = vmatprep.subr.mxu0 0.0
        %7878 = vmatpush1.msra.mxu0 0.0
        %7879 = vmatprep.subr.mxu0 0.0
        %7880 = vmatpush1.msra.mxu0 0.0
        %7881 = vmatprep.subr.mxu0 0.0
        %7882 = vmatpush1.msra.mxu0 0.0
        %7883 = vmatprep.subr.mxu0 0.0
        %7884 = vmatpush1.msra.mxu0 0.0
        %7885 = vmatprep.subr.mxu0 0.0
        %7886 = vmatpush1.msra.mxu0 0.0
        %7887 = vmatprep.mubr.f32.mxu0 0.0
        %7888 = vmatmul.mubr.f32.gmra.mrb[0].mxu0 %v7592
        %v7889 = vpop.f32.mrb[0].mxu0
        %v7890 = vadd.f32 0.0, %v7889
        %v7891 = vpop.f32.mrb[0].mxu0
        %v7892 = vadd.f32 0.0, %v7891
        %7893 = vdwg.mxu0
        %v7894 = vadd.f32 %v7540, %v7677
        %v7895 = vadd.f32 %v7541, %v7679
        %v7896 = vadd.f32 %v7542, %v7748
        %v7897 = vadd.f32 %v7543, %v7750
        %v7898 = vadd.f32 %v7544, %v7819
        %v7899 = vadd.f32 %v7545, %v7821
        %v7900 = vadd.f32 %v7546, %v7890
        %v7901 = vadd.f32 %v7547, %v7892
        %s7902 = scalar_lea.vmem %s1, 176
        %v7903 = vld [vmem:[%s7902] sm:$0xff]
        %v7904 = vld [vmem:[%s168 + $0x4] sm:$0xff]
        %v7905 = vld [vmem:[%s168 + $0xc] sm:$0xff]
        %v7906 = vld [vmem:[%s168 + $0x14] sm:$0xff]
        %v7907 = vld [vmem:[%s168 + $0x1c] sm:$0xff]
        %v7908 = vld [vmem:[%s168 + $0x24] sm:$0xf]
        %v7914 = vcombine.high %v7904, %v7904
        %v7915 = vcombine.high %v7905, %v7905
        %v7916 = vcombine.high %v7906, %v7906
        %v7917 = vcombine.high %v7907, %v7907
        %7918 = vrot.lane.b32.xlu0 %v7904, 45
        %v7919 = vpop.permute.xlu0 %7918
        %7920 = vrot.lane.b32.xlu0 %v7914, 45
        %v7921 = vpop.permute.xlu0 %7920
        %7922 = vrot.lane.b32.xlu0 %v7905, 45
        %v7923 = vpop.permute.xlu0 %7922
        %7924 = vrot.lane.b32.xlu0 %v7915, 45
        %v7925 = vpop.permute.xlu0 %7924
        %7926 = vrot.lane.b32.xlu0 %v7906, 45
        %v7927 = vpop.permute.xlu0 %7926
        %7928 = vrot.lane.b32.xlu0 %v7916, 45
        %v7929 = vpop.permute.xlu0 %7928
        %7930 = vrot.lane.b32.xlu0 %v7907, 45
        %v7931 = vpop.permute.xlu0 %7930
        %7932 = vrot.lane.b32.xlu0 %v7917, 45
        %v7933 = vpop.permute.xlu0 %7932
        %7934 = vrot.lane.b32.xlu0 %v7908, 45
        %v7935 = vpop.permute.xlu0 %7934
        %vm7936 = vcmask 367616
        %v7937 = vsel %vm7936, %v7919, %v7921
        %v7938 = vsel %vm7936, %v7921, %v7923
        %v7939 = vsel %vm7936, %v7923, %v7925
        %v7940 = vsel %vm7936, %v7925, %v7927
        %v7941 = vsel %vm7936, %v7927, %v7929
        %v7942 = vsel %vm7936, %v7929, %v7931
        %v7943 = vsel %vm7936, %v7931, %v7933
        %v7944 = vsel %vm7936, %v7933, %v7935
        %v7946 = vsel %vm214, %v7903, 0
        %v7948 = vsel %vm218, %v7937, 0
        %v7950 = vsel %vm218, %v7938, 0
        %v7952 = vsel %vm218, %v7939, 0
        %v7954 = vsel %vm218, %v7940, 0
        %v7956 = vsel %vm218, %v7941, 0
        %v7958 = vsel %vm218, %v7942, 0
        %v7960 = vsel %vm218, %v7943, 0
        %v7962 = vsel %vm218, %v7944, 0
        %7964 = vmatprep.subr.mxu0 %v7950
        %7965 = vmatpush1.msra.mxu0 %v7948
        %7966 = vmatprep.subr.mxu0 0.0
        %7967 = vmatpush1.msra.mxu0 0.0
        %7968 = vmatprep.subr.mxu0 0.0
        %7969 = vmatpush1.msra.mxu0 0.0
        %7970 = vmatprep.subr.mxu0 0.0
        %7971 = vmatpush1.msra.mxu0 0.0
        %7972 = vmatprep.subr.mxu0 0.0
        %7973 = vmatpush1.msra.mxu0 0.0
        %7974 = vmatprep.subr.mxu0 0.0
        %7975 = vmatpush1.msra.mxu0 0.0
        %7976 = vmatprep.subr.mxu0 0.0
        %7977 = vmatpush1.msra.mxu0 0.0
        %7978 = vmatprep.subr.mxu0 0.0
        %7979 = vmatpush1.msra.mxu0 0.0
        %7980 = vmatprep.subr.mxu0 0.0
        %7981 = vmatpush1.msra.mxu0 0.0
        %7982 = vmatprep.subr.mxu0 0.0
        %7983 = vmatpush1.msra.mxu0 0.0
        %7984 = vmatprep.subr.mxu0 0.0
        %7985 = vmatpush1.msra.mxu0 0.0
        %7986 = vmatprep.subr.mxu0 0.0
        %7987 = vmatpush1.msra.mxu0 0.0
        %7988 = vmatprep.subr.mxu0 0.0
        %7989 = vmatpush1.msra.mxu0 0.0
        %7990 = vmatprep.subr.mxu0 0.0
        %7991 = vmatpush1.msra.mxu0 0.0
        %7992 = vmatprep.subr.mxu0 0.0
        %7993 = vmatpush1.msra.mxu0 0.0
        %7994 = vmatprep.subr.mxu0 0.0
        %7995 = vmatpush1.msra.mxu0 0.0
        %7996 = vmatprep.subr.mxu0 0.0
        %7997 = vmatpush1.msra.mxu0 0.0
        %7998 = vmatprep.subr.mxu0 0.0
        %7999 = vmatpush1.msra.mxu0 0.0
        %8000 = vmatprep.subr.mxu0 0.0
        %8001 = vmatpush1.msra.mxu0 0.0
        %8002 = vmatprep.subr.mxu0 0.0
        %8003 = vmatpush1.msra.mxu0 0.0
        %8004 = vmatprep.subr.mxu0 0.0
        %8005 = vmatpush1.msra.mxu0 0.0
        %8006 = vmatprep.subr.mxu0 0.0
        %8007 = vmatpush1.msra.mxu0 0.0
        %8008 = vmatprep.subr.mxu0 0.0
        %8009 = vmatpush1.msra.mxu0 0.0
        %8010 = vmatprep.subr.mxu0 0.0
        %8011 = vmatpush1.msra.mxu0 0.0
        %8012 = vmatprep.subr.mxu0 0.0
        %8013 = vmatpush1.msra.mxu0 0.0
        %8014 = vmatprep.subr.mxu0 0.0
        %8015 = vmatpush1.msra.mxu0 0.0
        %8016 = vmatprep.subr.mxu0 0.0
        %8017 = vmatpush1.msra.mxu0 0.0
        %8018 = vmatprep.subr.mxu0 0.0
        %8019 = vmatpush1.msra.mxu0 0.0
        %8020 = vmatprep.subr.mxu0 0.0
        %8021 = vmatpush1.msra.mxu0 0.0
        %8022 = vmatprep.subr.mxu0 0.0
        %8023 = vmatpush1.msra.mxu0 0.0
        %8024 = vmatprep.subr.mxu0 0.0
        %8025 = vmatpush1.msra.mxu0 0.0
        %8026 = vmatprep.subr.mxu0 0.0
        %8027 = vmatpush1.msra.mxu0 0.0
        %8028 = vmatprep.mubr.f32.mxu0 0.0
        %8029 = vmatmul.mubr.f32.gmra.mrb[0].mxu0 %v7946
        %v8030 = vpop.f32.mrb[0].mxu0
        %v8031 = vadd.f32 0.0, %v8030
        %v8032 = vpop.f32.mrb[0].mxu0
        %v8033 = vadd.f32 0.0, %v8032
        %8034 = vdwg.mxu0
        %8035 = vmatprep.subr.mxu0 %v7954
        %8036 = vmatpush1.msra.mxu0 %v7952
        %8037 = vmatprep.subr.mxu0 0.0
        %8038 = vmatpush1.msra.mxu0 0.0
        %8039 = vmatprep.subr.mxu0 0.0
        %8040 = vmatpush1.msra.mxu0 0.0
        %8041 = vmatprep.subr.mxu0 0.0
        %8042 = vmatpush1.msra.mxu0 0.0
        %8043 = vmatprep.subr.mxu0 0.0
        %8044 = vmatpush1.msra.mxu0 0.0
        %8045 = vmatprep.subr.mxu0 0.0
        %8046 = vmatpush1.msra.mxu0 0.0
        %8047 = vmatprep.subr.mxu0 0.0
        %8048 = vmatpush1.msra.mxu0 0.0
        %8049 = vmatprep.subr.mxu0 0.0
        %8050 = vmatpush1.msra.mxu0 0.0
        %8051 = vmatprep.subr.mxu0 0.0
        %8052 = vmatpush1.msra.mxu0 0.0
        %8053 = vmatprep.subr.mxu0 0.0
        %8054 = vmatpush1.msra.mxu0 0.0
        %8055 = vmatprep.subr.mxu0 0.0
        %8056 = vmatpush1.msra.mxu0 0.0
        %8057 = vmatprep.subr.mxu0 0.0
        %8058 = vmatpush1.msra.mxu0 0.0
        %8059 = vmatprep.subr.mxu0 0.0
        %8060 = vmatpush1.msra.mxu0 0.0
        %8061 = vmatprep.subr.mxu0 0.0
        %8062 = vmatpush1.msra.mxu0 0.0
        %8063 = vmatprep.subr.mxu0 0.0
        %8064 = vmatpush1.msra.mxu0 0.0
        %8065 = vmatprep.subr.mxu0 0.0
        %8066 = vmatpush1.msra.mxu0 0.0
        %8067 = vmatprep.subr.mxu0 0.0
        %8068 = vmatpush1.msra.mxu0 0.0
        %8069 = vmatprep.subr.mxu0 0.0
        %8070 = vmatpush1.msra.mxu0 0.0
        %8071 = vmatprep.subr.mxu0 0.0
        %8072 = vmatpush1.msra.mxu0 0.0
        %8073 = vmatprep.subr.mxu0 0.0
        %8074 = vmatpush1.msra.mxu0 0.0
        %8075 = vmatprep.subr.mxu0 0.0
        %8076 = vmatpush1.msra.mxu0 0.0
        %8077 = vmatprep.subr.mxu0 0.0
        %8078 = vmatpush1.msra.mxu0 0.0
        %8079 = vmatprep.subr.mxu0 0.0
        %8080 = vmatpush1.msra.mxu0 0.0
        %8081 = vmatprep.subr.mxu0 0.0
        %8082 = vmatpush1.msra.mxu0 0.0
        %8083 = vmatprep.subr.mxu0 0.0
        %8084 = vmatpush1.msra.mxu0 0.0
        %8085 = vmatprep.subr.mxu0 0.0
        %8086 = vmatpush1.msra.mxu0 0.0
        %8087 = vmatprep.subr.mxu0 0.0
        %8088 = vmatpush1.msra.mxu0 0.0
        %8089 = vmatprep.subr.mxu0 0.0
        %8090 = vmatpush1.msra.mxu0 0.0
        %8091 = vmatprep.subr.mxu0 0.0
        %8092 = vmatpush1.msra.mxu0 0.0
        %8093 = vmatprep.subr.mxu0 0.0
        %8094 = vmatpush1.msra.mxu0 0.0
        %8095 = vmatprep.subr.mxu0 0.0
        %8096 = vmatpush1.msra.mxu0 0.0
        %8097 = vmatprep.subr.mxu0 0.0
        %8098 = vmatpush1.msra.mxu0 0.0
        %8099 = vmatprep.mubr.f32.mxu0 0.0
        %8100 = vmatmul.mubr.f32.gmra.mrb[0].mxu0 %v7946
        %v8101 = vpop.f32.mrb[0].mxu0
        %v8102 = vadd.f32 0.0, %v8101
        %v8103 = vpop.f32.mrb[0].mxu0
        %v8104 = vadd.f32 0.0, %v8103
        %8105 = vdwg.mxu0
        %8106 = vmatprep.subr.mxu0 %v7958
        %8107 = vmatpush1.msra.mxu0 %v7956
        %8108 = vmatprep.subr.mxu0 0.0
        %8109 = vmatpush1.msra.mxu0 0.0
        %8110 = vmatprep.subr.mxu0 0.0
        %8111 = vmatpush1.msra.mxu0 0.0
        %8112 = vmatprep.subr.mxu0 0.0
        %8113 = vmatpush1.msra.mxu0 0.0
        %8114 = vmatprep.subr.mxu0 0.0
        %8115 = vmatpush1.msra.mxu0 0.0
        %8116 = vmatprep.subr.mxu0 0.0
        %8117 = vmatpush1.msra.mxu0 0.0
        %8118 = vmatprep.subr.mxu0 0.0
        %8119 = vmatpush1.msra.mxu0 0.0
        %8120 = vmatprep.subr.mxu0 0.0
        %8121 = vmatpush1.msra.mxu0 0.0
        %8122 = vmatprep.subr.mxu0 0.0
        %8123 = vmatpush1.msra.mxu0 0.0
        %8124 = vmatprep.subr.mxu0 0.0
        %8125 = vmatpush1.msra.mxu0 0.0
        %8126 = vmatprep.subr.mxu0 0.0
        %8127 = vmatpush1.msra.mxu0 0.0
        %8128 = vmatprep.subr.mxu0 0.0
        %8129 = vmatpush1.msra.mxu0 0.0
        %8130 = vmatprep.subr.mxu0 0.0
        %8131 = vmatpush1.msra.mxu0 0.0
        %8132 = vmatprep.subr.mxu0 0.0
        %8133 = vmatpush1.msra.mxu0 0.0
        %8134 = vmatprep.subr.mxu0 0.0
        %8135 = vmatpush1.msra.mxu0 0.0
        %8136 = vmatprep.subr.mxu0 0.0
        %8137 = vmatpush1.msra.mxu0 0.0
        %8138 = vmatprep.subr.mxu0 0.0
        %8139 = vmatpush1.msra.mxu0 0.0
        %8140 = vmatprep.subr.mxu0 0.0
        %8141 = vmatpush1.msra.mxu0 0.0
        %8142 = vmatprep.subr.mxu0 0.0
        %8143 = vmatpush1.msra.mxu0 0.0
        %8144 = vmatprep.subr.mxu0 0.0
        %8145 = vmatpush1.msra.mxu0 0.0
        %8146 = vmatprep.subr.mxu0 0.0
        %8147 = vmatpush1.msra.mxu0 0.0
        %8148 = vmatprep.subr.mxu0 0.0
        %8149 = vmatpush1.msra.mxu0 0.0
        %8150 = vmatprep.subr.mxu0 0.0
        %8151 = vmatpush1.msra.mxu0 0.0
        %8152 = vmatprep.subr.mxu0 0.0
        %8153 = vmatpush1.msra.mxu0 0.0
        %8154 = vmatprep.subr.mxu0 0.0
        %8155 = vmatpush1.msra.mxu0 0.0
        %8156 = vmatprep.subr.mxu0 0.0
        %8157 = vmatpush1.msra.mxu0 0.0
        %8158 = vmatprep.subr.mxu0 0.0
        %8159 = vmatpush1.msra.mxu0 0.0
        %8160 = vmatprep.subr.mxu0 0.0
        %8161 = vmatpush1.msra.mxu0 0.0
        %8162 = vmatprep.subr.mxu0 0.0
        %8163 = vmatpush1.msra.mxu0 0.0
        %8164 = vmatprep.subr.mxu0 0.0
        %8165 = vmatpush1.msra.mxu0 0.0
        %8166 = vmatprep.subr.mxu0 0.0
        %8167 = vmatpush1.msra.mxu0 0.0
        %8168 = vmatprep.subr.mxu0 0.0
        %8169 = vmatpush1.msra.mxu0 0.0
        %8170 = vmatprep.mubr.f32.mxu0 0.0
        %8171 = vmatmul.mubr.f32.gmra.mrb[0].mxu0 %v7946
        %v8172 = vpop.f32.mrb[0].mxu0
        %v8173 = vadd.f32 0.0, %v8172
        %v8174 = vpop.f32.mrb[0].mxu0
        %v8175 = vadd.f32 0.0, %v8174
        %8176 = vdwg.mxu0
        %8177 = vmatprep.subr.mxu0 %v7962
        %8178 = vmatpush1.msra.mxu0 %v7960
        %8179 = vmatprep.subr.mxu0 0.0
        %8180 = vmatpush1.msra.mxu0 0.0
        %8181 = vmatprep.subr.mxu0 0.0
        %8182 = vmatpush1.msra.mxu0 0.0
        %8183 = vmatprep.subr.mxu0 0.0
        %8184 = vmatpush1.msra.mxu0 0.0
        %8185 = vmatprep.subr.mxu0 0.0
        %8186 = vmatpush1.msra.mxu0 0.0
        %8187 = vmatprep.subr.mxu0 0.0
        %8188 = vmatpush1.msra.mxu0 0.0
        %8189 = vmatprep.subr.mxu0 0.0
        %8190 = vmatpush1.msra.mxu0 0.0
        %8191 = vmatprep.subr.mxu0 0.0
        %8192 = vmatpush1.msra.mxu0 0.0
        %8193 = vmatprep.subr.mxu0 0.0
        %8194 = vmatpush1.msra.mxu0 0.0
        %8195 = vmatprep.subr.mxu0 0.0
        %8196 = vmatpush1.msra.mxu0 0.0
        %8197 = vmatprep.subr.mxu0 0.0
        %8198 = vmatpush1.msra.mxu0 0.0
        %8199 = vmatprep.subr.mxu0 0.0
        %8200 = vmatpush1.msra.mxu0 0.0
        %8201 = vmatprep.subr.mxu0 0.0
        %8202 = vmatpush1.msra.mxu0 0.0
        %8203 = vmatprep.subr.mxu0 0.0
        %8204 = vmatpush1.msra.mxu0 0.0
        %8205 = vmatprep.subr.mxu0 0.0
        %8206 = vmatpush1.msra.mxu0 0.0
        %8207 = vmatprep.subr.mxu0 0.0
        %8208 = vmatpush1.msra.mxu0 0.0
        %8209 = vmatprep.subr.mxu0 0.0
        %8210 = vmatpush1.msra.mxu0 0.0
        %8211 = vmatprep.subr.mxu0 0.0
        %8212 = vmatpush1.msra.mxu0 0.0
        %8213 = vmatprep.subr.mxu0 0.0
        %8214 = vmatpush1.msra.mxu0 0.0
        %8215 = vmatprep.subr.mxu0 0.0
        %8216 = vmatpush1.msra.mxu0 0.0
        %8217 = vmatprep.subr.mxu0 0.0
        %8218 = vmatpush1.msra.mxu0 0.0
        %8219 = vmatprep.subr.mxu0 0.0
        %8220 = vmatpush1.msra.mxu0 0.0
        %8221 = vmatprep.subr.mxu0 0.0
        %8222 = vmatpush1.msra.mxu0 0.0
        %8223 = vmatprep.subr.mxu0 0.0
        %8224 = vmatpush1.msra.mxu0 0.0
        %8225 = vmatprep.subr.mxu0 0.0
        %8226 = vmatpush1.msra.mxu0 0.0
        %8227 = vmatprep.subr.mxu0 0.0
        %8228 = vmatpush1.msra.mxu0 0.0
        %8229 = vmatprep.subr.mxu0 0.0
        %8230 = vmatpush1.msra.mxu0 0.0
        %8231 = vmatprep.subr.mxu0 0.0
        %8232 = vmatpush1.msra.mxu0 0.0
        %8233 = vmatprep.subr.mxu0 0.0
        %8234 = vmatpush1.msra.mxu0 0.0
        %8235 = vmatprep.subr.mxu0 0.0
        %8236 = vmatpush1.msra.mxu0 0.0
        %8237 = vmatprep.subr.mxu0 0.0
        %8238 = vmatpush1.msra.mxu0 0.0
        %8239 = vmatprep.subr.mxu0 0.0
        %8240 = vmatpush1.msra.mxu0 0.0
        %8241 = vmatprep.mubr.f32.mxu0 0.0
        %8242 = vmatmul.mubr.f32.gmra.mrb[0].mxu0 %v7946
        %v8243 = vpop.f32.mrb[0].mxu0
        %v8244 = vadd.f32 0.0, %v8243
        %v8245 = vpop.f32.mrb[0].mxu0
        %v8246 = vadd.f32 0.0, %v8245
        %8247 = vdwg.mxu0
        %v8248 = vadd.f32 %v7894, %v8031
        %v8249 = vadd.f32 %v7895, %v8033
        %v8250 = vadd.f32 %v7896, %v8102
        %v8251 = vadd.f32 %v7897, %v8104
        %v8252 = vadd.f32 %v7898, %v8173
        %v8253 = vadd.f32 %v7899, %v8175
        %v8254 = vadd.f32 %v7900, %v8244
        %v8255 = vadd.f32 %v7901, %v8246
        %s8256 = scalar_lea.vmem %s1, 184
        %v8257 = vld [vmem:[%s8256] sm:$0xff]
        %v8258 = vld [vmem:[%s168 + $0x4] sm:$0xff]
        %v8259 = vld [vmem:[%s168 + $0xc] sm:$0xff]
        %v8260 = vld [vmem:[%s168 + $0x14] sm:$0xff]
        %v8261 = vld [vmem:[%s168 + $0x1c] sm:$0xff]
        %v8262 = vld [vmem:[%s168 + $0x24] sm:$0xf]
        %v8268 = vcombine.high %v8258, %v8258
        %v8269 = vcombine.high %v8259, %v8259
        %v8270 = vcombine.high %v8260, %v8260
        %v8271 = vcombine.high %v8261, %v8261
        %8272 = vrot.lane.b32.xlu0 %v8258, 44
        %v8273 = vpop.permute.xlu0 %8272
        %8274 = vrot.lane.b32.xlu0 %v8268, 44
        %v8275 = vpop.permute.xlu0 %8274
        %8276 = vrot.lane.b32.xlu0 %v8259, 44
        %v8277 = vpop.permute.xlu0 %8276
        %8278 = vrot.lane.b32.xlu0 %v8269, 44
        %v8279 = vpop.permute.xlu0 %8278
        %8280 = vrot.lane.b32.xlu0 %v8260, 44
        %v8281 = vpop.permute.xlu0 %8280
        %8282 = vrot.lane.b32.xlu0 %v8270, 44
        %v8283 = vpop.permute.xlu0 %8282
        %8284 = vrot.lane.b32.xlu0 %v8261, 44
        %v8285 = vpop.permute.xlu0 %8284
        %8286 = vrot.lane.b32.xlu0 %v8271, 44
        %v8287 = vpop.permute.xlu0 %8286
        %8288 = vrot.lane.b32.xlu0 %v8262, 44
        %v8289 = vpop.permute.xlu0 %8288
        %vm8290 = vcmask 359424
        %v8291 = vsel %vm8290, %v8273, %v8275
        %v8292 = vsel %vm8290, %v8275, %v8277
        %v8293 = vsel %vm8290, %v8277, %v8279
        %v8294 = vsel %vm8290, %v8279, %v8281
        %v8295 = vsel %vm8290, %v8281, %v8283
        %v8296 = vsel %vm8290, %v8283, %v8285
        %v8297 = vsel %vm8290, %v8285, %v8287
        %v8298 = vsel %vm8290, %v8287, %v8289
        %v8300 = vsel %vm214, %v8257, 0
        %v8302 = vsel %vm218, %v8291, 0
        %v8304 = vsel %vm218, %v8292, 0
        %v8306 = vsel %vm218, %v8293, 0
        %v8308 = vsel %vm218, %v8294, 0
        %v8310 = vsel %vm218, %v8295, 0
        %v8312 = vsel %vm218, %v8296, 0
        %v8314 = vsel %vm218, %v8297, 0
        %v8316 = vsel %vm218, %v8298, 0
        %8318 = vmatprep.subr.mxu0 %v8304
        %8319 = vmatpush1.msra.mxu0 %v8302
        %8320 = vmatprep.subr.mxu0 0.0
        %8321 = vmatpush1.msra.mxu0 0.0
        %8322 = vmatprep.subr.mxu0 0.0
        %8323 = vmatpush1.msra.mxu0 0.0
        %8324 = vmatprep.subr.mxu0 0.0
        %8325 = vmatpush1.msra.mxu0 0.0
        %8326 = vmatprep.subr.mxu0 0.0
        %8327 = vmatpush1.msra.mxu0 0.0
        %8328 = vmatprep.subr.mxu0 0.0
        %8329 = vmatpush1.msra.mxu0 0.0
        %8330 = vmatprep.subr.mxu0 0.0
        %8331 = vmatpush1.msra.mxu0 0.0
        %8332 = vmatprep.subr.mxu0 0.0
        %8333 = vmatpush1.msra.mxu0 0.0
        %8334 = vmatprep.subr.mxu0 0.0
        %8335 = vmatpush1.msra.mxu0 0.0
        %8336 = vmatprep.subr.mxu0 0.0
        %8337 = vmatpush1.msra.mxu0 0.0
        %8338 = vmatprep.subr.mxu0 0.0
        %8339 = vmatpush1.msra.mxu0 0.0
        %8340 = vmatprep.subr.mxu0 0.0
        %8341 = vmatpush1.msra.mxu0 0.0
        %8342 = vmatprep.subr.mxu0 0.0
        %8343 = vmatpush1.msra.mxu0 0.0
        %8344 = vmatprep.subr.mxu0 0.0
        %8345 = vmatpush1.msra.mxu0 0.0
        %8346 = vmatprep.subr.mxu0 0.0
        %8347 = vmatpush1.msra.mxu0 0.0
        %8348 = vmatprep.subr.mxu0 0.0
        %8349 = vmatpush1.msra.mxu0 0.0
        %8350 = vmatprep.subr.mxu0 0.0
        %8351 = vmatpush1.msra.mxu0 0.0
        %8352 = vmatprep.subr.mxu0 0.0
        %8353 = vmatpush1.msra.mxu0 0.0
        %8354 = vmatprep.subr.mxu0 0.0
        %8355 = vmatpush1.msra.mxu0 0.0
        %8356 = vmatprep.subr.mxu0 0.0
        %8357 = vmatpush1.msra.mxu0 0.0
        %8358 = vmatprep.subr.mxu0 0.0
        %8359 = vmatpush1.msra.mxu0 0.0
        %8360 = vmatprep.subr.mxu0 0.0
        %8361 = vmatpush1.msra.mxu0 0.0
        %8362 = vmatprep.subr.mxu0 0.0
        %8363 = vmatpush1.msra.mxu0 0.0
        %8364 = vmatprep.subr.mxu0 0.0
        %8365 = vmatpush1.msra.mxu0 0.0
        %8366 = vmatprep.subr.mxu0 0.0
        %8367 = vmatpush1.msra.mxu0 0.0
        %8368 = vmatprep.subr.mxu0 0.0
        %8369 = vmatpush1.msra.mxu0 0.0
        %8370 = vmatprep.subr.mxu0 0.0
        %8371 = vmatpush1.msra.mxu0 0.0
        %8372 = vmatprep.subr.mxu0 0.0
        %8373 = vmatpush1.msra.mxu0 0.0
        %8374 = vmatprep.subr.mxu0 0.0
        %8375 = vmatpush1.msra.mxu0 0.0
        %8376 = vmatprep.subr.mxu0 0.0
        %8377 = vmatpush1.msra.mxu0 0.0
        %8378 = vmatprep.subr.mxu0 0.0
        %8379 = vmatpush1.msra.mxu0 0.0
        %8380 = vmatprep.subr.mxu0 0.0
        %8381 = vmatpush1.msra.mxu0 0.0
        %8382 = vmatprep.mubr.f32.mxu0 0.0
        %8383 = vmatmul.mubr.f32.gmra.mrb[0].mxu0 %v8300
        %v8384 = vpop.f32.mrb[0].mxu0
        %v8385 = vadd.f32 0.0, %v8384
        %v8386 = vpop.f32.mrb[0].mxu0
        %v8387 = vadd.f32 0.0, %v8386
        %8388 = vdwg.mxu0
        %8389 = vmatprep.subr.mxu0 %v8308
        %8390 = vmatpush1.msra.mxu0 %v8306
        %8391 = vmatprep.subr.mxu0 0.0
        %8392 = vmatpush1.msra.mxu0 0.0
        %8393 = vmatprep.subr.mxu0 0.0
        %8394 = vmatpush1.msra.mxu0 0.0
        %8395 = vmatprep.subr.mxu0 0.0
        %8396 = vmatpush1.msra.mxu0 0.0
        %8397 = vmatprep.subr.mxu0 0.0
        %8398 = vmatpush1.msra.mxu0 0.0
        %8399 = vmatprep.subr.mxu0 0.0
        %8400 = vmatpush1.msra.mxu0 0.0
        %8401 = vmatprep.subr.mxu0 0.0
        %8402 = vmatpush1.msra.mxu0 0.0
        %8403 = vmatprep.subr.mxu0 0.0
        %8404 = vmatpush1.msra.mxu0 0.0
        %8405 = vmatprep.subr.mxu0 0.0
        %8406 = vmatpush1.msra.mxu0 0.0
        %8407 = vmatprep.subr.mxu0 0.0
        %8408 = vmatpush1.msra.mxu0 0.0
        %8409 = vmatprep.subr.mxu0 0.0
        %8410 = vmatpush1.msra.mxu0 0.0
        %8411 = vmatprep.subr.mxu0 0.0
        %8412 = vmatpush1.msra.mxu0 0.0
        %8413 = vmatprep.subr.mxu0 0.0
        %8414 = vmatpush1.msra.mxu0 0.0
        %8415 = vmatprep.subr.mxu0 0.0
        %8416 = vmatpush1.msra.mxu0 0.0
        %8417 = vmatprep.subr.mxu0 0.0
        %8418 = vmatpush1.msra.mxu0 0.0
        %8419 = vmatprep.subr.mxu0 0.0
        %8420 = vmatpush1.msra.mxu0 0.0
        %8421 = vmatprep.subr.mxu0 0.0
        %8422 = vmatpush1.msra.mxu0 0.0
        %8423 = vmatprep.subr.mxu0 0.0
        %8424 = vmatpush1.msra.mxu0 0.0
        %8425 = vmatprep.subr.mxu0 0.0
        %8426 = vmatpush1.msra.mxu0 0.0
        %8427 = vmatprep.subr.mxu0 0.0
        %8428 = vmatpush1.msra.mxu0 0.0
        %8429 = vmatprep.subr.mxu0 0.0
        %8430 = vmatpush1.msra.mxu0 0.0
        %8431 = vmatprep.subr.mxu0 0.0
        %8432 = vmatpush1.msra.mxu0 0.0
        %8433 = vmatprep.subr.mxu0 0.0
        %8434 = vmatpush1.msra.mxu0 0.0
        %8435 = vmatprep.subr.mxu0 0.0
        %8436 = vmatpush1.msra.mxu0 0.0
        %8437 = vmatprep.subr.mxu0 0.0
        %8438 = vmatpush1.msra.mxu0 0.0
        %8439 = vmatprep.subr.mxu0 0.0
        %8440 = vmatpush1.msra.mxu0 0.0
        %8441 = vmatprep.subr.mxu0 0.0
        %8442 = vmatpush1.msra.mxu0 0.0
        %8443 = vmatprep.subr.mxu0 0.0
        %8444 = vmatpush1.msra.mxu0 0.0
        %8445 = vmatprep.subr.mxu0 0.0
        %8446 = vmatpush1.msra.mxu0 0.0
        %8447 = vmatprep.subr.mxu0 0.0
        %8448 = vmatpush1.msra.mxu0 0.0
        %8449 = vmatprep.subr.mxu0 0.0
        %8450 = vmatpush1.msra.mxu0 0.0
        %8451 = vmatprep.subr.mxu0 0.0
        %8452 = vmatpush1.msra.mxu0 0.0
        %8453 = vmatprep.mubr.f32.mxu0 0.0
        %8454 = vmatmul.mubr.f32.gmra.mrb[0].mxu0 %v8300
        %v8455 = vpop.f32.mrb[0].mxu0
        %v8456 = vadd.f32 0.0, %v8455
        %v8457 = vpop.f32.mrb[0].mxu0
        %v8458 = vadd.f32 0.0, %v8457
        %8459 = vdwg.mxu0
        %8460 = vmatprep.subr.mxu0 %v8312
        %8461 = vmatpush1.msra.mxu0 %v8310
        %8462 = vmatprep.subr.mxu0 0.0
        %8463 = vmatpush1.msra.mxu0 0.0
        %8464 = vmatprep.subr.mxu0 0.0
        %8465 = vmatpush1.msra.mxu0 0.0
        %8466 = vmatprep.subr.mxu0 0.0
        %8467 = vmatpush1.msra.mxu0 0.0
        %8468 = vmatprep.subr.mxu0 0.0
        %8469 = vmatpush1.msra.mxu0 0.0
        %8470 = vmatprep.subr.mxu0 0.0
        %8471 = vmatpush1.msra.mxu0 0.0
        %8472 = vmatprep.subr.mxu0 0.0
        %8473 = vmatpush1.msra.mxu0 0.0
        %8474 = vmatprep.subr.mxu0 0.0
        %8475 = vmatpush1.msra.mxu0 0.0
        %8476 = vmatprep.subr.mxu0 0.0
        %8477 = vmatpush1.msra.mxu0 0.0
        %8478 = vmatprep.subr.mxu0 0.0
        %8479 = vmatpush1.msra.mxu0 0.0
        %8480 = vmatprep.subr.mxu0 0.0
        %8481 = vmatpush1.msra.mxu0 0.0
        %8482 = vmatprep.subr.mxu0 0.0
        %8483 = vmatpush1.msra.mxu0 0.0
        %8484 = vmatprep.subr.mxu0 0.0
        %8485 = vmatpush1.msra.mxu0 0.0
        %8486 = vmatprep.subr.mxu0 0.0
        %8487 = vmatpush1.msra.mxu0 0.0
        %8488 = vmatprep.subr.mxu0 0.0
        %8489 = vmatpush1.msra.mxu0 0.0
        %8490 = vmatprep.subr.mxu0 0.0
        %8491 = vmatpush1.msra.mxu0 0.0
        %8492 = vmatprep.subr.mxu0 0.0
        %8493 = vmatpush1.msra.mxu0 0.0
        %8494 = vmatprep.subr.mxu0 0.0
        %8495 = vmatpush1.msra.mxu0 0.0
        %8496 = vmatprep.subr.mxu0 0.0
        %8497 = vmatpush1.msra.mxu0 0.0
        %8498 = vmatprep.subr.mxu0 0.0
        %8499 = vmatpush1.msra.mxu0 0.0
        %8500 = vmatprep.subr.mxu0 0.0
        %8501 = vmatpush1.msra.mxu0 0.0
        %8502 = vmatprep.subr.mxu0 0.0
        %8503 = vmatpush1.msra.mxu0 0.0
        %8504 = vmatprep.subr.mxu0 0.0
        %8505 = vmatpush1.msra.mxu0 0.0
        %8506 = vmatprep.subr.mxu0 0.0
        %8507 = vmatpush1.msra.mxu0 0.0
        %8508 = vmatprep.subr.mxu0 0.0
        %8509 = vmatpush1.msra.mxu0 0.0
        %8510 = vmatprep.subr.mxu0 0.0
        %8511 = vmatpush1.msra.mxu0 0.0
        %8512 = vmatprep.subr.mxu0 0.0
        %8513 = vmatpush1.msra.mxu0 0.0
        %8514 = vmatprep.subr.mxu0 0.0
        %8515 = vmatpush1.msra.mxu0 0.0
        %8516 = vmatprep.subr.mxu0 0.0
        %8517 = vmatpush1.msra.mxu0 0.0
        %8518 = vmatprep.subr.mxu0 0.0
        %8519 = vmatpush1.msra.mxu0 0.0
        %8520 = vmatprep.subr.mxu0 0.0
        %8521 = vmatpush1.msra.mxu0 0.0
        %8522 = vmatprep.subr.mxu0 0.0
        %8523 = vmatpush1.msra.mxu0 0.0
        %8524 = vmatprep.mubr.f32.mxu0 0.0
        %8525 = vmatmul.mubr.f32.gmra.mrb[0].mxu0 %v8300
        %v8526 = vpop.f32.mrb[0].mxu0
        %v8527 = vadd.f32 0.0, %v8526
        %v8528 = vpop.f32.mrb[0].mxu0
        %v8529 = vadd.f32 0.0, %v8528
        %8530 = vdwg.mxu0
        %8531 = vmatprep.subr.mxu0 %v8316
        %8532 = vmatpush1.msra.mxu0 %v8314
        %8533 = vmatprep.subr.mxu0 0.0
        %8534 = vmatpush1.msra.mxu0 0.0
        %8535 = vmatprep.subr.mxu0 0.0
        %8536 = vmatpush1.msra.mxu0 0.0
        %8537 = vmatprep.subr.mxu0 0.0
        %8538 = vmatpush1.msra.mxu0 0.0
        %8539 = vmatprep.subr.mxu0 0.0
        %8540 = vmatpush1.msra.mxu0 0.0
        %8541 = vmatprep.subr.mxu0 0.0
        %8542 = vmatpush1.msra.mxu0 0.0
        %8543 = vmatprep.subr.mxu0 0.0
        %8544 = vmatpush1.msra.mxu0 0.0
        %8545 = vmatprep.subr.mxu0 0.0
        %8546 = vmatpush1.msra.mxu0 0.0
        %8547 = vmatprep.subr.mxu0 0.0
        %8548 = vmatpush1.msra.mxu0 0.0
        %8549 = vmatprep.subr.mxu0 0.0
        %8550 = vmatpush1.msra.mxu0 0.0
        %8551 = vmatprep.subr.mxu0 0.0
        %8552 = vmatpush1.msra.mxu0 0.0
        %8553 = vmatprep.subr.mxu0 0.0
        %8554 = vmatpush1.msra.mxu0 0.0
        %8555 = vmatprep.subr.mxu0 0.0
        %8556 = vmatpush1.msra.mxu0 0.0
        %8557 = vmatprep.subr.mxu0 0.0
        %8558 = vmatpush1.msra.mxu0 0.0
        %8559 = vmatprep.subr.mxu0 0.0
        %8560 = vmatpush1.msra.mxu0 0.0
        %8561 = vmatprep.subr.mxu0 0.0
        %8562 = vmatpush1.msra.mxu0 0.0
        %8563 = vmatprep.subr.mxu0 0.0
        %8564 = vmatpush1.msra.mxu0 0.0
        %8565 = vmatprep.subr.mxu0 0.0
        %8566 = vmatpush1.msra.mxu0 0.0
        %8567 = vmatprep.subr.mxu0 0.0
        %8568 = vmatpush1.msra.mxu0 0.0
        %8569 = vmatprep.subr.mxu0 0.0
        %8570 = vmatpush1.msra.mxu0 0.0
        %8571 = vmatprep.subr.mxu0 0.0
        %8572 = vmatpush1.msra.mxu0 0.0
        %8573 = vmatprep.subr.mxu0 0.0
        %8574 = vmatpush1.msra.mxu0 0.0
        %8575 = vmatprep.subr.mxu0 0.0
        %8576 = vmatpush1.msra.mxu0 0.0
        %8577 = vmatprep.subr.mxu0 0.0
        %8578 = vmatpush1.msra.mxu0 0.0
        %8579 = vmatprep.subr.mxu0 0.0
        %8580 = vmatpush1.msra.mxu0 0.0
        %8581 = vmatprep.subr.mxu0 0.0
        %8582 = vmatpush1.msra.mxu0 0.0
        %8583 = vmatprep.subr.mxu0 0.0
        %8584 = vmatpush1.msra.mxu0 0.0
        %8585 = vmatprep.subr.mxu0 0.0
        %8586 = vmatpush1.msra.mxu0 0.0
        %8587 = vmatprep.subr.mxu0 0.0
        %8588 = vmatpush1.msra.mxu0 0.0
        %8589 = vmatprep.subr.mxu0 0.0
        %8590 = vmatpush1.msra.mxu0 0.0
        %8591 = vmatprep.subr.mxu0 0.0
        %8592 = vmatpush1.msra.mxu0 0.0
        %8593 = vmatprep.subr.mxu0 0.0
        %8594 = vmatpush1.msra.mxu0 0.0
        %8595 = vmatprep.mubr.f32.mxu0 0.0
        %8596 = vmatmul.mubr.f32.gmra.mrb[0].mxu0 %v8300
        %v8597 = vpop.f32.mrb[0].mxu0
        %v8598 = vadd.f32 0.0, %v8597
        %v8599 = vpop.f32.mrb[0].mxu0
        %v8600 = vadd.f32 0.0, %v8599
        %8601 = vdwg.mxu0
        %v8602 = vadd.f32 %v8248, %v8385
        %v8603 = vadd.f32 %v8249, %v8387
        %v8604 = vadd.f32 %v8250, %v8456
        %v8605 = vadd.f32 %v8251, %v8458
        %v8606 = vadd.f32 %v8252, %v8527
        %v8607 = vadd.f32 %v8253, %v8529
        %v8608 = vadd.f32 %v8254, %v8598
        %v8609 = vadd.f32 %v8255, %v8600
        %s8610 = scalar_lea.vmem %s1, 192
        %v8611 = vld [vmem:[%s8610] sm:$0xff]
        %v8612 = vld [vmem:[%s168 + $0x4] sm:$0xff]
        %v8613 = vld [vmem:[%s168 + $0xc] sm:$0xff]
        %v8614 = vld [vmem:[%s168 + $0x14] sm:$0xff]
        %v8615 = vld [vmem:[%s168 + $0x1c] sm:$0xff]
        %v8616 = vld [vmem:[%s168 + $0x24] sm:$0xf]
        %v8622 = vcombine.high %v8612, %v8612
        %v8623 = vcombine.high %v8613, %v8613
        %v8624 = vcombine.high %v8614, %v8614
        %v8625 = vcombine.high %v8615, %v8615
        %8626 = vrot.lane.b32.xlu0 %v8612, 36
        %v8627 = vpop.permute.xlu0 %8626
        %8628 = vrot.lane.b32.xlu0 %v8622, 36
        %v8629 = vpop.permute.xlu0 %8628
        %8630 = vrot.lane.b32.xlu0 %v8613, 36
        %v8631 = vpop.permute.xlu0 %8630
        %8632 = vrot.lane.b32.xlu0 %v8623, 36
        %v8633 = vpop.permute.xlu0 %8632
        %8634 = vrot.lane.b32.xlu0 %v8614, 36
        %v8635 = vpop.permute.xlu0 %8634
        %8636 = vrot.lane.b32.xlu0 %v8624, 36
        %v8637 = vpop.permute.xlu0 %8636
        %8638 = vrot.lane.b32.xlu0 %v8615, 36
        %v8639 = vpop.permute.xlu0 %8638
        %8640 = vrot.lane.b32.xlu0 %v8625, 36
        %v8641 = vpop.permute.xlu0 %8640
        %8642 = vrot.lane.b32.xlu0 %v8616, 36
        %v8643 = vpop.permute.xlu0 %8642
        %vm8644 = vcmask 293888
        %v8645 = vsel %vm8644, %v8627, %v8629
        %v8646 = vsel %vm8644, %v8629, %v8631
        %v8647 = vsel %vm8644, %v8631, %v8633
        %v8648 = vsel %vm8644, %v8633, %v8635
        %v8649 = vsel %vm8644, %v8635, %v8637
        %v8650 = vsel %vm8644, %v8637, %v8639
        %v8651 = vsel %vm8644, %v8639, %v8641
        %v8652 = vsel %vm8644, %v8641, %v8643
        %v8654 = vsel %vm214, %v8611, 0
        %v8656 = vsel %vm218, %v8645, 0
        %v8658 = vsel %vm218, %v8646, 0
        %v8660 = vsel %vm218, %v8647, 0
        %v8662 = vsel %vm218, %v8648, 0
        %v8664 = vsel %vm218, %v8649, 0
        %v8666 = vsel %vm218, %v8650, 0
        %v8668 = vsel %vm218, %v8651, 0
        %v8670 = vsel %vm218, %v8652, 0
        %8672 = vmatprep.subr.mxu0 %v8658
        %8673 = vmatpush1.msra.mxu0 %v8656
        %8674 = vmatprep.subr.mxu0 0.0
        %8675 = vmatpush1.msra.mxu0 0.0
        %8676 = vmatprep.subr.mxu0 0.0
        %8677 = vmatpush1.msra.mxu0 0.0
        %8678 = vmatprep.subr.mxu0 0.0
        %8679 = vmatpush1.msra.mxu0 0.0
        %8680 = vmatprep.subr.mxu0 0.0
        %8681 = vmatpush1.msra.mxu0 0.0
        %8682 = vmatprep.subr.mxu0 0.0
        %8683 = vmatpush1.msra.mxu0 0.0
        %8684 = vmatprep.subr.mxu0 0.0
        %8685 = vmatpush1.msra.mxu0 0.0
        %8686 = vmatprep.subr.mxu0 0.0
        %8687 = vmatpush1.msra.mxu0 0.0
        %8688 = vmatprep.subr.mxu0 0.0
        %8689 = vmatpush1.msra.mxu0 0.0
        %8690 = vmatprep.subr.mxu0 0.0
        %8691 = vmatpush1.msra.mxu0 0.0
        %8692 = vmatprep.subr.mxu0 0.0
        %8693 = vmatpush1.msra.mxu0 0.0
        %8694 = vmatprep.subr.mxu0 0.0
        %8695 = vmatpush1.msra.mxu0 0.0
        %8696 = vmatprep.subr.mxu0 0.0
        %8697 = vmatpush1.msra.mxu0 0.0
        %8698 = vmatprep.subr.mxu0 0.0
        %8699 = vmatpush1.msra.mxu0 0.0
        %8700 = vmatprep.subr.mxu0 0.0
        %8701 = vmatpush1.msra.mxu0 0.0
        %8702 = vmatprep.subr.mxu0 0.0
        %8703 = vmatpush1.msra.mxu0 0.0
        %8704 = vmatprep.subr.mxu0 0.0
        %8705 = vmatpush1.msra.mxu0 0.0
        %8706 = vmatprep.subr.mxu0 0.0
        %8707 = vmatpush1.msra.mxu0 0.0
        %8708 = vmatprep.subr.mxu0 0.0
        %8709 = vmatpush1.msra.mxu0 0.0
        %8710 = vmatprep.subr.mxu0 0.0
        %8711 = vmatpush1.msra.mxu0 0.0
        %8712 = vmatprep.subr.mxu0 0.0
        %8713 = vmatpush1.msra.mxu0 0.0
        %8714 = vmatprep.subr.mxu0 0.0
        %8715 = vmatpush1.msra.mxu0 0.0
        %8716 = vmatprep.subr.mxu0 0.0
        %8717 = vmatpush1.msra.mxu0 0.0
        %8718 = vmatprep.subr.mxu0 0.0
        %8719 = vmatpush1.msra.mxu0 0.0
        %8720 = vmatprep.subr.mxu0 0.0
        %8721 = vmatpush1.msra.mxu0 0.0
        %8722 = vmatprep.subr.mxu0 0.0
        %8723 = vmatpush1.msra.mxu0 0.0
        %8724 = vmatprep.subr.mxu0 0.0
        %8725 = vmatpush1.msra.mxu0 0.0
        %8726 = vmatprep.subr.mxu0 0.0
        %8727 = vmatpush1.msra.mxu0 0.0
        %8728 = vmatprep.subr.mxu0 0.0
        %8729 = vmatpush1.msra.mxu0 0.0
        %8730 = vmatprep.subr.mxu0 0.0
        %8731 = vmatpush1.msra.mxu0 0.0
        %8732 = vmatprep.subr.mxu0 0.0
        %8733 = vmatpush1.msra.mxu0 0.0
        %8734 = vmatprep.subr.mxu0 0.0
        %8735 = vmatpush1.msra.mxu0 0.0
        %8736 = vmatprep.mubr.f32.mxu0 0.0
        %8737 = vmatmul.mubr.f32.gmra.mrb[0].mxu0 %v8654
        %v8738 = vpop.f32.mrb[0].mxu0
        %v8739 = vadd.f32 0.0, %v8738
        %v8740 = vpop.f32.mrb[0].mxu0
        %v8741 = vadd.f32 0.0, %v8740
        %8742 = vdwg.mxu0
        %8743 = vmatprep.subr.mxu0 %v8662
        %8744 = vmatpush1.msra.mxu0 %v8660
        %8745 = vmatprep.subr.mxu0 0.0
        %8746 = vmatpush1.msra.mxu0 0.0
        %8747 = vmatprep.subr.mxu0 0.0
        %8748 = vmatpush1.msra.mxu0 0.0
        %8749 = vmatprep.subr.mxu0 0.0
        %8750 = vmatpush1.msra.mxu0 0.0
        %8751 = vmatprep.subr.mxu0 0.0
        %8752 = vmatpush1.msra.mxu0 0.0
        %8753 = vmatprep.subr.mxu0 0.0
        %8754 = vmatpush1.msra.mxu0 0.0
        %8755 = vmatprep.subr.mxu0 0.0
        %8756 = vmatpush1.msra.mxu0 0.0
        %8757 = vmatprep.subr.mxu0 0.0
        %8758 = vmatpush1.msra.mxu0 0.0
        %8759 = vmatprep.subr.mxu0 0.0
        %8760 = vmatpush1.msra.mxu0 0.0
        %8761 = vmatprep.subr.mxu0 0.0
        %8762 = vmatpush1.msra.mxu0 0.0
        %8763 = vmatprep.subr.mxu0 0.0
        %8764 = vmatpush1.msra.mxu0 0.0
        %8765 = vmatprep.subr.mxu0 0.0
        %8766 = vmatpush1.msra.mxu0 0.0
        %8767 = vmatprep.subr.mxu0 0.0
        %8768 = vmatpush1.msra.mxu0 0.0
        %8769 = vmatprep.subr.mxu0 0.0
        %8770 = vmatpush1.msra.mxu0 0.0
        %8771 = vmatprep.subr.mxu0 0.0
        %8772 = vmatpush1.msra.mxu0 0.0
        %8773 = vmatprep.subr.mxu0 0.0
        %8774 = vmatpush1.msra.mxu0 0.0
        %8775 = vmatprep.subr.mxu0 0.0
        %8776 = vmatpush1.msra.mxu0 0.0
        %8777 = vmatprep.subr.mxu0 0.0
        %8778 = vmatpush1.msra.mxu0 0.0
        %8779 = vmatprep.subr.mxu0 0.0
        %8780 = vmatpush1.msra.mxu0 0.0
        %8781 = vmatprep.subr.mxu0 0.0
        %8782 = vmatpush1.msra.mxu0 0.0
        %8783 = vmatprep.subr.mxu0 0.0
        %8784 = vmatpush1.msra.mxu0 0.0
        %8785 = vmatprep.subr.mxu0 0.0
        %8786 = vmatpush1.msra.mxu0 0.0
        %8787 = vmatprep.subr.mxu0 0.0
        %8788 = vmatpush1.msra.mxu0 0.0
        %8789 = vmatprep.subr.mxu0 0.0
        %8790 = vmatpush1.msra.mxu0 0.0
        %8791 = vmatprep.subr.mxu0 0.0
        %8792 = vmatpush1.msra.mxu0 0.0
        %8793 = vmatprep.subr.mxu0 0.0
        %8794 = vmatpush1.msra.mxu0 0.0
        %8795 = vmatprep.subr.mxu0 0.0
        %8796 = vmatpush1.msra.mxu0 0.0
        %8797 = vmatprep.subr.mxu0 0.0
        %8798 = vmatpush1.msra.mxu0 0.0
        %8799 = vmatprep.subr.mxu0 0.0
        %8800 = vmatpush1.msra.mxu0 0.0
        %8801 = vmatprep.subr.mxu0 0.0
        %8802 = vmatpush1.msra.mxu0 0.0
        %8803 = vmatprep.subr.mxu0 0.0
        %8804 = vmatpush1.msra.mxu0 0.0
        %8805 = vmatprep.subr.mxu0 0.0
        %8806 = vmatpush1.msra.mxu0 0.0
        %8807 = vmatprep.mubr.f32.mxu0 0.0
        %8808 = vmatmul.mubr.f32.gmra.mrb[0].mxu0 %v8654
        %v8809 = vpop.f32.mrb[0].mxu0
        %v8810 = vadd.f32 0.0, %v8809
        %v8811 = vpop.f32.mrb[0].mxu0
        %v8812 = vadd.f32 0.0, %v8811
        %8813 = vdwg.mxu0
        %8814 = vmatprep.subr.mxu0 %v8666
        %8815 = vmatpush1.msra.mxu0 %v8664
        %8816 = vmatprep.subr.mxu0 0.0
        %8817 = vmatpush1.msra.mxu0 0.0
        %8818 = vmatprep.subr.mxu0 0.0
        %8819 = vmatpush1.msra.mxu0 0.0
        %8820 = vmatprep.subr.mxu0 0.0
        %8821 = vmatpush1.msra.mxu0 0.0
        %8822 = vmatprep.subr.mxu0 0.0
        %8823 = vmatpush1.msra.mxu0 0.0
        %8824 = vmatprep.subr.mxu0 0.0
        %8825 = vmatpush1.msra.mxu0 0.0
        %8826 = vmatprep.subr.mxu0 0.0
        %8827 = vmatpush1.msra.mxu0 0.0
        %8828 = vmatprep.subr.mxu0 0.0
        %8829 = vmatpush1.msra.mxu0 0.0
        %8830 = vmatprep.subr.mxu0 0.0
        %8831 = vmatpush1.msra.mxu0 0.0
        %8832 = vmatprep.subr.mxu0 0.0
        %8833 = vmatpush1.msra.mxu0 0.0
        %8834 = vmatprep.subr.mxu0 0.0
        %8835 = vmatpush1.msra.mxu0 0.0
        %8836 = vmatprep.subr.mxu0 0.0
        %8837 = vmatpush1.msra.mxu0 0.0
        %8838 = vmatprep.subr.mxu0 0.0
        %8839 = vmatpush1.msra.mxu0 0.0
        %8840 = vmatprep.subr.mxu0 0.0
        %8841 = vmatpush1.msra.mxu0 0.0
        %8842 = vmatprep.subr.mxu0 0.0
        %8843 = vmatpush1.msra.mxu0 0.0
        %8844 = vmatprep.subr.mxu0 0.0
        %8845 = vmatpush1.msra.mxu0 0.0
        %8846 = vmatprep.subr.mxu0 0.0
        %8847 = vmatpush1.msra.mxu0 0.0
        %8848 = vmatprep.subr.mxu0 0.0
        %8849 = vmatpush1.msra.mxu0 0.0
        %8850 = vmatprep.subr.mxu0 0.0
        %8851 = vmatpush1.msra.mxu0 0.0
        %8852 = vmatprep.subr.mxu0 0.0
        %8853 = vmatpush1.msra.mxu0 0.0
        %8854 = vmatprep.subr.mxu0 0.0
        %8855 = vmatpush1.msra.mxu0 0.0
        %8856 = vmatprep.subr.mxu0 0.0
        %8857 = vmatpush1.msra.mxu0 0.0
        %8858 = vmatprep.subr.mxu0 0.0
        %8859 = vmatpush1.msra.mxu0 0.0
        %8860 = vmatprep.subr.mxu0 0.0
        %8861 = vmatpush1.msra.mxu0 0.0
        %8862 = vmatprep.subr.mxu0 0.0
        %8863 = vmatpush1.msra.mxu0 0.0
        %8864 = vmatprep.subr.mxu0 0.0
        %8865 = vmatpush1.msra.mxu0 0.0
        %8866 = vmatprep.subr.mxu0 0.0
        %8867 = vmatpush1.msra.mxu0 0.0
        %8868 = vmatprep.subr.mxu0 0.0
        %8869 = vmatpush1.msra.mxu0 0.0
        %8870 = vmatprep.subr.mxu0 0.0
        %8871 = vmatpush1.msra.mxu0 0.0
        %8872 = vmatprep.subr.mxu0 0.0
        %8873 = vmatpush1.msra.mxu0 0.0
        %8874 = vmatprep.subr.mxu0 0.0
        %8875 = vmatpush1.msra.mxu0 0.0
        %8876 = vmatprep.subr.mxu0 0.0
        %8877 = vmatpush1.msra.mxu0 0.0
        %8878 = vmatprep.mubr.f32.mxu0 0.0
        %8879 = vmatmul.mubr.f32.gmra.mrb[0].mxu0 %v8654
        %v8880 = vpop.f32.mrb[0].mxu0
        %v8881 = vadd.f32 0.0, %v8880
        %v8882 = vpop.f32.mrb[0].mxu0
        %v8883 = vadd.f32 0.0, %v8882
        %8884 = vdwg.mxu0
        %8885 = vmatprep.subr.mxu0 %v8670
        %8886 = vmatpush1.msra.mxu0 %v8668
        %8887 = vmatprep.subr.mxu0 0.0
        %8888 = vmatpush1.msra.mxu0 0.0
        %8889 = vmatprep.subr.mxu0 0.0
        %8890 = vmatpush1.msra.mxu0 0.0
        %8891 = vmatprep.subr.mxu0 0.0
        %8892 = vmatpush1.msra.mxu0 0.0
        %8893 = vmatprep.subr.mxu0 0.0
        %8894 = vmatpush1.msra.mxu0 0.0
        %8895 = vmatprep.subr.mxu0 0.0
        %8896 = vmatpush1.msra.mxu0 0.0
        %8897 = vmatprep.subr.mxu0 0.0
        %8898 = vmatpush1.msra.mxu0 0.0
        %8899 = vmatprep.subr.mxu0 0.0
        %8900 = vmatpush1.msra.mxu0 0.0
        %8901 = vmatprep.subr.mxu0 0.0
        %8902 = vmatpush1.msra.mxu0 0.0
        %8903 = vmatprep.subr.mxu0 0.0
        %8904 = vmatpush1.msra.mxu0 0.0
        %8905 = vmatprep.subr.mxu0 0.0
        %8906 = vmatpush1.msra.mxu0 0.0
        %8907 = vmatprep.subr.mxu0 0.0
        %8908 = vmatpush1.msra.mxu0 0.0
        %8909 = vmatprep.subr.mxu0 0.0
        %8910 = vmatpush1.msra.mxu0 0.0
        %8911 = vmatprep.subr.mxu0 0.0
        %8912 = vmatpush1.msra.mxu0 0.0
        %8913 = vmatprep.subr.mxu0 0.0
        %8914 = vmatpush1.msra.mxu0 0.0
        %8915 = vmatprep.subr.mxu0 0.0
        %8916 = vmatpush1.msra.mxu0 0.0
        %8917 = vmatprep.subr.mxu0 0.0
        %8918 = vmatpush1.msra.mxu0 0.0
        %8919 = vmatprep.subr.mxu0 0.0
        %8920 = vmatpush1.msra.mxu0 0.0
        %8921 = vmatprep.subr.mxu0 0.0
        %8922 = vmatpush1.msra.mxu0 0.0
        %8923 = vmatprep.subr.mxu0 0.0
        %8924 = vmatpush1.msra.mxu0 0.0
        %8925 = vmatprep.subr.mxu0 0.0
        %8926 = vmatpush1.msra.mxu0 0.0
        %8927 = vmatprep.subr.mxu0 0.0
        %8928 = vmatpush1.msra.mxu0 0.0
        %8929 = vmatprep.subr.mxu0 0.0
        %8930 = vmatpush1.msra.mxu0 0.0
        %8931 = vmatprep.subr.mxu0 0.0
        %8932 = vmatpush1.msra.mxu0 0.0
        %8933 = vmatprep.subr.mxu0 0.0
        %8934 = vmatpush1.msra.mxu0 0.0
        %8935 = vmatprep.subr.mxu0 0.0
        %8936 = vmatpush1.msra.mxu0 0.0
        %8937 = vmatprep.subr.mxu0 0.0
        %8938 = vmatpush1.msra.mxu0 0.0
        %8939 = vmatprep.subr.mxu0 0.0
        %8940 = vmatpush1.msra.mxu0 0.0
        %8941 = vmatprep.subr.mxu0 0.0
        %8942 = vmatpush1.msra.mxu0 0.0
        %8943 = vmatprep.subr.mxu0 0.0
        %8944 = vmatpush1.msra.mxu0 0.0
        %8945 = vmatprep.subr.mxu0 0.0
        %8946 = vmatpush1.msra.mxu0 0.0
        %8947 = vmatprep.subr.mxu0 0.0
        %8948 = vmatpush1.msra.mxu0 0.0
        %8949 = vmatprep.mubr.f32.mxu0 0.0
        %8950 = vmatmul.mubr.f32.gmra.mrb[0].mxu0 %v8654
        %v8951 = vpop.f32.mrb[0].mxu0
        %v8952 = vadd.f32 0.0, %v8951
        %v8953 = vpop.f32.mrb[0].mxu0
        %v8954 = vadd.f32 0.0, %v8953
        %8955 = vdwg.mxu0
        %v8956 = vadd.f32 %v8602, %v8739
        %v8957 = vadd.f32 %v8603, %v8741
        %v8958 = vadd.f32 %v8604, %v8810
        %v8959 = vadd.f32 %v8605, %v8812
        %v8960 = vadd.f32 %v8606, %v8881
        %v8961 = vadd.f32 %v8607, %v8883
        %v8962 = vadd.f32 %v8608, %v8952
        %v8963 = vadd.f32 %v8609, %v8954
        %s8964 = scalar_lea.vmem %s1, 200
        %v8965 = vld [vmem:[%s8964] sm:$0xff]
        %v8966 = vld [vmem:[%s168 + $0x4] sm:$0xff]
        %v8967 = vld [vmem:[%s168 + $0xc] sm:$0xff]
        %v8968 = vld [vmem:[%s168 + $0x14] sm:$0xff]
        %v8969 = vld [vmem:[%s168 + $0x1c] sm:$0xff]
        %v8970 = vld [vmem:[%s168 + $0x24] sm:$0xf]
        %v8976 = vcombine.high %v8966, %v8966
        %v8977 = vcombine.high %v8967, %v8967
        %v8978 = vcombine.high %v8968, %v8968
        %v8979 = vcombine.high %v8969, %v8969
        %8980 = vrot.lane.b32.xlu0 %v8966, 35
        %v8981 = vpop.permute.xlu0 %8980
        %8982 = vrot.lane.b32.xlu0 %v8976, 35
        %v8983 = vpop.permute.xlu0 %8982
        %8984 = vrot.lane.b32.xlu0 %v8967, 35
        %v8985 = vpop.permute.xlu0 %8984
        %8986 = vrot.lane.b32.xlu0 %v8977, 35
        %v8987 = vpop.permute.xlu0 %8986
        %8988 = vrot.lane.b32.xlu0 %v8968, 35
        %v8989 = vpop.permute.xlu0 %8988
        %8990 = vrot.lane.b32.xlu0 %v8978, 35
        %v8991 = vpop.permute.xlu0 %8990
        %8992 = vrot.lane.b32.xlu0 %v8969, 35
        %v8993 = vpop.permute.xlu0 %8992
        %8994 = vrot.lane.b32.xlu0 %v8979, 35
        %v8995 = vpop.permute.xlu0 %8994
        %8996 = vrot.lane.b32.xlu0 %v8970, 35
        %v8997 = vpop.permute.xlu0 %8996
        %vm8998 = vcmask 285696
        %v8999 = vsel %vm8998, %v8981, %v8983
        %v9000 = vsel %vm8998, %v8983, %v8985
        %v9001 = vsel %vm8998, %v8985, %v8987
        %v9002 = vsel %vm8998, %v8987, %v8989
        %v9003 = vsel %vm8998, %v8989, %v8991
        %v9004 = vsel %vm8998, %v8991, %v8993
        %v9005 = vsel %vm8998, %v8993, %v8995
        %v9006 = vsel %vm8998, %v8995, %v8997
        %v9008 = vsel %vm214, %v8965, 0
        %v9010 = vsel %vm218, %v8999, 0
        %v9012 = vsel %vm218, %v9000, 0
        %v9014 = vsel %vm218, %v9001, 0
        %v9016 = vsel %vm218, %v9002, 0
        %v9018 = vsel %vm218, %v9003, 0
        %v9020 = vsel %vm218, %v9004, 0
        %v9022 = vsel %vm218, %v9005, 0
        %v9024 = vsel %vm218, %v9006, 0
        %9026 = vmatprep.subr.mxu0 %v9012
        %9027 = vmatpush1.msra.mxu0 %v9010
        %9028 = vmatprep.subr.mxu0 0.0
        %9029 = vmatpush1.msra.mxu0 0.0
        %9030 = vmatprep.subr.mxu0 0.0
        %9031 = vmatpush1.msra.mxu0 0.0
        %9032 = vmatprep.subr.mxu0 0.0
        %9033 = vmatpush1.msra.mxu0 0.0
        %9034 = vmatprep.subr.mxu0 0.0
        %9035 = vmatpush1.msra.mxu0 0.0
        %9036 = vmatprep.subr.mxu0 0.0
        %9037 = vmatpush1.msra.mxu0 0.0
        %9038 = vmatprep.subr.mxu0 0.0
        %9039 = vmatpush1.msra.mxu0 0.0
        %9040 = vmatprep.subr.mxu0 0.0
        %9041 = vmatpush1.msra.mxu0 0.0
        %9042 = vmatprep.subr.mxu0 0.0
        %9043 = vmatpush1.msra.mxu0 0.0
        %9044 = vmatprep.subr.mxu0 0.0
        %9045 = vmatpush1.msra.mxu0 0.0
        %9046 = vmatprep.subr.mxu0 0.0
        %9047 = vmatpush1.msra.mxu0 0.0
        %9048 = vmatprep.subr.mxu0 0.0
        %9049 = vmatpush1.msra.mxu0 0.0
        %9050 = vmatprep.subr.mxu0 0.0
        %9051 = vmatpush1.msra.mxu0 0.0
        %9052 = vmatprep.subr.mxu0 0.0
        %9053 = vmatpush1.msra.mxu0 0.0
        %9054 = vmatprep.subr.mxu0 0.0
        %9055 = vmatpush1.msra.mxu0 0.0
        %9056 = vmatprep.subr.mxu0 0.0
        %9057 = vmatpush1.msra.mxu0 0.0
        %9058 = vmatprep.subr.mxu0 0.0
        %9059 = vmatpush1.msra.mxu0 0.0
        %9060 = vmatprep.subr.mxu0 0.0
        %9061 = vmatpush1.msra.mxu0 0.0
        %9062 = vmatprep.subr.mxu0 0.0
        %9063 = vmatpush1.msra.mxu0 0.0
        %9064 = vmatprep.subr.mxu0 0.0
        %9065 = vmatpush1.msra.mxu0 0.0
        %9066 = vmatprep.subr.mxu0 0.0
        %9067 = vmatpush1.msra.mxu0 0.0
        %9068 = vmatprep.subr.mxu0 0.0
        %9069 = vmatpush1.msra.mxu0 0.0
        %9070 = vmatprep.subr.mxu0 0.0
        %9071 = vmatpush1.msra.mxu0 0.0
        %9072 = vmatprep.subr.mxu0 0.0
        %9073 = vmatpush1.msra.mxu0 0.0
        %9074 = vmatprep.subr.mxu0 0.0
        %9075 = vmatpush1.msra.mxu0 0.0
        %9076 = vmatprep.subr.mxu0 0.0
        %9077 = vmatpush1.msra.mxu0 0.0
        %9078 = vmatprep.subr.mxu0 0.0
        %9079 = vmatpush1.msra.mxu0 0.0
        %9080 = vmatprep.subr.mxu0 0.0
        %9081 = vmatpush1.msra.mxu0 0.0
        %9082 = vmatprep.subr.mxu0 0.0
        %9083 = vmatpush1.msra.mxu0 0.0
        %9084 = vmatprep.subr.mxu0 0.0
        %9085 = vmatpush1.msra.mxu0 0.0
        %9086 = vmatprep.subr.mxu0 0.0
        %9087 = vmatpush1.msra.mxu0 0.0
        %9088 = vmatprep.subr.mxu0 0.0
        %9089 = vmatpush1.msra.mxu0 0.0
        %9090 = vmatprep.mubr.f32.mxu0 0.0
        %9091 = vmatmul.mubr.f32.gmra.mrb[0].mxu0 %v9008
        %v9092 = vpop.f32.mrb[0].mxu0
        %v9093 = vadd.f32 0.0, %v9092
        %v9094 = vpop.f32.mrb[0].mxu0
        %v9095 = vadd.f32 0.0, %v9094
        %9096 = vdwg.mxu0
        %9097 = vmatprep.subr.mxu0 %v9016
        %9098 = vmatpush1.msra.mxu0 %v9014
        %9099 = vmatprep.subr.mxu0 0.0
        %9100 = vmatpush1.msra.mxu0 0.0
        %9101 = vmatprep.subr.mxu0 0.0
        %9102 = vmatpush1.msra.mxu0 0.0
        %9103 = vmatprep.subr.mxu0 0.0
        %9104 = vmatpush1.msra.mxu0 0.0
        %9105 = vmatprep.subr.mxu0 0.0
        %9106 = vmatpush1.msra.mxu0 0.0
        %9107 = vmatprep.subr.mxu0 0.0
        %9108 = vmatpush1.msra.mxu0 0.0
        %9109 = vmatprep.subr.mxu0 0.0
        %9110 = vmatpush1.msra.mxu0 0.0
        %9111 = vmatprep.subr.mxu0 0.0
        %9112 = vmatpush1.msra.mxu0 0.0
        %9113 = vmatprep.subr.mxu0 0.0
        %9114 = vmatpush1.msra.mxu0 0.0
        %9115 = vmatprep.subr.mxu0 0.0
        %9116 = vmatpush1.msra.mxu0 0.0
        %9117 = vmatprep.subr.mxu0 0.0
        %9118 = vmatpush1.msra.mxu0 0.0
        %9119 = vmatprep.subr.mxu0 0.0
        %9120 = vmatpush1.msra.mxu0 0.0
        %9121 = vmatprep.subr.mxu0 0.0
        %9122 = vmatpush1.msra.mxu0 0.0
        %9123 = vmatprep.subr.mxu0 0.0
        %9124 = vmatpush1.msra.mxu0 0.0
        %9125 = vmatprep.subr.mxu0 0.0
        %9126 = vmatpush1.msra.mxu0 0.0
        %9127 = vmatprep.subr.mxu0 0.0
        %9128 = vmatpush1.msra.mxu0 0.0
        %9129 = vmatprep.subr.mxu0 0.0
        %9130 = vmatpush1.msra.mxu0 0.0
        %9131 = vmatprep.subr.mxu0 0.0
        %9132 = vmatpush1.msra.mxu0 0.0
        %9133 = vmatprep.subr.mxu0 0.0
        %9134 = vmatpush1.msra.mxu0 0.0
        %9135 = vmatprep.subr.mxu0 0.0
        %9136 = vmatpush1.msra.mxu0 0.0
        %9137 = vmatprep.subr.mxu0 0.0
        %9138 = vmatpush1.msra.mxu0 0.0
        %9139 = vmatprep.subr.mxu0 0.0
        %9140 = vmatpush1.msra.mxu0 0.0
        %9141 = vmatprep.subr.mxu0 0.0
        %9142 = vmatpush1.msra.mxu0 0.0
        %9143 = vmatprep.subr.mxu0 0.0
        %9144 = vmatpush1.msra.mxu0 0.0
        %9145 = vmatprep.subr.mxu0 0.0
        %9146 = vmatpush1.msra.mxu0 0.0
        %9147 = vmatprep.subr.mxu0 0.0
        %9148 = vmatpush1.msra.mxu0 0.0
        %9149 = vmatprep.subr.mxu0 0.0
        %9150 = vmatpush1.msra.mxu0 0.0
        %9151 = vmatprep.subr.mxu0 0.0
        %9152 = vmatpush1.msra.mxu0 0.0
        %9153 = vmatprep.subr.mxu0 0.0
        %9154 = vmatpush1.msra.mxu0 0.0
        %9155 = vmatprep.subr.mxu0 0.0
        %9156 = vmatpush1.msra.mxu0 0.0
        %9157 = vmatprep.subr.mxu0 0.0
        %9158 = vmatpush1.msra.mxu0 0.0
        %9159 = vmatprep.subr.mxu0 0.0
        %9160 = vmatpush1.msra.mxu0 0.0
        %9161 = vmatprep.mubr.f32.mxu0 0.0
        %9162 = vmatmul.mubr.f32.gmra.mrb[0].mxu0 %v9008
        %v9163 = vpop.f32.mrb[0].mxu0
        %v9164 = vadd.f32 0.0, %v9163
        %v9165 = vpop.f32.mrb[0].mxu0
        %v9166 = vadd.f32 0.0, %v9165
        %9167 = vdwg.mxu0
        %9168 = vmatprep.subr.mxu0 %v9020
        %9169 = vmatpush1.msra.mxu0 %v9018
        %9170 = vmatprep.subr.mxu0 0.0
        %9171 = vmatpush1.msra.mxu0 0.0
        %9172 = vmatprep.subr.mxu0 0.0
        %9173 = vmatpush1.msra.mxu0 0.0
        %9174 = vmatprep.subr.mxu0 0.0
        %9175 = vmatpush1.msra.mxu0 0.0
        %9176 = vmatprep.subr.mxu0 0.0
        %9177 = vmatpush1.msra.mxu0 0.0
        %9178 = vmatprep.subr.mxu0 0.0
        %9179 = vmatpush1.msra.mxu0 0.0
        %9180 = vmatprep.subr.mxu0 0.0
        %9181 = vmatpush1.msra.mxu0 0.0
        %9182 = vmatprep.subr.mxu0 0.0
        %9183 = vmatpush1.msra.mxu0 0.0
        %9184 = vmatprep.subr.mxu0 0.0
        %9185 = vmatpush1.msra.mxu0 0.0
        %9186 = vmatprep.subr.mxu0 0.0
        %9187 = vmatpush1.msra.mxu0 0.0
        %9188 = vmatprep.subr.mxu0 0.0
        %9189 = vmatpush1.msra.mxu0 0.0
        %9190 = vmatprep.subr.mxu0 0.0
        %9191 = vmatpush1.msra.mxu0 0.0
        %9192 = vmatprep.subr.mxu0 0.0
        %9193 = vmatpush1.msra.mxu0 0.0
        %9194 = vmatprep.subr.mxu0 0.0
        %9195 = vmatpush1.msra.mxu0 0.0
        %9196 = vmatprep.subr.mxu0 0.0
        %9197 = vmatpush1.msra.mxu0 0.0
        %9198 = vmatprep.subr.mxu0 0.0
        %9199 = vmatpush1.msra.mxu0 0.0
        %9200 = vmatprep.subr.mxu0 0.0
        %9201 = vmatpush1.msra.mxu0 0.0
        %9202 = vmatprep.subr.mxu0 0.0
        %9203 = vmatpush1.msra.mxu0 0.0
        %9204 = vmatprep.subr.mxu0 0.0
        %9205 = vmatpush1.msra.mxu0 0.0
        %9206 = vmatprep.subr.mxu0 0.0
        %9207 = vmatpush1.msra.mxu0 0.0
        %9208 = vmatprep.subr.mxu0 0.0
        %9209 = vmatpush1.msra.mxu0 0.0
        %9210 = vmatprep.subr.mxu0 0.0
        %9211 = vmatpush1.msra.mxu0 0.0
        %9212 = vmatprep.subr.mxu0 0.0
        %9213 = vmatpush1.msra.mxu0 0.0
        %9214 = vmatprep.subr.mxu0 0.0
        %9215 = vmatpush1.msra.mxu0 0.0
        %9216 = vmatprep.subr.mxu0 0.0
        %9217 = vmatpush1.msra.mxu0 0.0
        %9218 = vmatprep.subr.mxu0 0.0
        %9219 = vmatpush1.msra.mxu0 0.0
        %9220 = vmatprep.subr.mxu0 0.0
        %9221 = vmatpush1.msra.mxu0 0.0
        %9222 = vmatprep.subr.mxu0 0.0
        %9223 = vmatpush1.msra.mxu0 0.0
        %9224 = vmatprep.subr.mxu0 0.0
        %9225 = vmatpush1.msra.mxu0 0.0
        %9226 = vmatprep.subr.mxu0 0.0
        %9227 = vmatpush1.msra.mxu0 0.0
        %9228 = vmatprep.subr.mxu0 0.0
        %9229 = vmatpush1.msra.mxu0 0.0
        %9230 = vmatprep.subr.mxu0 0.0
        %9231 = vmatpush1.msra.mxu0 0.0
        %9232 = vmatprep.mubr.f32.mxu0 0.0
        %9233 = vmatmul.mubr.f32.gmra.mrb[0].mxu0 %v9008
        %v9234 = vpop.f32.mrb[0].mxu0
        %v9235 = vadd.f32 0.0, %v9234
        %v9236 = vpop.f32.mrb[0].mxu0
        %v9237 = vadd.f32 0.0, %v9236
        %9238 = vdwg.mxu0
        %9239 = vmatprep.subr.mxu0 %v9024
        %9240 = vmatpush1.msra.mxu0 %v9022
        %9241 = vmatprep.subr.mxu0 0.0
        %9242 = vmatpush1.msra.mxu0 0.0
        %9243 = vmatprep.subr.mxu0 0.0
        %9244 = vmatpush1.msra.mxu0 0.0
        %9245 = vmatprep.subr.mxu0 0.0
        %9246 = vmatpush1.msra.mxu0 0.0
        %9247 = vmatprep.subr.mxu0 0.0
        %9248 = vmatpush1.msra.mxu0 0.0
        %9249 = vmatprep.subr.mxu0 0.0
        %9250 = vmatpush1.msra.mxu0 0.0
        %9251 = vmatprep.subr.mxu0 0.0
        %9252 = vmatpush1.msra.mxu0 0.0
        %9253 = vmatprep.subr.mxu0 0.0
        %9254 = vmatpush1.msra.mxu0 0.0
        %9255 = vmatprep.subr.mxu0 0.0
        %9256 = vmatpush1.msra.mxu0 0.0
        %9257 = vmatprep.subr.mxu0 0.0
        %9258 = vmatpush1.msra.mxu0 0.0
        %9259 = vmatprep.subr.mxu0 0.0
        %9260 = vmatpush1.msra.mxu0 0.0
        %9261 = vmatprep.subr.mxu0 0.0
        %9262 = vmatpush1.msra.mxu0 0.0
        %9263 = vmatprep.subr.mxu0 0.0
        %9264 = vmatpush1.msra.mxu0 0.0
        %9265 = vmatprep.subr.mxu0 0.0
        %9266 = vmatpush1.msra.mxu0 0.0
        %9267 = vmatprep.subr.mxu0 0.0
        %9268 = vmatpush1.msra.mxu0 0.0
        %9269 = vmatprep.subr.mxu0 0.0
        %9270 = vmatpush1.msra.mxu0 0.0
        %9271 = vmatprep.subr.mxu0 0.0
        %9272 = vmatpush1.msra.mxu0 0.0
        %9273 = vmatprep.subr.mxu0 0.0
        %9274 = vmatpush1.msra.mxu0 0.0
        %9275 = vmatprep.subr.mxu0 0.0
        %9276 = vmatpush1.msra.mxu0 0.0
        %9277 = vmatprep.subr.mxu0 0.0
        %9278 = vmatpush1.msra.mxu0 0.0
        %9279 = vmatprep.subr.mxu0 0.0
        %9280 = vmatpush1.msra.mxu0 0.0
        %9281 = vmatprep.subr.mxu0 0.0
        %9282 = vmatpush1.msra.mxu0 0.0
        %9283 = vmatprep.subr.mxu0 0.0
        %9284 = vmatpush1.msra.mxu0 0.0
        %9285 = vmatprep.subr.mxu0 0.0
        %9286 = vmatpush1.msra.mxu0 0.0
        %9287 = vmatprep.subr.mxu0 0.0
        %9288 = vmatpush1.msra.mxu0 0.0
        %9289 = vmatprep.subr.mxu0 0.0
        %9290 = vmatpush1.msra.mxu0 0.0
        %9291 = vmatprep.subr.mxu0 0.0
        %9292 = vmatpush1.msra.mxu0 0.0
        %9293 = vmatprep.subr.mxu0 0.0
        %9294 = vmatpush1.msra.mxu0 0.0
        %9295 = vmatprep.subr.mxu0 0.0
        %9296 = vmatpush1.msra.mxu0 0.0
        %9297 = vmatprep.subr.mxu0 0.0
        %9298 = vmatpush1.msra.mxu0 0.0
        %9299 = vmatprep.subr.mxu0 0.0
        %9300 = vmatpush1.msra.mxu0 0.0
        %9301 = vmatprep.subr.mxu0 0.0
        %9302 = vmatpush1.msra.mxu0 0.0
        %9303 = vmatprep.mubr.f32.mxu0 0.0
        %9304 = vmatmul.mubr.f32.gmra.mrb[0].mxu0 %v9008
        %v9305 = vpop.f32.mrb[0].mxu0
        %v9306 = vadd.f32 0.0, %v9305
        %v9307 = vpop.f32.mrb[0].mxu0
        %v9308 = vadd.f32 0.0, %v9307
        %9309 = vdwg.mxu0
        %v9310 = vadd.f32 %v8956, %v9093
        %v9311 = vadd.f32 %v8957, %v9095
        %v9312 = vadd.f32 %v8958, %v9164
        %v9313 = vadd.f32 %v8959, %v9166
        %v9314 = vadd.f32 %v8960, %v9235
        %v9315 = vadd.f32 %v8961, %v9237
        %v9316 = vadd.f32 %v8962, %v9306
        %v9317 = vadd.f32 %v8963, %v9308
        %s9318 = scalar_lea.vmem %s1, 208
        %v9319 = vld [vmem:[%s9318] sm:$0xff]
        %v9320 = vld [vmem:[%s168 + $0x4] sm:$0xff]
        %v9321 = vld [vmem:[%s168 + $0xc] sm:$0xff]
        %v9322 = vld [vmem:[%s168 + $0x14] sm:$0xff]
        %v9323 = vld [vmem:[%s168 + $0x1c] sm:$0xff]
        %v9324 = vld [vmem:[%s168 + $0x24] sm:$0xf]
        %v9330 = vcombine.high %v9320, %v9320
        %v9331 = vcombine.high %v9321, %v9321
        %v9332 = vcombine.high %v9322, %v9322
        %v9333 = vcombine.high %v9323, %v9323
        %9334 = vrot.lane.b32.xlu0 %v9320, 34
        %v9335 = vpop.permute.xlu0 %9334
        %9336 = vrot.lane.b32.xlu0 %v9330, 34
        %v9337 = vpop.permute.xlu0 %9336
        %9338 = vrot.lane.b32.xlu0 %v9321, 34
        %v9339 = vpop.permute.xlu0 %9338
        %9340 = vrot.lane.b32.xlu0 %v9331, 34
        %v9341 = vpop.permute.xlu0 %9340
        %9342 = vrot.lane.b32.xlu0 %v9322, 34
        %v9343 = vpop.permute.xlu0 %9342
        %9344 = vrot.lane.b32.xlu0 %v9332, 34
        %v9345 = vpop.permute.xlu0 %9344
        %9346 = vrot.lane.b32.xlu0 %v9323, 34
        %v9347 = vpop.permute.xlu0 %9346
        %9348 = vrot.lane.b32.xlu0 %v9333, 34
        %v9349 = vpop.permute.xlu0 %9348
        %9350 = vrot.lane.b32.xlu0 %v9324, 34
        %v9351 = vpop.permute.xlu0 %9350
        %vm9352 = vcmask 277504
        %v9353 = vsel %vm9352, %v9335, %v9337
        %v9354 = vsel %vm9352, %v9337, %v9339
        %v9355 = vsel %vm9352, %v9339, %v9341
        %v9356 = vsel %vm9352, %v9341, %v9343
        %v9357 = vsel %vm9352, %v9343, %v9345
        %v9358 = vsel %vm9352, %v9345, %v9347
        %v9359 = vsel %vm9352, %v9347, %v9349
        %v9360 = vsel %vm9352, %v9349, %v9351
        %v9362 = vsel %vm214, %v9319, 0
        %v9364 = vsel %vm218, %v9353, 0
        %v9366 = vsel %vm218, %v9354, 0
        %v9368 = vsel %vm218, %v9355, 0
        %v9370 = vsel %vm218, %v9356, 0
        %v9372 = vsel %vm218, %v9357, 0
        %v9374 = vsel %vm218, %v9358, 0
        %v9376 = vsel %vm218, %v9359, 0
        %v9378 = vsel %vm218, %v9360, 0
        %9380 = vmatprep.subr.mxu0 %v9366
        %9381 = vmatpush1.msra.mxu0 %v9364
        %9382 = vmatprep.subr.mxu0 0.0
        %9383 = vmatpush1.msra.mxu0 0.0
        %9384 = vmatprep.subr.mxu0 0.0
        %9385 = vmatpush1.msra.mxu0 0.0
        %9386 = vmatprep.subr.mxu0 0.0
        %9387 = vmatpush1.msra.mxu0 0.0
        %9388 = vmatprep.subr.mxu0 0.0
        %9389 = vmatpush1.msra.mxu0 0.0
        %9390 = vmatprep.subr.mxu0 0.0
        %9391 = vmatpush1.msra.mxu0 0.0
        %9392 = vmatprep.subr.mxu0 0.0
        %9393 = vmatpush1.msra.mxu0 0.0
        %9394 = vmatprep.subr.mxu0 0.0
        %9395 = vmatpush1.msra.mxu0 0.0
        %9396 = vmatprep.subr.mxu0 0.0
        %9397 = vmatpush1.msra.mxu0 0.0
        %9398 = vmatprep.subr.mxu0 0.0
        %9399 = vmatpush1.msra.mxu0 0.0
        %9400 = vmatprep.subr.mxu0 0.0
        %9401 = vmatpush1.msra.mxu0 0.0
        %9402 = vmatprep.subr.mxu0 0.0
        %9403 = vmatpush1.msra.mxu0 0.0
        %9404 = vmatprep.subr.mxu0 0.0
        %9405 = vmatpush1.msra.mxu0 0.0
        %9406 = vmatprep.subr.mxu0 0.0
        %9407 = vmatpush1.msra.mxu0 0.0
        %9408 = vmatprep.subr.mxu0 0.0
        %9409 = vmatpush1.msra.mxu0 0.0
        %9410 = vmatprep.subr.mxu0 0.0
        %9411 = vmatpush1.msra.mxu0 0.0
        %9412 = vmatprep.subr.mxu0 0.0
        %9413 = vmatpush1.msra.mxu0 0.0
        %9414 = vmatprep.subr.mxu0 0.0
        %9415 = vmatpush1.msra.mxu0 0.0
        %9416 = vmatprep.subr.mxu0 0.0
        %9417 = vmatpush1.msra.mxu0 0.0
        %9418 = vmatprep.subr.mxu0 0.0
        %9419 = vmatpush1.msra.mxu0 0.0
        %9420 = vmatprep.subr.mxu0 0.0
        %9421 = vmatpush1.msra.mxu0 0.0
        %9422 = vmatprep.subr.mxu0 0.0
        %9423 = vmatpush1.msra.mxu0 0.0
        %9424 = vmatprep.subr.mxu0 0.0
        %9425 = vmatpush1.msra.mxu0 0.0
        %9426 = vmatprep.subr.mxu0 0.0
        %9427 = vmatpush1.msra.mxu0 0.0
        %9428 = vmatprep.subr.mxu0 0.0
        %9429 = vmatpush1.msra.mxu0 0.0
        %9430 = vmatprep.subr.mxu0 0.0
        %9431 = vmatpush1.msra.mxu0 0.0
        %9432 = vmatprep.subr.mxu0 0.0
        %9433 = vmatpush1.msra.mxu0 0.0
        %9434 = vmatprep.subr.mxu0 0.0
        %9435 = vmatpush1.msra.mxu0 0.0
        %9436 = vmatprep.subr.mxu0 0.0
        %9437 = vmatpush1.msra.mxu0 0.0
        %9438 = vmatprep.subr.mxu0 0.0
        %9439 = vmatpush1.msra.mxu0 0.0
        %9440 = vmatprep.subr.mxu0 0.0
        %9441 = vmatpush1.msra.mxu0 0.0
        %9442 = vmatprep.subr.mxu0 0.0
        %9443 = vmatpush1.msra.mxu0 0.0
        %9444 = vmatprep.mubr.f32.mxu0 0.0
        %9445 = vmatmul.mubr.f32.gmra.mrb[0].mxu0 %v9362
        %v9446 = vpop.f32.mrb[0].mxu0
        %v9447 = vadd.f32 0.0, %v9446
        %v9448 = vpop.f32.mrb[0].mxu0
        %v9449 = vadd.f32 0.0, %v9448
        %9450 = vdwg.mxu0
        %9451 = vmatprep.subr.mxu0 %v9370
        %9452 = vmatpush1.msra.mxu0 %v9368
        %9453 = vmatprep.subr.mxu0 0.0
        %9454 = vmatpush1.msra.mxu0 0.0
        %9455 = vmatprep.subr.mxu0 0.0
        %9456 = vmatpush1.msra.mxu0 0.0
        %9457 = vmatprep.subr.mxu0 0.0
        %9458 = vmatpush1.msra.mxu0 0.0
        %9459 = vmatprep.subr.mxu0 0.0
        %9460 = vmatpush1.msra.mxu0 0.0
        %9461 = vmatprep.subr.mxu0 0.0
        %9462 = vmatpush1.msra.mxu0 0.0
        %9463 = vmatprep.subr.mxu0 0.0
        %9464 = vmatpush1.msra.mxu0 0.0
        %9465 = vmatprep.subr.mxu0 0.0
        %9466 = vmatpush1.msra.mxu0 0.0
        %9467 = vmatprep.subr.mxu0 0.0
        %9468 = vmatpush1.msra.mxu0 0.0
        %9469 = vmatprep.subr.mxu0 0.0
        %9470 = vmatpush1.msra.mxu0 0.0
        %9471 = vmatprep.subr.mxu0 0.0
        %9472 = vmatpush1.msra.mxu0 0.0
        %9473 = vmatprep.subr.mxu0 0.0
        %9474 = vmatpush1.msra.mxu0 0.0
        %9475 = vmatprep.subr.mxu0 0.0
        %9476 = vmatpush1.msra.mxu0 0.0
        %9477 = vmatprep.subr.mxu0 0.0
        %9478 = vmatpush1.msra.mxu0 0.0
        %9479 = vmatprep.subr.mxu0 0.0
        %9480 = vmatpush1.msra.mxu0 0.0
        %9481 = vmatprep.subr.mxu0 0.0
        %9482 = vmatpush1.msra.mxu0 0.0
        %9483 = vmatprep.subr.mxu0 0.0
        %9484 = vmatpush1.msra.mxu0 0.0
        %9485 = vmatprep.subr.mxu0 0.0
        %9486 = vmatpush1.msra.mxu0 0.0
        %9487 = vmatprep.subr.mxu0 0.0
        %9488 = vmatpush1.msra.mxu0 0.0
        %9489 = vmatprep.subr.mxu0 0.0
        %9490 = vmatpush1.msra.mxu0 0.0
        %9491 = vmatprep.subr.mxu0 0.0
        %9492 = vmatpush1.msra.mxu0 0.0
        %9493 = vmatprep.subr.mxu0 0.0
        %9494 = vmatpush1.msra.mxu0 0.0
        %9495 = vmatprep.subr.mxu0 0.0
        %9496 = vmatpush1.msra.mxu0 0.0
        %9497 = vmatprep.subr.mxu0 0.0
        %9498 = vmatpush1.msra.mxu0 0.0
        %9499 = vmatprep.subr.mxu0 0.0
        %9500 = vmatpush1.msra.mxu0 0.0
        %9501 = vmatprep.subr.mxu0 0.0
        %9502 = vmatpush1.msra.mxu0 0.0
        %9503 = vmatprep.subr.mxu0 0.0
        %9504 = vmatpush1.msra.mxu0 0.0
        %9505 = vmatprep.subr.mxu0 0.0
        %9506 = vmatpush1.msra.mxu0 0.0
        %9507 = vmatprep.subr.mxu0 0.0
        %9508 = vmatpush1.msra.mxu0 0.0
        %9509 = vmatprep.subr.mxu0 0.0
        %9510 = vmatpush1.msra.mxu0 0.0
        %9511 = vmatprep.subr.mxu0 0.0
        %9512 = vmatpush1.msra.mxu0 0.0
        %9513 = vmatprep.subr.mxu0 0.0
        %9514 = vmatpush1.msra.mxu0 0.0
        %9515 = vmatprep.mubr.f32.mxu0 0.0
        %9516 = vmatmul.mubr.f32.gmra.mrb[0].mxu0 %v9362
        %v9517 = vpop.f32.mrb[0].mxu0
        %v9518 = vadd.f32 0.0, %v9517
        %v9519 = vpop.f32.mrb[0].mxu0
        %v9520 = vadd.f32 0.0, %v9519
        %9521 = vdwg.mxu0
        %9522 = vmatprep.subr.mxu0 %v9374
        %9523 = vmatpush1.msra.mxu0 %v9372
        %9524 = vmatprep.subr.mxu0 0.0
        %9525 = vmatpush1.msra.mxu0 0.0
        %9526 = vmatprep.subr.mxu0 0.0
        %9527 = vmatpush1.msra.mxu0 0.0
        %9528 = vmatprep.subr.mxu0 0.0
        %9529 = vmatpush1.msra.mxu0 0.0
        %9530 = vmatprep.subr.mxu0 0.0
        %9531 = vmatpush1.msra.mxu0 0.0
        %9532 = vmatprep.subr.mxu0 0.0
        %9533 = vmatpush1.msra.mxu0 0.0
        %9534 = vmatprep.subr.mxu0 0.0
        %9535 = vmatpush1.msra.mxu0 0.0
        %9536 = vmatprep.subr.mxu0 0.0
        %9537 = vmatpush1.msra.mxu0 0.0
        %9538 = vmatprep.subr.mxu0 0.0
        %9539 = vmatpush1.msra.mxu0 0.0
        %9540 = vmatprep.subr.mxu0 0.0
        %9541 = vmatpush1.msra.mxu0 0.0
        %9542 = vmatprep.subr.mxu0 0.0
        %9543 = vmatpush1.msra.mxu0 0.0
        %9544 = vmatprep.subr.mxu0 0.0
        %9545 = vmatpush1.msra.mxu0 0.0
        %9546 = vmatprep.subr.mxu0 0.0
        %9547 = vmatpush1.msra.mxu0 0.0
        %9548 = vmatprep.subr.mxu0 0.0
        %9549 = vmatpush1.msra.mxu0 0.0
        %9550 = vmatprep.subr.mxu0 0.0
        %9551 = vmatpush1.msra.mxu0 0.0
        %9552 = vmatprep.subr.mxu0 0.0
        %9553 = vmatpush1.msra.mxu0 0.0
        %9554 = vmatprep.subr.mxu0 0.0
        %9555 = vmatpush1.msra.mxu0 0.0
        %9556 = vmatprep.subr.mxu0 0.0
        %9557 = vmatpush1.msra.mxu0 0.0
        %9558 = vmatprep.subr.mxu0 0.0
        %9559 = vmatpush1.msra.mxu0 0.0
        %9560 = vmatprep.subr.mxu0 0.0
        %9561 = vmatpush1.msra.mxu0 0.0
        %9562 = vmatprep.subr.mxu0 0.0
        %9563 = vmatpush1.msra.mxu0 0.0
        %9564 = vmatprep.subr.mxu0 0.0
        %9565 = vmatpush1.msra.mxu0 0.0
        %9566 = vmatprep.subr.mxu0 0.0
        %9567 = vmatpush1.msra.mxu0 0.0
        %9568 = vmatprep.subr.mxu0 0.0
        %9569 = vmatpush1.msra.mxu0 0.0
        %9570 = vmatprep.subr.mxu0 0.0
        %9571 = vmatpush1.msra.mxu0 0.0
        %9572 = vmatprep.subr.mxu0 0.0
        %9573 = vmatpush1.msra.mxu0 0.0
        %9574 = vmatprep.subr.mxu0 0.0
        %9575 = vmatpush1.msra.mxu0 0.0
        %9576 = vmatprep.subr.mxu0 0.0
        %9577 = vmatpush1.msra.mxu0 0.0
        %9578 = vmatprep.subr.mxu0 0.0
        %9579 = vmatpush1.msra.mxu0 0.0
        %9580 = vmatprep.subr.mxu0 0.0
        %9581 = vmatpush1.msra.mxu0 0.0
        %9582 = vmatprep.subr.mxu0 0.0
        %9583 = vmatpush1.msra.mxu0 0.0
        %9584 = vmatprep.subr.mxu0 0.0
        %9585 = vmatpush1.msra.mxu0 0.0
        %9586 = vmatprep.mubr.f32.mxu0 0.0
        %9587 = vmatmul.mubr.f32.gmra.mrb[0].mxu0 %v9362
        %v9588 = vpop.f32.mrb[0].mxu0
        %v9589 = vadd.f32 0.0, %v9588
        %v9590 = vpop.f32.mrb[0].mxu0
        %v9591 = vadd.f32 0.0, %v9590
        %9592 = vdwg.mxu0
        %9593 = vmatprep.subr.mxu0 %v9378
        %9594 = vmatpush1.msra.mxu0 %v9376
        %9595 = vmatprep.subr.mxu0 0.0
        %9596 = vmatpush1.msra.mxu0 0.0
        %9597 = vmatprep.subr.mxu0 0.0
        %9598 = vmatpush1.msra.mxu0 0.0
        %9599 = vmatprep.subr.mxu0 0.0
        %9600 = vmatpush1.msra.mxu0 0.0
        %9601 = vmatprep.subr.mxu0 0.0
        %9602 = vmatpush1.msra.mxu0 0.0
        %9603 = vmatprep.subr.mxu0 0.0
        %9604 = vmatpush1.msra.mxu0 0.0
        %9605 = vmatprep.subr.mxu0 0.0
        %9606 = vmatpush1.msra.mxu0 0.0
        %9607 = vmatprep.subr.mxu0 0.0
        %9608 = vmatpush1.msra.mxu0 0.0
        %9609 = vmatprep.subr.mxu0 0.0
        %9610 = vmatpush1.msra.mxu0 0.0
        %9611 = vmatprep.subr.mxu0 0.0
        %9612 = vmatpush1.msra.mxu0 0.0
        %9613 = vmatprep.subr.mxu0 0.0
        %9614 = vmatpush1.msra.mxu0 0.0
        %9615 = vmatprep.subr.mxu0 0.0
        %9616 = vmatpush1.msra.mxu0 0.0
        %9617 = vmatprep.subr.mxu0 0.0
        %9618 = vmatpush1.msra.mxu0 0.0
        %9619 = vmatprep.subr.mxu0 0.0
        %9620 = vmatpush1.msra.mxu0 0.0
        %9621 = vmatprep.subr.mxu0 0.0
        %9622 = vmatpush1.msra.mxu0 0.0
        %9623 = vmatprep.subr.mxu0 0.0
        %9624 = vmatpush1.msra.mxu0 0.0
        %9625 = vmatprep.subr.mxu0 0.0
        %9626 = vmatpush1.msra.mxu0 0.0
        %9627 = vmatprep.subr.mxu0 0.0
        %9628 = vmatpush1.msra.mxu0 0.0
        %9629 = vmatprep.subr.mxu0 0.0
        %9630 = vmatpush1.msra.mxu0 0.0
        %9631 = vmatprep.subr.mxu0 0.0
        %9632 = vmatpush1.msra.mxu0 0.0
        %9633 = vmatprep.subr.mxu0 0.0
        %9634 = vmatpush1.msra.mxu0 0.0
        %9635 = vmatprep.subr.mxu0 0.0
        %9636 = vmatpush1.msra.mxu0 0.0
        %9637 = vmatprep.subr.mxu0 0.0
        %9638 = vmatpush1.msra.mxu0 0.0
        %9639 = vmatprep.subr.mxu0 0.0
        %9640 = vmatpush1.msra.mxu0 0.0
        %9641 = vmatprep.subr.mxu0 0.0
        %9642 = vmatpush1.msra.mxu0 0.0
        %9643 = vmatprep.subr.mxu0 0.0
        %9644 = vmatpush1.msra.mxu0 0.0
        %9645 = vmatprep.subr.mxu0 0.0
        %9646 = vmatpush1.msra.mxu0 0.0
        %9647 = vmatprep.subr.mxu0 0.0
        %9648 = vmatpush1.msra.mxu0 0.0
        %9649 = vmatprep.subr.mxu0 0.0
        %9650 = vmatpush1.msra.mxu0 0.0
        %9651 = vmatprep.subr.mxu0 0.0
        %9652 = vmatpush1.msra.mxu0 0.0
        %9653 = vmatprep.subr.mxu0 0.0
        %9654 = vmatpush1.msra.mxu0 0.0
        %9655 = vmatprep.subr.mxu0 0.0
        %9656 = vmatpush1.msra.mxu0 0.0
        %9657 = vmatprep.mubr.f32.mxu0 0.0
        %9658 = vmatmul.mubr.f32.gmra.mrb[0].mxu0 %v9362
        %v9659 = vpop.f32.mrb[0].mxu0
        %v9660 = vadd.f32 0.0, %v9659
        %v9661 = vpop.f32.mrb[0].mxu0
        %v9662 = vadd.f32 0.0, %v9661
        %9663 = vdwg.mxu0
        %v9664 = vadd.f32 %v9310, %v9447
        %v9665 = vadd.f32 %v9311, %v9449
        %v9666 = vadd.f32 %v9312, %v9518
        %v9667 = vadd.f32 %v9313, %v9520
        %v9668 = vadd.f32 %v9314, %v9589
        %v9669 = vadd.f32 %v9315, %v9591
        %v9670 = vadd.f32 %v9316, %v9660
        %v9671 = vadd.f32 %v9317, %v9662
        %9673 = vset.pattern.permute.xlu0 0
        %9674 = vperm.xlu0 %9673, %v169
        %v9675 = vpop.permute.xlu0 %9674
        %v9677 = vadd.f32 %v9664, %v9675
        %v9678 = vadd.f32 %v9665, %v9675
        %v9679 = vadd.f32 %v9666, %v9675
        %v9680 = vadd.f32 %v9667, %v9675
        %v9681 = vadd.f32 %v9668, %v9675
        %v9682 = vadd.f32 %v9669, %v9675
        %v9683 = vadd.f32 %v9670, %v9675
        %v9684 = vadd.f32 %v9671, %v9675
        %9685 = vst [vmem:[%s163] sm:$0xff] %v9677
        %9686 = vst [vmem:[%s163 + $0x8] sm:$0xff] %v9678
        %9687 = vst [vmem:[%s163 + $0x10] sm:$0xff] %v9679
        %9688 = vst [vmem:[%s163 + $0x18] sm:$0xff] %v9680
        %9689 = vst [vmem:[%s163 + $0x20] sm:$0xff] %v9681
        %9690 = vst [vmem:[%s163 + $0x28] sm:$0xff] %v9682
        %9691 = vst [vmem:[%s163 + $0x30] sm:$0xff] %v9683
        %9692 = vst [vmem:[%s163 + $0x38] sm:$0xff] %v9684
        %s9693 = sand.u32 %s93, 1
        %s9694 = scalar_lea.sflag [#allocation3], %s9693
        %s9695 = sand.u32 %s93, 1
        %s9696 = smul.addr %s9695, 64
        %s9697 = scalar_lea.vmem [#allocation2], %s9696
        // Predicated region
        $region33: #{tpu_custom_call.1} parent=31 // pred_check
          %p9698 = pneg %p103
        $region34: #{tpu_custom_call.1} parent=31 // pred_check_branch
          %9700 = sbr.rel (%p9698) target = $region36
        $region35: #{tpu_custom_call.1} parent=31 // pred_region
          %s9702 = ssub.s32 1024, 1024
          %9703 = vsyncadd %s9694, %s9702
          %s9704 = smul.addr %s17, 8
          %s9705 = smul.addr %s9704, 128
          %s9706 = scalar_lea.hbm %s3, %s9705
          %s9708 = sshll.u32 %s9697, 4
          %s9709 = int_to_ptr.vmem [resolvable:$true] %s9708
          %9711 = dma.vmem_to_hbm [thread:$0]  %s9709, 1024, %s9706, %s9694
        $region36: #{tpu_custom_call.1} parent=31 // pred_fallthru
          _
      $region32: #{tpu_custom_call.1} parent=5 // pred_fallthru
        _
      %p9712 = scmp.le.s32.totalorder 2, %s12
      // Predicated region
      $region37: #{tpu_custom_call.1} parent=5 // pred_check
        %p9713 = pneg %p9712
      $region38: #{tpu_custom_call.1} parent=5 // pred_check_branch
        %9715 = sbr.rel (%p9713) target = $region40
      $region39: #{tpu_custom_call.1} parent=5 // pred_region
        %s9716 = ssub.s32 %s12, 2
        // Predicated region
        $region41: #{tpu_custom_call.1} parent=39 // pred_check
          %p9717 = pneg %p109
        $region42: #{tpu_custom_call.1} parent=39 // pred_check_branch
          %9719 = sbr.rel (%p9717) target = $region44
        $region43: #{tpu_custom_call.1} parent=39 // pred_region
          %s9720 = sand.u32 %s94, 1
          %s9721 = scalar_lea.sflag [#allocation3], %s9720
          %s9722 = sand.u32 %s94, 1
          %s9723 = smul.addr %s9722, 64
          %s9724 = scalar_lea.vmem [#allocation2], %s9723
          %9725 = dma.done %s9721, 1024
        $region44: #{tpu_custom_call.1} parent=39 // pred_fallthru
          _
      $region40: #{tpu_custom_call.1} parent=5 // pred_fallthru
        _
    $region6: #{tpu_custom_call.1} parent=1 // loop_footer
      %s16 = sadd.s32 1, %s12
    $region7: #{tpu_custom_call.1} parent=1 // loop_footer_branch
      %11 = sbr.rel target = $region3
    $region8: #{tpu_custom_call.1} parent=1 // loop_exit
      _
    %9726 = vsyncpa [#allocation3], 1
    %s9727 = scalar_lea.sflag [#allocation3], 1
    %9728 = vsyncpa %s9727, 1

</llo_original>
